<compile_context>
chip_gen: v7x
topology: tpu7x:2x2x1
jax: 0.10.0
libtpu: 0.0.40
codegen_flags: <defaults>
</compile_context>

<pallas_src>
import functools
import math

import jax
import jax.numpy as jnp
from jax.experimental import pallas as pl
from jax.experimental.pallas import tpu as pltpu


# ----------------------------------------------------------------------------
# helpers
# ----------------------------------------------------------------------------
def _round_up(n, m):
    return ((n + m - 1) // m) * m


def _pad_last2(x, d1, d2):
    pads = [(0, 0)] * x.ndim
    pads[-2] = (0, d1 - x.shape[-2])
    pads[-1] = (0, d2 - x.shape[-1])
    return jnp.pad(x, pads)


def _pick_fc1_tile(k_total, d1, itemsize=2, budget=6 * 1024 * 1024):
    """Largest divisor of k_total that is a multiple of 128 and whose weight
    block (tk x d1) fits the per-buffer budget (works on v5e/v6e/v7x)."""
    candidates = [d for d in range(128, k_total + 1, 128) if k_total % d == 0]
    if not candidates:
        return k_total
    fitting = [d for d in candidates if d * d1 * itemsize <= budget]
    return max(fitting) if fitting else min(candidates)


def _pick_graphs_per_step(batch, max_g=8):
    """Largest G <= max_g dividing batch while keeping grid length >= 2
    (so the fused stack can shard across v7x's two TensorCores)."""
    best = 1
    for g in range(1, min(max_g, batch) + 1):
        if batch % g == 0 and batch // g >= 2:
            best = g
    return best


def make_config(node_num, num_features, plm_num, hidden,
                param_dtype=jnp.bfloat16):
    np_ = _round_up(node_num, 8)
    hp = _round_up(hidden, 128)
    fp = _round_up(num_features, 128)
    pp = _round_up(plm_num, 128)
    d1p = _round_up(4 * hidden, 128)
    k_total = node_num * 4 * hp          # fc1 contraction over VALID nodes only
    tk = _pick_fc1_tile(k_total, d1p)
    return dict(node_num=node_num, node_num_pad=np_,
                hidden=hidden, hidden_pad=hp,
                num_features=num_features, num_features_pad=fp,
                plm_num=plm_num, plm_num_pad=pp,
                d1_pad=d1p, fc1_k=k_total, fc1_tile_k=tk,
                param_dtype=param_dtype)


# ----------------------------------------------------------------------------
# Fused per-graph attention stack: grid = (B // G,), G graphs per step.
# ----------------------------------------------------------------------------
def _fused_stack_kernel(plm_ref, node_ref, adj_ref,
                        plm_w_ref, plm_b_ref, plm_g_ref, plm_bt_ref,
                        ge_w_ref, ge_b_ref,
                        ga_wqkv_ref, ga_bqkv_ref, ga_wo_ref, ga_bo_ref,
                        gln_g_ref, gln_b_ref,
                        gh_w_ref, gh_b_ref,
                        sa_wqkv_ref, sa_bqkv_ref, sa_wo_ref, sa_bo_ref,
                        co_wqkv_ref, co_bqkv_ref, co_wo_ref, co_bo_ref,
                        out_ref, *, n_valid, h_valid, f_valid):
    G, NP, PP = plm_ref.shape
    HP = plm_w_ref.shape[1]
    FP = ge_w_ref.shape[1]
    M = G * NP
    scale_h = 1.0 / math.sqrt(h_valid)
    scale_f = 1.0 / math.sqrt(f_valid)

    def mm(x, w_ref, b_ref):
        y = jnp.dot(x.astype(w_ref.dtype), w_ref[...],
                    preferred_element_type=jnp.float32)
        return y + b_ref[...]

    def layer_norm(x, g_ref, b_ref, d_valid):
        d_pad = x.shape[-1]
        inv_d = 1.0 / d_valid
        # padded lanes of x are exactly zero, so the plain sum is the valid sum
        mean = jnp.sum(x, axis=-1, keepdims=True) * inv_d
        diff = x - mean
        if d_valid != d_pad:
            lane = jax.lax.broadcasted_iota(jnp.int32, x.shape, x.ndim - 1)
            diff = jnp.where(lane < d_valid, diff, 0.0)
        var = jnp.sum(diff * diff, axis=-1, keepdims=True) * inv_d
        xn = (x - mean) * jax.lax.rsqrt(var + 1e-5)
        # gamma / beta are zero-padded -> padded lanes stay exactly zero
        return xn * g_ref[...] + b_ref[...]

    if n_valid != NP:
        key_mask = (jax.lax.broadcasted_iota(jnp.int32, (1, NP, NP), 2) < n_valid)
    else:
        key_mask = None

    def attn(q, k, v, scale, mask):
        # q, k, v: (G, NP, D) bf16; scores / softmax in f32
        s = jnp.einsum('bqd,bkd->bqk', q, k,
                       preferred_element_type=jnp.float32) * scale
        if mask is not None:
            s = jnp.where(mask, s, jnp.float32(-1e30))
        s = s - jnp.max(s, axis=-1, keepdims=True)
        p = jnp.exp(s)
        p = p * pl.reciprocal(jnp.sum(p, axis=-1, keepdims=True), approx=True)
        return jnp.einsum('bqk,bkd->bqd', p.astype(v.dtype), v,
                          preferred_element_type=jnp.float32)

    def split_qkv(qkv, d):
        q3 = qkv.astype(jnp.bfloat16)
        return (q3[:, :d].reshape(G, NP, d),
                q3[:, d:2 * d].reshape(G, NP, d),
                q3[:, 2 * d:].reshape(G, NP, d))

    # ---- PLM branch: Linear + LayerNorm (fused) -----------------------------
    plm = layer_norm(mm(plm_ref[...].reshape(M, PP), plm_w_ref, plm_b_ref),
                     plm_g_ref, plm_bt_ref, h_valid)                  # (M, HP)

    # ---- Graph branch --------------------------------------------------------
    # TODO(synk): dense masked-attention stand-in for the DGL GraphTransformerNet.
    gh = mm(node_ref[...].reshape(M, FP), ge_w_ref, ge_b_ref)         # (M, FP)
    qg, kg, vg = split_qkv(mm(gh, ga_wqkv_ref, ga_bqkv_ref), FP)
    adj_mask = adj_ref[...] > 0.0                                     # (G, NP, NP)
    ctx_g = attn(qg, kg, vg, scale_f, adj_mask).reshape(M, FP)
    graph_out = layer_norm(gh + mm(ctx_g, ga_wo_ref, ga_bo_ref),
                           gln_g_ref, gln_b_ref, f_valid)
    graph_proj = mm(graph_out, gh_w_ref, gh_b_ref)                    # (M, HP)

    # ---- Shared self-attention on each stream (no concats) ------------------
    def self_attn(x):
        q, k, v = split_qkv(mm(x, sa_wqkv_ref, sa_bqkv_ref), HP)
        ctx = attn(q, k, v, scale_h, key_mask).reshape(M, HP)
        return mm(ctx, sa_wo_ref, sa_bo_ref)

    plm_sa = self_attn(plm)                                           # (M, HP)
    graph_sa = self_attn(graph_proj)                                  # (M, HP)

    # ---- Shared cross-attention, both directions -----------------------------
    qp, kp, vp = split_qkv(mm(plm_sa, co_wqkv_ref, co_bqkv_ref), HP)
    qg2, kg2, vg2 = split_qkv(mm(graph_sa, co_wqkv_ref, co_bqkv_ref), HP)
    co1 = mm(attn(qp, kg2, vg2, scale_h, key_mask).reshape(M, HP),
             co_wo_ref, co_bo_ref)          # Q = plm_sa,   K/V = graph_sa
    co2 = mm(attn(qg2, kp, vp, scale_h, key_mask).reshape(M, HP),
             co_wo_ref, co_bo_ref)          # Q = graph_sa, K/V = plm_sa

    # ---- direct lane-slice stores (no final concatenate) ---------------------
    dt = out_ref.dtype
    out_ref[:, :, 0 * HP:1 * HP] = co1.reshape(G, NP, HP).astype(dt)
    out_ref[:, :, 1 * HP:2 * HP] = co2.reshape(G, NP, HP).astype(dt)
    out_ref[:, :, 2 * HP:3 * HP] = plm.reshape(G, NP, HP).astype(dt)
    out_ref[:, :, 3 * HP:4 * HP] = graph_proj.reshape(G, NP, HP).astype(dt)


_W_ORDER = ("plm_head_w", "plm_head_b", "plm_ln_g", "plm_ln_b",
            "graph_embed_w", "graph_embed_b",
            "graph_attn_wqkv", "graph_attn_bqkv", "graph_attn_wo", "graph_attn_bo",
            "graph_ln_g", "graph_ln_b",
            "graph_head_w", "graph_head_b",
            "sa_wqkv", "sa_bqkv", "sa_wo", "sa_bo",
            "co_wqkv", "co_bqkv", "co_wo", "co_bo")


def fused_attention_stack(plm, node, adj, params, cfg):
    B, NP, PP = plm.shape
    FP = node.shape[-1]
    HP = cfg["hidden_pad"]
    G = _pick_graphs_per_step(B)
    w_vals = [params[k] for k in _W_ORDER]

    kern = functools.partial(_fused_stack_kernel,
                             n_valid=cfg["node_num"],
                             h_valid=cfg["hidden"],
                             f_valid=cfg["num_features"])
    in_specs = [
        pl.BlockSpec((G, NP, PP), lambda b: (b, 0, 0)),
        pl.BlockSpec((G, NP, FP), lambda b: (b, 0, 0)),
        pl.BlockSpec((G, NP, NP), lambda b: (b, 0, 0)),
    ] + [pl.BlockSpec(w.shape, lambda b: (0, 0)) for w in w_vals]

    return pl.pallas_call(
        kern,
        out_shape=jax.ShapeDtypeStruct((B, NP, 4 * HP), jnp.bfloat16),
        grid=(B // G,),
        in_specs=in_specs,
        out_specs=pl.BlockSpec((G, NP, 4 * HP), lambda b: (b, 0, 0)),
        compiler_params=pltpu.CompilerParams(
            dimension_semantics=("parallel",)),
    )(plm, node, adj, *w_vals)


# ----------------------------------------------------------------------------
# Fused MLP head: fc1 (K-tiled, VMEM accumulator) -> ReLU -> fc2 -> ReLU -> fc3
# ----------------------------------------------------------------------------
def _mlp_head_kernel(x_ref, w1_ref, b1_ref, w2_ref, b2_ref, w3_ref, b3_ref,
                     o_ref, acc_ref):
    k = pl.program_id(0)

    @pl.when(k == 0)
    def _():
        acc_ref[...] = jnp.zeros_like(acc_ref)

    w1 = w1_ref[...]
    acc_ref[...] += jnp.dot(x_ref[...].astype(w1.dtype), w1,
                            preferred_element_type=jnp.float32)

    @pl.when(k == pl.num_programs(0) - 1)
    def _():
        h1 = jnp.maximum(acc_ref[...] + b1_ref[...], 0.0)
        w2 = w2_ref[...]
        h2 = jnp.dot(h1.astype(w2.dtype), w2,
                     preferred_element_type=jnp.float32) + b2_ref[...]
        h2 = jnp.maximum(h2, 0.0)
        w3 = w3_ref[...]
        o_ref[...] = jnp.dot(h2.astype(w3.dtype), w3,
                             preferred_element_type=jnp.float32) + b3_ref[...]


def mlp_head(x, params, cfg):
    B, K = x.shape
    tk = cfg["fc1_tile_k"]
    assert K == cfg["fc1_k"] and K % tk == 0
    D1 = params["fc1_b"].shape[-1]
    DO = params["fc3_b"].shape[-1]
    return pl.pallas_call(
        _mlp_head_kernel,
        out_shape=jax.ShapeDtypeStruct((B, DO), jnp.float32),
        grid=(K // tk,),
        in_specs=[
            pl.BlockSpec((B, tk), lambda k: (0, k)),
            pl.BlockSpec((tk, D1), lambda k: (k, 0)),
            pl.BlockSpec((1, D1), lambda k: (0, 0)),
            pl.BlockSpec(params["fc2_w"].shape, lambda k: (0, 0)),
            pl.BlockSpec(params["fc2_b"].shape, lambda k: (0, 0)),
            pl.BlockSpec(params["fc3_w"].shape, lambda k: (0, 0)),
            pl.BlockSpec(params["fc3_b"].shape, lambda k: (0, 0)),
        ],
        out_specs=pl.BlockSpec((B, DO), lambda k: (0, 0)),
        scratch_shapes=[pltpu.VMEM((B, D1), jnp.float32)],
        compiler_params=pltpu.CompilerParams(
            dimension_semantics=("arbitrary",),
            vmem_limit_bytes=32 * 1024 * 1024),
    )(x, params["fc1_w"], params["fc1_b"], params["fc2_w"], params["fc2_b"],
      params["fc3_w"], params["fc3_b"])


# ----------------------------------------------------------------------------
# Parameter construction (deterministic, padded to lane-aligned shapes)
# ----------------------------------------------------------------------------
def init_params(key, cfg):
    N = cfg["node_num"]
    H, HP = cfg["hidden"], cfg["hidden_pad"]
    F, FP = cfg["num_features"], cfg["num_features_pad"]
    P, PP = cfg["plm_num"], cfg["plm_num_pad"]
    D1, D1P = 4 * H, cfg["d1_pad"]
    dtype = cfg["param_dtype"]
    keys = jax.random.split(key, 10)

    def xavier(k, din, dout):
        bound = math.sqrt(6.0 / (din + dout))
        return jax.random.uniform(k, (din, dout), jnp.float32, -bound, bound)

    def pad2(w, r, c):
        return jnp.pad(w, ((0, r - w.shape[0]), (0, c - w.shape[1])))

    def ln_params(d, dpad):
        g = jnp.pad(jnp.ones((1, d), jnp.float32), ((0, 0), (0, dpad - d)))
        return g, jnp.zeros((1, dpad), jnp.float32)

    def attn_packed(k, d, dpad):
        kq, kk, kv, ko = jax.random.split(k, 4)
        wq, wk, wv, wo = (xavier(kq, d, d), xavier(kk, d, d),
                          xavier(kv, d, d), xavier(ko, d, d))
        wqkv = jnp.concatenate([pad2(wq, dpad, dpad), pad2(wk, dpad, dpad),
                                pad2(wv, dpad, dpad)], axis=1).astype(dtype)
        return (wqkv, jnp.zeros((1, 3 * dpad), jnp.float32),
                pad2(wo, dpad, dpad).astype(dtype),
                jnp.zeros((1, dpad), jnp.float32))

    p = {}
    p["plm_head_w"] = pad2(xavier(keys[0], P, H), PP, HP).astype(dtype)
    p["plm_head_b"] = jnp.zeros((1, HP), jnp.float32)
    p["plm_ln_g"], p["plm_ln_b"] = ln_params(H, HP)

    # TODO(synk): stand-in parameters for the 6-layer DGL GraphTransformerNet.
    p["graph_embed_w"] = pad2(xavier(keys[1], F, F), FP, FP).astype(dtype)
    p["graph_embed_b"] = jnp.zeros((1, FP), jnp.float32)
    (p["graph_attn_wqkv"], p["graph_attn_bqkv"],
     p["graph_attn_wo"], p["graph_attn_bo"]) = attn_packed(keys[2], F, FP)
    p["graph_ln_g"], p["graph_ln_b"] = ln_params(F, FP)
    p["graph_head_w"] = pad2(xavier(keys[3], F, H), FP, HP).astype(dtype)
    p["graph_head_b"] = jnp.zeros((1, HP), jnp.float32)

    (p["sa_wqkv"], p["sa_bqkv"], p["sa_wo"], p["sa_bo"]) = attn_packed(keys[4], H, HP)
    (p["co_wqkv"], p["co_bqkv"], p["co_wo"], p["co_bo"]) = attn_packed(keys[5], H, HP)

    # MLP head: fc1 weight at VALID-node rows only (no node padding); only the
    # hidden dim is lane-padded H -> HP inside each of the 4 concat slots.
    w1 = xavier(keys[6], N * 4 * H, D1).reshape(N, 4, H, D1)
    w1 = jnp.pad(w1, ((0, 0), (0, 0), (0, HP - H), (0, D1P - D1)))
    p["fc1_w"] = w1.reshape(N * 4 * HP, D1P).astype(dtype)
    p["fc1_b"] = jnp.zeros((1, D1P), jnp.float32)
    p["fc2_w"] = pad2(xavier(keys[7], D1, H), D1P, HP).astype(dtype)
    p["fc2_b"] = jnp.zeros((1, HP), jnp.float32)
    DO = 128                                    # 2 logits padded to full lanes
    p["fc3_w"] = pad2(xavier(keys[8], H, 2), HP, DO).astype(dtype)
    p["fc3_b"] = jnp.zeros((1, DO), jnp.float32)
    return p


# ----------------------------------------------------------------------------
# Forward pass
# ----------------------------------------------------------------------------
def co_attention_forward(params, plm_features, node_features, adjacency, cfg):
    N, NP = cfg["node_num"], cfg["node_num_pad"]
    HP = cfg["hidden_pad"]
    F, FP = cfg["num_features"], cfg["num_features_pad"]
    P, PP = cfg["plm_num"], cfg["plm_num_pad"]
    B = plm_features.shape[0] // N

    # bf16 inputs: halves the dominant per-step DMA into the fused kernel.
    plm = _pad_last2(plm_features.reshape(B, N, P), NP, PP).astype(jnp.bfloat16)
    node = _pad_last2(node_features.reshape(B, N, F), NP, FP).astype(jnp.bfloat16)
    adj = _pad_last2(adjacency, NP, NP)

    fused = fused_attention_stack(plm, node, adj, params, cfg)   # (B, NP, 4*HP) bf16
    # Keep only the valid node rows (padded rows carry garbage and fc1_w has
    # no padded rows any more).  Dropout: identity (eval).
    fused_flat = fused[:, :N, :].reshape(B, N * 4 * HP)
    logits = mlp_head(fused_flat, params, cfg)                   # (B, 128) f32
    return logits[:, :2]                                         # (B, 2)


# ----------------------------------------------------------------------------
if __name__ == "__main__":
    # Small shapes consistent with the module structure.
    B = 4              # number of graphs in the batch
    NODE_NUM = 8       # nodes per graph        (41 in the reference)
    NUM_FEATURES = 16  # node feature dim       (78 in the reference)
    PLM_NUM = 128      # PLM embedding dim      (1280 in the reference)
    HIDDEN = 32        # hidden size            (128 in the reference)

    cfg = make_config(NODE_NUM, NUM_FEATURES, PLM_NUM, HIDDEN)

    root = jax.random.PRNGKey(0)
    k_in, k_param = jax.random.split(root)
    k_plm, k_feat, k_adj = jax.random.split(k_in, 3)

    plm_features = jax.random.normal(k_plm, (B * NODE_NUM, PLM_NUM), jnp.float32)
    node_features = jax.random.normal(k_feat, (B * NODE_NUM, NUM_FEATURES), jnp.float32)
    # random symmetric adjacency with self loops (stand-in for the DGL graph)
    adj = (jax.random.uniform(k_adj, (B, NODE_NUM, NODE_NUM)) > 0.5).astype(jnp.float32)
    adj = jnp.maximum(adj, jnp.transpose(adj, (0, 2, 1)))
    adj = jnp.maximum(adj, jnp.eye(NODE_NUM, dtype=jnp.float32)[None])

    params = init_params(k_param, cfg)

    fwd = jax.jit(functools.partial(co_attention_forward, cfg=cfg))
    logits = fwd(params, plm_features, node_features, adj)
    jax.block_until_ready(logits)

    assert logits.shape == (B, 2), logits.shape
    assert bool(jnp.all(jnp.isfinite(logits)))
    print("KERNEL_OK")
</pallas_src>

<mosaic_0001>
module attributes {stable_mosaic.version = 11 : i64} {
  func.func @_fused_stack_kernel(%arg0: i32, %arg1: memref<2x8x128xbf16, #tpu.memory_space<vmem>>, %arg2: memref<2x8x128xbf16, #tpu.memory_space<vmem>>, %arg3: memref<2x8x8xf32, #tpu.memory_space<vmem>>, %arg4: memref<128x128xbf16, #tpu.memory_space<vmem>>, %arg5: memref<1x128xf32, #tpu.memory_space<vmem>>, %arg6: memref<1x128xf32, #tpu.memory_space<vmem>>, %arg7: memref<1x128xf32, #tpu.memory_space<vmem>>, %arg8: memref<128x128xbf16, #tpu.memory_space<vmem>>, %arg9: memref<1x128xf32, #tpu.memory_space<vmem>>, %arg10: memref<128x384xbf16, #tpu.memory_space<vmem>>, %arg11: memref<1x384xf32, #tpu.memory_space<vmem>>, %arg12: memref<128x128xbf16, #tpu.memory_space<vmem>>, %arg13: memref<1x128xf32, #tpu.memory_space<vmem>>, %arg14: memref<1x128xf32, #tpu.memory_space<vmem>>, %arg15: memref<1x128xf32, #tpu.memory_space<vmem>>, %arg16: memref<128x128xbf16, #tpu.memory_space<vmem>>, %arg17: memref<1x128xf32, #tpu.memory_space<vmem>>, %arg18: memref<128x384xbf16, #tpu.memory_space<vmem>>, %arg19: memref<1x384xf32, #tpu.memory_space<vmem>>, %arg20: memref<128x128xbf16, #tpu.memory_space<vmem>>, %arg21: memref<1x128xf32, #tpu.memory_space<vmem>>, %arg22: memref<128x384xbf16, #tpu.memory_space<vmem>>, %arg23: memref<1x384xf32, #tpu.memory_space<vmem>>, %arg24: memref<128x128xbf16, #tpu.memory_space<vmem>>, %arg25: memref<1x128xf32, #tpu.memory_space<vmem>>, %arg26: memref<2x8x512xbf16, #tpu.memory_space<vmem>>) attributes {dimension_semantics = [#tpu.dimension_semantics<parallel>], iteration_bounds = array<i64: 2>, scalar_prefetch = 0 : i64, scratch_operands = 0 : i64, tpu.core_type = #tpu.core_type<tc>, window_params = [{transform_indices = @transform_0, window_bounds = array<i64: 2, 8, 128>}, {transform_indices = @transform_1, window_bounds = array<i64: 2, 8, 128>}, {transform_indices = @transform_2, window_bounds = array<i64: 2, 8, 8>}, {pipeline_mode = #tpu.pipeline_mode<synchronous>, transform_indices = @transform_3, window_bounds = array<i64: 128, 128>}, {pipeline_mode = #tpu.pipeline_mode<synchronous>, transform_indices = @transform_4, window_bounds = array<i64: 1, 128>}, {pipeline_mode = #tpu.pipeline_mode<synchronous>, transform_indices = @transform_5, window_bounds = array<i64: 1, 128>}, {pipeline_mode = #tpu.pipeline_mode<synchronous>, transform_indices = @transform_6, window_bounds = array<i64: 1, 128>}, {pipeline_mode = #tpu.pipeline_mode<synchronous>, transform_indices = @transform_7, window_bounds = array<i64: 128, 128>}, {pipeline_mode = #tpu.pipeline_mode<synchronous>, transform_indices = @transform_8, window_bounds = array<i64: 1, 128>}, {pipeline_mode = #tpu.pipeline_mode<synchronous>, transform_indices = @transform_9, window_bounds = array<i64: 128, 384>}, {pipeline_mode = #tpu.pipeline_mode<synchronous>, transform_indices = @transform_10, window_bounds = array<i64: 1, 384>}, {pipeline_mode = #tpu.pipeline_mode<synchronous>, transform_indices = @transform_11, window_bounds = array<i64: 128, 128>}, {pipeline_mode = #tpu.pipeline_mode<synchronous>, transform_indices = @transform_12, window_bounds = array<i64: 1, 128>}, {pipeline_mode = #tpu.pipeline_mode<synchronous>, transform_indices = @transform_13, window_bounds = array<i64: 1, 128>}, {pipeline_mode = #tpu.pipeline_mode<synchronous>, transform_indices = @transform_14, window_bounds = array<i64: 1, 128>}, {pipeline_mode = #tpu.pipeline_mode<synchronous>, transform_indices = @transform_15, window_bounds = array<i64: 128, 128>}, {pipeline_mode = #tpu.pipeline_mode<synchronous>, transform_indices = @transform_16, window_bounds = array<i64: 1, 128>}, {pipeline_mode = #tpu.pipeline_mode<synchronous>, transform_indices = @transform_17, window_bounds = array<i64: 128, 384>}, {pipeline_mode = #tpu.pipeline_mode<synchronous>, transform_indices = @transform_18, window_bounds = array<i64: 1, 384>}, {pipeline_mode = #tpu.pipeline_mode<synchronous>, transform_indices = @transform_19, window_bounds = array<i64: 128, 128>}, {pipeline_mode = #tpu.pipeline_mode<synchronous>, transform_indices = @transform_20, window_bounds = array<i64: 1, 128>}, {pipeline_mode = #tpu.pipeline_mode<synchronous>, transform_indices = @transform_21, window_bounds = array<i64: 128, 384>}, {pipeline_mode = #tpu.pipeline_mode<synchronous>, transform_indices = @transform_22, window_bounds = array<i64: 1, 384>}, {pipeline_mode = #tpu.pipeline_mode<synchronous>, transform_indices = @transform_23, window_bounds = array<i64: 128, 128>}, {pipeline_mode = #tpu.pipeline_mode<synchronous>, transform_indices = @transform_24, window_bounds = array<i64: 1, 128>}, {transform_indices = @transform_25, window_bounds = array<i64: 2, 8, 512>}]} {
    %c0 = arith.constant 0 : index
    %c0_0 = arith.constant 0 : index
    %c0_1 = arith.constant 0 : index
    %0 = vector.load %arg1[%c0, %c0_0, %c0_1] : memref<2x8x128xbf16, #tpu.memory_space<vmem>>, vector<2x8x128xbf16>
    %1 = vector.shape_cast %0 : vector<2x8x128xbf16> to vector<16x128xbf16>
    %c0_2 = arith.constant 0 : index
    %c0_3 = arith.constant 0 : index
    %2 = vector.load %arg4[%c0_2, %c0_3] : memref<128x128xbf16, #tpu.memory_space<vmem>>, vector<128x128xbf16>
    %cst = arith.constant dense<0.000000e+00> : vector<16x128xf32>
    %3 = tpu.matmul %1, %2, %cst {dimension_numbers = #tpu.dot_dimension_numbers<[1], [0], [0], [1], [0, 0, 1, 1], [], []>} : vector<16x128xbf16>, vector<128x128xbf16>, vector<16x128xf32> -> vector<16x128xf32>
    %c0_4 = arith.constant 0 : index
    %c0_5 = arith.constant 0 : index
    %4 = vector.load %arg5[%c0_4, %c0_5] : memref<1x128xf32, #tpu.memory_space<vmem>>, vector<1x128xf32>
    %5 = vector.broadcast %4 : vector<1x128xf32> to vector<16x128xf32>
    %6 = arith.addf %3, %5 : vector<16x128xf32>
    %cst_6 = arith.constant dense<0.000000e+00> : vector<16xf32>
    %7 = vector.multi_reduction <add>, %6, %cst_6 [1] : vector<16x128xf32> to vector<16xf32>
    %8 = vector.shape_cast %7 : vector<16xf32> to vector<16x1xf32>
    %cst_7 = arith.constant 3.125000e-02 : f32
    %9 = vector.broadcast %cst_7 : f32 to vector<16x1xf32>
    %10 = arith.mulf %8, %9 : vector<16x1xf32>
    %11 = vector.broadcast %10 : vector<16x1xf32> to vector<16x128xf32>
    %12 = arith.subf %6, %11 : vector<16x128xf32>
    %13 = tpu.iota {dimensions = array<i32: 1>} : vector<16x128xi32>
    %c32_i32 = arith.constant 32 : i32
    %14 = vector.broadcast %c32_i32 : i32 to vector<16x128xi32>
    %15 = arith.cmpi slt, %13, %14 : vector<16x128xi32>
    %cst_8 = arith.constant 0.000000e+00 : f32
    %16 = vector.broadcast %cst_8 : f32 to vector<16x128xf32>
    %17 = arith.select %15, %12, %16 : vector<16x128xi1>, vector<16x128xf32>
    %18 = arith.mulf %17, %17 : vector<16x128xf32>
    %cst_9 = arith.constant dense<0.000000e+00> : vector<16xf32>
    %19 = vector.multi_reduction <add>, %18, %cst_9 [1] : vector<16x128xf32> to vector<16xf32>
    %20 = vector.shape_cast %19 : vector<16xf32> to vector<16x1xf32>
    %cst_10 = arith.constant 3.125000e-02 : f32
    %21 = vector.broadcast %cst_10 : f32 to vector<16x1xf32>
    %22 = arith.mulf %20, %21 : vector<16x1xf32>
    %23 = vector.broadcast %10 : vector<16x1xf32> to vector<16x128xf32>
    %24 = arith.subf %6, %23 : vector<16x128xf32>
    %cst_11 = arith.constant 9.99999974E-6 : f32
    %25 = vector.broadcast %cst_11 : f32 to vector<16x1xf32>
    %26 = arith.addf %22, %25 : vector<16x1xf32>
    %27 = math.rsqrt %26 : vector<16x1xf32>
    %28 = vector.broadcast %27 : vector<16x1xf32> to vector<16x128xf32>
    %29 = arith.mulf %24, %28 : vector<16x128xf32>
    %c0_12 = arith.constant 0 : index
    %c0_13 = arith.constant 0 : index
    %30 = vector.load %arg6[%c0_12, %c0_13] : memref<1x128xf32, #tpu.memory_space<vmem>>, vector<1x128xf32>
    %31 = vector.broadcast %30 : vector<1x128xf32> to vector<16x128xf32>
    %32 = arith.mulf %29, %31 : vector<16x128xf32>
    %c0_14 = arith.constant 0 : index
    %c0_15 = arith.constant 0 : index
    %33 = vector.load %arg7[%c0_14, %c0_15] : memref<1x128xf32, #tpu.memory_space<vmem>>, vector<1x128xf32>
    %34 = vector.broadcast %33 : vector<1x128xf32> to vector<16x128xf32>
    %35 = arith.addf %32, %34 : vector<16x128xf32>
    %c0_16 = arith.constant 0 : index
    %c0_17 = arith.constant 0 : index
    %c0_18 = arith.constant 0 : index
    %36 = vector.load %arg2[%c0_16, %c0_17, %c0_18] : memref<2x8x128xbf16, #tpu.memory_space<vmem>>, vector<2x8x128xbf16>
    %37 = vector.shape_cast %36 : vector<2x8x128xbf16> to vector<16x128xbf16>
    %c0_19 = arith.constant 0 : index
    %c0_20 = arith.constant 0 : index
    %38 = vector.load %arg8[%c0_19, %c0_20] : memref<128x128xbf16, #tpu.memory_space<vmem>>, vector<128x128xbf16>
    %cst_21 = arith.constant dense<0.000000e+00> : vector<16x128xf32>
    %39 = tpu.matmul %37, %38, %cst_21 {dimension_numbers = #tpu.dot_dimension_numbers<[1], [0], [0], [1], [0, 0, 1, 1], [], []>} : vector<16x128xbf16>, vector<128x128xbf16>, vector<16x128xf32> -> vector<16x128xf32>
    %c0_22 = arith.constant 0 : index
    %c0_23 = arith.constant 0 : index
    %40 = vector.load %arg9[%c0_22, %c0_23] : memref<1x128xf32, #tpu.memory_space<vmem>>, vector<1x128xf32>
    %41 = vector.broadcast %40 : vector<1x128xf32> to vector<16x128xf32>
    %42 = arith.addf %39, %41 : vector<16x128xf32>
    %43 = arith.truncf %42 : vector<16x128xf32> to vector<16x128xbf16>
    %c0_24 = arith.constant 0 : index
    %c0_25 = arith.constant 0 : index
    %44 = vector.load %arg10[%c0_24, %c0_25] : memref<128x384xbf16, #tpu.memory_space<vmem>>, vector<128x384xbf16>
    %cst_26 = arith.constant dense<0.000000e+00> : vector<16x384xf32>
    %45 = tpu.matmul %43, %44, %cst_26 {dimension_numbers = #tpu.dot_dimension_numbers<[1], [0], [0], [1], [0, 0, 1, 1], [], []>} : vector<16x128xbf16>, vector<128x384xbf16>, vector<16x384xf32> -> vector<16x384xf32>
    %c0_27 = arith.constant 0 : index
    %c0_28 = arith.constant 0 : index
    %46 = vector.load %arg11[%c0_27, %c0_28] : memref<1x384xf32, #tpu.memory_space<vmem>>, vector<1x384xf32>
    %47 = vector.broadcast %46 : vector<1x384xf32> to vector<16x384xf32>
    %48 = arith.addf %45, %47 : vector<16x384xf32>
    %49 = arith.truncf %48 : vector<16x384xf32> to vector<16x384xbf16>
    %50 = vector.extract_strided_slice %49 {offsets = [0, 0], sizes = [16, 128], strides = [1, 1]} : vector<16x384xbf16> to vector<16x128xbf16>
    %51 = vector.shape_cast %50 : vector<16x128xbf16> to vector<2x8x128xbf16>
    %52 = vector.extract_strided_slice %49 {offsets = [0, 128], sizes = [16, 128], strides = [1, 1]} : vector<16x384xbf16> to vector<16x128xbf16>
    %53 = vector.shape_cast %52 : vector<16x128xbf16> to vector<2x8x128xbf16>
    %54 = vector.extract_strided_slice %49 {offsets = [0, 256], sizes = [16, 128], strides = [1, 1]} : vector<16x384xbf16> to vector<16x128xbf16>
    %55 = vector.shape_cast %54 : vector<16x128xbf16> to vector<2x8x128xbf16>
    %c0_29 = arith.constant 0 : index
    %c0_30 = arith.constant 0 : index
    %c0_31 = arith.constant 0 : index
    %56 = vector.load %arg3[%c0_29, %c0_30, %c0_31] : memref<2x8x8xf32, #tpu.memory_space<vmem>>, vector<2x8x8xf32>
    %cst_32 = arith.constant 0.000000e+00 : f32
    %57 = vector.broadcast %cst_32 : f32 to vector<2x8x8xf32>
    %58 = arith.cmpf ogt, %56, %57 : vector<2x8x8xf32>
    "tpu.trace_start"() <{level = 10 : i32, message = "bqd,bkd->bqk"}> : () -> ()
    %cst_33 = arith.constant dense<0.000000e+00> : vector<2x8x8xf32>
    %59 = tpu.matmul %51, %53, %cst_33 {dimension_numbers = #tpu.dot_dimension_numbers<[2], [2], [1], [1], [0, 0, 0, 1, 1, 1], [0], [0]>} : vector<2x8x128xbf16>, vector<2x8x128xbf16>, vector<2x8x8xf32> -> vector<2x8x8xf32>
    "tpu.trace_stop"() : () -> ()
    %cst_34 = arith.constant 2.500000e-01 : f32
    %60 = vector.broadcast %cst_34 : f32 to vector<2x8x8xf32>
    %61 = arith.mulf %59, %60 : vector<2x8x8xf32>
    %cst_35 = arith.constant -1.000000e+30 : f32
    %62 = vector.broadcast %cst_35 : f32 to vector<2x8x8xf32>
    %63 = arith.select %58, %61, %62 : vector<2x8x8xi1>, vector<2x8x8xf32>
    %cst_36 = arith.constant dense<0xFF800000> : vector<2x8xf32>
    %64 = vector.multi_reduction <maximumf>, %63, %cst_36 [2] : vector<2x8x8xf32> to vector<2x8xf32>
    %65 = vector.shape_cast %64 : vector<2x8xf32> to vector<2x8x1xf32>
    %66 = vector.broadcast %65 : vector<2x8x1xf32> to vector<2x8x8xf32>
    %67 = arith.subf %63, %66 : vector<2x8x8xf32>
    %68 = math.exp %67 : vector<2x8x8xf32>
    %cst_37 = arith.constant dense<0.000000e+00> : vector<2x8xf32>
    %69 = vector.multi_reduction <add>, %68, %cst_37 [2] : vector<2x8x8xf32> to vector<2x8xf32>
    %70 = vector.shape_cast %69 : vector<2x8xf32> to vector<2x8x1xf32>
    %71 = tpu.reciprocal %70 {approx = true} : vector<2x8x1xf32> -> vector<2x8x1xf32>
    %72 = vector.broadcast %71 : vector<2x8x1xf32> to vector<2x8x8xf32>
    %73 = arith.mulf %68, %72 : vector<2x8x8xf32>
    %74 = arith.truncf %73 : vector<2x8x8xf32> to vector<2x8x8xbf16>
    "tpu.trace_start"() <{level = 10 : i32, message = "bqk,bkd->bqd"}> : () -> ()
    %cst_38 = arith.constant dense<0.000000e+00> : vector<2x8x128xf32>
    %75 = tpu.matmul %74, %55, %cst_38 {dimension_numbers = #tpu.dot_dimension_numbers<[2], [1], [1], [2], [0, 0, 0, 1, 1, 2], [0], [0]>} : vector<2x8x8xbf16>, vector<2x8x128xbf16>, vector<2x8x128xf32> -> vector<2x8x128xf32>
    "tpu.trace_stop"() : () -> ()
    %76 = vector.shape_cast %75 : vector<2x8x128xf32> to vector<16x128xf32>
    %77 = arith.truncf %76 : vector<16x128xf32> to vector<16x128xbf16>
    %c0_39 = arith.constant 0 : index
    %c0_40 = arith.constant 0 : index
    %78 = vector.load %arg12[%c0_39, %c0_40] : memref<128x128xbf16, #tpu.memory_space<vmem>>, vector<128x128xbf16>
    %cst_41 = arith.constant dense<0.000000e+00> : vector<16x128xf32>
    %79 = tpu.matmul %77, %78, %cst_41 {dimension_numbers = #tpu.dot_dimension_numbers<[1], [0], [0], [1], [0, 0, 1, 1], [], []>} : vector<16x128xbf16>, vector<128x128xbf16>, vector<16x128xf32> -> vector<16x128xf32>
    %c0_42 = arith.constant 0 : index
    %c0_43 = arith.constant 0 : index
    %80 = vector.load %arg13[%c0_42, %c0_43] : memref<1x128xf32, #tpu.memory_space<vmem>>, vector<1x128xf32>
    %81 = vector.broadcast %80 : vector<1x128xf32> to vector<16x128xf32>
    %82 = arith.addf %79, %81 : vector<16x128xf32>
    %83 = arith.addf %42, %82 : vector<16x128xf32>
    %cst_44 = arith.constant dense<0.000000e+00> : vector<16xf32>
    %84 = vector.multi_reduction <add>, %83, %cst_44 [1] : vector<16x128xf32> to vector<16xf32>
    %85 = vector.shape_cast %84 : vector<16xf32> to vector<16x1xf32>
    %cst_45 = arith.constant 6.250000e-02 : f32
    %86 = vector.broadcast %cst_45 : f32 to vector<16x1xf32>
    %87 = arith.mulf %85, %86 : vector<16x1xf32>
    %88 = vector.broadcast %87 : vector<16x1xf32> to vector<16x128xf32>
    %89 = arith.subf %83, %88 : vector<16x128xf32>
    %90 = tpu.iota {dimensions = array<i32: 1>} : vector<16x128xi32>
    %c16_i32 = arith.constant 16 : i32
    %91 = vector.broadcast %c16_i32 : i32 to vector<16x128xi32>
    %92 = arith.cmpi slt, %90, %91 : vector<16x128xi32>
    %cst_46 = arith.constant 0.000000e+00 : f32
    %93 = vector.broadcast %cst_46 : f32 to vector<16x128xf32>
    %94 = arith.select %92, %89, %93 : vector<16x128xi1>, vector<16x128xf32>
    %95 = arith.mulf %94, %94 : vector<16x128xf32>
    %cst_47 = arith.constant dense<0.000000e+00> : vector<16xf32>
    %96 = vector.multi_reduction <add>, %95, %cst_47 [1] : vector<16x128xf32> to vector<16xf32>
    %97 = vector.shape_cast %96 : vector<16xf32> to vector<16x1xf32>
    %cst_48 = arith.constant 6.250000e-02 : f32
    %98 = vector.broadcast %cst_48 : f32 to vector<16x1xf32>
    %99 = arith.mulf %97, %98 : vector<16x1xf32>
    %100 = vector.broadcast %87 : vector<16x1xf32> to vector<16x128xf32>
    %101 = arith.subf %83, %100 : vector<16x128xf32>
    %cst_49 = arith.constant 9.99999974E-6 : f32
    %102 = vector.broadcast %cst_49 : f32 to vector<16x1xf32>
    %103 = arith.addf %99, %102 : vector<16x1xf32>
    %104 = math.rsqrt %103 : vector<16x1xf32>
    %105 = vector.broadcast %104 : vector<16x1xf32> to vector<16x128xf32>
    %106 = arith.mulf %101, %105 : vector<16x128xf32>
    %c0_50 = arith.constant 0 : index
    %c0_51 = arith.constant 0 : index
    %107 = vector.load %arg14[%c0_50, %c0_51] : memref<1x128xf32, #tpu.memory_space<vmem>>, vector<1x128xf32>
    %108 = vector.broadcast %107 : vector<1x128xf32> to vector<16x128xf32>
    %109 = arith.mulf %106, %108 : vector<16x128xf32>
    %c0_52 = arith.constant 0 : index
    %c0_53 = arith.constant 0 : index
    %110 = vector.load %arg15[%c0_52, %c0_53] : memref<1x128xf32, #tpu.memory_space<vmem>>, vector<1x128xf32>
    %111 = vector.broadcast %110 : vector<1x128xf32> to vector<16x128xf32>
    %112 = arith.addf %109, %111 : vector<16x128xf32>
    %113 = arith.truncf %112 : vector<16x128xf32> to vector<16x128xbf16>
    %c0_54 = arith.constant 0 : index
    %c0_55 = arith.constant 0 : index
    %114 = vector.load %arg16[%c0_54, %c0_55] : memref<128x128xbf16, #tpu.memory_space<vmem>>, vector<128x128xbf16>
    %cst_56 = arith.constant dense<0.000000e+00> : vector<16x128xf32>
    %115 = tpu.matmul %113, %114, %cst_56 {dimension_numbers = #tpu.dot_dimension_numbers<[1], [0], [0], [1], [0, 0, 1, 1], [], []>} : vector<16x128xbf16>, vector<128x128xbf16>, vector<16x128xf32> -> vector<16x128xf32>
    %c0_57 = arith.constant 0 : index
    %c0_58 = arith.constant 0 : index
    %116 = vector.load %arg17[%c0_57, %c0_58] : memref<1x128xf32, #tpu.memory_space<vmem>>, vector<1x128xf32>
    %117 = vector.broadcast %116 : vector<1x128xf32> to vector<16x128xf32>
    %118 = arith.addf %115, %117 : vector<16x128xf32>
    %119 = arith.truncf %35 : vector<16x128xf32> to vector<16x128xbf16>
    %c0_59 = arith.constant 0 : index
    %c0_60 = arith.constant 0 : index
    %120 = vector.load %arg18[%c0_59, %c0_60] : memref<128x384xbf16, #tpu.memory_space<vmem>>, vector<128x384xbf16>
    %cst_61 = arith.constant dense<0.000000e+00> : vector<16x384xf32>
    %121 = tpu.matmul %119, %120, %cst_61 {dimension_numbers = #tpu.dot_dimension_numbers<[1], [0], [0], [1], [0, 0, 1, 1], [], []>} : vector<16x128xbf16>, vector<128x384xbf16>, vector<16x384xf32> -> vector<16x384xf32>
    %c0_62 = arith.constant 0 : index
    %c0_63 = arith.constant 0 : index
    %122 = vector.load %arg19[%c0_62, %c0_63] : memref<1x384xf32, #tpu.memory_space<vmem>>, vector<1x384xf32>
    %123 = vector.broadcast %122 : vector<1x384xf32> to vector<16x384xf32>
    %124 = arith.addf %121, %123 : vector<16x384xf32>
    %125 = arith.truncf %124 : vector<16x384xf32> to vector<16x384xbf16>
    %126 = vector.extract_strided_slice %125 {offsets = [0, 0], sizes = [16, 128], strides = [1, 1]} : vector<16x384xbf16> to vector<16x128xbf16>
    %127 = vector.shape_cast %126 : vector<16x128xbf16> to vector<2x8x128xbf16>
    %128 = vector.extract_strided_slice %125 {offsets = [0, 128], sizes = [16, 128], strides = [1, 1]} : vector<16x384xbf16> to vector<16x128xbf16>
    %129 = vector.shape_cast %128 : vector<16x128xbf16> to vector<2x8x128xbf16>
    %130 = vector.extract_strided_slice %125 {offsets = [0, 256], sizes = [16, 128], strides = [1, 1]} : vector<16x384xbf16> to vector<16x128xbf16>
    %131 = vector.shape_cast %130 : vector<16x128xbf16> to vector<2x8x128xbf16>
    "tpu.trace_start"() <{level = 10 : i32, message = "bqd,bkd->bqk"}> : () -> ()
    %cst_64 = arith.constant dense<0.000000e+00> : vector<2x8x8xf32>
    %132 = tpu.matmul %127, %129, %cst_64 {dimension_numbers = #tpu.dot_dimension_numbers<[2], [2], [1], [1], [0, 0, 0, 1, 1, 1], [0], [0]>} : vector<2x8x128xbf16>, vector<2x8x128xbf16>, vector<2x8x8xf32> -> vector<2x8x8xf32>
    "tpu.trace_stop"() : () -> ()
    %cst_65 = arith.constant 0.176776692 : f32
    %133 = vector.broadcast %cst_65 : f32 to vector<2x8x8xf32>
    %134 = arith.mulf %132, %133 : vector<2x8x8xf32>
    %cst_66 = arith.constant dense<0xFF800000> : vector<2x8xf32>
    %135 = vector.multi_reduction <maximumf>, %134, %cst_66 [2] : vector<2x8x8xf32> to vector<2x8xf32>
    %136 = vector.shape_cast %135 : vector<2x8xf32> to vector<2x8x1xf32>
    %137 = vector.broadcast %136 : vector<2x8x1xf32> to vector<2x8x8xf32>
    %138 = arith.subf %134, %137 : vector<2x8x8xf32>
    %139 = math.exp %138 : vector<2x8x8xf32>
    %cst_67 = arith.constant dense<0.000000e+00> : vector<2x8xf32>
    %140 = vector.multi_reduction <add>, %139, %cst_67 [2] : vector<2x8x8xf32> to vector<2x8xf32>
    %141 = vector.shape_cast %140 : vector<2x8xf32> to vector<2x8x1xf32>
    %142 = tpu.reciprocal %141 {approx = true} : vector<2x8x1xf32> -> vector<2x8x1xf32>
    %143 = vector.broadcast %142 : vector<2x8x1xf32> to vector<2x8x8xf32>
    %144 = arith.mulf %139, %143 : vector<2x8x8xf32>
    %145 = arith.truncf %144 : vector<2x8x8xf32> to vector<2x8x8xbf16>
    "tpu.trace_start"() <{level = 10 : i32, message = "bqk,bkd->bqd"}> : () -> ()
    %cst_68 = arith.constant dense<0.000000e+00> : vector<2x8x128xf32>
    %146 = tpu.matmul %145, %131, %cst_68 {dimension_numbers = #tpu.dot_dimension_numbers<[2], [1], [1], [2], [0, 0, 0, 1, 1, 2], [0], [0]>} : vector<2x8x8xbf16>, vector<2x8x128xbf16>, vector<2x8x128xf32> -> vector<2x8x128xf32>
    "tpu.trace_stop"() : () -> ()
    %147 = vector.shape_cast %146 : vector<2x8x128xf32> to vector<16x128xf32>
    %148 = arith.truncf %147 : vector<16x128xf32> to vector<16x128xbf16>
    %c0_69 = arith.constant 0 : index
    %c0_70 = arith.constant 0 : index
    %149 = vector.load %arg20[%c0_69, %c0_70] : memref<128x128xbf16, #tpu.memory_space<vmem>>, vector<128x128xbf16>
    %cst_71 = arith.constant dense<0.000000e+00> : vector<16x128xf32>
    %150 = tpu.matmul %148, %149, %cst_71 {dimension_numbers = #tpu.dot_dimension_numbers<[1], [0], [0], [1], [0, 0, 1, 1], [], []>} : vector<16x128xbf16>, vector<128x128xbf16>, vector<16x128xf32> -> vector<16x128xf32>
    %c0_72 = arith.constant 0 : index
    %c0_73 = arith.constant 0 : index
    %151 = vector.load %arg21[%c0_72, %c0_73] : memref<1x128xf32, #tpu.memory_space<vmem>>, vector<1x128xf32>
    %152 = vector.broadcast %151 : vector<1x128xf32> to vector<16x128xf32>
    %153 = arith.addf %150, %152 : vector<16x128xf32>
    %154 = arith.truncf %118 : vector<16x128xf32> to vector<16x128xbf16>
    %c0_74 = arith.constant 0 : index
    %c0_75 = arith.constant 0 : index
    %155 = vector.load %arg18[%c0_74, %c0_75] : memref<128x384xbf16, #tpu.memory_space<vmem>>, vector<128x384xbf16>
    %cst_76 = arith.constant dense<0.000000e+00> : vector<16x384xf32>
    %156 = tpu.matmul %154, %155, %cst_76 {dimension_numbers = #tpu.dot_dimension_numbers<[1], [0], [0], [1], [0, 0, 1, 1], [], []>} : vector<16x128xbf16>, vector<128x384xbf16>, vector<16x384xf32> -> vector<16x384xf32>
    %c0_77 = arith.constant 0 : index
    %c0_78 = arith.constant 0 : index
    %157 = vector.load %arg19[%c0_77, %c0_78] : memref<1x384xf32, #tpu.memory_space<vmem>>, vector<1x384xf32>
    %158 = vector.broadcast %157 : vector<1x384xf32> to vector<16x384xf32>
    %159 = arith.addf %156, %158 : vector<16x384xf32>
    %160 = arith.truncf %159 : vector<16x384xf32> to vector<16x384xbf16>
    %161 = vector.extract_strided_slice %160 {offsets = [0, 0], sizes = [16, 128], strides = [1, 1]} : vector<16x384xbf16> to vector<16x128xbf16>
    %162 = vector.shape_cast %161 : vector<16x128xbf16> to vector<2x8x128xbf16>
    %163 = vector.extract_strided_slice %160 {offsets = [0, 128], sizes = [16, 128], strides = [1, 1]} : vector<16x384xbf16> to vector<16x128xbf16>
    %164 = vector.shape_cast %163 : vector<16x128xbf16> to vector<2x8x128xbf16>
    %165 = vector.extract_strided_slice %160 {offsets = [0, 256], sizes = [16, 128], strides = [1, 1]} : vector<16x384xbf16> to vector<16x128xbf16>
    %166 = vector.shape_cast %165 : vector<16x128xbf16> to vector<2x8x128xbf16>
    "tpu.trace_start"() <{level = 10 : i32, message = "bqd,bkd->bqk"}> : () -> ()
    %cst_79 = arith.constant dense<0.000000e+00> : vector<2x8x8xf32>
    %167 = tpu.matmul %162, %164, %cst_79 {dimension_numbers = #tpu.dot_dimension_numbers<[2], [2], [1], [1], [0, 0, 0, 1, 1, 1], [0], [0]>} : vector<2x8x128xbf16>, vector<2x8x128xbf16>, vector<2x8x8xf32> -> vector<2x8x8xf32>
    "tpu.trace_stop"() : () -> ()
    %cst_80 = arith.constant 0.176776692 : f32
    %168 = vector.broadcast %cst_80 : f32 to vector<2x8x8xf32>
    %169 = arith.mulf %167, %168 : vector<2x8x8xf32>
    %cst_81 = arith.constant dense<0xFF800000> : vector<2x8xf32>
    %170 = vector.multi_reduction <maximumf>, %169, %cst_81 [2] : vector<2x8x8xf32> to vector<2x8xf32>
    %171 = vector.shape_cast %170 : vector<2x8xf32> to vector<2x8x1xf32>
    %172 = vector.broadcast %171 : vector<2x8x1xf32> to vector<2x8x8xf32>
    %173 = arith.subf %169, %172 : vector<2x8x8xf32>
    %174 = math.exp %173 : vector<2x8x8xf32>
    %cst_82 = arith.constant dense<0.000000e+00> : vector<2x8xf32>
    %175 = vector.multi_reduction <add>, %174, %cst_82 [2] : vector<2x8x8xf32> to vector<2x8xf32>
    %176 = vector.shape_cast %175 : vector<2x8xf32> to vector<2x8x1xf32>
    %177 = tpu.reciprocal %176 {approx = true} : vector<2x8x1xf32> -> vector<2x8x1xf32>
    %178 = vector.broadcast %177 : vector<2x8x1xf32> to vector<2x8x8xf32>
    %179 = arith.mulf %174, %178 : vector<2x8x8xf32>
    %180 = arith.truncf %179 : vector<2x8x8xf32> to vector<2x8x8xbf16>
    "tpu.trace_start"() <{level = 10 : i32, message = "bqk,bkd->bqd"}> : () -> ()
    %cst_83 = arith.constant dense<0.000000e+00> : vector<2x8x128xf32>
    %181 = tpu.matmul %180, %166, %cst_83 {dimension_numbers = #tpu.dot_dimension_numbers<[2], [1], [1], [2], [0, 0, 0, 1, 1, 2], [0], [0]>} : vector<2x8x8xbf16>, vector<2x8x128xbf16>, vector<2x8x128xf32> -> vector<2x8x128xf32>
    "tpu.trace_stop"() : () -> ()
    %182 = vector.shape_cast %181 : vector<2x8x128xf32> to vector<16x128xf32>
    %183 = arith.truncf %182 : vector<16x128xf32> to vector<16x128xbf16>
    %c0_84 = arith.constant 0 : index
    %c0_85 = arith.constant 0 : index
    %184 = vector.load %arg20[%c0_84, %c0_85] : memref<128x128xbf16, #tpu.memory_space<vmem>>, vector<128x128xbf16>
    %cst_86 = arith.constant dense<0.000000e+00> : vector<16x128xf32>
    %185 = tpu.matmul %183, %184, %cst_86 {dimension_numbers = #tpu.dot_dimension_numbers<[1], [0], [0], [1], [0, 0, 1, 1], [], []>} : vector<16x128xbf16>, vector<128x128xbf16>, vector<16x128xf32> -> vector<16x128xf32>
    %c0_87 = arith.constant 0 : index
    %c0_88 = arith.constant 0 : index
    %186 = vector.load %arg21[%c0_87, %c0_88] : memref<1x128xf32, #tpu.memory_space<vmem>>, vector<1x128xf32>
    %187 = vector.broadcast %186 : vector<1x128xf32> to vector<16x128xf32>
    %188 = arith.addf %185, %187 : vector<16x128xf32>
    %189 = arith.truncf %153 : vector<16x128xf32> to vector<16x128xbf16>
    %c0_89 = arith.constant 0 : index
    %c0_90 = arith.constant 0 : index
    %190 = vector.load %arg22[%c0_89, %c0_90] : memref<128x384xbf16, #tpu.memory_space<vmem>>, vector<128x384xbf16>
    %cst_91 = arith.constant dense<0.000000e+00> : vector<16x384xf32>
    %191 = tpu.matmul %189, %190, %cst_91 {dimension_numbers = #tpu.dot_dimension_numbers<[1], [0], [0], [1], [0, 0, 1, 1], [], []>} : vector<16x128xbf16>, vector<128x384xbf16>, vector<16x384xf32> -> vector<16x384xf32>
    %c0_92 = arith.constant 0 : index
    %c0_93 = arith.constant 0 : index
    %192 = vector.load %arg23[%c0_92, %c0_93] : memref<1x384xf32, #tpu.memory_space<vmem>>, vector<1x384xf32>
    %193 = vector.broadcast %192 : vector<1x384xf32> to vector<16x384xf32>
    %194 = arith.addf %191, %193 : vector<16x384xf32>
    %195 = arith.truncf %194 : vector<16x384xf32> to vector<16x384xbf16>
    %196 = vector.extract_strided_slice %195 {offsets = [0, 0], sizes = [16, 128], strides = [1, 1]} : vector<16x384xbf16> to vector<16x128xbf16>
    %197 = vector.shape_cast %196 : vector<16x128xbf16> to vector<2x8x128xbf16>
    %198 = vector.extract_strided_slice %195 {offsets = [0, 128], sizes = [16, 128], strides = [1, 1]} : vector<16x384xbf16> to vector<16x128xbf16>
    %199 = vector.shape_cast %198 : vector<16x128xbf16> to vector<2x8x128xbf16>
    %200 = vector.extract_strided_slice %195 {offsets = [0, 256], sizes = [16, 128], strides = [1, 1]} : vector<16x384xbf16> to vector<16x128xbf16>
    %201 = vector.shape_cast %200 : vector<16x128xbf16> to vector<2x8x128xbf16>
    %202 = arith.truncf %188 : vector<16x128xf32> to vector<16x128xbf16>
    %c0_94 = arith.constant 0 : index
    %c0_95 = arith.constant 0 : index
    %203 = vector.load %arg22[%c0_94, %c0_95] : memref<128x384xbf16, #tpu.memory_space<vmem>>, vector<128x384xbf16>
    %cst_96 = arith.constant dense<0.000000e+00> : vector<16x384xf32>
    %204 = tpu.matmul %202, %203, %cst_96 {dimension_numbers = #tpu.dot_dimension_numbers<[1], [0], [0], [1], [0, 0, 1, 1], [], []>} : vector<16x128xbf16>, vector<128x384xbf16>, vector<16x384xf32> -> vector<16x384xf32>
    %c0_97 = arith.constant 0 : index
    %c0_98 = arith.constant 0 : index
    %205 = vector.load %arg23[%c0_97, %c0_98] : memref<1x384xf32, #tpu.memory_space<vmem>>, vector<1x384xf32>
    %206 = vector.broadcast %205 : vector<1x384xf32> to vector<16x384xf32>
    %207 = arith.addf %204, %206 : vector<16x384xf32>
    %208 = arith.truncf %207 : vector<16x384xf32> to vector<16x384xbf16>
    %209 = vector.extract_strided_slice %208 {offsets = [0, 0], sizes = [16, 128], strides = [1, 1]} : vector<16x384xbf16> to vector<16x128xbf16>
    %210 = vector.shape_cast %209 : vector<16x128xbf16> to vector<2x8x128xbf16>
    %211 = vector.extract_strided_slice %208 {offsets = [0, 128], sizes = [16, 128], strides = [1, 1]} : vector<16x384xbf16> to vector<16x128xbf16>
    %212 = vector.shape_cast %211 : vector<16x128xbf16> to vector<2x8x128xbf16>
    %213 = vector.extract_strided_slice %208 {offsets = [0, 256], sizes = [16, 128], strides = [1, 1]} : vector<16x384xbf16> to vector<16x128xbf16>
    %214 = vector.shape_cast %213 : vector<16x128xbf16> to vector<2x8x128xbf16>
    "tpu.trace_start"() <{level = 10 : i32, message = "bqd,bkd->bqk"}> : () -> ()
    %cst_99 = arith.constant dense<0.000000e+00> : vector<2x8x8xf32>
    %215 = tpu.matmul %197, %212, %cst_99 {dimension_numbers = #tpu.dot_dimension_numbers<[2], [2], [1], [1], [0, 0, 0, 1, 1, 1], [0], [0]>} : vector<2x8x128xbf16>, vector<2x8x128xbf16>, vector<2x8x8xf32> -> vector<2x8x8xf32>
    "tpu.trace_stop"() : () -> ()
    %cst_100 = arith.constant 0.176776692 : f32
    %216 = vector.broadcast %cst_100 : f32 to vector<2x8x8xf32>
    %217 = arith.mulf %215, %216 : vector<2x8x8xf32>
    %cst_101 = arith.constant dense<0xFF800000> : vector<2x8xf32>
    %218 = vector.multi_reduction <maximumf>, %217, %cst_101 [2] : vector<2x8x8xf32> to vector<2x8xf32>
    %219 = vector.shape_cast %218 : vector<2x8xf32> to vector<2x8x1xf32>
    %220 = vector.broadcast %219 : vector<2x8x1xf32> to vector<2x8x8xf32>
    %221 = arith.subf %217, %220 : vector<2x8x8xf32>
    %222 = math.exp %221 : vector<2x8x8xf32>
    %cst_102 = arith.constant dense<0.000000e+00> : vector<2x8xf32>
    %223 = vector.multi_reduction <add>, %222, %cst_102 [2] : vector<2x8x8xf32> to vector<2x8xf32>
    %224 = vector.shape_cast %223 : vector<2x8xf32> to vector<2x8x1xf32>
    %225 = tpu.reciprocal %224 {approx = true} : vector<2x8x1xf32> -> vector<2x8x1xf32>
    %226 = vector.broadcast %225 : vector<2x8x1xf32> to vector<2x8x8xf32>
    %227 = arith.mulf %222, %226 : vector<2x8x8xf32>
    %228 = arith.truncf %227 : vector<2x8x8xf32> to vector<2x8x8xbf16>
    "tpu.trace_start"() <{level = 10 : i32, message = "bqk,bkd->bqd"}> : () -> ()
    %cst_103 = arith.constant dense<0.000000e+00> : vector<2x8x128xf32>
    %229 = tpu.matmul %228, %214, %cst_103 {dimension_numbers = #tpu.dot_dimension_numbers<[2], [1], [1], [2], [0, 0, 0, 1, 1, 2], [0], [0]>} : vector<2x8x8xbf16>, vector<2x8x128xbf16>, vector<2x8x128xf32> -> vector<2x8x128xf32>
    "tpu.trace_stop"() : () -> ()
    %230 = vector.shape_cast %229 : vector<2x8x128xf32> to vector<16x128xf32>
    %231 = arith.truncf %230 : vector<16x128xf32> to vector<16x128xbf16>
    %c0_104 = arith.constant 0 : index
    %c0_105 = arith.constant 0 : index
    %232 = vector.load %arg24[%c0_104, %c0_105] : memref<128x128xbf16, #tpu.memory_space<vmem>>, vector<128x128xbf16>
    %cst_106 = arith.constant dense<0.000000e+00> : vector<16x128xf32>
    %233 = tpu.matmul %231, %232, %cst_106 {dimension_numbers = #tpu.dot_dimension_numbers<[1], [0], [0], [1], [0, 0, 1, 1], [], []>} : vector<16x128xbf16>, vector<128x128xbf16>, vector<16x128xf32> -> vector<16x128xf32>
    %c0_107 = arith.constant 0 : index
    %c0_108 = arith.constant 0 : index
    %234 = vector.load %arg25[%c0_107, %c0_108] : memref<1x128xf32, #tpu.memory_space<vmem>>, vector<1x128xf32>
    %235 = vector.broadcast %234 : vector<1x128xf32> to vector<16x128xf32>
    %236 = arith.addf %233, %235 : vector<16x128xf32>
    "tpu.trace_start"() <{level = 10 : i32, message = "bqd,bkd->bqk"}> : () -> ()
    %cst_109 = arith.constant dense<0.000000e+00> : vector<2x8x8xf32>
    %237 = tpu.matmul %210, %199, %cst_109 {dimension_numbers = #tpu.dot_dimension_numbers<[2], [2], [1], [1], [0, 0, 0, 1, 1, 1], [0], [0]>} : vector<2x8x128xbf16>, vector<2x8x128xbf16>, vector<2x8x8xf32> -> vector<2x8x8xf32>
    "tpu.trace_stop"() : () -> ()
    %cst_110 = arith.constant 0.176776692 : f32
    %238 = vector.broadcast %cst_110 : f32 to vector<2x8x8xf32>
    %239 = arith.mulf %237, %238 : vector<2x8x8xf32>
    %cst_111 = arith.constant dense<0xFF800000> : vector<2x8xf32>
    %240 = vector.multi_reduction <maximumf>, %239, %cst_111 [2] : vector<2x8x8xf32> to vector<2x8xf32>
    %241 = vector.shape_cast %240 : vector<2x8xf32> to vector<2x8x1xf32>
    %242 = vector.broadcast %241 : vector<2x8x1xf32> to vector<2x8x8xf32>
    %243 = arith.subf %239, %242 : vector<2x8x8xf32>
    %244 = math.exp %243 : vector<2x8x8xf32>
    %cst_112 = arith.constant dense<0.000000e+00> : vector<2x8xf32>
    %245 = vector.multi_reduction <add>, %244, %cst_112 [2] : vector<2x8x8xf32> to vector<2x8xf32>
    %246 = vector.shape_cast %245 : vector<2x8xf32> to vector<2x8x1xf32>
    %247 = tpu.reciprocal %246 {approx = true} : vector<2x8x1xf32> -> vector<2x8x1xf32>
    %248 = vector.broadcast %247 : vector<2x8x1xf32> to vector<2x8x8xf32>
    %249 = arith.mulf %244, %248 : vector<2x8x8xf32>
    %250 = arith.truncf %249 : vector<2x8x8xf32> to vector<2x8x8xbf16>
    "tpu.trace_start"() <{level = 10 : i32, message = "bqk,bkd->bqd"}> : () -> ()
    %cst_113 = arith.constant dense<0.000000e+00> : vector<2x8x128xf32>
    %251 = tpu.matmul %250, %201, %cst_113 {dimension_numbers = #tpu.dot_dimension_numbers<[2], [1], [1], [2], [0, 0, 0, 1, 1, 2], [0], [0]>} : vector<2x8x8xbf16>, vector<2x8x128xbf16>, vector<2x8x128xf32> -> vector<2x8x128xf32>
    "tpu.trace_stop"() : () -> ()
    %252 = vector.shape_cast %251 : vector<2x8x128xf32> to vector<16x128xf32>
    %253 = arith.truncf %252 : vector<16x128xf32> to vector<16x128xbf16>
    %c0_114 = arith.constant 0 : index
    %c0_115 = arith.constant 0 : index
    %254 = vector.load %arg24[%c0_114, %c0_115] : memref<128x128xbf16, #tpu.memory_space<vmem>>, vector<128x128xbf16>
    %cst_116 = arith.constant dense<0.000000e+00> : vector<16x128xf32>
    %255 = tpu.matmul %253, %254, %cst_116 {dimension_numbers = #tpu.dot_dimension_numbers<[1], [0], [0], [1], [0, 0, 1, 1], [], []>} : vector<16x128xbf16>, vector<128x128xbf16>, vector<16x128xf32> -> vector<16x128xf32>
    %c0_117 = arith.constant 0 : index
    %c0_118 = arith.constant 0 : index
    %256 = vector.load %arg25[%c0_117, %c0_118] : memref<1x128xf32, #tpu.memory_space<vmem>>, vector<1x128xf32>
    %257 = vector.broadcast %256 : vector<1x128xf32> to vector<16x128xf32>
    %258 = arith.addf %255, %257 : vector<16x128xf32>
    %259 = vector.shape_cast %236 : vector<16x128xf32> to vector<2x8x128xf32>
    %260 = arith.truncf %259 : vector<2x8x128xf32> to vector<2x8x128xbf16>
    %c0_119 = arith.constant 0 : index
    %c0_120 = arith.constant 0 : index
    %c0_121 = arith.constant 0 : index
    %261 = vector.load %arg26[%c0_119, %c0_120, %c0_121] : memref<2x8x512xbf16, #tpu.memory_space<vmem>>, vector<2x8x128xbf16>
    tpu.vector_store %arg26[%c0_119, %c0_120, %c0_121], %260 {strides = array<i32>} : memref<2x8x512xbf16, #tpu.memory_space<vmem>>, vector<2x8x128xbf16>,
    %262 = vector.shape_cast %258 : vector<16x128xf32> to vector<2x8x128xf32>
    %263 = arith.truncf %262 : vector<2x8x128xf32> to vector<2x8x128xbf16>
    %c0_122 = arith.constant 0 : index
    %c0_123 = arith.constant 0 : index
    %c128 = arith.constant 128 : index
    %264 = vector.load %arg26[%c0_122, %c0_123, %c128] : memref<2x8x512xbf16, #tpu.memory_space<vmem>>, vector<2x8x128xbf16>
    tpu.vector_store %arg26[%c0_122, %c0_123, %c128], %263 {strides = array<i32>} : memref<2x8x512xbf16, #tpu.memory_space<vmem>>, vector<2x8x128xbf16>,
    %265 = vector.shape_cast %35 : vector<16x128xf32> to vector<2x8x128xf32>
    %266 = arith.truncf %265 : vector<2x8x128xf32> to vector<2x8x128xbf16>
    %c0_124 = arith.constant 0 : index
    %c0_125 = arith.constant 0 : index
    %c256 = arith.constant 256 : index
    %267 = vector.load %arg26[%c0_124, %c0_125, %c256] : memref<2x8x512xbf16, #tpu.memory_space<vmem>>, vector<2x8x128xbf16>
    tpu.vector_store %arg26[%c0_124, %c0_125, %c256], %266 {strides = array<i32>} : memref<2x8x512xbf16, #tpu.memory_space<vmem>>, vector<2x8x128xbf16>,
    %268 = vector.shape_cast %118 : vector<16x128xf32> to vector<2x8x128xf32>
    %269 = arith.truncf %268 : vector<2x8x128xf32> to vector<2x8x128xbf16>
    %c0_126 = arith.constant 0 : index
    %c0_127 = arith.constant 0 : index
    %c384 = arith.constant 384 : index
    %270 = vector.load %arg26[%c0_126, %c0_127, %c384] : memref<2x8x512xbf16, #tpu.memory_space<vmem>>, vector<2x8x128xbf16>
    tpu.vector_store %arg26[%c0_126, %c0_127, %c384], %269 {strides = array<i32>} : memref<2x8x512xbf16, #tpu.memory_space<vmem>>, vector<2x8x128xbf16>,
    return
  }
  func.func @transform_0(%arg0: i32) -> (i32, i32, i32) {
    %c0_i32 = arith.constant 0 : i32
    %c0_i32_0 = arith.constant 0 : i32
    %c0_i32_1 = arith.constant 0 : i32
    return %arg0, %c0_i32, %c0_i32_0 : i32, i32, i32
  }
  func.func @transform_1(%arg0: i32) -> (i32, i32, i32) {
    %c0_i32 = arith.constant 0 : i32
    %c0_i32_0 = arith.constant 0 : i32
    %c0_i32_1 = arith.constant 0 : i32
    return %arg0, %c0_i32, %c0_i32_0 : i32, i32, i32
  }
  func.func @transform_2(%arg0: i32) -> (i32, i32, i32) {
    %c0_i32 = arith.constant 0 : i32
    %c0_i32_0 = arith.constant 0 : i32
    %c0_i32_1 = arith.constant 0 : i32
    return %arg0, %c0_i32, %c0_i32_0 : i32, i32, i32
  }
  func.func @transform_3(%arg0: i32) -> (i32, i32) {
    %c0_i32 = arith.constant 0 : i32
    %c0_i32_0 = arith.constant 0 : i32
    %c0_i32_1 = arith.constant 0 : i32
    return %c0_i32, %c0_i32_0 : i32, i32
  }
  func.func @transform_4(%arg0: i32) -> (i32, i32) {
    %c0_i32 = arith.constant 0 : i32
    %c0_i32_0 = arith.constant 0 : i32
    %c0_i32_1 = arith.constant 0 : i32
    return %c0_i32, %c0_i32_0 : i32, i32
  }
  func.func @transform_5(%arg0: i32) -> (i32, i32) {
    %c0_i32 = arith.constant 0 : i32
    %c0_i32_0 = arith.constant 0 : i32
    %c0_i32_1 = arith.constant 0 : i32
    return %c0_i32, %c0_i32_0 : i32, i32
  }
  func.func @transform_6(%arg0: i32) -> (i32, i32) {
    %c0_i32 = arith.constant 0 : i32
    %c0_i32_0 = arith.constant 0 : i32
    %c0_i32_1 = arith.constant 0 : i32
    return %c0_i32, %c0_i32_0 : i32, i32
  }
  func.func @transform_7(%arg0: i32) -> (i32, i32) {
    %c0_i32 = arith.constant 0 : i32
    %c0_i32_0 = arith.constant 0 : i32
    %c0_i32_1 = arith.constant 0 : i32
    return %c0_i32, %c0_i32_0 : i32, i32
  }
  func.func @transform_8(%arg0: i32) -> (i32, i32) {
    %c0_i32 = arith.constant 0 : i32
    %c0_i32_0 = arith.constant 0 : i32
    %c0_i32_1 = arith.constant 0 : i32
    return %c0_i32, %c0_i32_0 : i32, i32
  }
  func.func @transform_9(%arg0: i32) -> (i32, i32) {
    %c0_i32 = arith.constant 0 : i32
    %c0_i32_0 = arith.constant 0 : i32
    %c0_i32_1 = arith.constant 0 : i32
    return %c0_i32, %c0_i32_0 : i32, i32
  }
  func.func @transform_10(%arg0: i32) -> (i32, i32) {
    %c0_i32 = arith.constant 0 : i32
    %c0_i32_0 = arith.constant 0 : i32
    %c0_i32_1 = arith.constant 0 : i32
    return %c0_i32, %c0_i32_0 : i32, i32
  }
  func.func @transform_11(%arg0: i32) -> (i32, i32) {
    %c0_i32 = arith.constant 0 : i32
    %c0_i32_0 = arith.constant 0 : i32
    %c0_i32_1 = arith.constant 0 : i32
    return %c0_i32, %c0_i32_0 : i32, i32
  }
  func.func @transform_12(%arg0: i32) -> (i32, i32) {
    %c0_i32 = arith.constant 0 : i32
    %c0_i32_0 = arith.constant 0 : i32
    %c0_i32_1 = arith.constant 0 : i32
    return %c0_i32, %c0_i32_0 : i32, i32
  }
  func.func @transform_13(%arg0: i32) -> (i32, i32) {
    %c0_i32 = arith.constant 0 : i32
    %c0_i32_0 = arith.constant 0 : i32
    %c0_i32_1 = arith.constant 0 : i32
    return %c0_i32, %c0_i32_0 : i32, i32
  }
  func.func @transform_14(%arg0: i32) -> (i32, i32) {
    %c0_i32 = arith.constant 0 : i32
    %c0_i32_0 = arith.constant 0 : i32
    %c0_i32_1 = arith.constant 0 : i32
    return %c0_i32, %c0_i32_0 : i32, i32
  }
  func.func @transform_15(%arg0: i32) -> (i32, i32) {
    %c0_i32 = arith.constant 0 : i32
    %c0_i32_0 = arith.constant 0 : i32
    %c0_i32_1 = arith.constant 0 : i32
    return %c0_i32, %c0_i32_0 : i32, i32
  }
  func.func @transform_16(%arg0: i32) -> (i32, i32) {
    %c0_i32 = arith.constant 0 : i32
    %c0_i32_0 = arith.constant 0 : i32
    %c0_i32_1 = arith.constant 0 : i32
    return %c0_i32, %c0_i32_0 : i32, i32
  }
  func.func @transform_17(%arg0: i32) -> (i32, i32) {
    %c0_i32 = arith.constant 0 : i32
    %c0_i32_0 = arith.constant 0 : i32
    %c0_i32_1 = arith.constant 0 : i32
    return %c0_i32, %c0_i32_0 : i32, i32
  }
  func.func @transform_18(%arg0: i32) -> (i32, i32) {
    %c0_i32 = arith.constant 0 : i32
    %c0_i32_0 = arith.constant 0 : i32
    %c0_i32_1 = arith.constant 0 : i32
    return %c0_i32, %c0_i32_0 : i32, i32
  }
  func.func @transform_19(%arg0: i32) -> (i32, i32) {
    %c0_i32 = arith.constant 0 : i32
    %c0_i32_0 = arith.constant 0 : i32
    %c0_i32_1 = arith.constant 0 : i32
    return %c0_i32, %c0_i32_0 : i32, i32
  }
  func.func @transform_20(%arg0: i32) -> (i32, i32) {
    %c0_i32 = arith.constant 0 : i32
    %c0_i32_0 = arith.constant 0 : i32
    %c0_i32_1 = arith.constant 0 : i32
    return %c0_i32, %c0_i32_0 : i32, i32
  }
  func.func @transform_21(%arg0: i32) -> (i32, i32) {
    %c0_i32 = arith.constant 0 : i32
    %c0_i32_0 = arith.constant 0 : i32
    %c0_i32_1 = arith.constant 0 : i32
    return %c0_i32, %c0_i32_0 : i32, i32
  }
  func.func @transform_22(%arg0: i32) -> (i32, i32) {
    %c0_i32 = arith.constant 0 : i32
    %c0_i32_0 = arith.constant 0 : i32
    %c0_i32_1 = arith.constant 0 : i32
    return %c0_i32, %c0_i32_0 : i32, i32
  }
  func.func @transform_23(%arg0: i32) -> (i32, i32) {
    %c0_i32 = arith.constant 0 : i32
    %c0_i32_0 = arith.constant 0 : i32
    %c0_i32_1 = arith.constant 0 : i32
    return %c0_i32, %c0_i32_0 : i32, i32
  }
  func.func @transform_24(%arg0: i32) -> (i32, i32) {
    %c0_i32 = arith.constant 0 : i32
    %c0_i32_0 = arith.constant 0 : i32
    %c0_i32_1 = arith.constant 0 : i32
    return %c0_i32, %c0_i32_0 : i32, i32
  }
  func.func @transform_25(%arg0: i32) -> (i32, i32, i32) {
    %c0_i32 = arith.constant 0 : i32
    %c0_i32_0 = arith.constant 0 : i32
    %c0_i32_1 = arith.constant 0 : i32
    return %arg0, %c0_i32, %c0_i32_0 : i32, i32, i32
  }
}

module attributes {stable_mosaic.version = 11 : i64} {
  func.func @_mlp_head_kernel(%arg0: i32, %arg1: memref<4x4096xbf16, #tpu.memory_space<vmem>>, %arg2: memref<4096x128xbf16, #tpu.memory_space<vmem>>, %arg3: memref<1x128xf32, #tpu.memory_space<vmem>>, %arg4: memref<128x128xbf16, #tpu.memory_space<vmem>>, %arg5: memref<1x128xf32, #tpu.memory_space<vmem>>, %arg6: memref<128x128xbf16, #tpu.memory_space<vmem>>, %arg7: memref<1x128xf32, #tpu.memory_space<vmem>>, %arg8: memref<4x128xf32, #tpu.memory_space<vmem>>, %arg9: memref<4x128xf32, #tpu.memory_space<vmem>>) attributes {dimension_semantics = [#tpu.dimension_semantics<arbitrary>], iteration_bounds = array<i64: 1>, scalar_prefetch = 0 : i64, scratch_operands = 1 : i64, tpu.core_type = #tpu.core_type<tc>, window_params = [{transform_indices = @transform_0, window_bounds = array<i64: 4, 4096>}, {transform_indices = @transform_1, window_bounds = array<i64: 4096, 128>}, {pipeline_mode = #tpu.pipeline_mode<synchronous>, transform_indices = @transform_2, window_bounds = array<i64: 1, 128>}, {pipeline_mode = #tpu.pipeline_mode<synchronous>, transform_indices = @transform_3, window_bounds = array<i64: 128, 128>}, {pipeline_mode = #tpu.pipeline_mode<synchronous>, transform_indices = @transform_4, window_bounds = array<i64: 1, 128>}, {pipeline_mode = #tpu.pipeline_mode<synchronous>, transform_indices = @transform_5, window_bounds = array<i64: 128, 128>}, {pipeline_mode = #tpu.pipeline_mode<synchronous>, transform_indices = @transform_6, window_bounds = array<i64: 1, 128>}, {pipeline_mode = #tpu.pipeline_mode<synchronous>, transform_indices = @transform_7, window_bounds = array<i64: 4, 128>}]} {
    %c0_i32 = arith.constant 0 : i32
    %0 = arith.cmpi eq, %arg0, %c0_i32 : i32
    %1 = arith.extui %0 : i1 to i32
    %c0_i32_0 = arith.constant 0 : i32
    %2 = arith.cmpi ne, %1, %c0_i32_0 : i32
    scf.if %2 {
      %cst_10 = arith.constant 0.000000e+00 : f32
      %12 = vector.broadcast %cst_10 : f32 to vector<4x128xf32>
      %c0_11 = arith.constant 0 : index
      %c0_12 = arith.constant 0 : index
      %13 = vector.load %arg9[%c0_11, %c0_12] : memref<4x128xf32, #tpu.memory_space<vmem>>, vector<4x128xf32>
      tpu.vector_store %arg9[%c0_11, %c0_12], %12 {strides = array<i32>} : memref<4x128xf32, #tpu.memory_space<vmem>>, vector<4x128xf32>,
    } else {
    }
    %c0 = arith.constant 0 : index
    %c0_1 = arith.constant 0 : index
    %3 = vector.load %arg2[%c0, %c0_1] : memref<4096x128xbf16, #tpu.memory_space<vmem>>, vector<4096x128xbf16>
    %c0_2 = arith.constant 0 : index
    %c0_3 = arith.constant 0 : index
    %4 = vector.load %arg9[%c0_2, %c0_3] : memref<4x128xf32, #tpu.memory_space<vmem>>, vector<4x128xf32>
    %c0_4 = arith.constant 0 : index
    %c0_5 = arith.constant 0 : index
    %5 = vector.load %arg1[%c0_4, %c0_5] : memref<4x4096xbf16, #tpu.memory_space<vmem>>, vector<4x4096xbf16>
    %cst = arith.constant dense<0.000000e+00> : vector<4x128xf32>
    %6 = tpu.matmul %5, %3, %cst {dimension_numbers = #tpu.dot_dimension_numbers<[1], [0], [0], [1], [0, 0, 1, 1], [], []>} : vector<4x4096xbf16>, vector<4096x128xbf16>, vector<4x128xf32> -> vector<4x128xf32>
    %7 = arith.addf %4, %6 : vector<4x128xf32>
    %c0_6 = arith.constant 0 : index
    %c0_7 = arith.constant 0 : index
    %8 = vector.load %arg9[%c0_6, %c0_7] : memref<4x128xf32, #tpu.memory_space<vmem>>, vector<4x128xf32>
    tpu.vector_store %arg9[%c0_6, %c0_7], %7 {strides = array<i32>} : memref<4x128xf32, #tpu.memory_space<vmem>>, vector<4x128xf32>,
    %c0_i32_8 = arith.constant 0 : i32
    %9 = arith.cmpi eq, %arg0, %c0_i32_8 : i32
    %10 = arith.extui %9 : i1 to i32
    %c0_i32_9 = arith.constant 0 : i32
    %11 = arith.cmpi ne, %10, %c0_i32_9 : i32
    scf.if %11 {
      %c0_10 = arith.constant 0 : index
      %c0_11 = arith.constant 0 : index
      %12 = vector.load %arg9[%c0_10, %c0_11] : memref<4x128xf32, #tpu.memory_space<vmem>>, vector<4x128xf32>
      %c0_12 = arith.constant 0 : index
      %c0_13 = arith.constant 0 : index
      %13 = vector.load %arg3[%c0_12, %c0_13] : memref<1x128xf32, #tpu.memory_space<vmem>>, vector<1x128xf32>
      %14 = vector.broadcast %13 : vector<1x128xf32> to vector<4x128xf32>
      %15 = arith.addf %12, %14 : vector<4x128xf32>
      %cst_14 = arith.constant 0.000000e+00 : f32
      %16 = vector.broadcast %cst_14 : f32 to vector<4x128xf32>
      %17 = arith.maximumf %15, %16 : vector<4x128xf32>
      %c0_15 = arith.constant 0 : index
      %c0_16 = arith.constant 0 : index
      %18 = vector.load %arg4[%c0_15, %c0_16] : memref<128x128xbf16, #tpu.memory_space<vmem>>, vector<128x128xbf16>
      %19 = arith.truncf %17 : vector<4x128xf32> to vector<4x128xbf16>
      %cst_17 = arith.constant dense<0.000000e+00> : vector<4x128xf32>
      %20 = tpu.matmul %19, %18, %cst_17 {dimension_numbers = #tpu.dot_dimension_numbers<[1], [0], [0], [1], [0, 0, 1, 1], [], []>} : vector<4x128xbf16>, vector<128x128xbf16>, vector<4x128xf32> -> vector<4x128xf32>
      %c0_18 = arith.constant 0 : index
      %c0_19 = arith.constant 0 : index
      %21 = vector.load %arg5[%c0_18, %c0_19] : memref<1x128xf32, #tpu.memory_space<vmem>>, vector<1x128xf32>
      %22 = vector.broadcast %21 : vector<1x128xf32> to vector<4x128xf32>
      %23 = arith.addf %20, %22 : vector<4x128xf32>
      %cst_20 = arith.constant 0.000000e+00 : f32
      %24 = vector.broadcast %cst_20 : f32 to vector<4x128xf32>
      %25 = arith.maximumf %23, %24 : vector<4x128xf32>
      %c0_21 = arith.constant 0 : index
      %c0_22 = arith.constant 0 : index
      %26 = vector.load %arg6[%c0_21, %c0_22] : memref<128x128xbf16, #tpu.memory_space<vmem>>, vector<128x128xbf16>
      %27 = arith.truncf %25 : vector<4x128xf32> to vector<4x128xbf16>
      %cst_23 = arith.constant dense<0.000000e+00> : vector<4x128xf32>
      %28 = tpu.matmul %27, %26, %cst_23 {dimension_numbers = #tpu.dot_dimension_numbers<[1], [0], [0], [1], [0, 0, 1, 1], [], []>} : vector<4x128xbf16>, vector<128x128xbf16>, vector<4x128xf32> -> vector<4x128xf32>
      %c0_24 = arith.constant 0 : index
      %c0_25 = arith.constant 0 : index
      %29 = vector.load %arg7[%c0_24, %c0_25] : memref<1x128xf32, #tpu.memory_space<vmem>>, vector<1x128xf32>
      %30 = vector.broadcast %29 : vector<1x128xf32> to vector<4x128xf32>
      %31 = arith.addf %28, %30 : vector<4x128xf32>
      %c0_26 = arith.constant 0 : index
      %c0_27 = arith.constant 0 : index
      %32 = vector.load %arg8[%c0_26, %c0_27] : memref<4x128xf32, #tpu.memory_space<vmem>>, vector<4x128xf32>
      tpu.vector_store %arg8[%c0_26, %c0_27], %31 {strides = array<i32>} : memref<4x128xf32, #tpu.memory_space<vmem>>, vector<4x128xf32>,
    } else {
    }
    return
  }
  func.func @transform_0(%arg0: i32) -> (i32, i32) {
    %c0_i32 = arith.constant 0 : i32
    %c0_i32_0 = arith.constant 0 : i32
    return %c0_i32, %arg0 : i32, i32
  }
  func.func @transform_1(%arg0: i32) -> (i32, i32) {
    %c0_i32 = arith.constant 0 : i32
    %c0_i32_0 = arith.constant 0 : i32
    return %arg0, %c0_i32 : i32, i32
  }
  func.func @transform_2(%arg0: i32) -> (i32, i32) {
    %c0_i32 = arith.constant 0 : i32
    %c0_i32_0 = arith.constant 0 : i32
    %c0_i32_1 = arith.constant 0 : i32
    return %c0_i32, %c0_i32_0 : i32, i32
  }
  func.func @transform_3(%arg0: i32) -> (i32, i32) {
    %c0_i32 = arith.constant 0 : i32
    %c0_i32_0 = arith.constant 0 : i32
    %c0_i32_1 = arith.constant 0 : i32
    return %c0_i32, %c0_i32_0 : i32, i32
  }
  func.func @transform_4(%arg0: i32) -> (i32, i32) {
    %c0_i32 = arith.constant 0 : i32
    %c0_i32_0 = arith.constant 0 : i32
    %c0_i32_1 = arith.constant 0 : i32
    return %c0_i32, %c0_i32_0 : i32, i32
  }
  func.func @transform_5(%arg0: i32) -> (i32, i32) {
    %c0_i32 = arith.constant 0 : i32
    %c0_i32_0 = arith.constant 0 : i32
    %c0_i32_1 = arith.constant 0 : i32
    return %c0_i32, %c0_i32_0 : i32, i32
  }
  func.func @transform_6(%arg0: i32) -> (i32, i32) {
    %c0_i32 = arith.constant 0 : i32
    %c0_i32_0 = arith.constant 0 : i32
    %c0_i32_1 = arith.constant 0 : i32
    return %c0_i32, %c0_i32_0 : i32, i32
  }
  func.func @transform_7(%arg0: i32) -> (i32, i32) {
    %c0_i32 = arith.constant 0 : i32
    %c0_i32_0 = arith.constant 0 : i32
    %c0_i32_1 = arith.constant 0 : i32
    return %c0_i32, %c0_i32_0 : i32, i32
  }
}

</mosaic_0001>

<llo_original>
// kernel: co_attention_forward.2
$region0: #{co_attention_forward.2}
  #allocation0 [shape = 'u32[]', space=smem, size = 0x4, offset = 0x4, fixed_abs, tag = 'smem constant byte address 0x4 - core index']
  #allocation1 [shape = 'u32[144,128]{1,0:T(1,128)}', space=vmem, size = 0x12000, scoped, tag = 'internal scratch']
  %s0 = inlined_call_operand.vmem [shape: bf16[4,8,128], index: 0, kind: input, shape index: {}]
  %s1 = inlined_call_operand.vmem [shape: bf16[4,8,128], index: 1, kind: input, shape index: {}]
  %s2 = inlined_call_operand.vmem [shape: f32[4,8,8], index: 2, kind: input, shape index: {}]
  %s3 = inlined_call_operand.hbm [shape: bf16[128,128], index: 3, kind: input, shape index: {}]
  %s4 = inlined_call_operand.vmem [shape: f32[1,128], index: 4, kind: input, shape index: {}]
  %s5 = inlined_call_operand.vmem [shape: f32[1,128], index: 5, kind: input, shape index: {}]
  %s6 = inlined_call_operand.hbm [shape: f32[1,128], index: 6, kind: input, shape index: {}]
  %s7 = inlined_call_operand.hbm [shape: bf16[128,128], index: 7, kind: input, shape index: {}]
  %s8 = inlined_call_operand.hbm [shape: f32[1,128], index: 8, kind: input, shape index: {}]
  %s9 = inlined_call_operand.hbm [shape: bf16[128,384], index: 9, kind: input, shape index: {}]
  %s10 = inlined_call_operand.hbm [shape: f32[1,384], index: 10, kind: input, shape index: {}]
  %s11 = inlined_call_operand.hbm [shape: bf16[128,128], index: 11, kind: input, shape index: {}]
  %s12 = inlined_call_operand.hbm [shape: f32[1,128], index: 12, kind: input, shape index: {}]
  %s13 = inlined_call_operand.hbm [shape: f32[1,128], index: 13, kind: input, shape index: {}]
  %s14 = inlined_call_operand.hbm [shape: f32[1,128], index: 14, kind: input, shape index: {}]
  %s15 = inlined_call_operand.hbm [shape: bf16[128,128], index: 15, kind: input, shape index: {}]
  %s16 = inlined_call_operand.hbm [shape: f32[1,128], index: 16, kind: input, shape index: {}]
  %s17 = inlined_call_operand.vmem [shape: bf16[128,384], index: 17, kind: input, shape index: {}]
  %s18 = inlined_call_operand.hbm [shape: f32[1,384], index: 18, kind: input, shape index: {}]
  %s19 = inlined_call_operand.hbm [shape: bf16[128,128], index: 19, kind: input, shape index: {}]
  %s20 = inlined_call_operand.hbm [shape: f32[1,128], index: 20, kind: input, shape index: {}]
  %s21 = inlined_call_operand.hbm [shape: bf16[128,384], index: 21, kind: input, shape index: {}]
  %s22 = inlined_call_operand.hbm [shape: f32[1,384], index: 22, kind: input, shape index: {}]
  %s23 = inlined_call_operand.hbm [shape: bf16[128,128], index: 23, kind: input, shape index: {}]
  %s24 = inlined_call_operand.hbm [shape: f32[1,128], index: 24, kind: input, shape index: {}]
  %s25 = inlined_call_operand.vmem [shape: bf16[4,8,512], index: 25, kind: output, shape index: {}]
  %s26 = sld [smem:[#allocation0]]
  $region209: #{co_attention_forward.2} parent=0
    _
  %s28 = ssub.s32 1, %s26
  %s29 = scalar_select 0, %s28, %s26
  $region1: #{co_attention_forward.2} parent=0
    #allocation2 [shape = 'u8[32768]{0}', space=vmem, size = 0x8000, scoped, tag = 'input window, operand 3, single buffered']
    #allocation3 [shape = 's32[2]{0}', space=sflag, size = 0x8, scoped, tag = 'scoped memory for co_attention_forward.2']
    #allocation4 [shape = 'u8[512]{0}', space=vmem, size = 0x400, scoped, tag = 'input window, operand 6, single buffered']
    #allocation5 [shape = 's32[1]{0}', space=sflag, size = 0x4, scoped, tag = 'scoped memory for co_attention_forward.2']
    #allocation6 [shape = 'u8[32768]{0}', space=vmem, size = 0x8000, scoped, tag = 'input window, operand 7, single buffered']
    #allocation7 [shape = 'u8[512]{0}', space=vmem, size = 0x400, scoped, tag = 'input window, operand 8, single buffered']
    #allocation8 [shape = 's32[1]{0}', space=sflag, size = 0x4, scoped, tag = 'scoped memory for co_attention_forward.2']
    #allocation9 [shape = 'u8[98304]{0}', space=vmem, size = 0x18000, scoped, tag = 'input window, operand 9, single buffered']
    #allocation10 [shape = 'u8[1536]{0}', space=vmem, size = 0x800, scoped, tag = 'input window, operand 10, single buffered']
    #allocation11 [shape = 's32[1]{0}', space=sflag, size = 0x4, scoped, tag = 'scoped memory for co_attention_forward.2']
    #allocation12 [shape = 'u8[32768]{0}', space=vmem, size = 0x8000, scoped, tag = 'input window, operand 11, single buffered']
    #allocation13 [shape = 'u8[512]{0}', space=vmem, size = 0x400, scoped, tag = 'input window, operand 12, single buffered']
    #allocation14 [shape = 's32[1]{0}', space=sflag, size = 0x4, scoped, tag = 'scoped memory for co_attention_forward.2']
    #allocation15 [shape = 'u8[512]{0}', space=vmem, size = 0x400, scoped, tag = 'input window, operand 13, single buffered']
    #allocation16 [shape = 'u8[512]{0}', space=vmem, size = 0x400, scoped, tag = 'input window, operand 14, single buffered']
    #allocation17 [shape = 's32[1]{0}', space=sflag, size = 0x4, scoped, tag = 'scoped memory for co_attention_forward.2']
    #allocation18 [shape = 'u8[32768]{0}', space=vmem, size = 0x8000, scoped, tag = 'input window, operand 15, single buffered']
    #allocation19 [shape = 'u8[512]{0}', space=vmem, size = 0x400, scoped, tag = 'input window, operand 16, single buffered']
    #allocation20 [shape = 's32[1]{0}', space=sflag, size = 0x4, scoped, tag = 'scoped memory for co_attention_forward.2']
    #allocation21 [shape = 'u8[1536]{0}', space=vmem, size = 0x800, scoped, tag = 'input window, operand 18, single buffered']
    #allocation22 [shape = 'u8[32768]{0}', space=vmem, size = 0x8000, scoped, tag = 'input window, operand 19, single buffered']
    #allocation23 [shape = 's32[1]{0}', space=sflag, size = 0x4, scoped, tag = 'scoped memory for co_attention_forward.2']
    #allocation24 [shape = 'u8[512]{0}', space=vmem, size = 0x400, scoped, tag = 'input window, operand 20, single buffered']
    #allocation25 [shape = 'u8[98304]{0}', space=vmem, size = 0x18000, scoped, tag = 'input window, operand 21, single buffered']
    #allocation26 [shape = 's32[1]{0}', space=sflag, size = 0x4, scoped, tag = 'scoped memory for co_attention_forward.2']
    #allocation27 [shape = 'u8[1536]{0}', space=vmem, size = 0x800, scoped, tag = 'input window, operand 22, single buffered']
    #allocation28 [shape = 'u8[32768]{0}', space=vmem, size = 0x8000, scoped, tag = 'input window, operand 23, single buffered']
    #allocation29 [shape = 's32[1]{0}', space=sflag, size = 0x4, scoped, tag = 'scoped memory for co_attention_forward.2']
    #allocation30 [shape = 'u8[512]{0}', space=vmem, size = 0x400, scoped, tag = 'input window, operand 24, single buffered']
    %30 = vsyncpa [#allocation3], 0
    %31 = vsyncpa [#allocation5], 0
    %32 = vsyncpa [#allocation8], 0
    %33 = vsyncpa [#allocation11], 0
    %34 = vsyncpa [#allocation14], 0
    %35 = vsyncpa [#allocation17], 0
    %36 = vsyncpa [#allocation20], 0
    %37 = vsyncpa [#allocation23], 0
    %38 = vsyncpa [#allocation26], 0
    %39 = vsyncpa [#allocation29], 0
    loop: start=0, step=1, limit=4
    $region2: #{co_attention_forward.2} parent=1 // loop_pre_header
      _
    $region3: #{co_attention_forward.2} parent=1 // loop_header
      %s41 = sphi 0, %s45
      %p42 = scmp.ge.s32.totalorder %s41, 4
      %s51 = sphi 0, %s53
      %s54 = sphi 0, %s51
      %s55 = sphi 0, %s54
      %s71 = sphi 0, %s55
      %s77 = sphi 0, %s79
      %s80 = sphi 0, %s77
      %s81 = sphi 0, %s80
      %s97 = sphi 0, %s81
      %s103 = sphi 0, %s105
      %s106 = sphi 0, %s103
      %s107 = sphi 0, %s106
      %s123 = sphi 0, %s107
      %s127 = sphi 0, %s127
      %s129 = sphi 0, %s127
      %s130 = sphi 0, %s129
      %s144 = sphi 0, %s130
      %s148 = sphi 0, %s148
      %s150 = sphi 0, %s148
      %s151 = sphi 0, %s150
      %s165 = sphi 0, %s151
      %s169 = sphi 0, %s169
      %s171 = sphi 0, %s169
      %s172 = sphi 0, %s171
      %s186 = sphi 0, %s172
      %s190 = sphi 0, %s190
      %s192 = sphi 0, %s190
      %s193 = sphi 0, %s192
      %s207 = sphi 0, %s193
      %s211 = sphi 0, %s211
      %s213 = sphi 0, %s211
      %s214 = sphi 0, %s213
      %s228 = sphi 0, %s214
      %s232 = sphi 0, %s232
      %s234 = sphi 0, %s232
      %s235 = sphi 0, %s234
      %s249 = sphi 0, %s235
      %s253 = sphi 0, %s253
      %s255 = sphi 0, %s253
      %s256 = sphi 0, %s255
      %s270 = sphi 0, %s256
      %s274 = sphi 0, %s274
      %s276 = sphi 0, %s274
      %s277 = sphi 0, %s276
      %s291 = sphi 0, %s277
      %s295 = sphi 0, %s295
      %s297 = sphi 0, %s295
      %s298 = sphi 0, %s297
      %s312 = sphi 0, %s298
      %s316 = sphi 0, %s316
      %s318 = sphi 0, %s316
      %s319 = sphi 0, %s318
      %s333 = sphi 0, %s319
      %s337 = sphi 0, %s337
      %s339 = sphi 0, %s337
      %s340 = sphi 0, %s339
      %s354 = sphi 0, %s340
      %s358 = sphi 0, %s358
      %s360 = sphi 0, %s358
      %s361 = sphi 0, %s360
      %s375 = sphi 0, %s361
      %s379 = sphi 0, %s379
      %s381 = sphi 0, %s379
      %s382 = sphi 0, %s381
      %s396 = sphi 0, %s382
      %s400 = sphi 0, %s400
      %s402 = sphi 0, %s400
      %s403 = sphi 0, %s402
      %s417 = sphi 0, %s403
      %s421 = sphi 0, %s421
      %s423 = sphi 0, %s421
      %s424 = sphi 0, %s423
      %s438 = sphi 0, %s424
      %s442 = sphi 0, %s442
      %s444 = sphi 0, %s442
      %s445 = sphi 0, %s444
      %s459 = sphi 0, %s445
      %s463 = sphi 0, %s463
      %s465 = sphi 0, %s463
      %s466 = sphi 0, %s465
      %s480 = sphi 0, %s466
      %s484 = sphi 0, %s484
      %s486 = sphi 0, %s484
      %s487 = sphi 0, %s486
      %s501 = sphi 0, %s487
      %s505 = sphi 0, %s505
      %s507 = sphi 0, %s505
      %s508 = sphi 0, %s507
      %s522 = sphi 0, %s508
      %s526 = sphi 0, %s526
      %s528 = sphi 0, %s526
      %s529 = sphi 0, %s528
      %s543 = sphi 0, %s529
      %s547 = sphi 0, %s547
      %s549 = sphi 0, %s547
      %s550 = sphi 0, %s549
      %s564 = sphi 0, %s550
      %s568 = sphi 0, %s568
      %s570 = sphi 0, %s568
      %s571 = sphi 0, %s570
      %s585 = sphi 0, %s571
      %s591 = sphi 0, %s593
      %s594 = sphi 0, %s591
      %s595 = sphi 0, %s594
      %s611 = sphi 0, %s595
    $region4: #{co_attention_forward.2} parent=1 // loop_header_branch
      %44 = sbr.rel (%p42) target = $region8
    $region5: #{co_attention_forward.2} parent=1 // loop_body
      %s46 = ssub.s32 %s41, 1
      %s47 = ssub.s32 %s41, 2
      %s48 = sadd.s32 %s41, 1
      %s49 = ssub.s32 %s41, %s48
      %p50 = scmp.eq.s32.totalorder %s49, 0
      %s52 = sadd.s32 %s51, 1
      %s53 = scalar_select %p50, %s51, %s52
      %p56 = pneg %p50
      %p57 = scmp.eq.s32.totalorder %s41, 1
      %p58 = por %p56, %p57
      %p59 = scmp.ne.s32.totalorder %s51, %s54
      %p60 = scmp.eq.s32.totalorder %s41, 0
      %p61 = por %p59, %p60
      %p62 = scmp.ne.s32.totalorder %s51, %s54
      %p63 = scmp.eq.s32.totalorder %s46, 1
      %p64 = por %p62, %p63
      %p65 = scmp.ne.s32.totalorder %s54, %s55
      %p66 = scmp.eq.s32.totalorder %s46, 0
      %p67 = por %p65, %p66
      %p68 = scmp.ne.s32.totalorder %s54, %s55
      %p69 = scmp.eq.s32.totalorder %s47, 1
      %p70 = por %p68, %p69
      %p72 = scmp.ne.s32.totalorder %s55, %s71
      %p73 = scmp.eq.s32.totalorder %s47, 0
      %p74 = por %p72, %p73
      %s75 = ssub.s32 %s41, %s48
      %p76 = scmp.eq.s32.totalorder %s75, 0
      %s78 = sadd.s32 %s77, 1
      %s79 = scalar_select %p76, %s77, %s78
      %p82 = pneg %p76
      %p83 = scmp.eq.s32.totalorder %s41, 1
      %p84 = por %p82, %p83
      %p85 = scmp.ne.s32.totalorder %s77, %s80
      %p86 = scmp.eq.s32.totalorder %s41, 0
      %p87 = por %p85, %p86
      %p88 = scmp.ne.s32.totalorder %s77, %s80
      %p89 = scmp.eq.s32.totalorder %s46, 1
      %p90 = por %p88, %p89
      %p91 = scmp.ne.s32.totalorder %s80, %s81
      %p92 = scmp.eq.s32.totalorder %s46, 0
      %p93 = por %p91, %p92
      %p94 = scmp.ne.s32.totalorder %s80, %s81
      %p95 = scmp.eq.s32.totalorder %s47, 1
      %p96 = por %p94, %p95
      %p98 = scmp.ne.s32.totalorder %s81, %s97
      %p99 = scmp.eq.s32.totalorder %s47, 0
      %p100 = por %p98, %p99
      %s101 = ssub.s32 %s41, %s48
      %p102 = scmp.eq.s32.totalorder %s101, 0
      %s104 = sadd.s32 %s103, 1
      %s105 = scalar_select %p102, %s103, %s104
      %p108 = pneg %p102
      %p109 = scmp.eq.s32.totalorder %s41, 1
      %p110 = por %p108, %p109
      %p111 = scmp.ne.s32.totalorder %s103, %s106
      %p112 = scmp.eq.s32.totalorder %s41, 0
      %p113 = por %p111, %p112
      %p114 = scmp.ne.s32.totalorder %s103, %s106
      %p115 = scmp.eq.s32.totalorder %s46, 1
      %p116 = por %p114, %p115
      %p117 = scmp.ne.s32.totalorder %s106, %s107
      %p118 = scmp.eq.s32.totalorder %s46, 0
      %p119 = por %p117, %p118
      %p120 = scmp.ne.s32.totalorder %s106, %s107
      %p121 = scmp.eq.s32.totalorder %s47, 1
      %p122 = por %p120, %p121
      %p124 = scmp.ne.s32.totalorder %s107, %s123
      %p125 = scmp.eq.s32.totalorder %s47, 0
      %p126 = por %p124, %p125
      %s128 = sadd.s32 %s127, 1
      %p131 = scmp.eq.s32.totalorder %s41, 1
      %p132 = scmp.ne.s32.totalorder %s127, %s129
      %p133 = scmp.eq.s32.totalorder %s41, 0
      %p134 = por %p132, %p133
      %p135 = scmp.ne.s32.totalorder %s127, %s129
      %p136 = scmp.eq.s32.totalorder %s46, 1
      %p137 = por %p135, %p136
      %p138 = scmp.ne.s32.totalorder %s129, %s130
      %p139 = scmp.eq.s32.totalorder %s46, 0
      %p140 = por %p138, %p139
      %p141 = scmp.ne.s32.totalorder %s129, %s130
      %p142 = scmp.eq.s32.totalorder %s47, 1
      %p143 = por %p141, %p142
      %p145 = scmp.ne.s32.totalorder %s130, %s144
      %p146 = scmp.eq.s32.totalorder %s47, 0
      %p147 = por %p145, %p146
      %s149 = sadd.s32 %s148, 1
      %p152 = scmp.eq.s32.totalorder %s41, 1
      %p153 = scmp.ne.s32.totalorder %s148, %s150
      %p154 = scmp.eq.s32.totalorder %s41, 0
      %p155 = por %p153, %p154
      %p156 = scmp.ne.s32.totalorder %s148, %s150
      %p157 = scmp.eq.s32.totalorder %s46, 1
      %p158 = por %p156, %p157
      %p159 = scmp.ne.s32.totalorder %s150, %s151
      %p160 = scmp.eq.s32.totalorder %s46, 0
      %p161 = por %p159, %p160
      %p162 = scmp.ne.s32.totalorder %s150, %s151
      %p163 = scmp.eq.s32.totalorder %s47, 1
      %p164 = por %p162, %p163
      %p166 = scmp.ne.s32.totalorder %s151, %s165
      %p167 = scmp.eq.s32.totalorder %s47, 0
      %p168 = por %p166, %p167
      %s170 = sadd.s32 %s169, 1
      %p173 = scmp.eq.s32.totalorder %s41, 1
      %p174 = scmp.ne.s32.totalorder %s169, %s171
      %p175 = scmp.eq.s32.totalorder %s41, 0
      %p176 = por %p174, %p175
      %p177 = scmp.ne.s32.totalorder %s169, %s171
      %p178 = scmp.eq.s32.totalorder %s46, 1
      %p179 = por %p177, %p178
      %p180 = scmp.ne.s32.totalorder %s171, %s172
      %p181 = scmp.eq.s32.totalorder %s46, 0
      %p182 = por %p180, %p181
      %p183 = scmp.ne.s32.totalorder %s171, %s172
      %p184 = scmp.eq.s32.totalorder %s47, 1
      %p185 = por %p183, %p184
      %p187 = scmp.ne.s32.totalorder %s172, %s186
      %p188 = scmp.eq.s32.totalorder %s47, 0
      %p189 = por %p187, %p188
      %s191 = sadd.s32 %s190, 1
      %p194 = scmp.eq.s32.totalorder %s41, 1
      %p195 = scmp.ne.s32.totalorder %s190, %s192
      %p196 = scmp.eq.s32.totalorder %s41, 0
      %p197 = por %p195, %p196
      %p198 = scmp.ne.s32.totalorder %s190, %s192
      %p199 = scmp.eq.s32.totalorder %s46, 1
      %p200 = por %p198, %p199
      %p201 = scmp.ne.s32.totalorder %s192, %s193
      %p202 = scmp.eq.s32.totalorder %s46, 0
      %p203 = por %p201, %p202
      %p204 = scmp.ne.s32.totalorder %s192, %s193
      %p205 = scmp.eq.s32.totalorder %s47, 1
      %p206 = por %p204, %p205
      %p208 = scmp.ne.s32.totalorder %s193, %s207
      %p209 = scmp.eq.s32.totalorder %s47, 0
      %p210 = por %p208, %p209
      %s212 = sadd.s32 %s211, 1
      %p215 = scmp.eq.s32.totalorder %s41, 1
      %p216 = scmp.ne.s32.totalorder %s211, %s213
      %p217 = scmp.eq.s32.totalorder %s41, 0
      %p218 = por %p216, %p217
      %p219 = scmp.ne.s32.totalorder %s211, %s213
      %p220 = scmp.eq.s32.totalorder %s46, 1
      %p221 = por %p219, %p220
      %p222 = scmp.ne.s32.totalorder %s213, %s214
      %p223 = scmp.eq.s32.totalorder %s46, 0
      %p224 = por %p222, %p223
      %p225 = scmp.ne.s32.totalorder %s213, %s214
      %p226 = scmp.eq.s32.totalorder %s47, 1
      %p227 = por %p225, %p226
      %p229 = scmp.ne.s32.totalorder %s214, %s228
      %p230 = scmp.eq.s32.totalorder %s47, 0
      %p231 = por %p229, %p230
      %s233 = sadd.s32 %s232, 1
      %p236 = scmp.eq.s32.totalorder %s41, 1
      %p237 = scmp.ne.s32.totalorder %s232, %s234
      %p238 = scmp.eq.s32.totalorder %s41, 0
      %p239 = por %p237, %p238
      %p240 = scmp.ne.s32.totalorder %s232, %s234
      %p241 = scmp.eq.s32.totalorder %s46, 1
      %p242 = por %p240, %p241
      %p243 = scmp.ne.s32.totalorder %s234, %s235
      %p244 = scmp.eq.s32.totalorder %s46, 0
      %p245 = por %p243, %p244
      %p246 = scmp.ne.s32.totalorder %s234, %s235
      %p247 = scmp.eq.s32.totalorder %s47, 1
      %p248 = por %p246, %p247
      %p250 = scmp.ne.s32.totalorder %s235, %s249
      %p251 = scmp.eq.s32.totalorder %s47, 0
      %p252 = por %p250, %p251
      %s254 = sadd.s32 %s253, 1
      %p257 = scmp.eq.s32.totalorder %s41, 1
      %p258 = scmp.ne.s32.totalorder %s253, %s255
      %p259 = scmp.eq.s32.totalorder %s41, 0
      %p260 = por %p258, %p259
      %p261 = scmp.ne.s32.totalorder %s253, %s255
      %p262 = scmp.eq.s32.totalorder %s46, 1
      %p263 = por %p261, %p262
      %p264 = scmp.ne.s32.totalorder %s255, %s256
      %p265 = scmp.eq.s32.totalorder %s46, 0
      %p266 = por %p264, %p265
      %p267 = scmp.ne.s32.totalorder %s255, %s256
      %p268 = scmp.eq.s32.totalorder %s47, 1
      %p269 = por %p267, %p268
      %p271 = scmp.ne.s32.totalorder %s256, %s270
      %p272 = scmp.eq.s32.totalorder %s47, 0
      %p273 = por %p271, %p272
      %s275 = sadd.s32 %s274, 1
      %p278 = scmp.eq.s32.totalorder %s41, 1
      %p279 = scmp.ne.s32.totalorder %s274, %s276
      %p280 = scmp.eq.s32.totalorder %s41, 0
      %p281 = por %p279, %p280
      %p282 = scmp.ne.s32.totalorder %s274, %s276
      %p283 = scmp.eq.s32.totalorder %s46, 1
      %p284 = por %p282, %p283
      %p285 = scmp.ne.s32.totalorder %s276, %s277
      %p286 = scmp.eq.s32.totalorder %s46, 0
      %p287 = por %p285, %p286
      %p288 = scmp.ne.s32.totalorder %s276, %s277
      %p289 = scmp.eq.s32.totalorder %s47, 1
      %p290 = por %p288, %p289
      %p292 = scmp.ne.s32.totalorder %s277, %s291
      %p293 = scmp.eq.s32.totalorder %s47, 0
      %p294 = por %p292, %p293
      %s296 = sadd.s32 %s295, 1
      %p299 = scmp.eq.s32.totalorder %s41, 1
      %p300 = scmp.ne.s32.totalorder %s295, %s297
      %p301 = scmp.eq.s32.totalorder %s41, 0
      %p302 = por %p300, %p301
      %p303 = scmp.ne.s32.totalorder %s295, %s297
      %p304 = scmp.eq.s32.totalorder %s46, 1
      %p305 = por %p303, %p304
      %p306 = scmp.ne.s32.totalorder %s297, %s298
      %p307 = scmp.eq.s32.totalorder %s46, 0
      %p308 = por %p306, %p307
      %p309 = scmp.ne.s32.totalorder %s297, %s298
      %p310 = scmp.eq.s32.totalorder %s47, 1
      %p311 = por %p309, %p310
      %p313 = scmp.ne.s32.totalorder %s298, %s312
      %p314 = scmp.eq.s32.totalorder %s47, 0
      %p315 = por %p313, %p314
      %s317 = sadd.s32 %s316, 1
      %p320 = scmp.eq.s32.totalorder %s41, 1
      %p321 = scmp.ne.s32.totalorder %s316, %s318
      %p322 = scmp.eq.s32.totalorder %s41, 0
      %p323 = por %p321, %p322
      %p324 = scmp.ne.s32.totalorder %s316, %s318
      %p325 = scmp.eq.s32.totalorder %s46, 1
      %p326 = por %p324, %p325
      %p327 = scmp.ne.s32.totalorder %s318, %s319
      %p328 = scmp.eq.s32.totalorder %s46, 0
      %p329 = por %p327, %p328
      %p330 = scmp.ne.s32.totalorder %s318, %s319
      %p331 = scmp.eq.s32.totalorder %s47, 1
      %p332 = por %p330, %p331
      %p334 = scmp.ne.s32.totalorder %s319, %s333
      %p335 = scmp.eq.s32.totalorder %s47, 0
      %p336 = por %p334, %p335
      %s338 = sadd.s32 %s337, 1
      %p341 = scmp.eq.s32.totalorder %s41, 1
      %p342 = scmp.ne.s32.totalorder %s337, %s339
      %p343 = scmp.eq.s32.totalorder %s41, 0
      %p344 = por %p342, %p343
      %p345 = scmp.ne.s32.totalorder %s337, %s339
      %p346 = scmp.eq.s32.totalorder %s46, 1
      %p347 = por %p345, %p346
      %p348 = scmp.ne.s32.totalorder %s339, %s340
      %p349 = scmp.eq.s32.totalorder %s46, 0
      %p350 = por %p348, %p349
      %p351 = scmp.ne.s32.totalorder %s339, %s340
      %p352 = scmp.eq.s32.totalorder %s47, 1
      %p353 = por %p351, %p352
      %p355 = scmp.ne.s32.totalorder %s340, %s354
      %p356 = scmp.eq.s32.totalorder %s47, 0
      %p357 = por %p355, %p356
      %s359 = sadd.s32 %s358, 1
      %p362 = scmp.eq.s32.totalorder %s41, 1
      %p363 = scmp.ne.s32.totalorder %s358, %s360
      %p364 = scmp.eq.s32.totalorder %s41, 0
      %p365 = por %p363, %p364
      %p366 = scmp.ne.s32.totalorder %s358, %s360
      %p367 = scmp.eq.s32.totalorder %s46, 1
      %p368 = por %p366, %p367
      %p369 = scmp.ne.s32.totalorder %s360, %s361
      %p370 = scmp.eq.s32.totalorder %s46, 0
      %p371 = por %p369, %p370
      %p372 = scmp.ne.s32.totalorder %s360, %s361
      %p373 = scmp.eq.s32.totalorder %s47, 1
      %p374 = por %p372, %p373
      %p376 = scmp.ne.s32.totalorder %s361, %s375
      %p377 = scmp.eq.s32.totalorder %s47, 0
      %p378 = por %p376, %p377
      %s380 = sadd.s32 %s379, 1
      %p383 = scmp.eq.s32.totalorder %s41, 1
      %p384 = scmp.ne.s32.totalorder %s379, %s381
      %p385 = scmp.eq.s32.totalorder %s41, 0
      %p386 = por %p384, %p385
      %p387 = scmp.ne.s32.totalorder %s379, %s381
      %p388 = scmp.eq.s32.totalorder %s46, 1
      %p389 = por %p387, %p388
      %p390 = scmp.ne.s32.totalorder %s381, %s382
      %p391 = scmp.eq.s32.totalorder %s46, 0
      %p392 = por %p390, %p391
      %p393 = scmp.ne.s32.totalorder %s381, %s382
      %p394 = scmp.eq.s32.totalorder %s47, 1
      %p395 = por %p393, %p394
      %p397 = scmp.ne.s32.totalorder %s382, %s396
      %p398 = scmp.eq.s32.totalorder %s47, 0
      %p399 = por %p397, %p398
      %s401 = sadd.s32 %s400, 1
      %p404 = scmp.eq.s32.totalorder %s41, 1
      %p405 = scmp.ne.s32.totalorder %s400, %s402
      %p406 = scmp.eq.s32.totalorder %s41, 0
      %p407 = por %p405, %p406
      %p408 = scmp.ne.s32.totalorder %s400, %s402
      %p409 = scmp.eq.s32.totalorder %s46, 1
      %p410 = por %p408, %p409
      %p411 = scmp.ne.s32.totalorder %s402, %s403
      %p412 = scmp.eq.s32.totalorder %s46, 0
      %p413 = por %p411, %p412
      %p414 = scmp.ne.s32.totalorder %s402, %s403
      %p415 = scmp.eq.s32.totalorder %s47, 1
      %p416 = por %p414, %p415
      %p418 = scmp.ne.s32.totalorder %s403, %s417
      %p419 = scmp.eq.s32.totalorder %s47, 0
      %p420 = por %p418, %p419
      %s422 = sadd.s32 %s421, 1
      %p425 = scmp.eq.s32.totalorder %s41, 1
      %p426 = scmp.ne.s32.totalorder %s421, %s423
      %p427 = scmp.eq.s32.totalorder %s41, 0
      %p428 = por %p426, %p427
      %p429 = scmp.ne.s32.totalorder %s421, %s423
      %p430 = scmp.eq.s32.totalorder %s46, 1
      %p431 = por %p429, %p430
      %p432 = scmp.ne.s32.totalorder %s423, %s424
      %p433 = scmp.eq.s32.totalorder %s46, 0
      %p434 = por %p432, %p433
      %p435 = scmp.ne.s32.totalorder %s423, %s424
      %p436 = scmp.eq.s32.totalorder %s47, 1
      %p437 = por %p435, %p436
      %p439 = scmp.ne.s32.totalorder %s424, %s438
      %p440 = scmp.eq.s32.totalorder %s47, 0
      %p441 = por %p439, %p440
      %s443 = sadd.s32 %s442, 1
      %p446 = scmp.eq.s32.totalorder %s41, 1
      %p447 = scmp.ne.s32.totalorder %s442, %s444
      %p448 = scmp.eq.s32.totalorder %s41, 0
      %p449 = por %p447, %p448
      %p450 = scmp.ne.s32.totalorder %s442, %s444
      %p451 = scmp.eq.s32.totalorder %s46, 1
      %p452 = por %p450, %p451
      %p453 = scmp.ne.s32.totalorder %s444, %s445
      %p454 = scmp.eq.s32.totalorder %s46, 0
      %p455 = por %p453, %p454
      %p456 = scmp.ne.s32.totalorder %s444, %s445
      %p457 = scmp.eq.s32.totalorder %s47, 1
      %p458 = por %p456, %p457
      %p460 = scmp.ne.s32.totalorder %s445, %s459
      %p461 = scmp.eq.s32.totalorder %s47, 0
      %p462 = por %p460, %p461
      %s464 = sadd.s32 %s463, 1
      %p467 = scmp.eq.s32.totalorder %s41, 1
      %p468 = scmp.ne.s32.totalorder %s463, %s465
      %p469 = scmp.eq.s32.totalorder %s41, 0
      %p470 = por %p468, %p469
      %p471 = scmp.ne.s32.totalorder %s463, %s465
      %p472 = scmp.eq.s32.totalorder %s46, 1
      %p473 = por %p471, %p472
      %p474 = scmp.ne.s32.totalorder %s465, %s466
      %p475 = scmp.eq.s32.totalorder %s46, 0
      %p476 = por %p474, %p475
      %p477 = scmp.ne.s32.totalorder %s465, %s466
      %p478 = scmp.eq.s32.totalorder %s47, 1
      %p479 = por %p477, %p478
      %p481 = scmp.ne.s32.totalorder %s466, %s480
      %p482 = scmp.eq.s32.totalorder %s47, 0
      %p483 = por %p481, %p482
      %s485 = sadd.s32 %s484, 1
      %p488 = scmp.eq.s32.totalorder %s41, 1
      %p489 = scmp.ne.s32.totalorder %s484, %s486
      %p490 = scmp.eq.s32.totalorder %s41, 0
      %p491 = por %p489, %p490
      %p492 = scmp.ne.s32.totalorder %s484, %s486
      %p493 = scmp.eq.s32.totalorder %s46, 1
      %p494 = por %p492, %p493
      %p495 = scmp.ne.s32.totalorder %s486, %s487
      %p496 = scmp.eq.s32.totalorder %s46, 0
      %p497 = por %p495, %p496
      %p498 = scmp.ne.s32.totalorder %s486, %s487
      %p499 = scmp.eq.s32.totalorder %s47, 1
      %p500 = por %p498, %p499
      %p502 = scmp.ne.s32.totalorder %s487, %s501
      %p503 = scmp.eq.s32.totalorder %s47, 0
      %p504 = por %p502, %p503
      %s506 = sadd.s32 %s505, 1
      %p509 = scmp.eq.s32.totalorder %s41, 1
      %p510 = scmp.ne.s32.totalorder %s505, %s507
      %p511 = scmp.eq.s32.totalorder %s41, 0
      %p512 = por %p510, %p511
      %p513 = scmp.ne.s32.totalorder %s505, %s507
      %p514 = scmp.eq.s32.totalorder %s46, 1
      %p515 = por %p513, %p514
      %p516 = scmp.ne.s32.totalorder %s507, %s508
      %p517 = scmp.eq.s32.totalorder %s46, 0
      %p518 = por %p516, %p517
      %p519 = scmp.ne.s32.totalorder %s507, %s508
      %p520 = scmp.eq.s32.totalorder %s47, 1
      %p521 = por %p519, %p520
      %p523 = scmp.ne.s32.totalorder %s508, %s522
      %p524 = scmp.eq.s32.totalorder %s47, 0
      %p525 = por %p523, %p524
      %s527 = sadd.s32 %s526, 1
      %p530 = scmp.eq.s32.totalorder %s41, 1
      %p531 = scmp.ne.s32.totalorder %s526, %s528
      %p532 = scmp.eq.s32.totalorder %s41, 0
      %p533 = por %p531, %p532
      %p534 = scmp.ne.s32.totalorder %s526, %s528
      %p535 = scmp.eq.s32.totalorder %s46, 1
      %p536 = por %p534, %p535
      %p537 = scmp.ne.s32.totalorder %s528, %s529
      %p538 = scmp.eq.s32.totalorder %s46, 0
      %p539 = por %p537, %p538
      %p540 = scmp.ne.s32.totalorder %s528, %s529
      %p541 = scmp.eq.s32.totalorder %s47, 1
      %p542 = por %p540, %p541
      %p544 = scmp.ne.s32.totalorder %s529, %s543
      %p545 = scmp.eq.s32.totalorder %s47, 0
      %p546 = por %p544, %p545
      %s548 = sadd.s32 %s547, 1
      %p551 = scmp.eq.s32.totalorder %s41, 1
      %p552 = scmp.ne.s32.totalorder %s547, %s549
      %p553 = scmp.eq.s32.totalorder %s41, 0
      %p554 = por %p552, %p553
      %p555 = scmp.ne.s32.totalorder %s547, %s549
      %p556 = scmp.eq.s32.totalorder %s46, 1
      %p557 = por %p555, %p556
      %p558 = scmp.ne.s32.totalorder %s549, %s550
      %p559 = scmp.eq.s32.totalorder %s46, 0
      %p560 = por %p558, %p559
      %p561 = scmp.ne.s32.totalorder %s549, %s550
      %p562 = scmp.eq.s32.totalorder %s47, 1
      %p563 = por %p561, %p562
      %p565 = scmp.ne.s32.totalorder %s550, %s564
      %p566 = scmp.eq.s32.totalorder %s47, 0
      %p567 = por %p565, %p566
      %s569 = sadd.s32 %s568, 1
      %p572 = scmp.eq.s32.totalorder %s41, 1
      %p573 = scmp.ne.s32.totalorder %s568, %s570
      %p574 = scmp.eq.s32.totalorder %s41, 0
      %p575 = por %p573, %p574
      %p576 = scmp.ne.s32.totalorder %s568, %s570
      %p577 = scmp.eq.s32.totalorder %s46, 1
      %p578 = por %p576, %p577
      %p579 = scmp.ne.s32.totalorder %s570, %s571
      %p580 = scmp.eq.s32.totalorder %s46, 0
      %p581 = por %p579, %p580
      %p582 = scmp.ne.s32.totalorder %s570, %s571
      %p583 = scmp.eq.s32.totalorder %s47, 1
      %p584 = por %p582, %p583
      %p586 = scmp.ne.s32.totalorder %s571, %s585
      %p587 = scmp.eq.s32.totalorder %s47, 0
      %p588 = por %p586, %p587
      %s589 = ssub.s32 %s41, %s48
      %p590 = scmp.eq.s32.totalorder %s589, 0
      %s592 = sadd.s32 %s591, 1
      %s593 = scalar_select %p590, %s591, %s592
      %p596 = pneg %p590
      %p597 = scmp.eq.s32.totalorder %s41, 1
      %p598 = por %p596, %p597
      %p599 = scmp.ne.s32.totalorder %s591, %s594
      %p600 = scmp.eq.s32.totalorder %s41, 0
      %p601 = por %p599, %p600
      %p602 = scmp.ne.s32.totalorder %s591, %s594
      %p603 = scmp.eq.s32.totalorder %s46, 1
      %p604 = por %p602, %p603
      %p605 = scmp.ne.s32.totalorder %s594, %s595
      %p606 = scmp.eq.s32.totalorder %s46, 0
      %p607 = por %p605, %p606
      %p608 = scmp.ne.s32.totalorder %s594, %s595
      %p609 = scmp.eq.s32.totalorder %s47, 1
      %p610 = por %p608, %p609
      %p612 = scmp.ne.s32.totalorder %s595, %s611
      %p613 = scmp.eq.s32.totalorder %s47, 0
      %p614 = por %p612, %p613
      %p615 = scmp.le.s32.totalorder 1, %s41
      %p616 = scmp.lt.s32.totalorder %s41, 3
      %p617 = pnand %p615, %p616
      %p618 = pneg %p617
      // Predicated region
      $region9: #{co_attention_forward.2} parent=5 // pred_check
        _
      $region10: #{co_attention_forward.2} parent=5 // pred_check_branch
        %620 = sbr.rel (%p617) target = $region12
      $region11: #{co_attention_forward.2} parent=5 // pred_region
        %s621 = ssub.s32 %s41, 1
        // Predicated region
        $region13: #{co_attention_forward.2} parent=11 // pred_check
          %p622 = pneg %p140
        $region14: #{co_attention_forward.2} parent=11 // pred_check_branch
          %624 = sbr.rel (%p622) target = $region16
        $region15: #{co_attention_forward.2} parent=11 // pred_region
          %s626 = ssub.s32 1024, 1024
          %627 = vsyncadd [#allocation3], %s626
          %s628 = sshll.u32 [#allocation2], 4
          %s629 = int_to_ptr.vmem [resolvable:$true] %s628
          %634 = dma.hbm_to_vmem [thread:$0]  %s3, 1024, %s629, [#allocation3], 64, 64, 4
        $region16: #{co_attention_forward.2} parent=11 // pred_fallthru
          _
        // Predicated region
        $region17: #{co_attention_forward.2} parent=11 // pred_check
          %p635 = pneg %p161
        $region18: #{co_attention_forward.2} parent=11 // pred_check_branch
          %637 = sbr.rel (%p635) target = $region20
        $region19: #{co_attention_forward.2} parent=11 // pred_region
          _
        $region20: #{co_attention_forward.2} parent=11 // pred_fallthru
          _
        // Predicated region
        $region21: #{co_attention_forward.2} parent=11 // pred_check
          %p638 = pneg %p182
        $region22: #{co_attention_forward.2} parent=11 // pred_check_branch
          %640 = sbr.rel (%p638) target = $region24
        $region23: #{co_attention_forward.2} parent=11 // pred_region
          _
        $region24: #{co_attention_forward.2} parent=11 // pred_fallthru
          _
        // Predicated region
        $region25: #{co_attention_forward.2} parent=11 // pred_check
          %p641 = pneg %p203
        $region26: #{co_attention_forward.2} parent=11 // pred_check_branch
          %643 = sbr.rel (%p641) target = $region28
        $region27: #{co_attention_forward.2} parent=11 // pred_region
          %s645 = ssub.s32 16, 16
          %646 = vsyncadd [#allocation5], %s645
          %s648 = sshll.u32 [#allocation4], 4
          %s649 = int_to_ptr.vmem [resolvable:$true] %s648
          %651 = dma.hbm_to_vmem [thread:$0]  %s6, 16, %s649, [#allocation5]
        $region28: #{co_attention_forward.2} parent=11 // pred_fallthru
          _
        // Predicated region
        $region29: #{co_attention_forward.2} parent=11 // pred_check
          %p652 = pneg %p224
        $region30: #{co_attention_forward.2} parent=11 // pred_check_branch
          %654 = sbr.rel (%p652) target = $region32
        $region31: #{co_attention_forward.2} parent=11 // pred_region
          %s656 = ssub.s32 1024, 1024
          %657 = vsyncadd [#allocation5], %s656
          %s658 = sshll.u32 [#allocation6], 4
          %s659 = int_to_ptr.vmem [resolvable:$true] %s658
          %664 = dma.hbm_to_vmem [thread:$0]  %s7, 1024, %s659, [#allocation5], 64, 64, 4
        $region32: #{co_attention_forward.2} parent=11 // pred_fallthru
          _
        // Predicated region
        $region33: #{co_attention_forward.2} parent=11 // pred_check
          %p665 = pneg %p245
        $region34: #{co_attention_forward.2} parent=11 // pred_check_branch
          %667 = sbr.rel (%p665) target = $region36
        $region35: #{co_attention_forward.2} parent=11 // pred_region
          %s669 = ssub.s32 16, 16
          %670 = vsyncadd [#allocation8], %s669
          %s672 = sshll.u32 [#allocation7], 4
          %s673 = int_to_ptr.vmem [resolvable:$true] %s672
          %675 = dma.hbm_to_vmem [thread:$0]  %s8, 16, %s673, [#allocation8]
        $region36: #{co_attention_forward.2} parent=11 // pred_fallthru
          _
        // Predicated region
        $region37: #{co_attention_forward.2} parent=11 // pred_check
          %p676 = pneg %p266
        $region38: #{co_attention_forward.2} parent=11 // pred_check_branch
          %678 = sbr.rel (%p676) target = $region40
        $region39: #{co_attention_forward.2} parent=11 // pred_region
          %s680 = ssub.s32 3072, 3072
          %681 = vsyncadd [#allocation8], %s680
          %s682 = sshll.u32 [#allocation9], 4
          %s683 = int_to_ptr.vmem [resolvable:$true] %s682
          %688 = dma.hbm_to_vmem [thread:$0]  %s9, 3072, %s683, [#allocation8], 192, 192, 12
        $region40: #{co_attention_forward.2} parent=11 // pred_fallthru
          _
        // Predicated region
        $region41: #{co_attention_forward.2} parent=11 // pred_check
          %p689 = pneg %p287
        $region42: #{co_attention_forward.2} parent=11 // pred_check_branch
          %691 = sbr.rel (%p689) target = $region44
        $region43: #{co_attention_forward.2} parent=11 // pred_region
          %s693 = ssub.s32 48, 48
          %694 = vsyncadd [#allocation11], %s693
          %s696 = sshll.u32 [#allocation10], 4
          %s697 = int_to_ptr.vmem [resolvable:$true] %s696
          %699 = dma.hbm_to_vmem [thread:$0]  %s10, 48, %s697, [#allocation11]
        $region44: #{co_attention_forward.2} parent=11 // pred_fallthru
          _
        // Predicated region
        $region45: #{co_attention_forward.2} parent=11 // pred_check
          %p700 = pneg %p308
        $region46: #{co_attention_forward.2} parent=11 // pred_check_branch
          %702 = sbr.rel (%p700) target = $region48
        $region47: #{co_attention_forward.2} parent=11 // pred_region
          %s704 = ssub.s32 1024, 1024
          %705 = vsyncadd [#allocation11], %s704
          %s706 = sshll.u32 [#allocation12], 4
          %s707 = int_to_ptr.vmem [resolvable:$true] %s706
          %712 = dma.hbm_to_vmem [thread:$0]  %s11, 1024, %s707, [#allocation11], 64, 64, 4
        $region48: #{co_attention_forward.2} parent=11 // pred_fallthru
          _
        // Predicated region
        $region49: #{co_attention_forward.2} parent=11 // pred_check
          %p713 = pneg %p329
        $region50: #{co_attention_forward.2} parent=11 // pred_check_branch
          %715 = sbr.rel (%p713) target = $region52
        $region51: #{co_attention_forward.2} parent=11 // pred_region
          %s717 = ssub.s32 16, 16
          %718 = vsyncadd [#allocation14], %s717
          %s720 = sshll.u32 [#allocation13], 4
          %s721 = int_to_ptr.vmem [resolvable:$true] %s720
          %723 = dma.hbm_to_vmem [thread:$0]  %s12, 16, %s721, [#allocation14]
        $region52: #{co_attention_forward.2} parent=11 // pred_fallthru
          _
        // Predicated region
        $region53: #{co_attention_forward.2} parent=11 // pred_check
          %p724 = pneg %p350
        $region54: #{co_attention_forward.2} parent=11 // pred_check_branch
          %726 = sbr.rel (%p724) target = $region56
        $region55: #{co_attention_forward.2} parent=11 // pred_region
          %s728 = ssub.s32 16, 16
          %729 = vsyncadd [#allocation14], %s728
          %s731 = sshll.u32 [#allocation15], 4
          %s732 = int_to_ptr.vmem [resolvable:$true] %s731
          %734 = dma.hbm_to_vmem [thread:$0]  %s13, 16, %s732, [#allocation14]
        $region56: #{co_attention_forward.2} parent=11 // pred_fallthru
          _
        // Predicated region
        $region57: #{co_attention_forward.2} parent=11 // pred_check
          %p735 = pneg %p371
        $region58: #{co_attention_forward.2} parent=11 // pred_check_branch
          %737 = sbr.rel (%p735) target = $region60
        $region59: #{co_attention_forward.2} parent=11 // pred_region
          %s739 = ssub.s32 16, 16
          %740 = vsyncadd [#allocation17], %s739
          %s742 = sshll.u32 [#allocation16], 4
          %s743 = int_to_ptr.vmem [resolvable:$true] %s742
          %745 = dma.hbm_to_vmem [thread:$0]  %s14, 16, %s743, [#allocation17]
        $region60: #{co_attention_forward.2} parent=11 // pred_fallthru
          _
        // Predicated region
        $region61: #{co_attention_forward.2} parent=11 // pred_check
          %p746 = pneg %p392
        $region62: #{co_attention_forward.2} parent=11 // pred_check_branch
          %748 = sbr.rel (%p746) target = $region64
        $region63: #{co_attention_forward.2} parent=11 // pred_region
          %s750 = ssub.s32 1024, 1024
          %751 = vsyncadd [#allocation17], %s750
          %s752 = sshll.u32 [#allocation18], 4
          %s753 = int_to_ptr.vmem [resolvable:$true] %s752
          %758 = dma.hbm_to_vmem [thread:$0]  %s15, 1024, %s753, [#allocation17], 64, 64, 4
        $region64: #{co_attention_forward.2} parent=11 // pred_fallthru
          _
        // Predicated region
        $region65: #{co_attention_forward.2} parent=11 // pred_check
          %p759 = pneg %p413
        $region66: #{co_attention_forward.2} parent=11 // pred_check_branch
          %761 = sbr.rel (%p759) target = $region68
        $region67: #{co_attention_forward.2} parent=11 // pred_region
          %s763 = ssub.s32 16, 16
          %764 = vsyncadd [#allocation20], %s763
          %s766 = sshll.u32 [#allocation19], 4
          %s767 = int_to_ptr.vmem [resolvable:$true] %s766
          %769 = dma.hbm_to_vmem [thread:$0]  %s16, 16, %s767, [#allocation20]
        $region68: #{co_attention_forward.2} parent=11 // pred_fallthru
          _
        // Predicated region
        $region69: #{co_attention_forward.2} parent=11 // pred_check
          %p770 = pneg %p434
        $region70: #{co_attention_forward.2} parent=11 // pred_check_branch
          %772 = sbr.rel (%p770) target = $region72
        $region71: #{co_attention_forward.2} parent=11 // pred_region
          _
        $region72: #{co_attention_forward.2} parent=11 // pred_fallthru
          _
        // Predicated region
        $region73: #{co_attention_forward.2} parent=11 // pred_check
          %p773 = pneg %p455
        $region74: #{co_attention_forward.2} parent=11 // pred_check_branch
          %775 = sbr.rel (%p773) target = $region76
        $region75: #{co_attention_forward.2} parent=11 // pred_region
          %s777 = ssub.s32 48, 48
          %778 = vsyncadd [#allocation20], %s777
          %s780 = sshll.u32 [#allocation21], 4
          %s781 = int_to_ptr.vmem [resolvable:$true] %s780
          %783 = dma.hbm_to_vmem [thread:$0]  %s18, 48, %s781, [#allocation20]
        $region76: #{co_attention_forward.2} parent=11 // pred_fallthru
          _
        // Predicated region
        $region77: #{co_attention_forward.2} parent=11 // pred_check
          %p784 = pneg %p476
        $region78: #{co_attention_forward.2} parent=11 // pred_check_branch
          %786 = sbr.rel (%p784) target = $region80
        $region79: #{co_attention_forward.2} parent=11 // pred_region
          %s788 = ssub.s32 1024, 1024
          %789 = vsyncadd [#allocation23], %s788
          %s790 = sshll.u32 [#allocation22], 4
          %s791 = int_to_ptr.vmem [resolvable:$true] %s790
          %796 = dma.hbm_to_vmem [thread:$0]  %s19, 1024, %s791, [#allocation23], 64, 64, 4
        $region80: #{co_attention_forward.2} parent=11 // pred_fallthru
          _
        // Predicated region
        $region81: #{co_attention_forward.2} parent=11 // pred_check
          %p797 = pneg %p497
        $region82: #{co_attention_forward.2} parent=11 // pred_check_branch
          %799 = sbr.rel (%p797) target = $region84
        $region83: #{co_attention_forward.2} parent=11 // pred_region
          %s801 = ssub.s32 16, 16
          %802 = vsyncadd [#allocation23], %s801
          %s804 = sshll.u32 [#allocation24], 4
          %s805 = int_to_ptr.vmem [resolvable:$true] %s804
          %807 = dma.hbm_to_vmem [thread:$0]  %s20, 16, %s805, [#allocation23]
        $region84: #{co_attention_forward.2} parent=11 // pred_fallthru
          _
        // Predicated region
        $region85: #{co_attention_forward.2} parent=11 // pred_check
          %p808 = pneg %p518
        $region86: #{co_attention_forward.2} parent=11 // pred_check_branch
          %810 = sbr.rel (%p808) target = $region88
        $region87: #{co_attention_forward.2} parent=11 // pred_region
          %s812 = ssub.s32 3072, 3072
          %813 = vsyncadd [#allocation26], %s812
          %s814 = sshll.u32 [#allocation25], 4
          %s815 = int_to_ptr.vmem [resolvable:$true] %s814
          %820 = dma.hbm_to_vmem [thread:$0]  %s21, 3072, %s815, [#allocation26], 192, 192, 12
        $region88: #{co_attention_forward.2} parent=11 // pred_fallthru
          _
        // Predicated region
        $region89: #{co_attention_forward.2} parent=11 // pred_check
          %p821 = pneg %p539
        $region90: #{co_attention_forward.2} parent=11 // pred_check_branch
          %823 = sbr.rel (%p821) target = $region92
        $region91: #{co_attention_forward.2} parent=11 // pred_region
          %s825 = ssub.s32 48, 48
          %826 = vsyncadd [#allocation26], %s825
          %s828 = sshll.u32 [#allocation27], 4
          %s829 = int_to_ptr.vmem [resolvable:$true] %s828
          %831 = dma.hbm_to_vmem [thread:$0]  %s22, 48, %s829, [#allocation26]
        $region92: #{co_attention_forward.2} parent=11 // pred_fallthru
          _
        // Predicated region
        $region93: #{co_attention_forward.2} parent=11 // pred_check
          %p832 = pneg %p560
        $region94: #{co_attention_forward.2} parent=11 // pred_check_branch
          %834 = sbr.rel (%p832) target = $region96
        $region95: #{co_attention_forward.2} parent=11 // pred_region
          %s836 = ssub.s32 1024, 1024
          %837 = vsyncadd [#allocation29], %s836
          %s838 = sshll.u32 [#allocation28], 4
          %s839 = int_to_ptr.vmem [resolvable:$true] %s838
          %844 = dma.hbm_to_vmem [thread:$0]  %s23, 1024, %s839, [#allocation29], 64, 64, 4
        $region96: #{co_attention_forward.2} parent=11 // pred_fallthru
          _
        // Predicated region
        $region97: #{co_attention_forward.2} parent=11 // pred_check
          %p845 = pneg %p581
        $region98: #{co_attention_forward.2} parent=11 // pred_check_branch
          %847 = sbr.rel (%p845) target = $region100
        $region99: #{co_attention_forward.2} parent=11 // pred_region
          %s849 = ssub.s32 16, 16
          %850 = vsyncadd [#allocation29], %s849
          %s852 = sshll.u32 [#allocation30], 4
          %s853 = int_to_ptr.vmem [resolvable:$true] %s852
          %855 = dma.hbm_to_vmem [thread:$0]  %s24, 16, %s853, [#allocation29]
        $region100: #{co_attention_forward.2} parent=11 // pred_fallthru
          _
      $region12: #{co_attention_forward.2} parent=5 // pred_fallthru
        _
      %p856 = scmp.lt.s32.totalorder %s41, 2
      // Predicated region
      $region101: #{co_attention_forward.2} parent=5 // pred_check
        %p857 = pneg %p856
      $region102: #{co_attention_forward.2} parent=5 // pred_check_branch
        %859 = sbr.rel (%p857) target = $region104
      $region103: #{co_attention_forward.2} parent=5 // pred_region
        // Predicated region
        $region105: #{co_attention_forward.2} parent=103 // pred_check
          %p860 = pneg %p61
        $region106: #{co_attention_forward.2} parent=103 // pred_check_branch
          %862 = sbr.rel (%p860) target = $region108
        $region107: #{co_attention_forward.2} parent=103 // pred_region
          %s863 = smul.u32 2, %s41
          %p864 = scmp.lt.s32.totalorder %s863, 3
          %s865 = scalar_select %p864, %s863, 3
          %s866 = smul.addr %s865, 4
          %s867 = scalar_lea.vmem %s0, %s866
          %s868 = smul.u32 2, %s41
        $region108: #{co_attention_forward.2} parent=103 // pred_fallthru
          _
        // Predicated region
        $region109: #{co_attention_forward.2} parent=103 // pred_check
          %p869 = pneg %p87
        $region110: #{co_attention_forward.2} parent=103 // pred_check_branch
          %871 = sbr.rel (%p869) target = $region112
        $region111: #{co_attention_forward.2} parent=103 // pred_region
          %s872 = smul.u32 2, %s41
          %p873 = scmp.lt.s32.totalorder %s872, 3
          %s874 = scalar_select %p873, %s872, 3
          %s875 = smul.addr %s874, 4
          %s876 = scalar_lea.vmem %s1, %s875
          %s877 = smul.u32 2, %s41
        $region112: #{co_attention_forward.2} parent=103 // pred_fallthru
          _
        // Predicated region
        $region113: #{co_attention_forward.2} parent=103 // pred_check
          %p878 = pneg %p113
        $region114: #{co_attention_forward.2} parent=103 // pred_check_branch
          %880 = sbr.rel (%p878) target = $region116
        $region115: #{co_attention_forward.2} parent=103 // pred_region
          %s881 = smul.u32 2, %s41
          %p882 = scmp.lt.s32.totalorder %s881, 3
          %s883 = scalar_select %p882, %s881, 3
          %s884 = smul.addr %s883, 8
          %s885 = scalar_lea.vmem %s2, %s884
          %s886 = smul.u32 2, %s41
        $region116: #{co_attention_forward.2} parent=103 // pred_fallthru
          _
      $region104: #{co_attention_forward.2} parent=5 // pred_fallthru
        _
      %p887 = scmp.le.s32.totalorder 1, %s41
      %p888 = scmp.lt.s32.totalorder %s41, 3
      %p889 = pnand %p887, %p888
      %p890 = pneg %p889
      // Predicated region
      $region117: #{co_attention_forward.2} parent=5 // pred_check
        _
      $region118: #{co_attention_forward.2} parent=5 // pred_check_branch
        %892 = sbr.rel (%p889) target = $region120
      $region119: #{co_attention_forward.2} parent=5 // pred_region
        %s893 = ssub.s32 %s41, 1
        // Predicated region
        $region121: #{co_attention_forward.2} parent=119 // pred_check
          %p894 = pneg %p140
        $region122: #{co_attention_forward.2} parent=119 // pred_check_branch
          %896 = sbr.rel (%p894) target = $region124
        $region123: #{co_attention_forward.2} parent=119 // pred_region
          %897 = dma.done [#allocation3], 1024
        $region124: #{co_attention_forward.2} parent=119 // pred_fallthru
          _
        // Predicated region
        $region125: #{co_attention_forward.2} parent=119 // pred_check
          %p898 = pneg %p203
        $region126: #{co_attention_forward.2} parent=119 // pred_check_branch
          %900 = sbr.rel (%p898) target = $region128
        $region127: #{co_attention_forward.2} parent=119 // pred_region
          %901 = dma.done [#allocation5], 16
        $region128: #{co_attention_forward.2} parent=119 // pred_fallthru
          _
        // Predicated region
        $region129: #{co_attention_forward.2} parent=119 // pred_check
          %p902 = pneg %p224
        $region130: #{co_attention_forward.2} parent=119 // pred_check_branch
          %904 = sbr.rel (%p902) target = $region132
        $region131: #{co_attention_forward.2} parent=119 // pred_region
          %905 = dma.done [#allocation5], 1024
        $region132: #{co_attention_forward.2} parent=119 // pred_fallthru
          _
        // Predicated region
        $region133: #{co_attention_forward.2} parent=119 // pred_check
          %p906 = pneg %p245
        $region134: #{co_attention_forward.2} parent=119 // pred_check_branch
          %908 = sbr.rel (%p906) target = $region136
        $region135: #{co_attention_forward.2} parent=119 // pred_region
          %909 = dma.done [#allocation8], 16
        $region136: #{co_attention_forward.2} parent=119 // pred_fallthru
          _
        // Predicated region
        $region137: #{co_attention_forward.2} parent=119 // pred_check
          %p910 = pneg %p266
        $region138: #{co_attention_forward.2} parent=119 // pred_check_branch
          %912 = sbr.rel (%p910) target = $region140
        $region139: #{co_attention_forward.2} parent=119 // pred_region
          %913 = dma.done [#allocation8], 3072
        $region140: #{co_attention_forward.2} parent=119 // pred_fallthru
          _
        // Predicated region
        $region141: #{co_attention_forward.2} parent=119 // pred_check
          %p914 = pneg %p287
        $region142: #{co_attention_forward.2} parent=119 // pred_check_branch
          %916 = sbr.rel (%p914) target = $region144
        $region143: #{co_attention_forward.2} parent=119 // pred_region
          %917 = dma.done [#allocation11], 48
        $region144: #{co_attention_forward.2} parent=119 // pred_fallthru
          _
        // Predicated region
        $region145: #{co_attention_forward.2} parent=119 // pred_check
          %p918 = pneg %p308
        $region146: #{co_attention_forward.2} parent=119 // pred_check_branch
          %920 = sbr.rel (%p918) target = $region148
        $region147: #{co_attention_forward.2} parent=119 // pred_region
          %921 = dma.done [#allocation11], 1024
        $region148: #{co_attention_forward.2} parent=119 // pred_fallthru
          _
        // Predicated region
        $region149: #{co_attention_forward.2} parent=119 // pred_check
          %p922 = pneg %p329
        $region150: #{co_attention_forward.2} parent=119 // pred_check_branch
          %924 = sbr.rel (%p922) target = $region152
        $region151: #{co_attention_forward.2} parent=119 // pred_region
          %925 = dma.done [#allocation14], 16
        $region152: #{co_attention_forward.2} parent=119 // pred_fallthru
          _
        // Predicated region
        $region153: #{co_attention_forward.2} parent=119 // pred_check
          %p926 = pneg %p350
        $region154: #{co_attention_forward.2} parent=119 // pred_check_branch
          %928 = sbr.rel (%p926) target = $region156
        $region155: #{co_attention_forward.2} parent=119 // pred_region
          %929 = dma.done [#allocation14], 16
        $region156: #{co_attention_forward.2} parent=119 // pred_fallthru
          _
        // Predicated region
        $region157: #{co_attention_forward.2} parent=119 // pred_check
          %p930 = pneg %p371
        $region158: #{co_attention_forward.2} parent=119 // pred_check_branch
          %932 = sbr.rel (%p930) target = $region160
        $region159: #{co_attention_forward.2} parent=119 // pred_region
          %933 = dma.done [#allocation17], 16
        $region160: #{co_attention_forward.2} parent=119 // pred_fallthru
          _
        // Predicated region
        $region161: #{co_attention_forward.2} parent=119 // pred_check
          %p934 = pneg %p392
        $region162: #{co_attention_forward.2} parent=119 // pred_check_branch
          %936 = sbr.rel (%p934) target = $region164
        $region163: #{co_attention_forward.2} parent=119 // pred_region
          %937 = dma.done [#allocation17], 1024
        $region164: #{co_attention_forward.2} parent=119 // pred_fallthru
          _
        // Predicated region
        $region165: #{co_attention_forward.2} parent=119 // pred_check
          %p938 = pneg %p413
        $region166: #{co_attention_forward.2} parent=119 // pred_check_branch
          %940 = sbr.rel (%p938) target = $region168
        $region167: #{co_attention_forward.2} parent=119 // pred_region
          %941 = dma.done [#allocation20], 16
        $region168: #{co_attention_forward.2} parent=119 // pred_fallthru
          _
        // Predicated region
        $region169: #{co_attention_forward.2} parent=119 // pred_check
          %p942 = pneg %p455
        $region170: #{co_attention_forward.2} parent=119 // pred_check_branch
          %944 = sbr.rel (%p942) target = $region172
        $region171: #{co_attention_forward.2} parent=119 // pred_region
          %945 = dma.done [#allocation20], 48
        $region172: #{co_attention_forward.2} parent=119 // pred_fallthru
          _
        // Predicated region
        $region173: #{co_attention_forward.2} parent=119 // pred_check
          %p946 = pneg %p476
        $region174: #{co_attention_forward.2} parent=119 // pred_check_branch
          %948 = sbr.rel (%p946) target = $region176
        $region175: #{co_attention_forward.2} parent=119 // pred_region
          %949 = dma.done [#allocation23], 1024
        $region176: #{co_attention_forward.2} parent=119 // pred_fallthru
          _
        // Predicated region
        $region177: #{co_attention_forward.2} parent=119 // pred_check
          %p950 = pneg %p497
        $region178: #{co_attention_forward.2} parent=119 // pred_check_branch
          %952 = sbr.rel (%p950) target = $region180
        $region179: #{co_attention_forward.2} parent=119 // pred_region
          %953 = dma.done [#allocation23], 16
        $region180: #{co_attention_forward.2} parent=119 // pred_fallthru
          _
        // Predicated region
        $region181: #{co_attention_forward.2} parent=119 // pred_check
          %p954 = pneg %p518
        $region182: #{co_attention_forward.2} parent=119 // pred_check_branch
          %956 = sbr.rel (%p954) target = $region184
        $region183: #{co_attention_forward.2} parent=119 // pred_region
          %957 = dma.done [#allocation26], 3072
        $region184: #{co_attention_forward.2} parent=119 // pred_fallthru
          _
        // Predicated region
        $region185: #{co_attention_forward.2} parent=119 // pred_check
          %p958 = pneg %p539
        $region186: #{co_attention_forward.2} parent=119 // pred_check_branch
          %960 = sbr.rel (%p958) target = $region188
        $region187: #{co_attention_forward.2} parent=119 // pred_region
          %961 = dma.done [#allocation26], 48
        $region188: #{co_attention_forward.2} parent=119 // pred_fallthru
          _
        // Predicated region
        $region189: #{co_attention_forward.2} parent=119 // pred_check
          %p962 = pneg %p560
        $region190: #{co_attention_forward.2} parent=119 // pred_check_branch
          %964 = sbr.rel (%p962) target = $region192
        $region191: #{co_attention_forward.2} parent=119 // pred_region
          %965 = dma.done [#allocation29], 1024
        $region192: #{co_attention_forward.2} parent=119 // pred_fallthru
          _
        // Predicated region
        $region193: #{co_attention_forward.2} parent=119 // pred_check
          %p966 = pneg %p581
        $region194: #{co_attention_forward.2} parent=119 // pred_check_branch
          %968 = sbr.rel (%p966) target = $region196
        $region195: #{co_attention_forward.2} parent=119 // pred_region
          %969 = dma.done [#allocation29], 16
        $region196: #{co_attention_forward.2} parent=119 // pred_fallthru
          _
        %s970 = smul.u32 2, %s46
        %p971 = scmp.lt.s32.totalorder %s970, 3
        %s972 = scalar_select %p971, %s970, 3
        %s973 = smul.addr %s972, 4
        %s974 = scalar_lea.vmem %s0, %s973
        %p975 = pneg %p67
        %p976 = pneg %p64
        %s977 = smul.u32 2, %s46
        %p978 = scmp.lt.s32.totalorder %s977, 3
        %s979 = scalar_select %p978, %s977, 3
        %s980 = smul.addr %s979, 4
        %s981 = scalar_lea.vmem %s1, %s980
        %p982 = pneg %p93
        %p983 = pneg %p90
        %s984 = smul.u32 2, %s46
        %p985 = scmp.lt.s32.totalorder %s984, 3
        %s986 = scalar_select %p985, %s984, 3
        %s987 = smul.addr %s986, 8
        %s988 = scalar_lea.vmem %s2, %s987
        %p989 = pneg %p119
        %p990 = pneg %p116
        %p991 = pneg %p140
        %p992 = pneg %p137
        %p993 = pneg %p161
        %p994 = pneg %p158
        %p995 = pneg %p182
        %p996 = pneg %p179
        %p997 = pneg %p203
        %p998 = pneg %p200
        %p999 = pneg %p224
        %p1000 = pneg %p221
        %p1001 = pneg %p245
        %p1002 = pneg %p242
        %p1003 = pneg %p266
        %p1004 = pneg %p263
        %p1005 = pneg %p287
        %p1006 = pneg %p284
        %p1007 = pneg %p308
        %p1008 = pneg %p305
        %p1009 = pneg %p329
        %p1010 = pneg %p326
        %p1011 = pneg %p350
        %p1012 = pneg %p347
        %p1013 = pneg %p371
        %p1014 = pneg %p368
        %p1015 = pneg %p392
        %p1016 = pneg %p389
        %p1017 = pneg %p413
        %p1018 = pneg %p410
        %p1019 = pneg %p434
        %p1020 = pneg %p431
        %p1021 = pneg %p455
        %p1022 = pneg %p452
        %p1023 = pneg %p476
        %p1024 = pneg %p473
        %p1025 = pneg %p497
        %p1026 = pneg %p494
        %p1027 = pneg %p518
        %p1028 = pneg %p515
        %p1029 = pneg %p539
        %p1030 = pneg %p536
        %p1031 = pneg %p560
        %p1032 = pneg %p557
        %p1033 = pneg %p581
        %p1034 = pneg %p578
        %p1035 = pneg %p607
        %p1036 = pneg %p604
        %s1037 = smul.u32 2, %s46
        %p1038 = scmp.lt.s32.totalorder %s1037, 3
        %s1039 = scalar_select %p1038, %s1037, 3
        %s1040 = smul.addr %s1039, 4
        %s1041 = smul.addr %s1040, 4
        %s1042 = scalar_lea.vmem %s25, %s1041
        %s1043 = smul.u32 2, %s46
        %p1044 = scmp.lt.s32.totalorder %s1043, 3
        %s1045 = scalar_select %p1044, %s1043, 3
        %s1046 = smul.addr %s1045, 4
        %s1047 = scalar_lea.vmem %s0, %s1046
        %s1048 = smul.u32 2, %s46
        %s1049 = smul.u32 2, %s46
        %p1050 = scmp.lt.s32.totalorder %s1049, 3
        %s1051 = scalar_select %p1050, %s1049, 3
        %s1052 = smul.addr %s1051, 4
        %s1053 = scalar_lea.vmem %s1, %s1052
        %s1054 = smul.u32 2, %s46
        %s1055 = smul.u32 2, %s46
        %p1056 = scmp.lt.s32.totalorder %s1055, 3
        %s1057 = scalar_select %p1056, %s1055, 3
        %s1058 = smul.addr %s1057, 8
        %s1059 = scalar_lea.vmem %s2, %s1058
        %s1060 = smul.u32 2, %s46
        %s1061 = smul.u32 2, %s46
        %p1062 = scmp.lt.s32.totalorder %s1061, 3
        %s1063 = scalar_select %p1062, %s1061, 3
        %s1064 = smul.addr %s1063, 4
        %s1065 = smul.addr %s1064, 4
        %s1066 = scalar_lea.vmem %s25, %s1065
        %s1067 = smul.u32 2, %s46
        %v1069 = vld [vmem:[%s1047] sm:$0xf]
        %v1070 = vld [vmem:[%s1047 + $0x4] sm:$0xf]
        %v1071 = vld [vmem:[#allocation2] sm:$0xf]
        %v1072 = vld [vmem:[#allocation2 + $0x4] sm:$0xf]
        %v1073 = vld [vmem:[#allocation2 + $0x8] sm:$0xf]
        %v1074 = vld [vmem:[#allocation2 + $0xc] sm:$0xf]
        %v1075 = vld [vmem:[#allocation2 + $0x10] sm:$0xf]
        %v1076 = vld [vmem:[#allocation2 + $0x14] sm:$0xf]
        %v1077 = vld [vmem:[#allocation2 + $0x18] sm:$0xf]
        %v1078 = vld [vmem:[#allocation2 + $0x1c] sm:$0xf]
        %v1079 = vld [vmem:[#allocation2 + $0x20] sm:$0xf]
        %v1080 = vld [vmem:[#allocation2 + $0x24] sm:$0xf]
        %v1081 = vld [vmem:[#allocation2 + $0x28] sm:$0xf]
        %v1082 = vld [vmem:[#allocation2 + $0x2c] sm:$0xf]
        %v1083 = vld [vmem:[#allocation2 + $0x30] sm:$0xf]
        %v1084 = vld [vmem:[#allocation2 + $0x34] sm:$0xf]
        %v1085 = vld [vmem:[#allocation2 + $0x38] sm:$0xf]
        %v1086 = vld [vmem:[#allocation2 + $0x3c] sm:$0xf]
        %v1087 = vld [vmem:[%s4] sm:$0x1]
        %v1089 = vlaneseq
        %v1090 = vshrl.u32 %v1089, 7
        %v1091 = vsub.s32 0, %v1090
        %v1092 = vrot.slane %v1087, %v1091
        %v1096 = vunpack.c.l.b16 %v1069
        %v1097 = vunpack.c.l.b16 %v1070
        %v1098 = vpack.c.b16 %v1097, %v1096
        %v1116 = vunpack.c.l.b16 %v1071
        %v1117 = vunpack.c.l.b16 %v1072
        %v1118 = vunpack.c.l.b16 %v1073
        %v1119 = vunpack.c.l.b16 %v1074
        %v1120 = vunpack.c.l.b16 %v1075
        %v1121 = vunpack.c.l.b16 %v1076
        %v1122 = vunpack.c.l.b16 %v1077
        %v1123 = vunpack.c.l.b16 %v1078
        %v1124 = vunpack.c.l.b16 %v1079
        %v1125 = vunpack.c.l.b16 %v1080
        %v1126 = vunpack.c.l.b16 %v1081
        %v1127 = vunpack.c.l.b16 %v1082
        %v1128 = vunpack.c.l.b16 %v1083
        %v1129 = vunpack.c.l.b16 %v1084
        %v1130 = vunpack.c.l.b16 %v1085
        %v1131 = vunpack.c.l.b16 %v1086
        %v1132 = vpack.c.b16 %v1117, %v1116
        %v1133 = vpack.c.b16 %v1119, %v1118
        %v1134 = vpack.c.b16 %v1121, %v1120
        %v1135 = vpack.c.b16 %v1123, %v1122
        %v1136 = vpack.c.b16 %v1125, %v1124
        %v1137 = vpack.c.b16 %v1127, %v1126
        %v1138 = vpack.c.b16 %v1129, %v1128
        %v1139 = vpack.c.b16 %v1131, %v1130
        %1148 = vmatprep.subr.bf16.mxu0 0
        %1149 = vmatpush1.bf16.msra.mxu0 %v1132
        %1150 = vmatprep.subr.bf16.mxu0 0
        %1151 = vmatpush1.bf16.msra.mxu0 %v1133
        %1152 = vmatprep.subr.bf16.mxu0 0
        %1153 = vmatpush1.bf16.msra.mxu0 %v1134
        %1154 = vmatprep.subr.bf16.mxu0 0
        %1155 = vmatpush1.bf16.msra.mxu0 %v1135
        %1156 = vmatprep.subr.bf16.mxu0 0
        %1157 = vmatpush1.bf16.msra.mxu0 %v1136
        %1158 = vmatprep.subr.bf16.mxu0 0
        %1159 = vmatpush1.bf16.msra.mxu0 %v1137
        %1160 = vmatprep.subr.bf16.mxu0 0
        %1161 = vmatpush1.bf16.msra.mxu0 %v1138
        %1162 = vmatprep.subr.bf16.mxu0 0
        %1163 = vmatpush1.bf16.msra.mxu0 %v1139
        %1164 = vmatprep.subr.bf16.mxu0 0
        %1165 = vmatpush1.bf16.msra.mxu0 0
        %1166 = vmatprep.subr.bf16.mxu0 0
        %1167 = vmatpush1.bf16.msra.mxu0 0
        %1168 = vmatprep.subr.bf16.mxu0 0
        %1169 = vmatpush1.bf16.msra.mxu0 0
        %1170 = vmatprep.subr.bf16.mxu0 0
        %1171 = vmatpush1.bf16.msra.mxu0 0
        %1172 = vmatprep.subr.bf16.mxu0 0
        %1173 = vmatpush1.bf16.msra.mxu0 0
        %1174 = vmatprep.subr.bf16.mxu0 0
        %1175 = vmatpush1.bf16.msra.mxu0 0
        %1176 = vmatprep.subr.bf16.mxu0 0
        %1177 = vmatpush1.bf16.msra.mxu0 0
        %1178 = vmatprep.subr.bf16.mxu0 0
        %1179 = vmatpush1.bf16.msra.mxu0 0
        %1180 = vmatprep.mubr.bf16.mxu0 0
        %1181 = vmatmul.mubr.bf16.gmra.mrb[0].mxu0 %v1098
        %v1182 = vpop.f32.mrb[0].mxu0
        %v1183 = vadd.f32 %v1092, %v1182
        %v1184 = vpop.f32.mrb[0].mxu0
        %v1185 = vpop.f32.mrb[0].mxu0
        %v1186 = vadd.f32 %v1092, %v1185
        %v1187 = vpop.f32.mrb[0].mxu0
        %1188 = vdwg.mxu0
        %1189 = vadd.xlane.f32.xlu0 %v1183
        %v1190 = vpop.xlane.xlu0 %1189
        %1191 = vadd.xlane.f32.xlu0 %v1186
        %v1192 = vpop.xlane.xlu0 %1191
        %v1193 = vmul.f32 %v1190, 0.03125
        %v1194 = vmul.f32 %v1192, 0.03125
        %v1195 = vsub.f32 %v1183, %v1193
        %v1196 = vsub.f32 %v1186, %v1194
        %v1197 = vlaneseq
        %v1198 = vand.u32 %v1197, 127
        %vm1199 = vcmp.lt.s32.totalorder %v1198, 32
        %v1200 = vsel %vm1199, %v1195, 0.0
        %v1201 = vsel %vm1199, %v1196, 0.0
        %v1202 = vmul.f32 %v1200, %v1200
        %v1203 = vmul.f32 %v1201, %v1201
        %1204 = vadd.xlane.f32.xlu0 %v1202
        %v1205 = vpop.xlane.xlu0 %1204
        %1206 = vadd.xlane.f32.xlu0 %v1203
        %v1207 = vpop.xlane.xlu0 %1206
        %v1208 = vmul.f32 %v1205, 0.03125
        %v1209 = vmul.f32 %v1207, 0.03125
        %v1210 = vadd.f32 %v1208, 1e-05
        %v1211 = vadd.f32 %v1209, 1e-05
        %v1212 = vrsqrt.pop %v1210
        %v1213 = vrsqrt.pop %v1211
        %v1214 = vmul.f32 %v1195, %v1212
        %v1215 = vmul.f32 %v1196, %v1213
        %v1216 = vld [vmem:[%s5] sm:$0x1]
        %v1218 = vlaneseq
        %v1219 = vshrl.u32 %v1218, 7
        %v1220 = vsub.s32 0, %v1219
        %v1221 = vrot.slane %v1216, %v1220
        %v1223 = vmul.f32 %v1214, %v1221
        %v1224 = vmul.f32 %v1215, %v1221
        %v1225 = vld [vmem:[#allocation4] sm:$0x1]
        %v1227 = vlaneseq
        %v1228 = vshrl.u32 %v1227, 7
        %v1229 = vsub.s32 0, %v1228
        %v1230 = vrot.slane %v1225, %v1229
        %v1232 = vadd.f32 %v1223, %v1230
        %v1233 = vadd.f32 %v1224, %v1230
        %v1234 = vld [vmem:[%s1053] sm:$0xf]
        %v1235 = vld [vmem:[%s1053 + $0x4] sm:$0xf]
        %v1236 = vld [vmem:[#allocation6] sm:$0xf]
        %v1237 = vld [vmem:[#allocation6 + $0x4] sm:$0xf]
        %v1238 = vld [vmem:[#allocation6 + $0x8] sm:$0xf]
        %v1239 = vld [vmem:[#allocation6 + $0xc] sm:$0xf]
        %v1240 = vld [vmem:[#allocation6 + $0x10] sm:$0xf]
        %v1241 = vld [vmem:[#allocation6 + $0x14] sm:$0xf]
        %v1242 = vld [vmem:[#allocation6 + $0x18] sm:$0xf]
        %v1243 = vld [vmem:[#allocation6 + $0x1c] sm:$0xf]
        %v1244 = vld [vmem:[#allocation6 + $0x20] sm:$0xf]
        %v1245 = vld [vmem:[#allocation6 + $0x24] sm:$0xf]
        %v1246 = vld [vmem:[#allocation6 + $0x28] sm:$0xf]
        %v1247 = vld [vmem:[#allocation6 + $0x2c] sm:$0xf]
        %v1248 = vld [vmem:[#allocation6 + $0x30] sm:$0xf]
        %v1249 = vld [vmem:[#allocation6 + $0x34] sm:$0xf]
        %v1250 = vld [vmem:[#allocation6 + $0x38] sm:$0xf]
        %v1251 = vld [vmem:[#allocation6 + $0x3c] sm:$0xf]
        %v1252 = vld [vmem:[#allocation7] sm:$0x1]
        %v1254 = vlaneseq
        %v1255 = vshrl.u32 %v1254, 7
        %v1256 = vsub.s32 0, %v1255
        %v1257 = vrot.slane %v1252, %v1256
        %v1261 = vunpack.c.l.b16 %v1234
        %v1262 = vunpack.c.l.b16 %v1235
        %v1263 = vpack.c.b16 %v1262, %v1261
        %v1281 = vunpack.c.l.b16 %v1236
        %v1282 = vunpack.c.l.b16 %v1237
        %v1283 = vunpack.c.l.b16 %v1238
        %v1284 = vunpack.c.l.b16 %v1239
        %v1285 = vunpack.c.l.b16 %v1240
        %v1286 = vunpack.c.l.b16 %v1241
        %v1287 = vunpack.c.l.b16 %v1242
        %v1288 = vunpack.c.l.b16 %v1243
        %v1289 = vunpack.c.l.b16 %v1244
        %v1290 = vunpack.c.l.b16 %v1245
        %v1291 = vunpack.c.l.b16 %v1246
        %v1292 = vunpack.c.l.b16 %v1247
        %v1293 = vunpack.c.l.b16 %v1248
        %v1294 = vunpack.c.l.b16 %v1249
        %v1295 = vunpack.c.l.b16 %v1250
        %v1296 = vunpack.c.l.b16 %v1251
        %v1297 = vpack.c.b16 %v1282, %v1281
        %v1298 = vpack.c.b16 %v1284, %v1283
        %v1299 = vpack.c.b16 %v1286, %v1285
        %v1300 = vpack.c.b16 %v1288, %v1287
        %v1301 = vpack.c.b16 %v1290, %v1289
        %v1302 = vpack.c.b16 %v1292, %v1291
        %v1303 = vpack.c.b16 %v1294, %v1293
        %v1304 = vpack.c.b16 %v1296, %v1295
        %1313 = vmatprep.subr.bf16.mxu0 0
        %1314 = vmatpush1.bf16.msra.mxu0 %v1297
        %1315 = vmatprep.subr.bf16.mxu0 0
        %1316 = vmatpush1.bf16.msra.mxu0 %v1298
        %1317 = vmatprep.subr.bf16.mxu0 0
        %1318 = vmatpush1.bf16.msra.mxu0 %v1299
        %1319 = vmatprep.subr.bf16.mxu0 0
        %1320 = vmatpush1.bf16.msra.mxu0 %v1300
        %1321 = vmatprep.subr.bf16.mxu0 0
        %1322 = vmatpush1.bf16.msra.mxu0 %v1301
        %1323 = vmatprep.subr.bf16.mxu0 0
        %1324 = vmatpush1.bf16.msra.mxu0 %v1302
        %1325 = vmatprep.subr.bf16.mxu0 0
        %1326 = vmatpush1.bf16.msra.mxu0 %v1303
        %1327 = vmatprep.subr.bf16.mxu0 0
        %1328 = vmatpush1.bf16.msra.mxu0 %v1304
        %1329 = vmatprep.subr.bf16.mxu0 0
        %1330 = vmatpush1.bf16.msra.mxu0 0
        %1331 = vmatprep.subr.bf16.mxu0 0
        %1332 = vmatpush1.bf16.msra.mxu0 0
        %1333 = vmatprep.subr.bf16.mxu0 0
        %1334 = vmatpush1.bf16.msra.mxu0 0
        %1335 = vmatprep.subr.bf16.mxu0 0
        %1336 = vmatpush1.bf16.msra.mxu0 0
        %1337 = vmatprep.subr.bf16.mxu0 0
        %1338 = vmatpush1.bf16.msra.mxu0 0
        %1339 = vmatprep.subr.bf16.mxu0 0
        %1340 = vmatpush1.bf16.msra.mxu0 0
        %1341 = vmatprep.subr.bf16.mxu0 0
        %1342 = vmatpush1.bf16.msra.mxu0 0
        %1343 = vmatprep.subr.bf16.mxu0 0
        %1344 = vmatpush1.bf16.msra.mxu0 0
        %1345 = vmatprep.mubr.bf16.mxu0 0
        %1346 = vmatmul.mubr.bf16.gmra.mrb[0].mxu0 %v1263
        %v1347 = vpop.f32.mrb[0].mxu0
        %v1348 = vadd.f32 %v1257, %v1347
        %v1349 = vpop.f32.mrb[0].mxu0
        %v1350 = vpop.f32.mrb[0].mxu0
        %v1351 = vadd.f32 %v1257, %v1350
        %v1352 = vpop.f32.mrb[0].mxu0
        %1353 = vdwg.mxu0
        %v1354 = vpack.c.bf16 %v1351, %v1348
        %v1355 = vld [vmem:[#allocation9] sm:$0xff]
        %v1356 = vld [vmem:[#allocation9 + $0x8] sm:$0xf]
        %v1357 = vld [vmem:[#allocation9 + $0xc] sm:$0xff]
        %v1358 = vld [vmem:[#allocation9 + $0x14] sm:$0xf]
        %v1359 = vld [vmem:[#allocation9 + $0x18] sm:$0xff]
        %v1360 = vld [vmem:[#allocation9 + $0x20] sm:$0xf]
        %v1361 = vld [vmem:[#allocation9 + $0x24] sm:$0xff]
        %v1362 = vld [vmem:[#allocation9 + $0x2c] sm:$0xf]
        %v1363 = vld [vmem:[#allocation9 + $0x30] sm:$0xff]
        %v1364 = vld [vmem:[#allocation9 + $0x38] sm:$0xf]
        %v1365 = vld [vmem:[#allocation9 + $0x3c] sm:$0xff]
        %v1366 = vld [vmem:[#allocation9 + $0x44] sm:$0xf]
        %v1367 = vld [vmem:[#allocation9 + $0x48] sm:$0xff]
        %v1368 = vld [vmem:[#allocation9 + $0x50] sm:$0xf]
        %v1369 = vld [vmem:[#allocation9 + $0x54] sm:$0xff]
        %v1370 = vld [vmem:[#allocation9 + $0x5c] sm:$0xf]
        %v1371 = vld [vmem:[#allocation9 + $0x60] sm:$0xff]
        %v1372 = vld [vmem:[#allocation9 + $0x68] sm:$0xf]
        %v1373 = vld [vmem:[#allocation9 + $0x6c] sm:$0xff]
        %v1374 = vld [vmem:[#allocation9 + $0x74] sm:$0xf]
        %v1375 = vld [vmem:[#allocation9 + $0x78] sm:$0xff]
        %v1376 = vld [vmem:[#allocation9 + $0x80] sm:$0xf]
        %v1377 = vld [vmem:[#allocation9 + $0x84] sm:$0xff]
        %v1378 = vld [vmem:[#allocation9 + $0x8c] sm:$0xf]
        %v1379 = vld [vmem:[#allocation9 + $0x90] sm:$0xff]
        %v1380 = vld [vmem:[#allocation9 + $0x98] sm:$0xf]
        %v1381 = vld [vmem:[#allocation9 + $0x9c] sm:$0xff]
        %v1382 = vld [vmem:[#allocation9 + $0xa4] sm:$0xf]
        %v1383 = vld [vmem:[#allocation9 + $0xa8] sm:$0xff]
        %v1384 = vld [vmem:[#allocation9 + $0xb0] sm:$0xf]
        %v1385 = vld [vmem:[#allocation9 + $0xb4] sm:$0xff]
        %v1386 = vld [vmem:[#allocation9 + $0xbc] sm:$0xf]
        %v1387 = vld [vmem:[#allocation10] sm:$0x7]
        %v1389 = vlaneseq
        %v1390 = vshrl.u32 %v1389, 7
        %v1391 = vsub.s32 0, %v1390
        %v1392 = vrot.slane %v1387, %v1391
        %v1393 = vlaneseq
        %v1394 = vshrl.u32 %v1393, 7
        %v1395 = vsub.s32 1, %v1394
        %v1396 = vrot.slane %v1387, %v1395
        %v1397 = vlaneseq
        %v1398 = vshrl.u32 %v1397, 7
        %v1399 = vsub.s32 2, %v1398
        %v1400 = vrot.slane %v1387, %v1399
        %v1436 = vunpack.c.l.b16 %v1355
        %v1437 = vunpack.c.h.b16 %v1355
        %v1438 = vunpack.c.l.b16 %v1356
        %v1439 = vunpack.c.l.b16 %v1357
        %v1440 = vunpack.c.h.b16 %v1357
        %v1441 = vunpack.c.l.b16 %v1358
        %v1442 = vunpack.c.l.b16 %v1359
        %v1443 = vunpack.c.h.b16 %v1359
        %v1444 = vunpack.c.l.b16 %v1360
        %v1445 = vunpack.c.l.b16 %v1361
        %v1446 = vunpack.c.h.b16 %v1361
        %v1447 = vunpack.c.l.b16 %v1362
        %v1448 = vunpack.c.l.b16 %v1363
        %v1449 = vunpack.c.h.b16 %v1363
        %v1450 = vunpack.c.l.b16 %v1364
        %v1451 = vunpack.c.l.b16 %v1365
        %v1452 = vunpack.c.h.b16 %v1365
        %v1453 = vunpack.c.l.b16 %v1366
        %v1454 = vunpack.c.l.b16 %v1367
        %v1455 = vunpack.c.h.b16 %v1367
        %v1456 = vunpack.c.l.b16 %v1368
        %v1457 = vunpack.c.l.b16 %v1369
        %v1458 = vunpack.c.h.b16 %v1369
        %v1459 = vunpack.c.l.b16 %v1370
        %v1460 = vunpack.c.l.b16 %v1371
        %v1461 = vunpack.c.h.b16 %v1371
        %v1462 = vunpack.c.l.b16 %v1372
        %v1463 = vunpack.c.l.b16 %v1373
        %v1464 = vunpack.c.h.b16 %v1373
        %v1465 = vunpack.c.l.b16 %v1374
        %v1466 = vunpack.c.l.b16 %v1375
        %v1467 = vunpack.c.h.b16 %v1375
        %v1468 = vunpack.c.l.b16 %v1376
        %v1469 = vunpack.c.l.b16 %v1377
        %v1470 = vunpack.c.h.b16 %v1377
        %v1471 = vunpack.c.l.b16 %v1378
        %v1472 = vunpack.c.l.b16 %v1379
        %v1473 = vunpack.c.h.b16 %v1379
        %v1474 = vunpack.c.l.b16 %v1380
        %v1475 = vunpack.c.l.b16 %v1381
        %v1476 = vunpack.c.h.b16 %v1381
        %v1477 = vunpack.c.l.b16 %v1382
        %v1478 = vunpack.c.l.b16 %v1383
        %v1479 = vunpack.c.h.b16 %v1383
        %v1480 = vunpack.c.l.b16 %v1384
        %v1481 = vunpack.c.l.b16 %v1385
        %v1482 = vunpack.c.h.b16 %v1385
        %v1483 = vunpack.c.l.b16 %v1386
        %v1484 = vpack.c.b16 %v1439, %v1436
        %v1485 = vpack.c.b16 %v1440, %v1437
        %v1486 = vpack.c.b16 %v1441, %v1438
        %v1487 = vpack.c.b16 %v1445, %v1442
        %v1488 = vpack.c.b16 %v1446, %v1443
        %v1489 = vpack.c.b16 %v1447, %v1444
        %v1490 = vpack.c.b16 %v1451, %v1448
        %v1491 = vpack.c.b16 %v1452, %v1449
        %v1492 = vpack.c.b16 %v1453, %v1450
        %v1493 = vpack.c.b16 %v1457, %v1454
        %v1494 = vpack.c.b16 %v1458, %v1455
        %v1495 = vpack.c.b16 %v1459, %v1456
        %v1496 = vpack.c.b16 %v1463, %v1460
        %v1497 = vpack.c.b16 %v1464, %v1461
        %v1498 = vpack.c.b16 %v1465, %v1462
        %v1499 = vpack.c.b16 %v1469, %v1466
        %v1500 = vpack.c.b16 %v1470, %v1467
        %v1501 = vpack.c.b16 %v1471, %v1468
        %v1502 = vpack.c.b16 %v1475, %v1472
        %v1503 = vpack.c.b16 %v1476, %v1473
        %v1504 = vpack.c.b16 %v1477, %v1474
        %v1505 = vpack.c.b16 %v1481, %v1478
        %v1506 = vpack.c.b16 %v1482, %v1479
        %v1507 = vpack.c.b16 %v1483, %v1480
        %1532 = vmatprep.subr.bf16.mxu0 %v1485
        %1533 = vmatpush1.bf16.msra.mxu0 %v1484
        %1534 = vmatprep.subr.bf16.mxu0 %v1488
        %1535 = vmatpush1.bf16.msra.mxu0 %v1487
        %1536 = vmatprep.subr.bf16.mxu0 %v1491
        %1537 = vmatpush1.bf16.msra.mxu0 %v1490
        %1538 = vmatprep.subr.bf16.mxu0 %v1494
        %1539 = vmatpush1.bf16.msra.mxu0 %v1493
        %1540 = vmatprep.subr.bf16.mxu0 %v1497
        %1541 = vmatpush1.bf16.msra.mxu0 %v1496
        %1542 = vmatprep.subr.bf16.mxu0 %v1500
        %1543 = vmatpush1.bf16.msra.mxu0 %v1499
        %1544 = vmatprep.subr.bf16.mxu0 %v1503
        %1545 = vmatpush1.bf16.msra.mxu0 %v1502
        %1546 = vmatprep.subr.bf16.mxu0 %v1506
        %1547 = vmatpush1.bf16.msra.mxu0 %v1505
        %1548 = vmatprep.subr.bf16.mxu0 0
        %1549 = vmatpush1.bf16.msra.mxu0 0
        %1550 = vmatprep.subr.bf16.mxu0 0
        %1551 = vmatpush1.bf16.msra.mxu0 0
        %1552 = vmatprep.subr.bf16.mxu0 0
        %1553 = vmatpush1.bf16.msra.mxu0 0
        %1554 = vmatprep.subr.bf16.mxu0 0
        %1555 = vmatpush1.bf16.msra.mxu0 0
        %1556 = vmatprep.subr.bf16.mxu0 0
        %1557 = vmatpush1.bf16.msra.mxu0 0
        %1558 = vmatprep.subr.bf16.mxu0 0
        %1559 = vmatpush1.bf16.msra.mxu0 0
        %1560 = vmatprep.subr.bf16.mxu0 0
        %1561 = vmatpush1.bf16.msra.mxu0 0
        %1562 = vmatprep.subr.bf16.mxu0 0
        %1563 = vmatpush1.bf16.msra.mxu0 0
        %1564 = vmatprep.mubr.bf16.mxu0 0
        %1565 = vmatmul.mubr.bf16.gmra.mrb[0].mxu0 %v1354
        %v1566 = vpop.f32.mrb[0].mxu0
        %v1567 = vadd.f32 %v1392, %v1566
        %v1568 = vpop.f32.mrb[0].mxu0
        %v1569 = vadd.f32 %v1396, %v1568
        %v1570 = vpop.f32.mrb[0].mxu0
        %v1571 = vadd.f32 %v1392, %v1570
        %v1572 = vpop.f32.mrb[0].mxu0
        %v1573 = vadd.f32 %v1396, %v1572
        %1574 = vdwg.mxu0
        %1575 = vmatprep.subr.bf16.mxu0 0
        %1576 = vmatpush1.bf16.msra.mxu0 %v1486
        %1577 = vmatprep.subr.bf16.mxu0 0
        %1578 = vmatpush1.bf16.msra.mxu0 %v1489
        %1579 = vmatprep.subr.bf16.mxu0 0
        %1580 = vmatpush1.bf16.msra.mxu0 %v1492
        %1581 = vmatprep.subr.bf16.mxu0 0
        %1582 = vmatpush1.bf16.msra.mxu0 %v1495
        %1583 = vmatprep.subr.bf16.mxu0 0
        %1584 = vmatpush1.bf16.msra.mxu0 %v1498
        %1585 = vmatprep.subr.bf16.mxu0 0
        %1586 = vmatpush1.bf16.msra.mxu0 %v1501
        %1587 = vmatprep.subr.bf16.mxu0 0
        %1588 = vmatpush1.bf16.msra.mxu0 %v1504
        %1589 = vmatprep.subr.bf16.mxu0 0
        %1590 = vmatpush1.bf16.msra.mxu0 %v1507
        %1591 = vmatprep.subr.bf16.mxu0 0
        %1592 = vmatpush1.bf16.msra.mxu0 0
        %1593 = vmatprep.subr.bf16.mxu0 0
        %1594 = vmatpush1.bf16.msra.mxu0 0
        %1595 = vmatprep.subr.bf16.mxu0 0
        %1596 = vmatpush1.bf16.msra.mxu0 0
        %1597 = vmatprep.subr.bf16.mxu0 0
        %1598 = vmatpush1.bf16.msra.mxu0 0
        %1599 = vmatprep.subr.bf16.mxu0 0
        %1600 = vmatpush1.bf16.msra.mxu0 0
        %1601 = vmatprep.subr.bf16.mxu0 0
        %1602 = vmatpush1.bf16.msra.mxu0 0
        %1603 = vmatprep.subr.bf16.mxu0 0
        %1604 = vmatpush1.bf16.msra.mxu0 0
        %1605 = vmatprep.subr.bf16.mxu0 0
        %1606 = vmatpush1.bf16.msra.mxu0 0
        %1607 = vmatprep.mubr.bf16.mxu0 0
        %1608 = vmatmul.mubr.bf16.gmra.mrb[0].mxu0 %v1354
        %v1609 = vpop.f32.mrb[0].mxu0
        %v1610 = vadd.f32 %v1400, %v1609
        %v1611 = vpop.f32.mrb[0].mxu0
        %v1612 = vpop.f32.mrb[0].mxu0
        %v1613 = vadd.f32 %v1400, %v1612
        %v1614 = vpop.f32.mrb[0].mxu0
        %1615 = vdwg.mxu0
        %v1616 = vpack.c.bf16 %v1571, %v1567
        %v1617 = vpack.c.bf16 %v1573, %v1569
        %v1618 = vpack.c.bf16 %v1613, %v1610
        %v1620 = vunpack.c.l.b16 %v1616
        %v1621 = vunpack.c.h.b16 %v1616
        %v1622 = vpack.c.b16 %v1620, %v1620
        %v1623 = vpack.c.b16 %v1621, %v1621
        %v1627 = vunpack.c.l.b16 %v1617
        %v1628 = vunpack.c.h.b16 %v1617
        %v1629 = vpack.c.b16 %v1627, %v1627
        %v1630 = vpack.c.b16 %v1628, %v1628
        %v1634 = vunpack.c.l.b16 %v1618
        %v1635 = vunpack.c.h.b16 %v1618
        %v1636 = vpack.c.b16 %v1634, %v1634
        %v1637 = vpack.c.b16 %v1635, %v1635
        %v1638 = vld [vmem:[%s1059] sm:$0xff]
        %v1639 = vld [vmem:[%s1059 + $0x8] sm:$0xff]
        %vm1640 = vcmp.gt.f32.partialorder %v1638, 0.0
        %vm1641 = vcmp.gt.f32.partialorder %v1639, 0.0
        %1642 = vmatprep.subr.bf16.mxu0 0
        %1643 = vmatpush1.bf16.xpose.msra.mxu0 %v1629
        %1644 = vmatprep.subr.bf16.mxu0 0
        %1645 = vmatpush1.bf16.xpose.msra.mxu0 0
        %1646 = vmatprep.subr.bf16.mxu0 0
        %1647 = vmatpush1.bf16.xpose.msra.mxu0 0
        %1648 = vmatprep.subr.bf16.mxu0 0
        %1649 = vmatpush1.bf16.xpose.msra.mxu0 0
        %1650 = vmatprep.subr.bf16.mxu0 0
        %1651 = vmatpush1.bf16.xpose.msra.mxu0 0
        %1652 = vmatprep.subr.bf16.mxu0 0
        %1653 = vmatpush1.bf16.xpose.msra.mxu0 0
        %1654 = vmatprep.subr.bf16.mxu0 0
        %1655 = vmatpush1.bf16.xpose.msra.mxu0 0
        %1656 = vmatprep.subr.bf16.mxu0 0
        %1657 = vmatpush1.bf16.xpose.msra.mxu0 0
        %1658 = vmatprep.subr.bf16.mxu0 0
        %1659 = vmatpush1.bf16.xpose.msra.mxu0 0
        %1660 = vmatprep.subr.bf16.mxu0 0
        %1661 = vmatpush1.bf16.xpose.msra.mxu0 0
        %1662 = vmatprep.subr.bf16.mxu0 0
        %1663 = vmatpush1.bf16.xpose.msra.mxu0 0
        %1664 = vmatprep.subr.bf16.mxu0 0
        %1665 = vmatpush1.bf16.xpose.msra.mxu0 0
        %1666 = vmatprep.subr.bf16.mxu0 0
        %1667 = vmatpush1.bf16.xpose.msra.mxu0 0
        %1668 = vmatprep.subr.bf16.mxu0 0
        %1669 = vmatpush1.bf16.xpose.msra.mxu0 0
        %1670 = vmatprep.subr.bf16.mxu0 0
        %1671 = vmatpush1.bf16.xpose.msra.mxu0 0
        %1672 = vmatprep.subr.bf16.mxu0 0
        %1673 = vmatpush1.bf16.xpose.msra.mxu0 0
        %1674 = vmatprep.mubr.bf16.mxu0 0
        %1675 = vmatmul.mubr.bf16.gmra.mrb[0].mxu0 %v1622
        %v1676 = vpop.f32.mrb[0].mxu0
        %v1677 = vadd.f32 0.0, %v1676
        %v1678 = vpop.f32.mrb[0].mxu0
        %v1679 = vpop.f32.mrb[0].mxu0
        %v1680 = vpop.f32.mrb[0].mxu0
        %1681 = vdwg.mxu0
        %1682 = vmatprep.subr.bf16.mxu0 0
        %1683 = vmatpush1.bf16.xpose.msra.mxu0 %v1630
        %1684 = vmatprep.subr.bf16.mxu0 0
        %1685 = vmatpush1.bf16.xpose.msra.mxu0 0
        %1686 = vmatprep.subr.bf16.mxu0 0
        %1687 = vmatpush1.bf16.xpose.msra.mxu0 0
        %1688 = vmatprep.subr.bf16.mxu0 0
        %1689 = vmatpush1.bf16.xpose.msra.mxu0 0
        %1690 = vmatprep.subr.bf16.mxu0 0
        %1691 = vmatpush1.bf16.xpose.msra.mxu0 0
        %1692 = vmatprep.subr.bf16.mxu0 0
        %1693 = vmatpush1.bf16.xpose.msra.mxu0 0
        %1694 = vmatprep.subr.bf16.mxu0 0
        %1695 = vmatpush1.bf16.xpose.msra.mxu0 0
        %1696 = vmatprep.subr.bf16.mxu0 0
        %1697 = vmatpush1.bf16.xpose.msra.mxu0 0
        %1698 = vmatprep.subr.bf16.mxu0 0
        %1699 = vmatpush1.bf16.xpose.msra.mxu0 0
        %1700 = vmatprep.subr.bf16.mxu0 0
        %1701 = vmatpush1.bf16.xpose.msra.mxu0 0
        %1702 = vmatprep.subr.bf16.mxu0 0
        %1703 = vmatpush1.bf16.xpose.msra.mxu0 0
        %1704 = vmatprep.subr.bf16.mxu0 0
        %1705 = vmatpush1.bf16.xpose.msra.mxu0 0
        %1706 = vmatprep.subr.bf16.mxu0 0
        %1707 = vmatpush1.bf16.xpose.msra.mxu0 0
        %1708 = vmatprep.subr.bf16.mxu0 0
        %1709 = vmatpush1.bf16.xpose.msra.mxu0 0
        %1710 = vmatprep.subr.bf16.mxu0 0
        %1711 = vmatpush1.bf16.xpose.msra.mxu0 0
        %1712 = vmatprep.subr.bf16.mxu0 0
        %1713 = vmatpush1.bf16.xpose.msra.mxu0 0
        %1714 = vmatprep.mubr.bf16.mxu0 0
        %1715 = vmatmul.mubr.bf16.gmra.mrb[0].mxu0 %v1623
        %v1716 = vpop.f32.mrb[0].mxu0
        %v1717 = vadd.f32 0.0, %v1716
        %v1718 = vpop.f32.mrb[0].mxu0
        %v1719 = vpop.f32.mrb[0].mxu0
        %v1720 = vpop.f32.mrb[0].mxu0
        %1721 = vdwg.mxu0
        %v1722 = vmul.f32 %v1677, 0.25
        %v1723 = vmul.f32 %v1717, 0.25
        %v1724 = vsel %vm1640, %v1722, -1e+30
        %v1725 = vsel %vm1641, %v1723, -1e+30
        %vm1726 = vcmask 64512
        %v1727 = vsel %vm1726, %v1724, -inf
        %1728 = vmax.xlane.f32.xlu0 %v1727
        %v1729 = vpop.xlane.xlu0 %1728
        %v1730 = vsel %vm1726, %v1725, -inf
        %1731 = vmax.xlane.f32.xlu0 %v1730
        %v1732 = vpop.xlane.xlu0 %1731
        %v1733 = vsub.f32 %v1724, %v1729
        %v1734 = vsub.f32 %v1725, %v1732
        %v1735 = vmul.f32 %v1733, 1.442695
        %v1736 = vpow.pop %v1735
        %v1737 = vmul.f32 %v1734, 1.442695
        %v1738 = vpow.pop %v1737
        %v1739 = vsel %vm1726, %v1736, 0.0
        %1740 = vadd.xlane.f32.xlu0 %v1739
        %v1741 = vpop.xlane.xlu0 %1740
        %v1742 = vsel %vm1726, %v1738, 0.0
        %1743 = vadd.xlane.f32.xlu0 %v1742
        %v1744 = vpop.xlane.xlu0 %1743
        %v1745 = vrcp.pop %v1741
        %v1746 = vrcp.pop %v1744
        %v1747 = vmul.f32 %v1736, %v1745
        %v1748 = vmul.f32 %v1738, %v1746
        %v1749 = vpack.c.bf16 %v1747, %v1747
        %v1750 = vpack.c.bf16 %v1748, %v1748
        %v1752 = vsel %vm1726, %v1749, 0
        %vm1754 = vcmask 1043456
        %v1756 = vsel %vm1754, %v1636, 0
        %1758 = vmatprep.subr.bf16.mxu0 0
        %1759 = vmatpush1.bf16.msra.mxu0 %v1756
        %1760 = vmatprep.subr.bf16.mxu0 0
        %1761 = vmatpush1.bf16.msra.mxu0 0
        %1762 = vmatprep.subr.bf16.mxu0 0
        %1763 = vmatpush1.bf16.msra.mxu0 0
        %1764 = vmatprep.subr.bf16.mxu0 0
        %1765 = vmatpush1.bf16.msra.mxu0 0
        %1766 = vmatprep.subr.bf16.mxu0 0
        %1767 = vmatpush1.bf16.msra.mxu0 0
        %1768 = vmatprep.subr.bf16.mxu0 0
        %1769 = vmatpush1.bf16.msra.mxu0 0
        %1770 = vmatprep.subr.bf16.mxu0 0
        %1771 = vmatpush1.bf16.msra.mxu0 0
        %1772 = vmatprep.subr.bf16.mxu0 0
        %1773 = vmatpush1.bf16.msra.mxu0 0
        %1774 = vmatprep.subr.bf16.mxu0 0
        %1775 = vmatpush1.bf16.msra.mxu0 0
        %1776 = vmatprep.subr.bf16.mxu0 0
        %1777 = vmatpush1.bf16.msra.mxu0 0
        %1778 = vmatprep.subr.bf16.mxu0 0
        %1779 = vmatpush1.bf16.msra.mxu0 0
        %1780 = vmatprep.subr.bf16.mxu0 0
        %1781 = vmatpush1.bf16.msra.mxu0 0
        %1782 = vmatprep.subr.bf16.mxu0 0
        %1783 = vmatpush1.bf16.msra.mxu0 0
        %1784 = vmatprep.subr.bf16.mxu0 0
        %1785 = vmatpush1.bf16.msra.mxu0 0
        %1786 = vmatprep.subr.bf16.mxu0 0
        %1787 = vmatpush1.bf16.msra.mxu0 0
        %1788 = vmatprep.subr.bf16.mxu0 0
        %1789 = vmatpush1.bf16.msra.mxu0 0
        %1790 = vmatprep.mubr.bf16.mxu0 0
        %1791 = vmatmul.mubr.bf16.gmra.mrb[0].mxu0 %v1752
        %v1792 = vpop.f32.mrb[0].mxu0
        %v1793 = vadd.f32 0.0, %v1792
        %v1794 = vpop.f32.mrb[0].mxu0
        %v1795 = vpop.f32.mrb[0].mxu0
        %v1796 = vpop.f32.mrb[0].mxu0
        %1797 = vdwg.mxu0
        %v1799 = vsel %vm1726, %v1750, 0
        %v1802 = vsel %vm1754, %v1637, 0
        %1804 = vmatprep.subr.bf16.mxu0 0
        %1805 = vmatpush1.bf16.msra.mxu0 %v1802
        %1806 = vmatprep.subr.bf16.mxu0 0
        %1807 = vmatpush1.bf16.msra.mxu0 0
        %1808 = vmatprep.subr.bf16.mxu0 0
        %1809 = vmatpush1.bf16.msra.mxu0 0
        %1810 = vmatprep.subr.bf16.mxu0 0
        %1811 = vmatpush1.bf16.msra.mxu0 0
        %1812 = vmatprep.subr.bf16.mxu0 0
        %1813 = vmatpush1.bf16.msra.mxu0 0
        %1814 = vmatprep.subr.bf16.mxu0 0
        %1815 = vmatpush1.bf16.msra.mxu0 0
        %1816 = vmatprep.subr.bf16.mxu0 0
        %1817 = vmatpush1.bf16.msra.mxu0 0
        %1818 = vmatprep.subr.bf16.mxu0 0
        %1819 = vmatpush1.bf16.msra.mxu0 0
        %1820 = vmatprep.subr.bf16.mxu0 0
        %1821 = vmatpush1.bf16.msra.mxu0 0
        %1822 = vmatprep.subr.bf16.mxu0 0
        %1823 = vmatpush1.bf16.msra.mxu0 0
        %1824 = vmatprep.subr.bf16.mxu0 0
        %1825 = vmatpush1.bf16.msra.mxu0 0
        %1826 = vmatprep.subr.bf16.mxu0 0
        %1827 = vmatpush1.bf16.msra.mxu0 0
        %1828 = vmatprep.subr.bf16.mxu0 0
        %1829 = vmatpush1.bf16.msra.mxu0 0
        %1830 = vmatprep.subr.bf16.mxu0 0
        %1831 = vmatpush1.bf16.msra.mxu0 0
        %1832 = vmatprep.subr.bf16.mxu0 0
        %1833 = vmatpush1.bf16.msra.mxu0 0
        %1834 = vmatprep.subr.bf16.mxu0 0
        %1835 = vmatpush1.bf16.msra.mxu0 0
        %1836 = vmatprep.mubr.bf16.mxu0 0
        %1837 = vmatmul.mubr.bf16.gmra.mrb[0].mxu0 %v1799
        %v1838 = vpop.f32.mrb[0].mxu0
        %v1839 = vadd.f32 0.0, %v1838
        %v1840 = vpop.f32.mrb[0].mxu0
        %v1841 = vpop.f32.mrb[0].mxu0
        %v1842 = vpop.f32.mrb[0].mxu0
        %1843 = vdwg.mxu0
        %v1844 = vpack.c.bf16 %v1839, %v1793
        %v1845 = vld [vmem:[#allocation12] sm:$0xf]
        %v1846 = vld [vmem:[#allocation12 + $0x4] sm:$0xf]
        %v1847 = vld [vmem:[#allocation12 + $0x8] sm:$0xf]
        %v1848 = vld [vmem:[#allocation12 + $0xc] sm:$0xf]
        %v1849 = vld [vmem:[#allocation12 + $0x10] sm:$0xf]
        %v1850 = vld [vmem:[#allocation12 + $0x14] sm:$0xf]
        %v1851 = vld [vmem:[#allocation12 + $0x18] sm:$0xf]
        %v1852 = vld [vmem:[#allocation12 + $0x1c] sm:$0xf]
        %v1853 = vld [vmem:[#allocation12 + $0x20] sm:$0xf]
        %v1854 = vld [vmem:[#allocation12 + $0x24] sm:$0xf]
        %v1855 = vld [vmem:[#allocation12 + $0x28] sm:$0xf]
        %v1856 = vld [vmem:[#allocation12 + $0x2c] sm:$0xf]
        %v1857 = vld [vmem:[#allocation12 + $0x30] sm:$0xf]
        %v1858 = vld [vmem:[#allocation12 + $0x34] sm:$0xf]
        %v1859 = vld [vmem:[#allocation12 + $0x38] sm:$0xf]
        %v1860 = vld [vmem:[#allocation12 + $0x3c] sm:$0xf]
        %v1861 = vld [vmem:[#allocation13] sm:$0x1]
        %v1863 = vlaneseq
        %v1864 = vshrl.u32 %v1863, 7
        %v1865 = vsub.s32 0, %v1864
        %v1866 = vrot.slane %v1861, %v1865
        %v1884 = vunpack.c.l.b16 %v1845
        %v1885 = vunpack.c.l.b16 %v1846
        %v1886 = vunpack.c.l.b16 %v1847
        %v1887 = vunpack.c.l.b16 %v1848
        %v1888 = vunpack.c.l.b16 %v1849
        %v1889 = vunpack.c.l.b16 %v1850
        %v1890 = vunpack.c.l.b16 %v1851
        %v1891 = vunpack.c.l.b16 %v1852
        %v1892 = vunpack.c.l.b16 %v1853
        %v1893 = vunpack.c.l.b16 %v1854
        %v1894 = vunpack.c.l.b16 %v1855
        %v1895 = vunpack.c.l.b16 %v1856
        %v1896 = vunpack.c.l.b16 %v1857
        %v1897 = vunpack.c.l.b16 %v1858
        %v1898 = vunpack.c.l.b16 %v1859
        %v1899 = vunpack.c.l.b16 %v1860
        %v1900 = vpack.c.b16 %v1885, %v1884
        %v1901 = vpack.c.b16 %v1887, %v1886
        %v1902 = vpack.c.b16 %v1889, %v1888
        %v1903 = vpack.c.b16 %v1891, %v1890
        %v1904 = vpack.c.b16 %v1893, %v1892
        %v1905 = vpack.c.b16 %v1895, %v1894
        %v1906 = vpack.c.b16 %v1897, %v1896
        %v1907 = vpack.c.b16 %v1899, %v1898
        %1916 = vmatprep.subr.bf16.mxu0 0
        %1917 = vmatpush1.bf16.msra.mxu0 %v1900
        %1918 = vmatprep.subr.bf16.mxu0 0
        %1919 = vmatpush1.bf16.msra.mxu0 %v1901
        %1920 = vmatprep.subr.bf16.mxu0 0
        %1921 = vmatpush1.bf16.msra.mxu0 %v1902
        %1922 = vmatprep.subr.bf16.mxu0 0
        %1923 = vmatpush1.bf16.msra.mxu0 %v1903
        %1924 = vmatprep.subr.bf16.mxu0 0
        %1925 = vmatpush1.bf16.msra.mxu0 %v1904
        %1926 = vmatprep.subr.bf16.mxu0 0
        %1927 = vmatpush1.bf16.msra.mxu0 %v1905
        %1928 = vmatprep.subr.bf16.mxu0 0
        %1929 = vmatpush1.bf16.msra.mxu0 %v1906
        %1930 = vmatprep.subr.bf16.mxu0 0
        %1931 = vmatpush1.bf16.msra.mxu0 %v1907
        %1932 = vmatprep.subr.bf16.mxu0 0
        %1933 = vmatpush1.bf16.msra.mxu0 0
        %1934 = vmatprep.subr.bf16.mxu0 0
        %1935 = vmatpush1.bf16.msra.mxu0 0
        %1936 = vmatprep.subr.bf16.mxu0 0
        %1937 = vmatpush1.bf16.msra.mxu0 0
        %1938 = vmatprep.subr.bf16.mxu0 0
        %1939 = vmatpush1.bf16.msra.mxu0 0
        %1940 = vmatprep.subr.bf16.mxu0 0
        %1941 = vmatpush1.bf16.msra.mxu0 0
        %1942 = vmatprep.subr.bf16.mxu0 0
        %1943 = vmatpush1.bf16.msra.mxu0 0
        %1944 = vmatprep.subr.bf16.mxu0 0
        %1945 = vmatpush1.bf16.msra.mxu0 0
        %1946 = vmatprep.subr.bf16.mxu0 0
        %1947 = vmatpush1.bf16.msra.mxu0 0
        %1948 = vmatprep.mubr.bf16.mxu0 0
        %1949 = vmatmul.mubr.bf16.gmra.mrb[0].mxu0 %v1844
        %v1950 = vpop.f32.mrb[0].mxu0
        %v1951 = vadd.f32 %v1866, %v1950
        %v1952 = vpop.f32.mrb[0].mxu0
        %v1953 = vpop.f32.mrb[0].mxu0
        %v1954 = vadd.f32 %v1866, %v1953
        %v1955 = vpop.f32.mrb[0].mxu0
        %1956 = vdwg.mxu0
        %v1957 = vadd.f32 %v1348, %v1951
        %v1958 = vadd.f32 %v1351, %v1954
        %1959 = vadd.xlane.f32.xlu0 %v1957
        %v1960 = vpop.xlane.xlu0 %1959
        %1961 = vadd.xlane.f32.xlu0 %v1958
        %v1962 = vpop.xlane.xlu0 %1961
        %v1963 = vmul.f32 %v1960, 0.0625
        %v1964 = vmul.f32 %v1962, 0.0625
        %v1965 = vsub.f32 %v1957, %v1963
        %v1966 = vsub.f32 %v1958, %v1964
        %vm1967 = vcmp.lt.s32.totalorder %v1198, 16
        %v1968 = vsel %vm1967, %v1965, 0.0
        %v1969 = vsel %vm1967, %v1966, 0.0
        %v1970 = vmul.f32 %v1968, %v1968
        %v1971 = vmul.f32 %v1969, %v1969
        %1972 = vadd.xlane.f32.xlu0 %v1970
        %v1973 = vpop.xlane.xlu0 %1972
        %1974 = vadd.xlane.f32.xlu0 %v1971
        %v1975 = vpop.xlane.xlu0 %1974
        %v1976 = vmul.f32 %v1973, 0.0625
        %v1977 = vmul.f32 %v1975, 0.0625
        %v1978 = vadd.f32 %v1976, 1e-05
        %v1979 = vadd.f32 %v1977, 1e-05
        %v1980 = vrsqrt.pop %v1978
        %v1981 = vrsqrt.pop %v1979
        %v1982 = vmul.f32 %v1965, %v1980
        %v1983 = vmul.f32 %v1966, %v1981
        %v1984 = vld [vmem:[#allocation15] sm:$0x1]
        %v1986 = vlaneseq
        %v1987 = vshrl.u32 %v1986, 7
        %v1988 = vsub.s32 0, %v1987
        %v1989 = vrot.slane %v1984, %v1988
        %v1991 = vmul.f32 %v1982, %v1989
        %v1992 = vmul.f32 %v1983, %v1989
        %v1993 = vld [vmem:[#allocation16] sm:$0x1]
        %v1995 = vlaneseq
        %v1996 = vshrl.u32 %v1995, 7
        %v1997 = vsub.s32 0, %v1996
        %v1998 = vrot.slane %v1993, %v1997
        %v2000 = vadd.f32 %v1991, %v1998
        %v2001 = vadd.f32 %v1992, %v1998
        %v2002 = vpack.c.bf16 %v2001, %v2000
        %v2003 = vld [vmem:[#allocation18] sm:$0xf]
        %v2004 = vld [vmem:[#allocation18 + $0x4] sm:$0xf]
        %v2005 = vld [vmem:[#allocation18 + $0x8] sm:$0xf]
        %v2006 = vld [vmem:[#allocation18 + $0xc] sm:$0xf]
        %v2007 = vld [vmem:[#allocation18 + $0x10] sm:$0xf]
        %v2008 = vld [vmem:[#allocation18 + $0x14] sm:$0xf]
        %v2009 = vld [vmem:[#allocation18 + $0x18] sm:$0xf]
        %v2010 = vld [vmem:[#allocation18 + $0x1c] sm:$0xf]
        %v2011 = vld [vmem:[#allocation18 + $0x20] sm:$0xf]
        %v2012 = vld [vmem:[#allocation18 + $0x24] sm:$0xf]
        %v2013 = vld [vmem:[#allocation18 + $0x28] sm:$0xf]
        %v2014 = vld [vmem:[#allocation18 + $0x2c] sm:$0xf]
        %v2015 = vld [vmem:[#allocation18 + $0x30] sm:$0xf]
        %v2016 = vld [vmem:[#allocation18 + $0x34] sm:$0xf]
        %v2017 = vld [vmem:[#allocation18 + $0x38] sm:$0xf]
        %v2018 = vld [vmem:[#allocation18 + $0x3c] sm:$0xf]
        %v2019 = vld [vmem:[#allocation19] sm:$0x1]
        %v2021 = vlaneseq
        %v2022 = vshrl.u32 %v2021, 7
        %v2023 = vsub.s32 0, %v2022
        %v2024 = vrot.slane %v2019, %v2023
        %v2042 = vunpack.c.l.b16 %v2003
        %v2043 = vunpack.c.l.b16 %v2004
        %v2044 = vunpack.c.l.b16 %v2005
        %v2045 = vunpack.c.l.b16 %v2006
        %v2046 = vunpack.c.l.b16 %v2007
        %v2047 = vunpack.c.l.b16 %v2008
        %v2048 = vunpack.c.l.b16 %v2009
        %v2049 = vunpack.c.l.b16 %v2010
        %v2050 = vunpack.c.l.b16 %v2011
        %v2051 = vunpack.c.l.b16 %v2012
        %v2052 = vunpack.c.l.b16 %v2013
        %v2053 = vunpack.c.l.b16 %v2014
        %v2054 = vunpack.c.l.b16 %v2015
        %v2055 = vunpack.c.l.b16 %v2016
        %v2056 = vunpack.c.l.b16 %v2017
        %v2057 = vunpack.c.l.b16 %v2018
        %v2058 = vpack.c.b16 %v2043, %v2042
        %v2059 = vpack.c.b16 %v2045, %v2044
        %v2060 = vpack.c.b16 %v2047, %v2046
        %v2061 = vpack.c.b16 %v2049, %v2048
        %v2062 = vpack.c.b16 %v2051, %v2050
        %v2063 = vpack.c.b16 %v2053, %v2052
        %v2064 = vpack.c.b16 %v2055, %v2054
        %v2065 = vpack.c.b16 %v2057, %v2056
        %2074 = vmatprep.subr.bf16.mxu0 0
        %2075 = vmatpush1.bf16.msra.mxu0 %v2058
        %2076 = vmatprep.subr.bf16.mxu0 0
        %2077 = vmatpush1.bf16.msra.mxu0 %v2059
        %2078 = vmatprep.subr.bf16.mxu0 0
        %2079 = vmatpush1.bf16.msra.mxu0 %v2060
        %2080 = vmatprep.subr.bf16.mxu0 0
        %2081 = vmatpush1.bf16.msra.mxu0 %v2061
        %2082 = vmatprep.subr.bf16.mxu0 0
        %2083 = vmatpush1.bf16.msra.mxu0 %v2062
        %2084 = vmatprep.subr.bf16.mxu0 0
        %2085 = vmatpush1.bf16.msra.mxu0 %v2063
        %2086 = vmatprep.subr.bf16.mxu0 0
        %2087 = vmatpush1.bf16.msra.mxu0 %v2064
        %2088 = vmatprep.subr.bf16.mxu0 0
        %2089 = vmatpush1.bf16.msra.mxu0 %v2065
        %2090 = vmatprep.subr.bf16.mxu0 0
        %2091 = vmatpush1.bf16.msra.mxu0 0
        %2092 = vmatprep.subr.bf16.mxu0 0
        %2093 = vmatpush1.bf16.msra.mxu0 0
        %2094 = vmatprep.subr.bf16.mxu0 0
        %2095 = vmatpush1.bf16.msra.mxu0 0
        %2096 = vmatprep.subr.bf16.mxu0 0
        %2097 = vmatpush1.bf16.msra.mxu0 0
        %2098 = vmatprep.subr.bf16.mxu0 0
        %2099 = vmatpush1.bf16.msra.mxu0 0
        %2100 = vmatprep.subr.bf16.mxu0 0
        %2101 = vmatpush1.bf16.msra.mxu0 0
        %2102 = vmatprep.subr.bf16.mxu0 0
        %2103 = vmatpush1.bf16.msra.mxu0 0
        %2104 = vmatprep.subr.bf16.mxu0 0
        %2105 = vmatpush1.bf16.msra.mxu0 0
        %2106 = vmatprep.mubr.bf16.mxu0 0
        %2107 = vmatmul.mubr.bf16.gmra.mrb[0].mxu0 %v2002
        %v2108 = vpop.f32.mrb[0].mxu0
        %v2109 = vadd.f32 %v2024, %v2108
        %v2110 = vpop.f32.mrb[0].mxu0
        %v2111 = vpop.f32.mrb[0].mxu0
        %v2112 = vadd.f32 %v2024, %v2111
        %v2113 = vpop.f32.mrb[0].mxu0
        %2114 = vdwg.mxu0
        %v2115 = vpack.c.bf16 %v1233, %v1232
        %v2116 = vld [vmem:[%s17] sm:$0xff]
        %v2117 = vld [vmem:[%s17 + $0x8] sm:$0xf]
        %v2118 = vld [vmem:[%s17 + $0xc] sm:$0xff]
        %v2119 = vld [vmem:[%s17 + $0x14] sm:$0xf]
        %v2120 = vld [vmem:[%s17 + $0x18] sm:$0xff]
        %v2121 = vld [vmem:[%s17 + $0x20] sm:$0xf]
        %v2122 = vld [vmem:[%s17 + $0x24] sm:$0xff]
        %v2123 = vld [vmem:[%s17 + $0x2c] sm:$0xf]
        %v2124 = vld [vmem:[%s17 + $0x30] sm:$0xff]
        %v2125 = vld [vmem:[%s17 + $0x38] sm:$0xf]
        %v2126 = vld [vmem:[%s17 + $0x3c] sm:$0xff]
        %v2127 = vld [vmem:[%s17 + $0x44] sm:$0xf]
        %v2128 = vld [vmem:[%s17 + $0x48] sm:$0xff]
        %v2129 = vld [vmem:[%s17 + $0x50] sm:$0xf]
        %v2130 = vld [vmem:[%s17 + $0x54] sm:$0xff]
        %v2131 = vld [vmem:[%s17 + $0x5c] sm:$0xf]
        %v2132 = vld [vmem:[%s17 + $0x60] sm:$0xff]
        %v2133 = vld [vmem:[%s17 + $0x68] sm:$0xf]
        %v2134 = vld [vmem:[%s17 + $0x6c] sm:$0xff]
        %v2135 = vld [vmem:[%s17 + $0x74] sm:$0xf]
        %v2136 = vld [vmem:[%s17 + $0x78] sm:$0xff]
        %v2137 = vld [vmem:[%s17 + $0x80] sm:$0xf]
        %v2138 = vld [vmem:[%s17 + $0x84] sm:$0xff]
        %v2139 = vld [vmem:[%s17 + $0x8c] sm:$0xf]
        %v2140 = vld [vmem:[%s17 + $0x90] sm:$0xff]
        %v2141 = vld [vmem:[%s17 + $0x98] sm:$0xf]
        %v2142 = vld [vmem:[%s17 + $0x9c] sm:$0xff]
        %v2143 = vld [vmem:[%s17 + $0xa4] sm:$0xf]
        %v2144 = vld [vmem:[%s17 + $0xa8] sm:$0xff]
        %v2145 = vld [vmem:[%s17 + $0xb0] sm:$0xf]
        %v2146 = vld [vmem:[%s17 + $0xb4] sm:$0xff]
        %v2147 = vld [vmem:[%s17 + $0xbc] sm:$0xf]
        %v2148 = vld [vmem:[#allocation21] sm:$0x7]
        %v2150 = vlaneseq
        %v2151 = vshrl.u32 %v2150, 7
        %v2152 = vsub.s32 0, %v2151
        %v2153 = vrot.slane %v2148, %v2152
        %v2154 = vlaneseq
        %v2155 = vshrl.u32 %v2154, 7
        %v2156 = vsub.s32 1, %v2155
        %v2157 = vrot.slane %v2148, %v2156
        %v2158 = vlaneseq
        %v2159 = vshrl.u32 %v2158, 7
        %v2160 = vsub.s32 2, %v2159
        %v2161 = vrot.slane %v2148, %v2160
        %v2197 = vunpack.c.l.b16 %v2116
        %v2198 = vunpack.c.h.b16 %v2116
        %v2199 = vunpack.c.l.b16 %v2117
        %v2200 = vunpack.c.l.b16 %v2118
        %v2201 = vunpack.c.h.b16 %v2118
        %v2202 = vunpack.c.l.b16 %v2119
        %v2203 = vunpack.c.l.b16 %v2120
        %v2204 = vunpack.c.h.b16 %v2120
        %v2205 = vunpack.c.l.b16 %v2121
        %v2206 = vunpack.c.l.b16 %v2122
        %v2207 = vunpack.c.h.b16 %v2122
        %v2208 = vunpack.c.l.b16 %v2123
        %v2209 = vunpack.c.l.b16 %v2124
        %v2210 = vunpack.c.h.b16 %v2124
        %v2211 = vunpack.c.l.b16 %v2125
        %v2212 = vunpack.c.l.b16 %v2126
        %v2213 = vunpack.c.h.b16 %v2126
        %v2214 = vunpack.c.l.b16 %v2127
        %v2215 = vunpack.c.l.b16 %v2128
        %v2216 = vunpack.c.h.b16 %v2128
        %v2217 = vunpack.c.l.b16 %v2129
        %v2218 = vunpack.c.l.b16 %v2130
        %v2219 = vunpack.c.h.b16 %v2130
        %v2220 = vunpack.c.l.b16 %v2131
        %v2221 = vunpack.c.l.b16 %v2132
        %v2222 = vunpack.c.h.b16 %v2132
        %v2223 = vunpack.c.l.b16 %v2133
        %v2224 = vunpack.c.l.b16 %v2134
        %v2225 = vunpack.c.h.b16 %v2134
        %v2226 = vunpack.c.l.b16 %v2135
        %v2227 = vunpack.c.l.b16 %v2136
        %v2228 = vunpack.c.h.b16 %v2136
        %v2229 = vunpack.c.l.b16 %v2137
        %v2230 = vunpack.c.l.b16 %v2138
        %v2231 = vunpack.c.h.b16 %v2138
        %v2232 = vunpack.c.l.b16 %v2139
        %v2233 = vunpack.c.l.b16 %v2140
        %v2234 = vunpack.c.h.b16 %v2140
        %v2235 = vunpack.c.l.b16 %v2141
        %v2236 = vunpack.c.l.b16 %v2142
        %v2237 = vunpack.c.h.b16 %v2142
        %v2238 = vunpack.c.l.b16 %v2143
        %v2239 = vunpack.c.l.b16 %v2144
        %v2240 = vunpack.c.h.b16 %v2144
        %v2241 = vunpack.c.l.b16 %v2145
        %v2242 = vunpack.c.l.b16 %v2146
        %v2243 = vunpack.c.h.b16 %v2146
        %v2244 = vunpack.c.l.b16 %v2147
        %v2245 = vpack.c.b16 %v2200, %v2197
        %v2246 = vpack.c.b16 %v2201, %v2198
        %v2247 = vpack.c.b16 %v2202, %v2199
        %v2248 = vpack.c.b16 %v2206, %v2203
        %v2249 = vpack.c.b16 %v2207, %v2204
        %v2250 = vpack.c.b16 %v2208, %v2205
        %v2251 = vpack.c.b16 %v2212, %v2209
        %v2252 = vpack.c.b16 %v2213, %v2210
        %v2253 = vpack.c.b16 %v2214, %v2211
        %v2254 = vpack.c.b16 %v2218, %v2215
        %v2255 = vpack.c.b16 %v2219, %v2216
        %v2256 = vpack.c.b16 %v2220, %v2217
        %v2257 = vpack.c.b16 %v2224, %v2221
        %v2258 = vpack.c.b16 %v2225, %v2222
        %v2259 = vpack.c.b16 %v2226, %v2223
        %v2260 = vpack.c.b16 %v2230, %v2227
        %v2261 = vpack.c.b16 %v2231, %v2228
        %v2262 = vpack.c.b16 %v2232, %v2229
        %v2263 = vpack.c.b16 %v2236, %v2233
        %v2264 = vpack.c.b16 %v2237, %v2234
        %v2265 = vpack.c.b16 %v2238, %v2235
        %v2266 = vpack.c.b16 %v2242, %v2239
        %v2267 = vpack.c.b16 %v2243, %v2240
        %v2268 = vpack.c.b16 %v2244, %v2241
        %2293 = vmatprep.subr.bf16.mxu0 %v2246
        %2294 = vmatpush1.bf16.msra.mxu0 %v2245
        %2295 = vmatprep.subr.bf16.mxu0 %v2249
        %2296 = vmatpush1.bf16.msra.mxu0 %v2248
        %2297 = vmatprep.subr.bf16.mxu0 %v2252
        %2298 = vmatpush1.bf16.msra.mxu0 %v2251
        %2299 = vmatprep.subr.bf16.mxu0 %v2255
        %2300 = vmatpush1.bf16.msra.mxu0 %v2254
        %2301 = vmatprep.subr.bf16.mxu0 %v2258
        %2302 = vmatpush1.bf16.msra.mxu0 %v2257
        %2303 = vmatprep.subr.bf16.mxu0 %v2261
        %2304 = vmatpush1.bf16.msra.mxu0 %v2260
        %2305 = vmatprep.subr.bf16.mxu0 %v2264
        %2306 = vmatpush1.bf16.msra.mxu0 %v2263
        %2307 = vmatprep.subr.bf16.mxu0 %v2267
        %2308 = vmatpush1.bf16.msra.mxu0 %v2266
        %2309 = vmatprep.subr.bf16.mxu0 0
        %2310 = vmatpush1.bf16.msra.mxu0 0
        %2311 = vmatprep.subr.bf16.mxu0 0
        %2312 = vmatpush1.bf16.msra.mxu0 0
        %2313 = vmatprep.subr.bf16.mxu0 0
        %2314 = vmatpush1.bf16.msra.mxu0 0
        %2315 = vmatprep.subr.bf16.mxu0 0
        %2316 = vmatpush1.bf16.msra.mxu0 0
        %2317 = vmatprep.subr.bf16.mxu0 0
        %2318 = vmatpush1.bf16.msra.mxu0 0
        %2319 = vmatprep.subr.bf16.mxu0 0
        %2320 = vmatpush1.bf16.msra.mxu0 0
        %2321 = vmatprep.subr.bf16.mxu0 0
        %2322 = vmatpush1.bf16.msra.mxu0 0
        %2323 = vmatprep.subr.bf16.mxu0 0
        %2324 = vmatpush1.bf16.msra.mxu0 0
        %2325 = vmatprep.mubr.bf16.mxu0 0
        %2326 = vmatmul.mubr.bf16.gmra.mrb[0].mxu0 %v2115
        %v2327 = vpop.f32.mrb[0].mxu0
        %v2328 = vadd.f32 %v2153, %v2327
        %v2329 = vpop.f32.mrb[0].mxu0
        %v2330 = vadd.f32 %v2157, %v2329
        %v2331 = vpop.f32.mrb[0].mxu0
        %v2332 = vadd.f32 %v2153, %v2331
        %v2333 = vpop.f32.mrb[0].mxu0
        %v2334 = vadd.f32 %v2157, %v2333
        %2335 = vdwg.mxu0
        %2336 = vmatprep.subr.bf16.mxu0 0
        %2337 = vmatpush1.bf16.msra.mxu0 %v2247
        %2338 = vmatprep.subr.bf16.mxu0 0
        %2339 = vmatpush1.bf16.msra.mxu0 %v2250
        %2340 = vmatprep.subr.bf16.mxu0 0
        %2341 = vmatpush1.bf16.msra.mxu0 %v2253
        %2342 = vmatprep.subr.bf16.mxu0 0
        %2343 = vmatpush1.bf16.msra.mxu0 %v2256
        %2344 = vmatprep.subr.bf16.mxu0 0
        %2345 = vmatpush1.bf16.msra.mxu0 %v2259
        %2346 = vmatprep.subr.bf16.mxu0 0
        %2347 = vmatpush1.bf16.msra.mxu0 %v2262
        %2348 = vmatprep.subr.bf16.mxu0 0
        %2349 = vmatpush1.bf16.msra.mxu0 %v2265
        %2350 = vmatprep.subr.bf16.mxu0 0
        %2351 = vmatpush1.bf16.msra.mxu0 %v2268
        %2352 = vmatprep.subr.bf16.mxu0 0
        %2353 = vmatpush1.bf16.msra.mxu0 0
        %2354 = vmatprep.subr.bf16.mxu0 0
        %2355 = vmatpush1.bf16.msra.mxu0 0
        %2356 = vmatprep.subr.bf16.mxu0 0
        %2357 = vmatpush1.bf16.msra.mxu0 0
        %2358 = vmatprep.subr.bf16.mxu0 0
        %2359 = vmatpush1.bf16.msra.mxu0 0
        %2360 = vmatprep.subr.bf16.mxu0 0
        %2361 = vmatpush1.bf16.msra.mxu0 0
        %2362 = vmatprep.subr.bf16.mxu0 0
        %2363 = vmatpush1.bf16.msra.mxu0 0
        %2364 = vmatprep.subr.bf16.mxu0 0
        %2365 = vmatpush1.bf16.msra.mxu0 0
        %2366 = vmatprep.subr.bf16.mxu0 0
        %2367 = vmatpush1.bf16.msra.mxu0 0
        %2368 = vmatprep.mubr.bf16.mxu0 0
        %2369 = vmatmul.mubr.bf16.gmra.mrb[0].mxu0 %v2115
        %v2370 = vpop.f32.mrb[0].mxu0
        %v2371 = vadd.f32 %v2161, %v2370
        %v2372 = vpop.f32.mrb[0].mxu0
        %v2373 = vpop.f32.mrb[0].mxu0
        %v2374 = vadd.f32 %v2161, %v2373
        %v2375 = vpop.f32.mrb[0].mxu0
        %2376 = vdwg.mxu0
        %v2377 = vpack.c.bf16 %v2332, %v2328
        %v2378 = vpack.c.bf16 %v2334, %v2330
        %v2379 = vpack.c.bf16 %v2374, %v2371
        %v2381 = vunpack.c.l.b16 %v2377
        %v2382 = vunpack.c.h.b16 %v2377
        %v2383 = vpack.c.b16 %v2381, %v2381
        %v2384 = vpack.c.b16 %v2382, %v2382
        %v2388 = vunpack.c.l.b16 %v2378
        %v2389 = vunpack.c.h.b16 %v2378
        %v2390 = vpack.c.b16 %v2388, %v2388
        %v2391 = vpack.c.b16 %v2389, %v2389
        %v2395 = vunpack.c.l.b16 %v2379
        %v2396 = vunpack.c.h.b16 %v2379
        %v2397 = vpack.c.b16 %v2395, %v2395
        %v2398 = vpack.c.b16 %v2396, %v2396
        %2399 = vmatprep.subr.bf16.mxu0 0
        %2400 = vmatpush1.bf16.xpose.msra.mxu0 %v2390
        %2401 = vmatprep.subr.bf16.mxu0 0
        %2402 = vmatpush1.bf16.xpose.msra.mxu0 0
        %2403 = vmatprep.subr.bf16.mxu0 0
        %2404 = vmatpush1.bf16.xpose.msra.mxu0 0
        %2405 = vmatprep.subr.bf16.mxu0 0
        %2406 = vmatpush1.bf16.xpose.msra.mxu0 0
        %2407 = vmatprep.subr.bf16.mxu0 0
        %2408 = vmatpush1.bf16.xpose.msra.mxu0 0
        %2409 = vmatprep.subr.bf16.mxu0 0
        %2410 = vmatpush1.bf16.xpose.msra.mxu0 0
        %2411 = vmatprep.subr.bf16.mxu0 0
        %2412 = vmatpush1.bf16.xpose.msra.mxu0 0
        %2413 = vmatprep.subr.bf16.mxu0 0
        %2414 = vmatpush1.bf16.xpose.msra.mxu0 0
        %2415 = vmatprep.subr.bf16.mxu0 0
        %2416 = vmatpush1.bf16.xpose.msra.mxu0 0
        %2417 = vmatprep.subr.bf16.mxu0 0
        %2418 = vmatpush1.bf16.xpose.msra.mxu0 0
        %2419 = vmatprep.subr.bf16.mxu0 0
        %2420 = vmatpush1.bf16.xpose.msra.mxu0 0
        %2421 = vmatprep.subr.bf16.mxu0 0
        %2422 = vmatpush1.bf16.xpose.msra.mxu0 0
        %2423 = vmatprep.subr.bf16.mxu0 0
        %2424 = vmatpush1.bf16.xpose.msra.mxu0 0
        %2425 = vmatprep.subr.bf16.mxu0 0
        %2426 = vmatpush1.bf16.xpose.msra.mxu0 0
        %2427 = vmatprep.subr.bf16.mxu0 0
        %2428 = vmatpush1.bf16.xpose.msra.mxu0 0
        %2429 = vmatprep.subr.bf16.mxu0 0
        %2430 = vmatpush1.bf16.xpose.msra.mxu0 0
        %2431 = vmatprep.mubr.bf16.mxu0 0
        %2432 = vmatmul.mubr.bf16.gmra.mrb[0].mxu0 %v2383
        %v2433 = vpop.f32.mrb[0].mxu0
        %v2434 = vadd.f32 0.0, %v2433
        %v2435 = vpop.f32.mrb[0].mxu0
        %v2436 = vpop.f32.mrb[0].mxu0
        %v2437 = vpop.f32.mrb[0].mxu0
        %2438 = vdwg.mxu0
        %2439 = vmatprep.subr.bf16.mxu0 0
        %2440 = vmatpush1.bf16.xpose.msra.mxu0 %v2391
        %2441 = vmatprep.subr.bf16.mxu0 0
        %2442 = vmatpush1.bf16.xpose.msra.mxu0 0
        %2443 = vmatprep.subr.bf16.mxu0 0
        %2444 = vmatpush1.bf16.xpose.msra.mxu0 0
        %2445 = vmatprep.subr.bf16.mxu0 0
        %2446 = vmatpush1.bf16.xpose.msra.mxu0 0
        %2447 = vmatprep.subr.bf16.mxu0 0
        %2448 = vmatpush1.bf16.xpose.msra.mxu0 0
        %2449 = vmatprep.subr.bf16.mxu0 0
        %2450 = vmatpush1.bf16.xpose.msra.mxu0 0
        %2451 = vmatprep.subr.bf16.mxu0 0
        %2452 = vmatpush1.bf16.xpose.msra.mxu0 0
        %2453 = vmatprep.subr.bf16.mxu0 0
        %2454 = vmatpush1.bf16.xpose.msra.mxu0 0
        %2455 = vmatprep.subr.bf16.mxu0 0
        %2456 = vmatpush1.bf16.xpose.msra.mxu0 0
        %2457 = vmatprep.subr.bf16.mxu0 0
        %2458 = vmatpush1.bf16.xpose.msra.mxu0 0
        %2459 = vmatprep.subr.bf16.mxu0 0
        %2460 = vmatpush1.bf16.xpose.msra.mxu0 0
        %2461 = vmatprep.subr.bf16.mxu0 0
        %2462 = vmatpush1.bf16.xpose.msra.mxu0 0
        %2463 = vmatprep.subr.bf16.mxu0 0
        %2464 = vmatpush1.bf16.xpose.msra.mxu0 0
        %2465 = vmatprep.subr.bf16.mxu0 0
        %2466 = vmatpush1.bf16.xpose.msra.mxu0 0
        %2467 = vmatprep.subr.bf16.mxu0 0
        %2468 = vmatpush1.bf16.xpose.msra.mxu0 0
        %2469 = vmatprep.subr.bf16.mxu0 0
        %2470 = vmatpush1.bf16.xpose.msra.mxu0 0
        %2471 = vmatprep.mubr.bf16.mxu0 0
        %2472 = vmatmul.mubr.bf16.gmra.mrb[0].mxu0 %v2384
        %v2473 = vpop.f32.mrb[0].mxu0
        %v2474 = vadd.f32 0.0, %v2473
        %v2475 = vpop.f32.mrb[0].mxu0
        %v2476 = vpop.f32.mrb[0].mxu0
        %v2477 = vpop.f32.mrb[0].mxu0
        %2478 = vdwg.mxu0
        %v2479 = vmul.f32 %v2434, 0.17677669
        %v2480 = vmul.f32 %v2474, 0.17677669
        %v2481 = vsel %vm1726, %v2479, -inf
        %2482 = vmax.xlane.f32.xlu0 %v2481
        %v2483 = vpop.xlane.xlu0 %2482
        %v2484 = vsel %vm1726, %v2480, -inf
        %2485 = vmax.xlane.f32.xlu0 %v2484
        %v2486 = vpop.xlane.xlu0 %2485
        %v2487 = vsub.f32 %v2479, %v2483
        %v2488 = vsub.f32 %v2480, %v2486
        %v2489 = vmul.f32 %v2487, 1.442695
        %v2490 = vpow.pop %v2489
        %v2491 = vmul.f32 %v2488, 1.442695
        %v2492 = vpow.pop %v2491
        %v2493 = vsel %vm1726, %v2490, 0.0
        %2494 = vadd.xlane.f32.xlu0 %v2493
        %v2495 = vpop.xlane.xlu0 %2494
        %v2496 = vsel %vm1726, %v2492, 0.0
        %2497 = vadd.xlane.f32.xlu0 %v2496
        %v2498 = vpop.xlane.xlu0 %2497
        %v2499 = vrcp.pop %v2495
        %v2500 = vrcp.pop %v2498
        %v2501 = vmul.f32 %v2490, %v2499
        %v2502 = vmul.f32 %v2492, %v2500
        %v2503 = vpack.c.bf16 %v2501, %v2501
        %v2504 = vpack.c.bf16 %v2502, %v2502
        %v2506 = vsel %vm1726, %v2503, 0
        %v2509 = vsel %vm1754, %v2397, 0
        %2511 = vmatprep.subr.bf16.mxu0 0
        %2512 = vmatpush1.bf16.msra.mxu0 %v2509
        %2513 = vmatprep.subr.bf16.mxu0 0
        %2514 = vmatpush1.bf16.msra.mxu0 0
        %2515 = vmatprep.subr.bf16.mxu0 0
        %2516 = vmatpush1.bf16.msra.mxu0 0
        %2517 = vmatprep.subr.bf16.mxu0 0
        %2518 = vmatpush1.bf16.msra.mxu0 0
        %2519 = vmatprep.subr.bf16.mxu0 0
        %2520 = vmatpush1.bf16.msra.mxu0 0
        %2521 = vmatprep.subr.bf16.mxu0 0
        %2522 = vmatpush1.bf16.msra.mxu0 0
        %2523 = vmatprep.subr.bf16.mxu0 0
        %2524 = vmatpush1.bf16.msra.mxu0 0
        %2525 = vmatprep.subr.bf16.mxu0 0
        %2526 = vmatpush1.bf16.msra.mxu0 0
        %2527 = vmatprep.subr.bf16.mxu0 0
        %2528 = vmatpush1.bf16.msra.mxu0 0
        %2529 = vmatprep.subr.bf16.mxu0 0
        %2530 = vmatpush1.bf16.msra.mxu0 0
        %2531 = vmatprep.subr.bf16.mxu0 0
        %2532 = vmatpush1.bf16.msra.mxu0 0
        %2533 = vmatprep.subr.bf16.mxu0 0
        %2534 = vmatpush1.bf16.msra.mxu0 0
        %2535 = vmatprep.subr.bf16.mxu0 0
        %2536 = vmatpush1.bf16.msra.mxu0 0
        %2537 = vmatprep.subr.bf16.mxu0 0
        %2538 = vmatpush1.bf16.msra.mxu0 0
        %2539 = vmatprep.subr.bf16.mxu0 0
        %2540 = vmatpush1.bf16.msra.mxu0 0
        %2541 = vmatprep.subr.bf16.mxu0 0
        %2542 = vmatpush1.bf16.msra.mxu0 0
        %2543 = vmatprep.mubr.bf16.mxu0 0
        %2544 = vmatmul.mubr.bf16.gmra.mrb[0].mxu0 %v2506
        %v2545 = vpop.f32.mrb[0].mxu0
        %v2546 = vadd.f32 0.0, %v2545
        %v2547 = vpop.f32.mrb[0].mxu0
        %v2548 = vpop.f32.mrb[0].mxu0
        %v2549 = vpop.f32.mrb[0].mxu0
        %2550 = vdwg.mxu0
        %v2552 = vsel %vm1726, %v2504, 0
        %v2555 = vsel %vm1754, %v2398, 0
        %2557 = vmatprep.subr.bf16.mxu0 0
        %2558 = vmatpush1.bf16.msra.mxu0 %v2555
        %2559 = vmatprep.subr.bf16.mxu0 0
        %2560 = vmatpush1.bf16.msra.mxu0 0
        %2561 = vmatprep.subr.bf16.mxu0 0
        %2562 = vmatpush1.bf16.msra.mxu0 0
        %2563 = vmatprep.subr.bf16.mxu0 0
        %2564 = vmatpush1.bf16.msra.mxu0 0
        %2565 = vmatprep.subr.bf16.mxu0 0
        %2566 = vmatpush1.bf16.msra.mxu0 0
        %2567 = vmatprep.subr.bf16.mxu0 0
        %2568 = vmatpush1.bf16.msra.mxu0 0
        %2569 = vmatprep.subr.bf16.mxu0 0
        %2570 = vmatpush1.bf16.msra.mxu0 0
        %2571 = vmatprep.subr.bf16.mxu0 0
        %2572 = vmatpush1.bf16.msra.mxu0 0
        %2573 = vmatprep.subr.bf16.mxu0 0
        %2574 = vmatpush1.bf16.msra.mxu0 0
        %2575 = vmatprep.subr.bf16.mxu0 0
        %2576 = vmatpush1.bf16.msra.mxu0 0
        %2577 = vmatprep.subr.bf16.mxu0 0
        %2578 = vmatpush1.bf16.msra.mxu0 0
        %2579 = vmatprep.subr.bf16.mxu0 0
        %2580 = vmatpush1.bf16.msra.mxu0 0
        %2581 = vmatprep.subr.bf16.mxu0 0
        %2582 = vmatpush1.bf16.msra.mxu0 0
        %2583 = vmatprep.subr.bf16.mxu0 0
        %2584 = vmatpush1.bf16.msra.mxu0 0
        %2585 = vmatprep.subr.bf16.mxu0 0
        %2586 = vmatpush1.bf16.msra.mxu0 0
        %2587 = vmatprep.subr.bf16.mxu0 0
        %2588 = vmatpush1.bf16.msra.mxu0 0
        %2589 = vmatprep.mubr.bf16.mxu0 0
        %2590 = vmatmul.mubr.bf16.gmra.mrb[0].mxu0 %v2552
        %v2591 = vpop.f32.mrb[0].mxu0
        %v2592 = vadd.f32 0.0, %v2591
        %v2593 = vpop.f32.mrb[0].mxu0
        %v2594 = vpop.f32.mrb[0].mxu0
        %v2595 = vpop.f32.mrb[0].mxu0
        %2596 = vdwg.mxu0
        %v2597 = vpack.c.bf16 %v2592, %v2546
        %v2598 = vld [vmem:[#allocation22] sm:$0xf]
        %v2599 = vld [vmem:[#allocation22 + $0x4] sm:$0xf]
        %v2600 = vld [vmem:[#allocation22 + $0x8] sm:$0xf]
        %v2601 = vld [vmem:[#allocation22 + $0xc] sm:$0xf]
        %v2602 = vld [vmem:[#allocation22 + $0x10] sm:$0xf]
        %v2603 = vld [vmem:[#allocation22 + $0x14] sm:$0xf]
        %v2604 = vld [vmem:[#allocation22 + $0x18] sm:$0xf]
        %v2605 = vld [vmem:[#allocation22 + $0x1c] sm:$0xf]
        %v2606 = vld [vmem:[#allocation22 + $0x20] sm:$0xf]
        %v2607 = vld [vmem:[#allocation22 + $0x24] sm:$0xf]
        %v2608 = vld [vmem:[#allocation22 + $0x28] sm:$0xf]
        %v2609 = vld [vmem:[#allocation22 + $0x2c] sm:$0xf]
        %v2610 = vld [vmem:[#allocation22 + $0x30] sm:$0xf]
        %v2611 = vld [vmem:[#allocation22 + $0x34] sm:$0xf]
        %v2612 = vld [vmem:[#allocation22 + $0x38] sm:$0xf]
        %v2613 = vld [vmem:[#allocation22 + $0x3c] sm:$0xf]
        %v2614 = vld [vmem:[#allocation24] sm:$0x1]
        %v2616 = vlaneseq
        %v2617 = vshrl.u32 %v2616, 7
        %v2618 = vsub.s32 0, %v2617
        %v2619 = vrot.slane %v2614, %v2618
        %v2637 = vunpack.c.l.b16 %v2598
        %v2638 = vunpack.c.l.b16 %v2599
        %v2639 = vunpack.c.l.b16 %v2600
        %v2640 = vunpack.c.l.b16 %v2601
        %v2641 = vunpack.c.l.b16 %v2602
        %v2642 = vunpack.c.l.b16 %v2603
        %v2643 = vunpack.c.l.b16 %v2604
        %v2644 = vunpack.c.l.b16 %v2605
        %v2645 = vunpack.c.l.b16 %v2606
        %v2646 = vunpack.c.l.b16 %v2607
        %v2647 = vunpack.c.l.b16 %v2608
        %v2648 = vunpack.c.l.b16 %v2609
        %v2649 = vunpack.c.l.b16 %v2610
        %v2650 = vunpack.c.l.b16 %v2611
        %v2651 = vunpack.c.l.b16 %v2612
        %v2652 = vunpack.c.l.b16 %v2613
        %v2653 = vpack.c.b16 %v2638, %v2637
        %v2654 = vpack.c.b16 %v2640, %v2639
        %v2655 = vpack.c.b16 %v2642, %v2641
        %v2656 = vpack.c.b16 %v2644, %v2643
        %v2657 = vpack.c.b16 %v2646, %v2645
        %v2658 = vpack.c.b16 %v2648, %v2647
        %v2659 = vpack.c.b16 %v2650, %v2649
        %v2660 = vpack.c.b16 %v2652, %v2651
        %2669 = vmatprep.subr.bf16.mxu0 0
        %2670 = vmatpush1.bf16.msra.mxu0 %v2653
        %2671 = vmatprep.subr.bf16.mxu0 0
        %2672 = vmatpush1.bf16.msra.mxu0 %v2654
        %2673 = vmatprep.subr.bf16.mxu0 0
        %2674 = vmatpush1.bf16.msra.mxu0 %v2655
        %2675 = vmatprep.subr.bf16.mxu0 0
        %2676 = vmatpush1.bf16.msra.mxu0 %v2656
        %2677 = vmatprep.subr.bf16.mxu0 0
        %2678 = vmatpush1.bf16.msra.mxu0 %v2657
        %2679 = vmatprep.subr.bf16.mxu0 0
        %2680 = vmatpush1.bf16.msra.mxu0 %v2658
        %2681 = vmatprep.subr.bf16.mxu0 0
        %2682 = vmatpush1.bf16.msra.mxu0 %v2659
        %2683 = vmatprep.subr.bf16.mxu0 0
        %2684 = vmatpush1.bf16.msra.mxu0 %v2660
        %2685 = vmatprep.subr.bf16.mxu0 0
        %2686 = vmatpush1.bf16.msra.mxu0 0
        %2687 = vmatprep.subr.bf16.mxu0 0
        %2688 = vmatpush1.bf16.msra.mxu0 0
        %2689 = vmatprep.subr.bf16.mxu0 0
        %2690 = vmatpush1.bf16.msra.mxu0 0
        %2691 = vmatprep.subr.bf16.mxu0 0
        %2692 = vmatpush1.bf16.msra.mxu0 0
        %2693 = vmatprep.subr.bf16.mxu0 0
        %2694 = vmatpush1.bf16.msra.mxu0 0
        %2695 = vmatprep.subr.bf16.mxu0 0
        %2696 = vmatpush1.bf16.msra.mxu0 0
        %2697 = vmatprep.subr.bf16.mxu0 0
        %2698 = vmatpush1.bf16.msra.mxu0 0
        %2699 = vmatprep.subr.bf16.mxu0 0
        %2700 = vmatpush1.bf16.msra.mxu0 0
        %2701 = vmatprep.mubr.bf16.mxu0 0
        %2702 = vmatmul.mubr.bf16.gmra.mrb[0].mxu0 %v2597
        %v2703 = vpop.f32.mrb[0].mxu0
        %v2704 = vadd.f32 %v2619, %v2703
        %v2705 = vpop.f32.mrb[0].mxu0
        %v2706 = vpop.f32.mrb[0].mxu0
        %v2707 = vadd.f32 %v2619, %v2706
        %v2708 = vpop.f32.mrb[0].mxu0
        %2709 = vdwg.mxu0
        %v2710 = vpack.c.bf16 %v2112, %v2109
        %v2711 = vld [vmem:[%s17] sm:$0xff]
        %v2712 = vld [vmem:[%s17 + $0x8] sm:$0xf]
        %v2713 = vld [vmem:[%s17 + $0xc] sm:$0xff]
        %v2714 = vld [vmem:[%s17 + $0x14] sm:$0xf]
        %v2715 = vld [vmem:[%s17 + $0x18] sm:$0xff]
        %v2716 = vld [vmem:[%s17 + $0x20] sm:$0xf]
        %v2717 = vld [vmem:[%s17 + $0x24] sm:$0xff]
        %v2718 = vld [vmem:[%s17 + $0x2c] sm:$0xf]
        %v2719 = vld [vmem:[%s17 + $0x30] sm:$0xff]
        %v2720 = vld [vmem:[%s17 + $0x38] sm:$0xf]
        %v2721 = vld [vmem:[%s17 + $0x3c] sm:$0xff]
        %v2722 = vld [vmem:[%s17 + $0x44] sm:$0xf]
        %v2723 = vld [vmem:[%s17 + $0x48] sm:$0xff]
        %v2724 = vld [vmem:[%s17 + $0x50] sm:$0xf]
        %v2725 = vld [vmem:[%s17 + $0x54] sm:$0xff]
        %v2726 = vld [vmem:[%s17 + $0x5c] sm:$0xf]
        %v2727 = vld [vmem:[%s17 + $0x60] sm:$0xff]
        %v2728 = vld [vmem:[%s17 + $0x68] sm:$0xf]
        %v2729 = vld [vmem:[%s17 + $0x6c] sm:$0xff]
        %v2730 = vld [vmem:[%s17 + $0x74] sm:$0xf]
        %v2731 = vld [vmem:[%s17 + $0x78] sm:$0xff]
        %v2732 = vld [vmem:[%s17 + $0x80] sm:$0xf]
        %v2733 = vld [vmem:[%s17 + $0x84] sm:$0xff]
        %v2734 = vld [vmem:[%s17 + $0x8c] sm:$0xf]
        %v2735 = vld [vmem:[%s17 + $0x90] sm:$0xff]
        %v2736 = vld [vmem:[%s17 + $0x98] sm:$0xf]
        %v2737 = vld [vmem:[%s17 + $0x9c] sm:$0xff]
        %v2738 = vld [vmem:[%s17 + $0xa4] sm:$0xf]
        %v2739 = vld [vmem:[%s17 + $0xa8] sm:$0xff]
        %v2740 = vld [vmem:[%s17 + $0xb0] sm:$0xf]
        %v2741 = vld [vmem:[%s17 + $0xb4] sm:$0xff]
        %v2742 = vld [vmem:[%s17 + $0xbc] sm:$0xf]
        %v2743 = vld [vmem:[#allocation21] sm:$0x7]
        %v2745 = vlaneseq
        %v2746 = vshrl.u32 %v2745, 7
        %v2747 = vsub.s32 0, %v2746
        %v2748 = vrot.slane %v2743, %v2747
        %v2749 = vlaneseq
        %v2750 = vshrl.u32 %v2749, 7
        %v2751 = vsub.s32 1, %v2750
        %v2752 = vrot.slane %v2743, %v2751
        %v2753 = vlaneseq
        %v2754 = vshrl.u32 %v2753, 7
        %v2755 = vsub.s32 2, %v2754
        %v2756 = vrot.slane %v2743, %v2755
        %v2792 = vunpack.c.l.b16 %v2711
        %v2793 = vunpack.c.h.b16 %v2711
        %v2794 = vunpack.c.l.b16 %v2712
        %v2795 = vunpack.c.l.b16 %v2713
        %v2796 = vunpack.c.h.b16 %v2713
        %v2797 = vunpack.c.l.b16 %v2714
        %v2798 = vunpack.c.l.b16 %v2715
        %v2799 = vunpack.c.h.b16 %v2715
        %v2800 = vunpack.c.l.b16 %v2716
        %v2801 = vunpack.c.l.b16 %v2717
        %v2802 = vunpack.c.h.b16 %v2717
        %v2803 = vunpack.c.l.b16 %v2718
        %v2804 = vunpack.c.l.b16 %v2719
        %v2805 = vunpack.c.h.b16 %v2719
        %v2806 = vunpack.c.l.b16 %v2720
        %v2807 = vunpack.c.l.b16 %v2721
        %v2808 = vunpack.c.h.b16 %v2721
        %v2809 = vunpack.c.l.b16 %v2722
        %v2810 = vunpack.c.l.b16 %v2723
        %v2811 = vunpack.c.h.b16 %v2723
        %v2812 = vunpack.c.l.b16 %v2724
        %v2813 = vunpack.c.l.b16 %v2725
        %v2814 = vunpack.c.h.b16 %v2725
        %v2815 = vunpack.c.l.b16 %v2726
        %v2816 = vunpack.c.l.b16 %v2727
        %v2817 = vunpack.c.h.b16 %v2727
        %v2818 = vunpack.c.l.b16 %v2728
        %v2819 = vunpack.c.l.b16 %v2729
        %v2820 = vunpack.c.h.b16 %v2729
        %v2821 = vunpack.c.l.b16 %v2730
        %v2822 = vunpack.c.l.b16 %v2731
        %v2823 = vunpack.c.h.b16 %v2731
        %v2824 = vunpack.c.l.b16 %v2732
        %v2825 = vunpack.c.l.b16 %v2733
        %v2826 = vunpack.c.h.b16 %v2733
        %v2827 = vunpack.c.l.b16 %v2734
        %v2828 = vunpack.c.l.b16 %v2735
        %v2829 = vunpack.c.h.b16 %v2735
        %v2830 = vunpack.c.l.b16 %v2736
        %v2831 = vunpack.c.l.b16 %v2737
        %v2832 = vunpack.c.h.b16 %v2737
        %v2833 = vunpack.c.l.b16 %v2738
        %v2834 = vunpack.c.l.b16 %v2739
        %v2835 = vunpack.c.h.b16 %v2739
        %v2836 = vunpack.c.l.b16 %v2740
        %v2837 = vunpack.c.l.b16 %v2741
        %v2838 = vunpack.c.h.b16 %v2741
        %v2839 = vunpack.c.l.b16 %v2742
        %v2840 = vpack.c.b16 %v2795, %v2792
        %v2841 = vpack.c.b16 %v2796, %v2793
        %v2842 = vpack.c.b16 %v2797, %v2794
        %v2843 = vpack.c.b16 %v2801, %v2798
        %v2844 = vpack.c.b16 %v2802, %v2799
        %v2845 = vpack.c.b16 %v2803, %v2800
        %v2846 = vpack.c.b16 %v2807, %v2804
        %v2847 = vpack.c.b16 %v2808, %v2805
        %v2848 = vpack.c.b16 %v2809, %v2806
        %v2849 = vpack.c.b16 %v2813, %v2810
        %v2850 = vpack.c.b16 %v2814, %v2811
        %v2851 = vpack.c.b16 %v2815, %v2812
        %v2852 = vpack.c.b16 %v2819, %v2816
        %v2853 = vpack.c.b16 %v2820, %v2817
        %v2854 = vpack.c.b16 %v2821, %v2818
        %v2855 = vpack.c.b16 %v2825, %v2822
        %v2856 = vpack.c.b16 %v2826, %v2823
        %v2857 = vpack.c.b16 %v2827, %v2824
        %v2858 = vpack.c.b16 %v2831, %v2828
        %v2859 = vpack.c.b16 %v2832, %v2829
        %v2860 = vpack.c.b16 %v2833, %v2830
        %v2861 = vpack.c.b16 %v2837, %v2834
        %v2862 = vpack.c.b16 %v2838, %v2835
        %v2863 = vpack.c.b16 %v2839, %v2836
        %2888 = vmatprep.subr.bf16.mxu0 %v2841
        %2889 = vmatpush1.bf16.msra.mxu0 %v2840
        %2890 = vmatprep.subr.bf16.mxu0 %v2844
        %2891 = vmatpush1.bf16.msra.mxu0 %v2843
        %2892 = vmatprep.subr.bf16.mxu0 %v2847
        %2893 = vmatpush1.bf16.msra.mxu0 %v2846
        %2894 = vmatprep.subr.bf16.mxu0 %v2850
        %2895 = vmatpush1.bf16.msra.mxu0 %v2849
        %2896 = vmatprep.subr.bf16.mxu0 %v2853
        %2897 = vmatpush1.bf16.msra.mxu0 %v2852
        %2898 = vmatprep.subr.bf16.mxu0 %v2856
        %2899 = vmatpush1.bf16.msra.mxu0 %v2855
        %2900 = vmatprep.subr.bf16.mxu0 %v2859
        %2901 = vmatpush1.bf16.msra.mxu0 %v2858
        %2902 = vmatprep.subr.bf16.mxu0 %v2862
        %2903 = vmatpush1.bf16.msra.mxu0 %v2861
        %2904 = vmatprep.subr.bf16.mxu0 0
        %2905 = vmatpush1.bf16.msra.mxu0 0
        %2906 = vmatprep.subr.bf16.mxu0 0
        %2907 = vmatpush1.bf16.msra.mxu0 0
        %2908 = vmatprep.subr.bf16.mxu0 0
        %2909 = vmatpush1.bf16.msra.mxu0 0
        %2910 = vmatprep.subr.bf16.mxu0 0
        %2911 = vmatpush1.bf16.msra.mxu0 0
        %2912 = vmatprep.subr.bf16.mxu0 0
        %2913 = vmatpush1.bf16.msra.mxu0 0
        %2914 = vmatprep.subr.bf16.mxu0 0
        %2915 = vmatpush1.bf16.msra.mxu0 0
        %2916 = vmatprep.subr.bf16.mxu0 0
        %2917 = vmatpush1.bf16.msra.mxu0 0
        %2918 = vmatprep.subr.bf16.mxu0 0
        %2919 = vmatpush1.bf16.msra.mxu0 0
        %2920 = vmatprep.mubr.bf16.mxu0 0
        %2921 = vmatmul.mubr.bf16.gmra.mrb[0].mxu0 %v2710
        %v2922 = vpop.f32.mrb[0].mxu0
        %v2923 = vadd.f32 %v2748, %v2922
        %v2924 = vpop.f32.mrb[0].mxu0
        %v2925 = vadd.f32 %v2752, %v2924
        %v2926 = vpop.f32.mrb[0].mxu0
        %v2927 = vadd.f32 %v2748, %v2926
        %v2928 = vpop.f32.mrb[0].mxu0
        %v2929 = vadd.f32 %v2752, %v2928
        %2930 = vdwg.mxu0
        %2931 = vmatprep.subr.bf16.mxu0 0
        %2932 = vmatpush1.bf16.msra.mxu0 %v2842
        %2933 = vmatprep.subr.bf16.mxu0 0
        %2934 = vmatpush1.bf16.msra.mxu0 %v2845
        %2935 = vmatprep.subr.bf16.mxu0 0
        %2936 = vmatpush1.bf16.msra.mxu0 %v2848
        %2937 = vmatprep.subr.bf16.mxu0 0
        %2938 = vmatpush1.bf16.msra.mxu0 %v2851
        %2939 = vmatprep.subr.bf16.mxu0 0
        %2940 = vmatpush1.bf16.msra.mxu0 %v2854
        %2941 = vmatprep.subr.bf16.mxu0 0
        %2942 = vmatpush1.bf16.msra.mxu0 %v2857
        %2943 = vmatprep.subr.bf16.mxu0 0
        %2944 = vmatpush1.bf16.msra.mxu0 %v2860
        %2945 = vmatprep.subr.bf16.mxu0 0
        %2946 = vmatpush1.bf16.msra.mxu0 %v2863
        %2947 = vmatprep.subr.bf16.mxu0 0
        %2948 = vmatpush1.bf16.msra.mxu0 0
        %2949 = vmatprep.subr.bf16.mxu0 0
        %2950 = vmatpush1.bf16.msra.mxu0 0
        %2951 = vmatprep.subr.bf16.mxu0 0
        %2952 = vmatpush1.bf16.msra.mxu0 0
        %2953 = vmatprep.subr.bf16.mxu0 0
        %2954 = vmatpush1.bf16.msra.mxu0 0
        %2955 = vmatprep.subr.bf16.mxu0 0
        %2956 = vmatpush1.bf16.msra.mxu0 0
        %2957 = vmatprep.subr.bf16.mxu0 0
        %2958 = vmatpush1.bf16.msra.mxu0 0
        %2959 = vmatprep.subr.bf16.mxu0 0
        %2960 = vmatpush1.bf16.msra.mxu0 0
        %2961 = vmatprep.subr.bf16.mxu0 0
        %2962 = vmatpush1.bf16.msra.mxu0 0
        %2963 = vmatprep.mubr.bf16.mxu0 0
        %2964 = vmatmul.mubr.bf16.gmra.mrb[0].mxu0 %v2710
        %v2965 = vpop.f32.mrb[0].mxu0
        %v2966 = vadd.f32 %v2756, %v2965
        %v2967 = vpop.f32.mrb[0].mxu0
        %v2968 = vpop.f32.mrb[0].mxu0
        %v2969 = vadd.f32 %v2756, %v2968
        %v2970 = vpop.f32.mrb[0].mxu0
        %2971 = vdwg.mxu0
        %v2972 = vpack.c.bf16 %v2927, %v2923
        %v2973 = vpack.c.bf16 %v2929, %v2925
        %v2974 = vpack.c.bf16 %v2969, %v2966
        %v2976 = vunpack.c.l.b16 %v2972
        %v2977 = vunpack.c.h.b16 %v2972
        %v2978 = vpack.c.b16 %v2976, %v2976
        %v2979 = vpack.c.b16 %v2977, %v2977
        %v2983 = vunpack.c.l.b16 %v2973
        %v2984 = vunpack.c.h.b16 %v2973
        %v2985 = vpack.c.b16 %v2983, %v2983
        %v2986 = vpack.c.b16 %v2984, %v2984
        %v2990 = vunpack.c.l.b16 %v2974
        %v2991 = vunpack.c.h.b16 %v2974
        %v2992 = vpack.c.b16 %v2990, %v2990
        %v2993 = vpack.c.b16 %v2991, %v2991
        %2994 = vmatprep.subr.bf16.mxu0 0
        %2995 = vmatpush1.bf16.xpose.msra.mxu0 %v2985
        %2996 = vmatprep.subr.bf16.mxu0 0
        %2997 = vmatpush1.bf16.xpose.msra.mxu0 0
        %2998 = vmatprep.subr.bf16.mxu0 0
        %2999 = vmatpush1.bf16.xpose.msra.mxu0 0
        %3000 = vmatprep.subr.bf16.mxu0 0
        %3001 = vmatpush1.bf16.xpose.msra.mxu0 0
        %3002 = vmatprep.subr.bf16.mxu0 0
        %3003 = vmatpush1.bf16.xpose.msra.mxu0 0
        %3004 = vmatprep.subr.bf16.mxu0 0
        %3005 = vmatpush1.bf16.xpose.msra.mxu0 0
        %3006 = vmatprep.subr.bf16.mxu0 0
        %3007 = vmatpush1.bf16.xpose.msra.mxu0 0
        %3008 = vmatprep.subr.bf16.mxu0 0
        %3009 = vmatpush1.bf16.xpose.msra.mxu0 0
        %3010 = vmatprep.subr.bf16.mxu0 0
        %3011 = vmatpush1.bf16.xpose.msra.mxu0 0
        %3012 = vmatprep.subr.bf16.mxu0 0
        %3013 = vmatpush1.bf16.xpose.msra.mxu0 0
        %3014 = vmatprep.subr.bf16.mxu0 0
        %3015 = vmatpush1.bf16.xpose.msra.mxu0 0
        %3016 = vmatprep.subr.bf16.mxu0 0
        %3017 = vmatpush1.bf16.xpose.msra.mxu0 0
        %3018 = vmatprep.subr.bf16.mxu0 0
        %3019 = vmatpush1.bf16.xpose.msra.mxu0 0
        %3020 = vmatprep.subr.bf16.mxu0 0
        %3021 = vmatpush1.bf16.xpose.msra.mxu0 0
        %3022 = vmatprep.subr.bf16.mxu0 0
        %3023 = vmatpush1.bf16.xpose.msra.mxu0 0
        %3024 = vmatprep.subr.bf16.mxu0 0
        %3025 = vmatpush1.bf16.xpose.msra.mxu0 0
        %3026 = vmatprep.mubr.bf16.mxu0 0
        %3027 = vmatmul.mubr.bf16.gmra.mrb[0].mxu0 %v2978
        %v3028 = vpop.f32.mrb[0].mxu0
        %v3029 = vadd.f32 0.0, %v3028
        %v3030 = vpop.f32.mrb[0].mxu0
        %v3031 = vpop.f32.mrb[0].mxu0
        %v3032 = vpop.f32.mrb[0].mxu0
        %3033 = vdwg.mxu0
        %3034 = vmatprep.subr.bf16.mxu0 0
        %3035 = vmatpush1.bf16.xpose.msra.mxu0 %v2986
        %3036 = vmatprep.subr.bf16.mxu0 0
        %3037 = vmatpush1.bf16.xpose.msra.mxu0 0
        %3038 = vmatprep.subr.bf16.mxu0 0
        %3039 = vmatpush1.bf16.xpose.msra.mxu0 0
        %3040 = vmatprep.subr.bf16.mxu0 0
        %3041 = vmatpush1.bf16.xpose.msra.mxu0 0
        %3042 = vmatprep.subr.bf16.mxu0 0
        %3043 = vmatpush1.bf16.xpose.msra.mxu0 0
        %3044 = vmatprep.subr.bf16.mxu0 0
        %3045 = vmatpush1.bf16.xpose.msra.mxu0 0
        %3046 = vmatprep.subr.bf16.mxu0 0
        %3047 = vmatpush1.bf16.xpose.msra.mxu0 0
        %3048 = vmatprep.subr.bf16.mxu0 0
        %3049 = vmatpush1.bf16.xpose.msra.mxu0 0
        %3050 = vmatprep.subr.bf16.mxu0 0
        %3051 = vmatpush1.bf16.xpose.msra.mxu0 0
        %3052 = vmatprep.subr.bf16.mxu0 0
        %3053 = vmatpush1.bf16.xpose.msra.mxu0 0
        %3054 = vmatprep.subr.bf16.mxu0 0
        %3055 = vmatpush1.bf16.xpose.msra.mxu0 0
        %3056 = vmatprep.subr.bf16.mxu0 0
        %3057 = vmatpush1.bf16.xpose.msra.mxu0 0
        %3058 = vmatprep.subr.bf16.mxu0 0
        %3059 = vmatpush1.bf16.xpose.msra.mxu0 0
        %3060 = vmatprep.subr.bf16.mxu0 0
        %3061 = vmatpush1.bf16.xpose.msra.mxu0 0
        %3062 = vmatprep.subr.bf16.mxu0 0
        %3063 = vmatpush1.bf16.xpose.msra.mxu0 0
        %3064 = vmatprep.subr.bf16.mxu0 0
        %3065 = vmatpush1.bf16.xpose.msra.mxu0 0
        %3066 = vmatprep.mubr.bf16.mxu0 0
        %3067 = vmatmul.mubr.bf16.gmra.mrb[0].mxu0 %v2979
        %v3068 = vpop.f32.mrb[0].mxu0
        %v3069 = vadd.f32 0.0, %v3068
        %v3070 = vpop.f32.mrb[0].mxu0
        %v3071 = vpop.f32.mrb[0].mxu0
        %v3072 = vpop.f32.mrb[0].mxu0
        %3073 = vdwg.mxu0
        %v3074 = vmul.f32 %v3029, 0.17677669
        %v3075 = vmul.f32 %v3069, 0.17677669
        %v3076 = vsel %vm1726, %v3074, -inf
        %3077 = vmax.xlane.f32.xlu0 %v3076
        %v3078 = vpop.xlane.xlu0 %3077
        %v3079 = vsel %vm1726, %v3075, -inf
        %3080 = vmax.xlane.f32.xlu0 %v3079
        %v3081 = vpop.xlane.xlu0 %3080
        %v3082 = vsub.f32 %v3074, %v3078
        %v3083 = vsub.f32 %v3075, %v3081
        %v3084 = vmul.f32 %v3082, 1.442695
        %v3085 = vpow.pop %v3084
        %v3086 = vmul.f32 %v3083, 1.442695
        %v3087 = vpow.pop %v3086
        %v3088 = vsel %vm1726, %v3085, 0.0
        %3089 = vadd.xlane.f32.xlu0 %v3088
        %v3090 = vpop.xlane.xlu0 %3089
        %v3091 = vsel %vm1726, %v3087, 0.0
        %3092 = vadd.xlane.f32.xlu0 %v3091
        %v3093 = vpop.xlane.xlu0 %3092
        %v3094 = vrcp.pop %v3090
        %v3095 = vrcp.pop %v3093
        %v3096 = vmul.f32 %v3085, %v3094
        %v3097 = vmul.f32 %v3087, %v3095
        %v3098 = vpack.c.bf16 %v3096, %v3096
        %v3099 = vpack.c.bf16 %v3097, %v3097
        %v3101 = vsel %vm1726, %v3098, 0
        %v3104 = vsel %vm1754, %v2992, 0
        %3106 = vmatprep.subr.bf16.mxu0 0
        %3107 = vmatpush1.bf16.msra.mxu0 %v3104
        %3108 = vmatprep.subr.bf16.mxu0 0
        %3109 = vmatpush1.bf16.msra.mxu0 0
        %3110 = vmatprep.subr.bf16.mxu0 0
        %3111 = vmatpush1.bf16.msra.mxu0 0
        %3112 = vmatprep.subr.bf16.mxu0 0
        %3113 = vmatpush1.bf16.msra.mxu0 0
        %3114 = vmatprep.subr.bf16.mxu0 0
        %3115 = vmatpush1.bf16.msra.mxu0 0
        %3116 = vmatprep.subr.bf16.mxu0 0
        %3117 = vmatpush1.bf16.msra.mxu0 0
        %3118 = vmatprep.subr.bf16.mxu0 0
        %3119 = vmatpush1.bf16.msra.mxu0 0
        %3120 = vmatprep.subr.bf16.mxu0 0
        %3121 = vmatpush1.bf16.msra.mxu0 0
        %3122 = vmatprep.subr.bf16.mxu0 0
        %3123 = vmatpush1.bf16.msra.mxu0 0
        %3124 = vmatprep.subr.bf16.mxu0 0
        %3125 = vmatpush1.bf16.msra.mxu0 0
        %3126 = vmatprep.subr.bf16.mxu0 0
        %3127 = vmatpush1.bf16.msra.mxu0 0
        %3128 = vmatprep.subr.bf16.mxu0 0
        %3129 = vmatpush1.bf16.msra.mxu0 0
        %3130 = vmatprep.subr.bf16.mxu0 0
        %3131 = vmatpush1.bf16.msra.mxu0 0
        %3132 = vmatprep.subr.bf16.mxu0 0
        %3133 = vmatpush1.bf16.msra.mxu0 0
        %3134 = vmatprep.subr.bf16.mxu0 0
        %3135 = vmatpush1.bf16.msra.mxu0 0
        %3136 = vmatprep.subr.bf16.mxu0 0
        %3137 = vmatpush1.bf16.msra.mxu0 0
        %3138 = vmatprep.mubr.bf16.mxu0 0
        %3139 = vmatmul.mubr.bf16.gmra.mrb[0].mxu0 %v3101
        %v3140 = vpop.f32.mrb[0].mxu0
        %v3141 = vadd.f32 0.0, %v3140
        %v3142 = vpop.f32.mrb[0].mxu0
        %v3143 = vpop.f32.mrb[0].mxu0
        %v3144 = vpop.f32.mrb[0].mxu0
        %3145 = vdwg.mxu0
        %v3147 = vsel %vm1726, %v3099, 0
        %v3150 = vsel %vm1754, %v2993, 0
        %3152 = vmatprep.subr.bf16.mxu0 0
        %3153 = vmatpush1.bf16.msra.mxu0 %v3150
        %3154 = vmatprep.subr.bf16.mxu0 0
        %3155 = vmatpush1.bf16.msra.mxu0 0
        %3156 = vmatprep.subr.bf16.mxu0 0
        %3157 = vmatpush1.bf16.msra.mxu0 0
        %3158 = vmatprep.subr.bf16.mxu0 0
        %3159 = vmatpush1.bf16.msra.mxu0 0
        %3160 = vmatprep.subr.bf16.mxu0 0
        %3161 = vmatpush1.bf16.msra.mxu0 0
        %3162 = vmatprep.subr.bf16.mxu0 0
        %3163 = vmatpush1.bf16.msra.mxu0 0
        %3164 = vmatprep.subr.bf16.mxu0 0
        %3165 = vmatpush1.bf16.msra.mxu0 0
        %3166 = vmatprep.subr.bf16.mxu0 0
        %3167 = vmatpush1.bf16.msra.mxu0 0
        %3168 = vmatprep.subr.bf16.mxu0 0
        %3169 = vmatpush1.bf16.msra.mxu0 0
        %3170 = vmatprep.subr.bf16.mxu0 0
        %3171 = vmatpush1.bf16.msra.mxu0 0
        %3172 = vmatprep.subr.bf16.mxu0 0
        %3173 = vmatpush1.bf16.msra.mxu0 0
        %3174 = vmatprep.subr.bf16.mxu0 0
        %3175 = vmatpush1.bf16.msra.mxu0 0
        %3176 = vmatprep.subr.bf16.mxu0 0
        %3177 = vmatpush1.bf16.msra.mxu0 0
        %3178 = vmatprep.subr.bf16.mxu0 0
        %3179 = vmatpush1.bf16.msra.mxu0 0
        %3180 = vmatprep.subr.bf16.mxu0 0
        %3181 = vmatpush1.bf16.msra.mxu0 0
        %3182 = vmatprep.subr.bf16.mxu0 0
        %3183 = vmatpush1.bf16.msra.mxu0 0
        %3184 = vmatprep.mubr.bf16.mxu0 0
        %3185 = vmatmul.mubr.bf16.gmra.mrb[0].mxu0 %v3147
        %v3186 = vpop.f32.mrb[0].mxu0
        %v3187 = vadd.f32 0.0, %v3186
        %v3188 = vpop.f32.mrb[0].mxu0
        %v3189 = vpop.f32.mrb[0].mxu0
        %v3190 = vpop.f32.mrb[0].mxu0
        %3191 = vdwg.mxu0
        %v3192 = vpack.c.bf16 %v3187, %v3141
        %v3193 = vld [vmem:[#allocation22] sm:$0xf]
        %v3194 = vld [vmem:[#allocation22 + $0x4] sm:$0xf]
        %v3195 = vld [vmem:[#allocation22 + $0x8] sm:$0xf]
        %v3196 = vld [vmem:[#allocation22 + $0xc] sm:$0xf]
        %v3197 = vld [vmem:[#allocation22 + $0x10] sm:$0xf]
        %v3198 = vld [vmem:[#allocation22 + $0x14] sm:$0xf]
        %v3199 = vld [vmem:[#allocation22 + $0x18] sm:$0xf]
        %v3200 = vld [vmem:[#allocation22 + $0x1c] sm:$0xf]
        %v3201 = vld [vmem:[#allocation22 + $0x20] sm:$0xf]
        %v3202 = vld [vmem:[#allocation22 + $0x24] sm:$0xf]
        %v3203 = vld [vmem:[#allocation22 + $0x28] sm:$0xf]
        %v3204 = vld [vmem:[#allocation22 + $0x2c] sm:$0xf]
        %v3205 = vld [vmem:[#allocation22 + $0x30] sm:$0xf]
        %v3206 = vld [vmem:[#allocation22 + $0x34] sm:$0xf]
        %v3207 = vld [vmem:[#allocation22 + $0x38] sm:$0xf]
        %v3208 = vld [vmem:[#allocation22 + $0x3c] sm:$0xf]
        %v3209 = vld [vmem:[#allocation24] sm:$0x1]
        %v3211 = vlaneseq
        %v3212 = vshrl.u32 %v3211, 7
        %v3213 = vsub.s32 0, %v3212
        %v3214 = vrot.slane %v3209, %v3213
        %v3232 = vunpack.c.l.b16 %v3193
        %v3233 = vunpack.c.l.b16 %v3194
        %v3234 = vunpack.c.l.b16 %v3195
        %v3235 = vunpack.c.l.b16 %v3196
        %v3236 = vunpack.c.l.b16 %v3197
        %v3237 = vunpack.c.l.b16 %v3198
        %v3238 = vunpack.c.l.b16 %v3199
        %v3239 = vunpack.c.l.b16 %v3200
        %v3240 = vunpack.c.l.b16 %v3201
        %v3241 = vunpack.c.l.b16 %v3202
        %v3242 = vunpack.c.l.b16 %v3203
        %v3243 = vunpack.c.l.b16 %v3204
        %v3244 = vunpack.c.l.b16 %v3205
        %v3245 = vunpack.c.l.b16 %v3206
        %v3246 = vunpack.c.l.b16 %v3207
        %v3247 = vunpack.c.l.b16 %v3208
        %v3248 = vpack.c.b16 %v3233, %v3232
        %v3249 = vpack.c.b16 %v3235, %v3234
        %v3250 = vpack.c.b16 %v3237, %v3236
        %v3251 = vpack.c.b16 %v3239, %v3238
        %v3252 = vpack.c.b16 %v3241, %v3240
        %v3253 = vpack.c.b16 %v3243, %v3242
        %v3254 = vpack.c.b16 %v3245, %v3244
        %v3255 = vpack.c.b16 %v3247, %v3246
        %3264 = vmatprep.subr.bf16.mxu0 0
        %3265 = vmatpush1.bf16.msra.mxu0 %v3248
        %3266 = vmatprep.subr.bf16.mxu0 0
        %3267 = vmatpush1.bf16.msra.mxu0 %v3249
        %3268 = vmatprep.subr.bf16.mxu0 0
        %3269 = vmatpush1.bf16.msra.mxu0 %v3250
        %3270 = vmatprep.subr.bf16.mxu0 0
        %3271 = vmatpush1.bf16.msra.mxu0 %v3251
        %3272 = vmatprep.subr.bf16.mxu0 0
        %3273 = vmatpush1.bf16.msra.mxu0 %v3252
        %3274 = vmatprep.subr.bf16.mxu0 0
        %3275 = vmatpush1.bf16.msra.mxu0 %v3253
        %3276 = vmatprep.subr.bf16.mxu0 0
        %3277 = vmatpush1.bf16.msra.mxu0 %v3254
        %3278 = vmatprep.subr.bf16.mxu0 0
        %3279 = vmatpush1.bf16.msra.mxu0 %v3255
        %3280 = vmatprep.subr.bf16.mxu0 0
        %3281 = vmatpush1.bf16.msra.mxu0 0
        %3282 = vmatprep.subr.bf16.mxu0 0
        %3283 = vmatpush1.bf16.msra.mxu0 0
        %3284 = vmatprep.subr.bf16.mxu0 0
        %3285 = vmatpush1.bf16.msra.mxu0 0
        %3286 = vmatprep.subr.bf16.mxu0 0
        %3287 = vmatpush1.bf16.msra.mxu0 0
        %3288 = vmatprep.subr.bf16.mxu0 0
        %3289 = vmatpush1.bf16.msra.mxu0 0
        %3290 = vmatprep.subr.bf16.mxu0 0
        %3291 = vmatpush1.bf16.msra.mxu0 0
        %3292 = vmatprep.subr.bf16.mxu0 0
        %3293 = vmatpush1.bf16.msra.mxu0 0
        %3294 = vmatprep.subr.bf16.mxu0 0
        %3295 = vmatpush1.bf16.msra.mxu0 0
        %3296 = vmatprep.mubr.bf16.mxu0 0
        %3297 = vmatmul.mubr.bf16.gmra.mrb[0].mxu0 %v3192
        %v3298 = vpop.f32.mrb[0].mxu0
        %v3299 = vadd.f32 %v3214, %v3298
        %v3300 = vpop.f32.mrb[0].mxu0
        %v3301 = vpop.f32.mrb[0].mxu0
        %v3302 = vadd.f32 %v3214, %v3301
        %v3303 = vpop.f32.mrb[0].mxu0
        %3304 = vdwg.mxu0
        %v3305 = vpack.c.bf16 %v2707, %v2704
        %v3306 = vld [vmem:[#allocation25] sm:$0xff]
        %v3307 = vld [vmem:[#allocation25 + $0x8] sm:$0xf]
        %v3308 = vld [vmem:[#allocation25 + $0xc] sm:$0xff]
        %v3309 = vld [vmem:[#allocation25 + $0x14] sm:$0xf]
        %v3310 = vld [vmem:[#allocation25 + $0x18] sm:$0xff]
        %v3311 = vld [vmem:[#allocation25 + $0x20] sm:$0xf]
        %v3312 = vld [vmem:[#allocation25 + $0x24] sm:$0xff]
        %v3313 = vld [vmem:[#allocation25 + $0x2c] sm:$0xf]
        %v3314 = vld [vmem:[#allocation25 + $0x30] sm:$0xff]
        %v3315 = vld [vmem:[#allocation25 + $0x38] sm:$0xf]
        %v3316 = vld [vmem:[#allocation25 + $0x3c] sm:$0xff]
        %v3317 = vld [vmem:[#allocation25 + $0x44] sm:$0xf]
        %v3318 = vld [vmem:[#allocation25 + $0x48] sm:$0xff]
        %v3319 = vld [vmem:[#allocation25 + $0x50] sm:$0xf]
        %v3320 = vld [vmem:[#allocation25 + $0x54] sm:$0xff]
        %v3321 = vld [vmem:[#allocation25 + $0x5c] sm:$0xf]
        %v3322 = vld [vmem:[#allocation25 + $0x60] sm:$0xff]
        %v3323 = vld [vmem:[#allocation25 + $0x68] sm:$0xf]
        %v3324 = vld [vmem:[#allocation25 + $0x6c] sm:$0xff]
        %v3325 = vld [vmem:[#allocation25 + $0x74] sm:$0xf]
        %v3326 = vld [vmem:[#allocation25 + $0x78] sm:$0xff]
        %v3327 = vld [vmem:[#allocation25 + $0x80] sm:$0xf]
        %v3328 = vld [vmem:[#allocation25 + $0x84] sm:$0xff]
        %v3329 = vld [vmem:[#allocation25 + $0x8c] sm:$0xf]
        %v3330 = vld [vmem:[#allocation25 + $0x90] sm:$0xff]
        %v3331 = vld [vmem:[#allocation25 + $0x98] sm:$0xf]
        %v3332 = vld [vmem:[#allocation25 + $0x9c] sm:$0xff]
        %v3333 = vld [vmem:[#allocation25 + $0xa4] sm:$0xf]
        %v3334 = vld [vmem:[#allocation25 + $0xa8] sm:$0xff]
        %v3335 = vld [vmem:[#allocation25 + $0xb0] sm:$0xf]
        %v3336 = vld [vmem:[#allocation25 + $0xb4] sm:$0xff]
        %v3337 = vld [vmem:[#allocation25 + $0xbc] sm:$0xf]
        %v3338 = vld [vmem:[#allocation27] sm:$0x7]
        %v3340 = vlaneseq
        %v3341 = vshrl.u32 %v3340, 7
        %v3342 = vsub.s32 0, %v3341
        %v3343 = vrot.slane %v3338, %v3342
        %v3344 = vlaneseq
        %v3345 = vshrl.u32 %v3344, 7
        %v3346 = vsub.s32 1, %v3345
        %v3347 = vrot.slane %v3338, %v3346
        %v3348 = vlaneseq
        %v3349 = vshrl.u32 %v3348, 7
        %v3350 = vsub.s32 2, %v3349
        %v3351 = vrot.slane %v3338, %v3350
        %v3387 = vunpack.c.l.b16 %v3306
        %v3388 = vunpack.c.h.b16 %v3306
        %v3389 = vunpack.c.l.b16 %v3307
        %v3390 = vunpack.c.l.b16 %v3308
        %v3391 = vunpack.c.h.b16 %v3308
        %v3392 = vunpack.c.l.b16 %v3309
        %v3393 = vunpack.c.l.b16 %v3310
        %v3394 = vunpack.c.h.b16 %v3310
        %v3395 = vunpack.c.l.b16 %v3311
        %v3396 = vunpack.c.l.b16 %v3312
        %v3397 = vunpack.c.h.b16 %v3312
        %v3398 = vunpack.c.l.b16 %v3313
        %v3399 = vunpack.c.l.b16 %v3314
        %v3400 = vunpack.c.h.b16 %v3314
        %v3401 = vunpack.c.l.b16 %v3315
        %v3402 = vunpack.c.l.b16 %v3316
        %v3403 = vunpack.c.h.b16 %v3316
        %v3404 = vunpack.c.l.b16 %v3317
        %v3405 = vunpack.c.l.b16 %v3318
        %v3406 = vunpack.c.h.b16 %v3318
        %v3407 = vunpack.c.l.b16 %v3319
        %v3408 = vunpack.c.l.b16 %v3320
        %v3409 = vunpack.c.h.b16 %v3320
        %v3410 = vunpack.c.l.b16 %v3321
        %v3411 = vunpack.c.l.b16 %v3322
        %v3412 = vunpack.c.h.b16 %v3322
        %v3413 = vunpack.c.l.b16 %v3323
        %v3414 = vunpack.c.l.b16 %v3324
        %v3415 = vunpack.c.h.b16 %v3324
        %v3416 = vunpack.c.l.b16 %v3325
        %v3417 = vunpack.c.l.b16 %v3326
        %v3418 = vunpack.c.h.b16 %v3326
        %v3419 = vunpack.c.l.b16 %v3327
        %v3420 = vunpack.c.l.b16 %v3328
        %v3421 = vunpack.c.h.b16 %v3328
        %v3422 = vunpack.c.l.b16 %v3329
        %v3423 = vunpack.c.l.b16 %v3330
        %v3424 = vunpack.c.h.b16 %v3330
        %v3425 = vunpack.c.l.b16 %v3331
        %v3426 = vunpack.c.l.b16 %v3332
        %v3427 = vunpack.c.h.b16 %v3332
        %v3428 = vunpack.c.l.b16 %v3333
        %v3429 = vunpack.c.l.b16 %v3334
        %v3430 = vunpack.c.h.b16 %v3334
        %v3431 = vunpack.c.l.b16 %v3335
        %v3432 = vunpack.c.l.b16 %v3336
        %v3433 = vunpack.c.h.b16 %v3336
        %v3434 = vunpack.c.l.b16 %v3337
        %v3435 = vpack.c.b16 %v3390, %v3387
        %v3436 = vpack.c.b16 %v3391, %v3388
        %v3437 = vpack.c.b16 %v3392, %v3389
        %v3438 = vpack.c.b16 %v3396, %v3393
        %v3439 = vpack.c.b16 %v3397, %v3394
        %v3440 = vpack.c.b16 %v3398, %v3395
        %v3441 = vpack.c.b16 %v3402, %v3399
        %v3442 = vpack.c.b16 %v3403, %v3400
        %v3443 = vpack.c.b16 %v3404, %v3401
        %v3444 = vpack.c.b16 %v3408, %v3405
        %v3445 = vpack.c.b16 %v3409, %v3406
        %v3446 = vpack.c.b16 %v3410, %v3407
        %v3447 = vpack.c.b16 %v3414, %v3411
        %v3448 = vpack.c.b16 %v3415, %v3412
        %v3449 = vpack.c.b16 %v3416, %v3413
        %v3450 = vpack.c.b16 %v3420, %v3417
        %v3451 = vpack.c.b16 %v3421, %v3418
        %v3452 = vpack.c.b16 %v3422, %v3419
        %v3453 = vpack.c.b16 %v3426, %v3423
        %v3454 = vpack.c.b16 %v3427, %v3424
        %v3455 = vpack.c.b16 %v3428, %v3425
        %v3456 = vpack.c.b16 %v3432, %v3429
        %v3457 = vpack.c.b16 %v3433, %v3430
        %v3458 = vpack.c.b16 %v3434, %v3431
        %3483 = vmatprep.subr.bf16.mxu0 %v3436
        %3484 = vmatpush1.bf16.msra.mxu0 %v3435
        %3485 = vmatprep.subr.bf16.mxu0 %v3439
        %3486 = vmatpush1.bf16.msra.mxu0 %v3438
        %3487 = vmatprep.subr.bf16.mxu0 %v3442
        %3488 = vmatpush1.bf16.msra.mxu0 %v3441
        %3489 = vmatprep.subr.bf16.mxu0 %v3445
        %3490 = vmatpush1.bf16.msra.mxu0 %v3444
        %3491 = vmatprep.subr.bf16.mxu0 %v3448
        %3492 = vmatpush1.bf16.msra.mxu0 %v3447
        %3493 = vmatprep.subr.bf16.mxu0 %v3451
        %3494 = vmatpush1.bf16.msra.mxu0 %v3450
        %3495 = vmatprep.subr.bf16.mxu0 %v3454
        %3496 = vmatpush1.bf16.msra.mxu0 %v3453
        %3497 = vmatprep.subr.bf16.mxu0 %v3457
        %3498 = vmatpush1.bf16.msra.mxu0 %v3456
        %3499 = vmatprep.subr.bf16.mxu0 0
        %3500 = vmatpush1.bf16.msra.mxu0 0
        %3501 = vmatprep.subr.bf16.mxu0 0
        %3502 = vmatpush1.bf16.msra.mxu0 0
        %3503 = vmatprep.subr.bf16.mxu0 0
        %3504 = vmatpush1.bf16.msra.mxu0 0
        %3505 = vmatprep.subr.bf16.mxu0 0
        %3506 = vmatpush1.bf16.msra.mxu0 0
        %3507 = vmatprep.subr.bf16.mxu0 0
        %3508 = vmatpush1.bf16.msra.mxu0 0
        %3509 = vmatprep.subr.bf16.mxu0 0
        %3510 = vmatpush1.bf16.msra.mxu0 0
        %3511 = vmatprep.subr.bf16.mxu0 0
        %3512 = vmatpush1.bf16.msra.mxu0 0
        %3513 = vmatprep.subr.bf16.mxu0 0
        %3514 = vmatpush1.bf16.msra.mxu0 0
        %3515 = vmatprep.mubr.bf16.mxu0 0
        %3516 = vmatmul.mubr.bf16.gmra.mrb[0].mxu0 %v3305
        %v3517 = vpop.f32.mrb[0].mxu0
        %v3518 = vadd.f32 %v3343, %v3517
        %v3519 = vpop.f32.mrb[0].mxu0
        %v3520 = vadd.f32 %v3347, %v3519
        %v3521 = vpop.f32.mrb[0].mxu0
        %v3522 = vadd.f32 %v3343, %v3521
        %v3523 = vpop.f32.mrb[0].mxu0
        %v3524 = vadd.f32 %v3347, %v3523
        %3525 = vdwg.mxu0
        %3526 = vmatprep.subr.bf16.mxu0 0
        %3527 = vmatpush1.bf16.msra.mxu0 %v3437
        %3528 = vmatprep.subr.bf16.mxu0 0
        %3529 = vmatpush1.bf16.msra.mxu0 %v3440
        %3530 = vmatprep.subr.bf16.mxu0 0
        %3531 = vmatpush1.bf16.msra.mxu0 %v3443
        %3532 = vmatprep.subr.bf16.mxu0 0
        %3533 = vmatpush1.bf16.msra.mxu0 %v3446
        %3534 = vmatprep.subr.bf16.mxu0 0
        %3535 = vmatpush1.bf16.msra.mxu0 %v3449
        %3536 = vmatprep.subr.bf16.mxu0 0
        %3537 = vmatpush1.bf16.msra.mxu0 %v3452
        %3538 = vmatprep.subr.bf16.mxu0 0
        %3539 = vmatpush1.bf16.msra.mxu0 %v3455
        %3540 = vmatprep.subr.bf16.mxu0 0
        %3541 = vmatpush1.bf16.msra.mxu0 %v3458
        %3542 = vmatprep.subr.bf16.mxu0 0
        %3543 = vmatpush1.bf16.msra.mxu0 0
        %3544 = vmatprep.subr.bf16.mxu0 0
        %3545 = vmatpush1.bf16.msra.mxu0 0
        %3546 = vmatprep.subr.bf16.mxu0 0
        %3547 = vmatpush1.bf16.msra.mxu0 0
        %3548 = vmatprep.subr.bf16.mxu0 0
        %3549 = vmatpush1.bf16.msra.mxu0 0
        %3550 = vmatprep.subr.bf16.mxu0 0
        %3551 = vmatpush1.bf16.msra.mxu0 0
        %3552 = vmatprep.subr.bf16.mxu0 0
        %3553 = vmatpush1.bf16.msra.mxu0 0
        %3554 = vmatprep.subr.bf16.mxu0 0
        %3555 = vmatpush1.bf16.msra.mxu0 0
        %3556 = vmatprep.subr.bf16.mxu0 0
        %3557 = vmatpush1.bf16.msra.mxu0 0
        %3558 = vmatprep.mubr.bf16.mxu0 0
        %3559 = vmatmul.mubr.bf16.gmra.mrb[0].mxu0 %v3305
        %v3560 = vpop.f32.mrb[0].mxu0
        %v3561 = vadd.f32 %v3351, %v3560
        %v3562 = vpop.f32.mrb[0].mxu0
        %v3563 = vpop.f32.mrb[0].mxu0
        %v3564 = vadd.f32 %v3351, %v3563
        %v3565 = vpop.f32.mrb[0].mxu0
        %3566 = vdwg.mxu0
        %v3567 = vpack.c.bf16 %v3522, %v3518
        %v3568 = vpack.c.bf16 %v3524, %v3520
        %v3569 = vpack.c.bf16 %v3564, %v3561
        %v3571 = vunpack.c.l.b16 %v3567
        %v3572 = vunpack.c.h.b16 %v3567
        %v3573 = vpack.c.b16 %v3571, %v3571
        %v3574 = vpack.c.b16 %v3572, %v3572
        %v3578 = vunpack.c.l.b16 %v3568
        %v3579 = vunpack.c.h.b16 %v3568
        %v3580 = vpack.c.b16 %v3578, %v3578
        %v3581 = vpack.c.b16 %v3579, %v3579
        %v3585 = vunpack.c.l.b16 %v3569
        %v3586 = vunpack.c.h.b16 %v3569
        %v3587 = vpack.c.b16 %v3585, %v3585
        %v3588 = vpack.c.b16 %v3586, %v3586
        %v3589 = vpack.c.bf16 %v3302, %v3299
        %3590 = vmatprep.subr.bf16.mxu0 %v3436
        %3591 = vmatpush1.bf16.msra.mxu0 %v3435
        %3592 = vmatprep.subr.bf16.mxu0 %v3439
        %3593 = vmatpush1.bf16.msra.mxu0 %v3438
        %3594 = vmatprep.subr.bf16.mxu0 %v3442
        %3595 = vmatpush1.bf16.msra.mxu0 %v3441
        %3596 = vmatprep.subr.bf16.mxu0 %v3445
        %3597 = vmatpush1.bf16.msra.mxu0 %v3444
        %3598 = vmatprep.subr.bf16.mxu0 %v3448
        %3599 = vmatpush1.bf16.msra.mxu0 %v3447
        %3600 = vmatprep.subr.bf16.mxu0 %v3451
        %3601 = vmatpush1.bf16.msra.mxu0 %v3450
        %3602 = vmatprep.subr.bf16.mxu0 %v3454
        %3603 = vmatpush1.bf16.msra.mxu0 %v3453
        %3604 = vmatprep.subr.bf16.mxu0 %v3457
        %3605 = vmatpush1.bf16.msra.mxu0 %v3456
        %3606 = vmatprep.subr.bf16.mxu0 0
        %3607 = vmatpush1.bf16.msra.mxu0 0
        %3608 = vmatprep.subr.bf16.mxu0 0
        %3609 = vmatpush1.bf16.msra.mxu0 0
        %3610 = vmatprep.subr.bf16.mxu0 0
        %3611 = vmatpush1.bf16.msra.mxu0 0
        %3612 = vmatprep.subr.bf16.mxu0 0
        %3613 = vmatpush1.bf16.msra.mxu0 0
        %3614 = vmatprep.subr.bf16.mxu0 0
        %3615 = vmatpush1.bf16.msra.mxu0 0
        %3616 = vmatprep.subr.bf16.mxu0 0
        %3617 = vmatpush1.bf16.msra.mxu0 0
        %3618 = vmatprep.subr.bf16.mxu0 0
        %3619 = vmatpush1.bf16.msra.mxu0 0
        %3620 = vmatprep.subr.bf16.mxu0 0
        %3621 = vmatpush1.bf16.msra.mxu0 0
        %3622 = vmatprep.mubr.bf16.mxu0 0
        %3623 = vmatmul.mubr.bf16.gmra.mrb[0].mxu0 %v3589
        %v3624 = vpop.f32.mrb[0].mxu0
        %v3625 = vadd.f32 %v3343, %v3624
        %v3626 = vpop.f32.mrb[0].mxu0
        %v3627 = vadd.f32 %v3347, %v3626
        %v3628 = vpop.f32.mrb[0].mxu0
        %v3629 = vadd.f32 %v3343, %v3628
        %v3630 = vpop.f32.mrb[0].mxu0
        %v3631 = vadd.f32 %v3347, %v3630
        %3632 = vdwg.mxu0
        %3633 = vmatprep.subr.bf16.mxu0 0
        %3634 = vmatpush1.bf16.msra.mxu0 %v3437
        %3635 = vmatprep.subr.bf16.mxu0 0
        %3636 = vmatpush1.bf16.msra.mxu0 %v3440
        %3637 = vmatprep.subr.bf16.mxu0 0
        %3638 = vmatpush1.bf16.msra.mxu0 %v3443
        %3639 = vmatprep.subr.bf16.mxu0 0
        %3640 = vmatpush1.bf16.msra.mxu0 %v3446
        %3641 = vmatprep.subr.bf16.mxu0 0
        %3642 = vmatpush1.bf16.msra.mxu0 %v3449
        %3643 = vmatprep.subr.bf16.mxu0 0
        %3644 = vmatpush1.bf16.msra.mxu0 %v3452
        %3645 = vmatprep.subr.bf16.mxu0 0
        %3646 = vmatpush1.bf16.msra.mxu0 %v3455
        %3647 = vmatprep.subr.bf16.mxu0 0
        %3648 = vmatpush1.bf16.msra.mxu0 %v3458
        %3649 = vmatprep.subr.bf16.mxu0 0
        %3650 = vmatpush1.bf16.msra.mxu0 0
        %3651 = vmatprep.subr.bf16.mxu0 0
        %3652 = vmatpush1.bf16.msra.mxu0 0
        %3653 = vmatprep.subr.bf16.mxu0 0
        %3654 = vmatpush1.bf16.msra.mxu0 0
        %3655 = vmatprep.subr.bf16.mxu0 0
        %3656 = vmatpush1.bf16.msra.mxu0 0
        %3657 = vmatprep.subr.bf16.mxu0 0
        %3658 = vmatpush1.bf16.msra.mxu0 0
        %3659 = vmatprep.subr.bf16.mxu0 0
        %3660 = vmatpush1.bf16.msra.mxu0 0
        %3661 = vmatprep.subr.bf16.mxu0 0
        %3662 = vmatpush1.bf16.msra.mxu0 0
        %3663 = vmatprep.subr.bf16.mxu0 0
        %3664 = vmatpush1.bf16.msra.mxu0 0
        %3665 = vmatprep.mubr.bf16.mxu0 0
        %3666 = vmatmul.mubr.bf16.gmra.mrb[0].mxu0 %v3589
        %v3667 = vpop.f32.mrb[0].mxu0
        %v3668 = vadd.f32 %v3351, %v3667
        %v3669 = vpop.f32.mrb[0].mxu0
        %v3670 = vpop.f32.mrb[0].mxu0
        %v3671 = vadd.f32 %v3351, %v3670
        %v3672 = vpop.f32.mrb[0].mxu0
        %3673 = vdwg.mxu0
        %v3674 = vpack.c.bf16 %v3629, %v3625
        %v3675 = vpack.c.bf16 %v3631, %v3627
        %v3676 = vpack.c.bf16 %v3671, %v3668
        %v3678 = vunpack.c.l.b16 %v3674
        %v3679 = vunpack.c.h.b16 %v3674
        %v3680 = vpack.c.b16 %v3678, %v3678
        %v3681 = vpack.c.b16 %v3679, %v3679
        %v3685 = vunpack.c.l.b16 %v3675
        %v3686 = vunpack.c.h.b16 %v3675
        %v3687 = vpack.c.b16 %v3685, %v3685
        %v3688 = vpack.c.b16 %v3686, %v3686
        %v3692 = vunpack.c.l.b16 %v3676
        %v3693 = vunpack.c.h.b16 %v3676
        %v3694 = vpack.c.b16 %v3692, %v3692
        %v3695 = vpack.c.b16 %v3693, %v3693
        %3696 = vmatprep.subr.bf16.mxu0 0
        %3697 = vmatpush1.bf16.xpose.msra.mxu0 %v3687
        %3698 = vmatprep.subr.bf16.mxu0 0
        %3699 = vmatpush1.bf16.xpose.msra.mxu0 0
        %3700 = vmatprep.subr.bf16.mxu0 0
        %3701 = vmatpush1.bf16.xpose.msra.mxu0 0
        %3702 = vmatprep.subr.bf16.mxu0 0
        %3703 = vmatpush1.bf16.xpose.msra.mxu0 0
        %3704 = vmatprep.subr.bf16.mxu0 0
        %3705 = vmatpush1.bf16.xpose.msra.mxu0 0
        %3706 = vmatprep.subr.bf16.mxu0 0
        %3707 = vmatpush1.bf16.xpose.msra.mxu0 0
        %3708 = vmatprep.subr.bf16.mxu0 0
        %3709 = vmatpush1.bf16.xpose.msra.mxu0 0
        %3710 = vmatprep.subr.bf16.mxu0 0
        %3711 = vmatpush1.bf16.xpose.msra.mxu0 0
        %3712 = vmatprep.subr.bf16.mxu0 0
        %3713 = vmatpush1.bf16.xpose.msra.mxu0 0
        %3714 = vmatprep.subr.bf16.mxu0 0
        %3715 = vmatpush1.bf16.xpose.msra.mxu0 0
        %3716 = vmatprep.subr.bf16.mxu0 0
        %3717 = vmatpush1.bf16.xpose.msra.mxu0 0
        %3718 = vmatprep.subr.bf16.mxu0 0
        %3719 = vmatpush1.bf16.xpose.msra.mxu0 0
        %3720 = vmatprep.subr.bf16.mxu0 0
        %3721 = vmatpush1.bf16.xpose.msra.mxu0 0
        %3722 = vmatprep.subr.bf16.mxu0 0
        %3723 = vmatpush1.bf16.xpose.msra.mxu0 0
        %3724 = vmatprep.subr.bf16.mxu0 0
        %3725 = vmatpush1.bf16.xpose.msra.mxu0 0
        %3726 = vmatprep.subr.bf16.mxu0 0
        %3727 = vmatpush1.bf16.xpose.msra.mxu0 0
        %3728 = vmatprep.mubr.bf16.mxu0 0
        %3729 = vmatmul.mubr.bf16.gmra.mrb[0].mxu0 %v3573
        %v3730 = vpop.f32.mrb[0].mxu0
        %v3731 = vadd.f32 0.0, %v3730
        %v3732 = vpop.f32.mrb[0].mxu0
        %v3733 = vpop.f32.mrb[0].mxu0
        %v3734 = vpop.f32.mrb[0].mxu0
        %3735 = vdwg.mxu0
        %3736 = vmatprep.subr.bf16.mxu0 0
        %3737 = vmatpush1.bf16.xpose.msra.mxu0 %v3688
        %3738 = vmatprep.subr.bf16.mxu0 0
        %3739 = vmatpush1.bf16.xpose.msra.mxu0 0
        %3740 = vmatprep.subr.bf16.mxu0 0
        %3741 = vmatpush1.bf16.xpose.msra.mxu0 0
        %3742 = vmatprep.subr.bf16.mxu0 0
        %3743 = vmatpush1.bf16.xpose.msra.mxu0 0
        %3744 = vmatprep.subr.bf16.mxu0 0
        %3745 = vmatpush1.bf16.xpose.msra.mxu0 0
        %3746 = vmatprep.subr.bf16.mxu0 0
        %3747 = vmatpush1.bf16.xpose.msra.mxu0 0
        %3748 = vmatprep.subr.bf16.mxu0 0
        %3749 = vmatpush1.bf16.xpose.msra.mxu0 0
        %3750 = vmatprep.subr.bf16.mxu0 0
        %3751 = vmatpush1.bf16.xpose.msra.mxu0 0
        %3752 = vmatprep.subr.bf16.mxu0 0
        %3753 = vmatpush1.bf16.xpose.msra.mxu0 0
        %3754 = vmatprep.subr.bf16.mxu0 0
        %3755 = vmatpush1.bf16.xpose.msra.mxu0 0
        %3756 = vmatprep.subr.bf16.mxu0 0
        %3757 = vmatpush1.bf16.xpose.msra.mxu0 0
        %3758 = vmatprep.subr.bf16.mxu0 0
        %3759 = vmatpush1.bf16.xpose.msra.mxu0 0
        %3760 = vmatprep.subr.bf16.mxu0 0
        %3761 = vmatpush1.bf16.xpose.msra.mxu0 0
        %3762 = vmatprep.subr.bf16.mxu0 0
        %3763 = vmatpush1.bf16.xpose.msra.mxu0 0
        %3764 = vmatprep.subr.bf16.mxu0 0
        %3765 = vmatpush1.bf16.xpose.msra.mxu0 0
        %3766 = vmatprep.subr.bf16.mxu0 0
        %3767 = vmatpush1.bf16.xpose.msra.mxu0 0
        %3768 = vmatprep.mubr.bf16.mxu0 0
        %3769 = vmatmul.mubr.bf16.gmra.mrb[0].mxu0 %v3574
        %v3770 = vpop.f32.mrb[0].mxu0
        %v3771 = vadd.f32 0.0, %v3770
        %v3772 = vpop.f32.mrb[0].mxu0
        %v3773 = vpop.f32.mrb[0].mxu0
        %v3774 = vpop.f32.mrb[0].mxu0
        %3775 = vdwg.mxu0
        %v3776 = vmul.f32 %v3731, 0.17677669
        %v3777 = vmul.f32 %v3771, 0.17677669
        %v3778 = vsel %vm1726, %v3776, -inf
        %3779 = vmax.xlane.f32.xlu0 %v3778
        %v3780 = vpop.xlane.xlu0 %3779
        %v3781 = vsel %vm1726, %v3777, -inf
        %3782 = vmax.xlane.f32.xlu0 %v3781
        %v3783 = vpop.xlane.xlu0 %3782
        %v3784 = vsub.f32 %v3776, %v3780
        %v3785 = vsub.f32 %v3777, %v3783
        %v3786 = vmul.f32 %v3784, 1.442695
        %v3787 = vpow.pop %v3786
        %v3788 = vmul.f32 %v3785, 1.442695
        %v3789 = vpow.pop %v3788
        %v3790 = vsel %vm1726, %v3787, 0.0
        %3791 = vadd.xlane.f32.xlu0 %v3790
        %v3792 = vpop.xlane.xlu0 %3791
        %v3793 = vsel %vm1726, %v3789, 0.0
        %3794 = vadd.xlane.f32.xlu0 %v3793
        %v3795 = vpop.xlane.xlu0 %3794
        %v3796 = vrcp.pop %v3792
        %v3797 = vrcp.pop %v3795
        %v3798 = vmul.f32 %v3787, %v3796
        %v3799 = vmul.f32 %v3789, %v3797
        %v3800 = vpack.c.bf16 %v3798, %v3798
        %v3801 = vpack.c.bf16 %v3799, %v3799
        %v3803 = vsel %vm1726, %v3800, 0
        %v3806 = vsel %vm1754, %v3694, 0
        %3808 = vmatprep.subr.bf16.mxu0 0
        %3809 = vmatpush1.bf16.msra.mxu0 %v3806
        %3810 = vmatprep.subr.bf16.mxu0 0
        %3811 = vmatpush1.bf16.msra.mxu0 0
        %3812 = vmatprep.subr.bf16.mxu0 0
        %3813 = vmatpush1.bf16.msra.mxu0 0
        %3814 = vmatprep.subr.bf16.mxu0 0
        %3815 = vmatpush1.bf16.msra.mxu0 0
        %3816 = vmatprep.subr.bf16.mxu0 0
        %3817 = vmatpush1.bf16.msra.mxu0 0
        %3818 = vmatprep.subr.bf16.mxu0 0
        %3819 = vmatpush1.bf16.msra.mxu0 0
        %3820 = vmatprep.subr.bf16.mxu0 0
        %3821 = vmatpush1.bf16.msra.mxu0 0
        %3822 = vmatprep.subr.bf16.mxu0 0
        %3823 = vmatpush1.bf16.msra.mxu0 0
        %3824 = vmatprep.subr.bf16.mxu0 0
        %3825 = vmatpush1.bf16.msra.mxu0 0
        %3826 = vmatprep.subr.bf16.mxu0 0
        %3827 = vmatpush1.bf16.msra.mxu0 0
        %3828 = vmatprep.subr.bf16.mxu0 0
        %3829 = vmatpush1.bf16.msra.mxu0 0
        %3830 = vmatprep.subr.bf16.mxu0 0
        %3831 = vmatpush1.bf16.msra.mxu0 0
        %3832 = vmatprep.subr.bf16.mxu0 0
        %3833 = vmatpush1.bf16.msra.mxu0 0
        %3834 = vmatprep.subr.bf16.mxu0 0
        %3835 = vmatpush1.bf16.msra.mxu0 0
        %3836 = vmatprep.subr.bf16.mxu0 0
        %3837 = vmatpush1.bf16.msra.mxu0 0
        %3838 = vmatprep.subr.bf16.mxu0 0
        %3839 = vmatpush1.bf16.msra.mxu0 0
        %3840 = vmatprep.mubr.bf16.mxu0 0
        %3841 = vmatmul.mubr.bf16.gmra.mrb[0].mxu0 %v3803
        %v3842 = vpop.f32.mrb[0].mxu0
        %v3843 = vadd.f32 0.0, %v3842
        %v3844 = vpop.f32.mrb[0].mxu0
        %v3845 = vpop.f32.mrb[0].mxu0
        %v3846 = vpop.f32.mrb[0].mxu0
        %3847 = vdwg.mxu0
        %v3849 = vsel %vm1726, %v3801, 0
        %v3852 = vsel %vm1754, %v3695, 0
        %3854 = vmatprep.subr.bf16.mxu0 0
        %3855 = vmatpush1.bf16.msra.mxu0 %v3852
        %3856 = vmatprep.subr.bf16.mxu0 0
        %3857 = vmatpush1.bf16.msra.mxu0 0
        %3858 = vmatprep.subr.bf16.mxu0 0
        %3859 = vmatpush1.bf16.msra.mxu0 0
        %3860 = vmatprep.subr.bf16.mxu0 0
        %3861 = vmatpush1.bf16.msra.mxu0 0
        %3862 = vmatprep.subr.bf16.mxu0 0
        %3863 = vmatpush1.bf16.msra.mxu0 0
        %3864 = vmatprep.subr.bf16.mxu0 0
        %3865 = vmatpush1.bf16.msra.mxu0 0
        %3866 = vmatprep.subr.bf16.mxu0 0
        %3867 = vmatpush1.bf16.msra.mxu0 0
        %3868 = vmatprep.subr.bf16.mxu0 0
        %3869 = vmatpush1.bf16.msra.mxu0 0
        %3870 = vmatprep.subr.bf16.mxu0 0
        %3871 = vmatpush1.bf16.msra.mxu0 0
        %3872 = vmatprep.subr.bf16.mxu0 0
        %3873 = vmatpush1.bf16.msra.mxu0 0
        %3874 = vmatprep.subr.bf16.mxu0 0
        %3875 = vmatpush1.bf16.msra.mxu0 0
        %3876 = vmatprep.subr.bf16.mxu0 0
        %3877 = vmatpush1.bf16.msra.mxu0 0
        %3878 = vmatprep.subr.bf16.mxu0 0
        %3879 = vmatpush1.bf16.msra.mxu0 0
        %3880 = vmatprep.subr.bf16.mxu0 0
        %3881 = vmatpush1.bf16.msra.mxu0 0
        %3882 = vmatprep.subr.bf16.mxu0 0
        %3883 = vmatpush1.bf16.msra.mxu0 0
        %3884 = vmatprep.subr.bf16.mxu0 0
        %3885 = vmatpush1.bf16.msra.mxu0 0
        %3886 = vmatprep.mubr.bf16.mxu0 0
        %3887 = vmatmul.mubr.bf16.gmra.mrb[0].mxu0 %v3849
        %v3888 = vpop.f32.mrb[0].mxu0
        %v3889 = vadd.f32 0.0, %v3888
        %v3890 = vpop.f32.mrb[0].mxu0
        %v3891 = vpop.f32.mrb[0].mxu0
        %v3892 = vpop.f32.mrb[0].mxu0
        %3893 = vdwg.mxu0
        %v3894 = vpack.c.bf16 %v3889, %v3843
        %v3895 = vld [vmem:[#allocation28] sm:$0xf]
        %v3896 = vld [vmem:[#allocation28 + $0x4] sm:$0xf]
        %v3897 = vld [vmem:[#allocation28 + $0x8] sm:$0xf]
        %v3898 = vld [vmem:[#allocation28 + $0xc] sm:$0xf]
        %v3899 = vld [vmem:[#allocation28 + $0x10] sm:$0xf]
        %v3900 = vld [vmem:[#allocation28 + $0x14] sm:$0xf]
        %v3901 = vld [vmem:[#allocation28 + $0x18] sm:$0xf]
        %v3902 = vld [vmem:[#allocation28 + $0x1c] sm:$0xf]
        %v3903 = vld [vmem:[#allocation28 + $0x20] sm:$0xf]
        %v3904 = vld [vmem:[#allocation28 + $0x24] sm:$0xf]
        %v3905 = vld [vmem:[#allocation28 + $0x28] sm:$0xf]
        %v3906 = vld [vmem:[#allocation28 + $0x2c] sm:$0xf]
        %v3907 = vld [vmem:[#allocation28 + $0x30] sm:$0xf]
        %v3908 = vld [vmem:[#allocation28 + $0x34] sm:$0xf]
        %v3909 = vld [vmem:[#allocation28 + $0x38] sm:$0xf]
        %v3910 = vld [vmem:[#allocation28 + $0x3c] sm:$0xf]
        %v3911 = vld [vmem:[#allocation30] sm:$0x1]
        %v3913 = vlaneseq
        %v3914 = vshrl.u32 %v3913, 7
        %v3915 = vsub.s32 0, %v3914
        %v3916 = vrot.slane %v3911, %v3915
        %v3934 = vunpack.c.l.b16 %v3895
        %v3935 = vunpack.c.l.b16 %v3896
        %v3936 = vunpack.c.l.b16 %v3897
        %v3937 = vunpack.c.l.b16 %v3898
        %v3938 = vunpack.c.l.b16 %v3899
        %v3939 = vunpack.c.l.b16 %v3900
        %v3940 = vunpack.c.l.b16 %v3901
        %v3941 = vunpack.c.l.b16 %v3902
        %v3942 = vunpack.c.l.b16 %v3903
        %v3943 = vunpack.c.l.b16 %v3904
        %v3944 = vunpack.c.l.b16 %v3905
        %v3945 = vunpack.c.l.b16 %v3906
        %v3946 = vunpack.c.l.b16 %v3907
        %v3947 = vunpack.c.l.b16 %v3908
        %v3948 = vunpack.c.l.b16 %v3909
        %v3949 = vunpack.c.l.b16 %v3910
        %v3950 = vpack.c.b16 %v3935, %v3934
        %v3951 = vpack.c.b16 %v3937, %v3936
        %v3952 = vpack.c.b16 %v3939, %v3938
        %v3953 = vpack.c.b16 %v3941, %v3940
        %v3954 = vpack.c.b16 %v3943, %v3942
        %v3955 = vpack.c.b16 %v3945, %v3944
        %v3956 = vpack.c.b16 %v3947, %v3946
        %v3957 = vpack.c.b16 %v3949, %v3948
        %3966 = vmatprep.subr.bf16.mxu0 0
        %3967 = vmatpush1.bf16.msra.mxu0 %v3950
        %3968 = vmatprep.subr.bf16.mxu0 0
        %3969 = vmatpush1.bf16.msra.mxu0 %v3951
        %3970 = vmatprep.subr.bf16.mxu0 0
        %3971 = vmatpush1.bf16.msra.mxu0 %v3952
        %3972 = vmatprep.subr.bf16.mxu0 0
        %3973 = vmatpush1.bf16.msra.mxu0 %v3953
        %3974 = vmatprep.subr.bf16.mxu0 0
        %3975 = vmatpush1.bf16.msra.mxu0 %v3954
        %3976 = vmatprep.subr.bf16.mxu0 0
        %3977 = vmatpush1.bf16.msra.mxu0 %v3955
        %3978 = vmatprep.subr.bf16.mxu0 0
        %3979 = vmatpush1.bf16.msra.mxu0 %v3956
        %3980 = vmatprep.subr.bf16.mxu0 0
        %3981 = vmatpush1.bf16.msra.mxu0 %v3957
        %3982 = vmatprep.subr.bf16.mxu0 0
        %3983 = vmatpush1.bf16.msra.mxu0 0
        %3984 = vmatprep.subr.bf16.mxu0 0
        %3985 = vmatpush1.bf16.msra.mxu0 0
        %3986 = vmatprep.subr.bf16.mxu0 0
        %3987 = vmatpush1.bf16.msra.mxu0 0
        %3988 = vmatprep.subr.bf16.mxu0 0
        %3989 = vmatpush1.bf16.msra.mxu0 0
        %3990 = vmatprep.subr.bf16.mxu0 0
        %3991 = vmatpush1.bf16.msra.mxu0 0
        %3992 = vmatprep.subr.bf16.mxu0 0
        %3993 = vmatpush1.bf16.msra.mxu0 0
        %3994 = vmatprep.subr.bf16.mxu0 0
        %3995 = vmatpush1.bf16.msra.mxu0 0
        %3996 = vmatprep.subr.bf16.mxu0 0
        %3997 = vmatpush1.bf16.msra.mxu0 0
        %3998 = vmatprep.mubr.bf16.mxu0 0
        %3999 = vmatmul.mubr.bf16.gmra.mrb[0].mxu0 %v3894
        %v4000 = vpop.f32.mrb[0].mxu0
        %v4001 = vadd.f32 %v3916, %v4000
        %v4002 = vpop.f32.mrb[0].mxu0
        %v4003 = vpop.f32.mrb[0].mxu0
        %v4004 = vadd.f32 %v3916, %v4003
        %v4005 = vpop.f32.mrb[0].mxu0
        %4006 = vdwg.mxu0
        %4007 = vmatprep.subr.bf16.mxu0 0
        %4008 = vmatpush1.bf16.xpose.msra.mxu0 %v3580
        %4009 = vmatprep.subr.bf16.mxu0 0
        %4010 = vmatpush1.bf16.xpose.msra.mxu0 0
        %4011 = vmatprep.subr.bf16.mxu0 0
        %4012 = vmatpush1.bf16.xpose.msra.mxu0 0
        %4013 = vmatprep.subr.bf16.mxu0 0
        %4014 = vmatpush1.bf16.xpose.msra.mxu0 0
        %4015 = vmatprep.subr.bf16.mxu0 0
        %4016 = vmatpush1.bf16.xpose.msra.mxu0 0
        %4017 = vmatprep.subr.bf16.mxu0 0
        %4018 = vmatpush1.bf16.xpose.msra.mxu0 0
        %4019 = vmatprep.subr.bf16.mxu0 0
        %4020 = vmatpush1.bf16.xpose.msra.mxu0 0
        %4021 = vmatprep.subr.bf16.mxu0 0
        %4022 = vmatpush1.bf16.xpose.msra.mxu0 0
        %4023 = vmatprep.subr.bf16.mxu0 0
        %4024 = vmatpush1.bf16.xpose.msra.mxu0 0
        %4025 = vmatprep.subr.bf16.mxu0 0
        %4026 = vmatpush1.bf16.xpose.msra.mxu0 0
        %4027 = vmatprep.subr.bf16.mxu0 0
        %4028 = vmatpush1.bf16.xpose.msra.mxu0 0
        %4029 = vmatprep.subr.bf16.mxu0 0
        %4030 = vmatpush1.bf16.xpose.msra.mxu0 0
        %4031 = vmatprep.subr.bf16.mxu0 0
        %4032 = vmatpush1.bf16.xpose.msra.mxu0 0
        %4033 = vmatprep.subr.bf16.mxu0 0
        %4034 = vmatpush1.bf16.xpose.msra.mxu0 0
        %4035 = vmatprep.subr.bf16.mxu0 0
        %4036 = vmatpush1.bf16.xpose.msra.mxu0 0
        %4037 = vmatprep.subr.bf16.mxu0 0
        %4038 = vmatpush1.bf16.xpose.msra.mxu0 0
        %4039 = vmatprep.mubr.bf16.mxu0 0
        %4040 = vmatmul.mubr.bf16.gmra.mrb[0].mxu0 %v3680
        %v4041 = vpop.f32.mrb[0].mxu0
        %v4042 = vadd.f32 0.0, %v4041
        %v4043 = vpop.f32.mrb[0].mxu0
        %v4044 = vpop.f32.mrb[0].mxu0
        %v4045 = vpop.f32.mrb[0].mxu0
        %4046 = vdwg.mxu0
        %4047 = vmatprep.subr.bf16.mxu0 0
        %4048 = vmatpush1.bf16.xpose.msra.mxu0 %v3581
        %4049 = vmatprep.subr.bf16.mxu0 0
        %4050 = vmatpush1.bf16.xpose.msra.mxu0 0
        %4051 = vmatprep.subr.bf16.mxu0 0
        %4052 = vmatpush1.bf16.xpose.msra.mxu0 0
        %4053 = vmatprep.subr.bf16.mxu0 0
        %4054 = vmatpush1.bf16.xpose.msra.mxu0 0
        %4055 = vmatprep.subr.bf16.mxu0 0
        %4056 = vmatpush1.bf16.xpose.msra.mxu0 0
        %4057 = vmatprep.subr.bf16.mxu0 0
        %4058 = vmatpush1.bf16.xpose.msra.mxu0 0
        %4059 = vmatprep.subr.bf16.mxu0 0
        %4060 = vmatpush1.bf16.xpose.msra.mxu0 0
        %4061 = vmatprep.subr.bf16.mxu0 0
        %4062 = vmatpush1.bf16.xpose.msra.mxu0 0
        %4063 = vmatprep.subr.bf16.mxu0 0
        %4064 = vmatpush1.bf16.xpose.msra.mxu0 0
        %4065 = vmatprep.subr.bf16.mxu0 0
        %4066 = vmatpush1.bf16.xpose.msra.mxu0 0
        %4067 = vmatprep.subr.bf16.mxu0 0
        %4068 = vmatpush1.bf16.xpose.msra.mxu0 0
        %4069 = vmatprep.subr.bf16.mxu0 0
        %4070 = vmatpush1.bf16.xpose.msra.mxu0 0
        %4071 = vmatprep.subr.bf16.mxu0 0
        %4072 = vmatpush1.bf16.xpose.msra.mxu0 0
        %4073 = vmatprep.subr.bf16.mxu0 0
        %4074 = vmatpush1.bf16.xpose.msra.mxu0 0
        %4075 = vmatprep.subr.bf16.mxu0 0
        %4076 = vmatpush1.bf16.xpose.msra.mxu0 0
        %4077 = vmatprep.subr.bf16.mxu0 0
        %4078 = vmatpush1.bf16.xpose.msra.mxu0 0
        %4079 = vmatprep.mubr.bf16.mxu0 0
        %4080 = vmatmul.mubr.bf16.gmra.mrb[0].mxu0 %v3681
        %v4081 = vpop.f32.mrb[0].mxu0
        %v4082 = vadd.f32 0.0, %v4081
        %v4083 = vpop.f32.mrb[0].mxu0
        %v4084 = vpop.f32.mrb[0].mxu0
        %v4085 = vpop.f32.mrb[0].mxu0
        %4086 = vdwg.mxu0
        %v4087 = vmul.f32 %v4042, 0.17677669
        %v4088 = vmul.f32 %v4082, 0.17677669
        %v4089 = vsel %vm1726, %v4087, -inf
        %4090 = vmax.xlane.f32.xlu0 %v4089
        %v4091 = vpop.xlane.xlu0 %4090
        %v4092 = vsel %vm1726, %v4088, -inf
        %4093 = vmax.xlane.f32.xlu0 %v4092
        %v4094 = vpop.xlane.xlu0 %4093
        %v4095 = vsub.f32 %v4087, %v4091
        %v4096 = vsub.f32 %v4088, %v4094
        %v4097 = vmul.f32 %v4095, 1.442695
        %v4098 = vpow.pop %v4097
        %v4099 = vmul.f32 %v4096, 1.442695
        %v4100 = vpow.pop %v4099
        %v4101 = vsel %vm1726, %v4098, 0.0
        %4102 = vadd.xlane.f32.xlu0 %v4101
        %v4103 = vpop.xlane.xlu0 %4102
        %v4104 = vsel %vm1726, %v4100, 0.0
        %4105 = vadd.xlane.f32.xlu0 %v4104
        %v4106 = vpop.xlane.xlu0 %4105
        %v4107 = vrcp.pop %v4103
        %v4108 = vrcp.pop %v4106
        %v4109 = vmul.f32 %v4098, %v4107
        %v4110 = vmul.f32 %v4100, %v4108
        %v4111 = vpack.c.bf16 %v4109, %v4109
        %v4112 = vpack.c.bf16 %v4110, %v4110
        %v4114 = vsel %vm1726, %v4111, 0
        %v4117 = vsel %vm1754, %v3587, 0
        %4119 = vmatprep.subr.bf16.mxu0 0
        %4120 = vmatpush1.bf16.msra.mxu0 %v4117
        %4121 = vmatprep.subr.bf16.mxu0 0
        %4122 = vmatpush1.bf16.msra.mxu0 0
        %4123 = vmatprep.subr.bf16.mxu0 0
        %4124 = vmatpush1.bf16.msra.mxu0 0
        %4125 = vmatprep.subr.bf16.mxu0 0
        %4126 = vmatpush1.bf16.msra.mxu0 0
        %4127 = vmatprep.subr.bf16.mxu0 0
        %4128 = vmatpush1.bf16.msra.mxu0 0
        %4129 = vmatprep.subr.bf16.mxu0 0
        %4130 = vmatpush1.bf16.msra.mxu0 0
        %4131 = vmatprep.subr.bf16.mxu0 0
        %4132 = vmatpush1.bf16.msra.mxu0 0
        %4133 = vmatprep.subr.bf16.mxu0 0
        %4134 = vmatpush1.bf16.msra.mxu0 0
        %4135 = vmatprep.subr.bf16.mxu0 0
        %4136 = vmatpush1.bf16.msra.mxu0 0
        %4137 = vmatprep.subr.bf16.mxu0 0
        %4138 = vmatpush1.bf16.msra.mxu0 0
        %4139 = vmatprep.subr.bf16.mxu0 0
        %4140 = vmatpush1.bf16.msra.mxu0 0
        %4141 = vmatprep.subr.bf16.mxu0 0
        %4142 = vmatpush1.bf16.msra.mxu0 0
        %4143 = vmatprep.subr.bf16.mxu0 0
        %4144 = vmatpush1.bf16.msra.mxu0 0
        %4145 = vmatprep.subr.bf16.mxu0 0
        %4146 = vmatpush1.bf16.msra.mxu0 0
        %4147 = vmatprep.subr.bf16.mxu0 0
        %4148 = vmatpush1.bf16.msra.mxu0 0
        %4149 = vmatprep.subr.bf16.mxu0 0
        %4150 = vmatpush1.bf16.msra.mxu0 0
        %4151 = vmatprep.mubr.bf16.mxu0 0
        %4152 = vmatmul.mubr.bf16.gmra.mrb[0].mxu0 %v4114
        %v4153 = vpop.f32.mrb[0].mxu0
        %v4154 = vadd.f32 0.0, %v4153
        %v4155 = vpop.f32.mrb[0].mxu0
        %v4156 = vpop.f32.mrb[0].mxu0
        %v4157 = vpop.f32.mrb[0].mxu0
        %4158 = vdwg.mxu0
        %v4160 = vsel %vm1726, %v4112, 0
        %v4163 = vsel %vm1754, %v3588, 0
        %4165 = vmatprep.subr.bf16.mxu0 0
        %4166 = vmatpush1.bf16.msra.mxu0 %v4163
        %4167 = vmatprep.subr.bf16.mxu0 0
        %4168 = vmatpush1.bf16.msra.mxu0 0
        %4169 = vmatprep.subr.bf16.mxu0 0
        %4170 = vmatpush1.bf16.msra.mxu0 0
        %4171 = vmatprep.subr.bf16.mxu0 0
        %4172 = vmatpush1.bf16.msra.mxu0 0
        %4173 = vmatprep.subr.bf16.mxu0 0
        %4174 = vmatpush1.bf16.msra.mxu0 0
        %4175 = vmatprep.subr.bf16.mxu0 0
        %4176 = vmatpush1.bf16.msra.mxu0 0
        %4177 = vmatprep.subr.bf16.mxu0 0
        %4178 = vmatpush1.bf16.msra.mxu0 0
        %4179 = vmatprep.subr.bf16.mxu0 0
        %4180 = vmatpush1.bf16.msra.mxu0 0
        %4181 = vmatprep.subr.bf16.mxu0 0
        %4182 = vmatpush1.bf16.msra.mxu0 0
        %4183 = vmatprep.subr.bf16.mxu0 0
        %4184 = vmatpush1.bf16.msra.mxu0 0
        %4185 = vmatprep.subr.bf16.mxu0 0
        %4186 = vmatpush1.bf16.msra.mxu0 0
        %4187 = vmatprep.subr.bf16.mxu0 0
        %4188 = vmatpush1.bf16.msra.mxu0 0
        %4189 = vmatprep.subr.bf16.mxu0 0
        %4190 = vmatpush1.bf16.msra.mxu0 0
        %4191 = vmatprep.subr.bf16.mxu0 0
        %4192 = vmatpush1.bf16.msra.mxu0 0
        %4193 = vmatprep.subr.bf16.mxu0 0
        %4194 = vmatpush1.bf16.msra.mxu0 0
        %4195 = vmatprep.subr.bf16.mxu0 0
        %4196 = vmatpush1.bf16.msra.mxu0 0
        %4197 = vmatprep.mubr.bf16.mxu0 0
        %4198 = vmatmul.mubr.bf16.gmra.mrb[0].mxu0 %v4160
        %v4199 = vpop.f32.mrb[0].mxu0
        %v4200 = vadd.f32 0.0, %v4199
        %v4201 = vpop.f32.mrb[0].mxu0
        %v4202 = vpop.f32.mrb[0].mxu0
        %v4203 = vpop.f32.mrb[0].mxu0
        %4204 = vdwg.mxu0
        %v4205 = vpack.c.bf16 %v4200, %v4154
        %v4206 = vld [vmem:[#allocation28] sm:$0xf]
        %v4207 = vld [vmem:[#allocation28 + $0x4] sm:$0xf]
        %v4208 = vld [vmem:[#allocation28 + $0x8] sm:$0xf]
        %v4209 = vld [vmem:[#allocation28 + $0xc] sm:$0xf]
        %v4210 = vld [vmem:[#allocation28 + $0x10] sm:$0xf]
        %v4211 = vld [vmem:[#allocation28 + $0x14] sm:$0xf]
        %v4212 = vld [vmem:[#allocation28 + $0x18] sm:$0xf]
        %v4213 = vld [vmem:[#allocation28 + $0x1c] sm:$0xf]
        %v4214 = vld [vmem:[#allocation28 + $0x20] sm:$0xf]
        %v4215 = vld [vmem:[#allocation28 + $0x24] sm:$0xf]
        %v4216 = vld [vmem:[#allocation28 + $0x28] sm:$0xf]
        %v4217 = vld [vmem:[#allocation28 + $0x2c] sm:$0xf]
        %v4218 = vld [vmem:[#allocation28 + $0x30] sm:$0xf]
        %v4219 = vld [vmem:[#allocation28 + $0x34] sm:$0xf]
        %v4220 = vld [vmem:[#allocation28 + $0x38] sm:$0xf]
        %v4221 = vld [vmem:[#allocation28 + $0x3c] sm:$0xf]
        %v4222 = vld [vmem:[#allocation30] sm:$0x1]
        %v4224 = vlaneseq
        %v4225 = vshrl.u32 %v4224, 7
        %v4226 = vsub.s32 0, %v4225
        %v4227 = vrot.slane %v4222, %v4226
        %v4245 = vunpack.c.l.b16 %v4206
        %v4246 = vunpack.c.l.b16 %v4207
        %v4247 = vunpack.c.l.b16 %v4208
        %v4248 = vunpack.c.l.b16 %v4209
        %v4249 = vunpack.c.l.b16 %v4210
        %v4250 = vunpack.c.l.b16 %v4211
        %v4251 = vunpack.c.l.b16 %v4212
        %v4252 = vunpack.c.l.b16 %v4213
        %v4253 = vunpack.c.l.b16 %v4214
        %v4254 = vunpack.c.l.b16 %v4215
        %v4255 = vunpack.c.l.b16 %v4216
        %v4256 = vunpack.c.l.b16 %v4217
        %v4257 = vunpack.c.l.b16 %v4218
        %v4258 = vunpack.c.l.b16 %v4219
        %v4259 = vunpack.c.l.b16 %v4220
        %v4260 = vunpack.c.l.b16 %v4221
        %v4261 = vpack.c.b16 %v4246, %v4245
        %v4262 = vpack.c.b16 %v4248, %v4247
        %v4263 = vpack.c.b16 %v4250, %v4249
        %v4264 = vpack.c.b16 %v4252, %v4251
        %v4265 = vpack.c.b16 %v4254, %v4253
        %v4266 = vpack.c.b16 %v4256, %v4255
        %v4267 = vpack.c.b16 %v4258, %v4257
        %v4268 = vpack.c.b16 %v4260, %v4259
        %4277 = vmatprep.subr.bf16.mxu0 0
        %4278 = vmatpush1.bf16.msra.mxu0 %v4261
        %4279 = vmatprep.subr.bf16.mxu0 0
        %4280 = vmatpush1.bf16.msra.mxu0 %v4262
        %4281 = vmatprep.subr.bf16.mxu0 0
        %4282 = vmatpush1.bf16.msra.mxu0 %v4263
        %4283 = vmatprep.subr.bf16.mxu0 0
        %4284 = vmatpush1.bf16.msra.mxu0 %v4264
        %4285 = vmatprep.subr.bf16.mxu0 0
        %4286 = vmatpush1.bf16.msra.mxu0 %v4265
        %4287 = vmatprep.subr.bf16.mxu0 0
        %4288 = vmatpush1.bf16.msra.mxu0 %v4266
        %4289 = vmatprep.subr.bf16.mxu0 0
        %4290 = vmatpush1.bf16.msra.mxu0 %v4267
        %4291 = vmatprep.subr.bf16.mxu0 0
        %4292 = vmatpush1.bf16.msra.mxu0 %v4268
        %4293 = vmatprep.subr.bf16.mxu0 0
        %4294 = vmatpush1.bf16.msra.mxu0 0
        %4295 = vmatprep.subr.bf16.mxu0 0
        %4296 = vmatpush1.bf16.msra.mxu0 0
        %4297 = vmatprep.subr.bf16.mxu0 0
        %4298 = vmatpush1.bf16.msra.mxu0 0
        %4299 = vmatprep.subr.bf16.mxu0 0
        %4300 = vmatpush1.bf16.msra.mxu0 0
        %4301 = vmatprep.subr.bf16.mxu0 0
        %4302 = vmatpush1.bf16.msra.mxu0 0
        %4303 = vmatprep.subr.bf16.mxu0 0
        %4304 = vmatpush1.bf16.msra.mxu0 0
        %4305 = vmatprep.subr.bf16.mxu0 0
        %4306 = vmatpush1.bf16.msra.mxu0 0
        %4307 = vmatprep.subr.bf16.mxu0 0
        %4308 = vmatpush1.bf16.msra.mxu0 0
        %4309 = vmatprep.mubr.bf16.mxu0 0
        %4310 = vmatmul.mubr.bf16.gmra.mrb[0].mxu0 %v4205
        %v4311 = vpop.f32.mrb[0].mxu0
        %v4312 = vadd.f32 %v4227, %v4311
        %v4313 = vpop.f32.mrb[0].mxu0
        %v4314 = vpop.f32.mrb[0].mxu0
        %v4315 = vadd.f32 %v4227, %v4314
        %v4316 = vpop.f32.mrb[0].mxu0
        %4317 = vdwg.mxu0
        %v4318 = vpack.c.bf16 %v4001, %v4001
        %v4319 = vpack.c.bf16 %v4004, %v4004
        %4320 = vst [vmem:[%s1066] sm:$0xf] %v4318
        %4321 = vst [vmem:[%s1066 + $0x10] sm:$0xf] %v4319
        %v4322 = vpack.c.bf16 %v4312, %v4312
        %v4323 = vpack.c.bf16 %v4315, %v4315
        %4324 = vst [vmem:[%s1066 + $0x4] sm:$0xf] %v4322
        %4325 = vst [vmem:[%s1066 + $0x14] sm:$0xf] %v4323
        %v4326 = vpack.c.bf16 %v1232, %v1232
        %v4327 = vpack.c.bf16 %v1233, %v1233
        %4328 = vst [vmem:[%s1066 + $0x8] sm:$0xf] %v4326
        %4329 = vst [vmem:[%s1066 + $0x18] sm:$0xf] %v4327
        %v4330 = vpack.c.bf16 %v2109, %v2109
        %v4331 = vpack.c.bf16 %v2112, %v2112
        %4332 = vst [vmem:[%s1066 + $0xc] sm:$0xf] %v4330
        %4333 = vst [vmem:[%s1066 + $0x1c] sm:$0xf] %v4331
        %s4334 = smul.u32 2, %s46
        %p4335 = scmp.lt.s32.totalorder %s4334, 3
        %s4336 = scalar_select %p4335, %s4334, 3
        %s4337 = smul.addr %s4336, 4
        %s4338 = smul.addr %s4337, 4
        %s4339 = scalar_lea.vmem %s25, %s4338
        // Predicated region
        $region197: #{co_attention_forward.2} parent=119 // pred_check
          %p4340 = pneg %p604
        $region198: #{co_attention_forward.2} parent=119 // pred_check_branch
          %4342 = sbr.rel (%p4340) target = $region200
        $region199: #{co_attention_forward.2} parent=119 // pred_region
          %s4343 = smul.u32 2, %s46
        $region200: #{co_attention_forward.2} parent=119 // pred_fallthru
          _
      $region120: #{co_attention_forward.2} parent=5 // pred_fallthru
        _
      %p4344 = scmp.le.s32.totalorder 2, %s41
      // Predicated region
      $region201: #{co_attention_forward.2} parent=5 // pred_check
        %p4345 = pneg %p4344
      $region202: #{co_attention_forward.2} parent=5 // pred_check_branch
        %4347 = sbr.rel (%p4345) target = $region204
      $region203: #{co_attention_forward.2} parent=5 // pred_region
        %s4348 = ssub.s32 %s41, 2
        // Predicated region
        $region205: #{co_attention_forward.2} parent=203 // pred_check
          %p4349 = pneg %p610
        $region206: #{co_attention_forward.2} parent=203 // pred_check_branch
          %4351 = sbr.rel (%p4349) target = $region208
        $region207: #{co_attention_forward.2} parent=203 // pred_region
          %s4352 = smul.u32 2, %s47
          %p4353 = scmp.lt.s32.totalorder %s4352, 3
          %s4354 = scalar_select %p4353, %s4352, 3
          %s4355 = smul.addr %s4354, 4
          %s4356 = smul.addr %s4355, 4
          %s4357 = scalar_lea.vmem %s25, %s4356
        $region208: #{co_attention_forward.2} parent=203 // pred_fallthru
          _
      $region204: #{co_attention_forward.2} parent=5 // pred_fallthru
        _
    $region6: #{co_attention_forward.2} parent=1 // loop_footer
      %s45 = sadd.s32 1, %s41
    $region7: #{co_attention_forward.2} parent=1 // loop_footer_branch
      %40 = sbr.rel target = $region3
    $region8: #{co_attention_forward.2} parent=1 // loop_exit
      _
    %4358 = vsyncpa [#allocation3], 1
    %s4359 = scalar_lea.sflag [#allocation3], 1
    %4360 = vsyncpa %s4359, 1
    %4361 = vsyncpa [#allocation5], 1
    %4362 = vsyncpa [#allocation8], 1
    %4363 = vsyncpa [#allocation11], 1
    %4364 = vsyncpa [#allocation14], 1
    %4365 = vsyncpa [#allocation17], 1
    %4366 = vsyncpa [#allocation20], 1
    %4367 = vsyncpa [#allocation23], 1
    %4368 = vsyncpa [#allocation26], 1
    %4369 = vsyncpa [#allocation29], 1

// kernel: co_attention_forward.3
$region0: #{co_attention_forward.3}
  #allocation0 [shape = 'u32[]', space=smem, size = 0x4, offset = 0x4, fixed_abs, tag = 'smem constant byte address 0x4 - core index']
  #allocation1 [shape = 'u32[144,128]{1,0:T(1,128)}', space=vmem, size = 0x12000, scoped, tag = 'internal scratch']
  #allocation2 [shape = 'f32[4,128]{1,0:T(4,128)}', space=vmem, size = 0x800, scoped, tag = 'scratch operand']
  %s0 = inlined_call_operand.vmem [shape: bf16[4,4096], index: 0, kind: input, shape index: {}]
  %s1 = inlined_call_operand.hbm [shape: bf16[4096,128], index: 1, kind: input, shape index: {}]
  %s2 = inlined_call_operand.vmem [shape: f32[1,128], index: 2, kind: input, shape index: {}]
  %s3 = inlined_call_operand.vmem [shape: bf16[128,128], index: 3, kind: input, shape index: {}]
  %s4 = inlined_call_operand.vmem [shape: f32[1,128], index: 4, kind: input, shape index: {}]
  %s5 = inlined_call_operand.vmem [shape: bf16[128,128], index: 5, kind: input, shape index: {}]
  %s6 = inlined_call_operand.vmem [shape: f32[1,128], index: 6, kind: input, shape index: {}]
  %s7 = inlined_call_operand.vmem [shape: f32[4,128], index: 7, kind: output, shape index: {}]
  %s8 = sld [smem:[#allocation0]]
  $region50: #{co_attention_forward.3} parent=0
    _
  %s10 = ssub.s32 1, %s8
  %s11 = scalar_select 0, %s10, %s8
  $region1: #{co_attention_forward.3} parent=0
    #allocation3 [shape = 'u8[1048576]{0}', space=vmem, size = 0x100000, scoped, tag = 'input window, operand 1, single buffered']
    #allocation4 [shape = 's32[1]{0}', space=sflag, size = 0x4, scoped, tag = 'scoped memory for co_attention_forward.3']
    %12 = vsyncpa [#allocation4], 0
    // Predicated region
    $region2: #{co_attention_forward.3} parent=1 // pred_check
      _
    $region3: #{co_attention_forward.3} parent=1 // pred_check_branch
      %14 = sbr.rel (0) target = $region5
    $region4: #{co_attention_forward.3} parent=1 // pred_region
      _
    $region5: #{co_attention_forward.3} parent=1 // pred_fallthru
      _
    // Predicated region
    $region6: #{co_attention_forward.3} parent=1 // pred_check
      _
    $region7: #{co_attention_forward.3} parent=1 // pred_check_branch
      %16 = sbr.rel (0) target = $region9
    $region8: #{co_attention_forward.3} parent=1 // pred_region
      %s18 = ssub.s32 32768, 32768
      %19 = vsyncadd [#allocation4], %s18
      %s20 = sshll.u32 [#allocation3], 4
      %s21 = int_to_ptr.vmem [resolvable:$true] %s20
      %26 = dma.hbm_to_vmem [thread:$0]  %s1, 32768, %s21, [#allocation4], 64, 64, 4
    $region9: #{co_attention_forward.3} parent=1 // pred_fallthru
      _
    // Predicated region
    $region10: #{co_attention_forward.3} parent=1 // pred_check
      _
    $region11: #{co_attention_forward.3} parent=1 // pred_check_branch
      %28 = sbr.rel (0) target = $region13
    $region12: #{co_attention_forward.3} parent=1 // pred_region
      _
    $region13: #{co_attention_forward.3} parent=1 // pred_fallthru
      _
    // Predicated region
    $region14: #{co_attention_forward.3} parent=1 // pred_check
      _
    $region15: #{co_attention_forward.3} parent=1 // pred_check_branch
      %30 = sbr.rel (0) target = $region17
    $region16: #{co_attention_forward.3} parent=1 // pred_region
      _
    $region17: #{co_attention_forward.3} parent=1 // pred_fallthru
      _
    // Predicated region
    $region18: #{co_attention_forward.3} parent=1 // pred_check
      _
    $region19: #{co_attention_forward.3} parent=1 // pred_check_branch
      %32 = sbr.rel (0) target = $region21
    $region20: #{co_attention_forward.3} parent=1 // pred_region
      _
    $region21: #{co_attention_forward.3} parent=1 // pred_fallthru
      _
    // Predicated region
    $region22: #{co_attention_forward.3} parent=1 // pred_check
      _
    $region23: #{co_attention_forward.3} parent=1 // pred_check_branch
      %34 = sbr.rel (0) target = $region25
    $region24: #{co_attention_forward.3} parent=1 // pred_region
      _
    $region25: #{co_attention_forward.3} parent=1 // pred_fallthru
      _
    // Predicated region
    $region26: #{co_attention_forward.3} parent=1 // pred_check
      _
    $region27: #{co_attention_forward.3} parent=1 // pred_check_branch
      %36 = sbr.rel (0) target = $region29
    $region28: #{co_attention_forward.3} parent=1 // pred_region
      _
    $region29: #{co_attention_forward.3} parent=1 // pred_fallthru
      _
    // Predicated region
    $region30: #{co_attention_forward.3} parent=1 // pred_check
      _
    $region31: #{co_attention_forward.3} parent=1 // pred_check_branch
      %38 = sbr.rel (0) target = $region33
    $region32: #{co_attention_forward.3} parent=1 // pred_region
      %39 = dma.done [#allocation4], 32768
    $region33: #{co_attention_forward.3} parent=1 // pred_fallthru
      _
    %p41 = scmp.eq.s32.totalorder 0, 0
    // Predicated region
    $region34: #{co_attention_forward.3} parent=1 // pred_check
      %p42 = pneg %p41
    $region35: #{co_attention_forward.3} parent=1 // pred_check_branch
      %44 = sbr.rel (%p42) target = $region37
    $region36: #{co_attention_forward.3} parent=1 // pred_region
      %45 = vst [vmem:[#allocation2] sm:$0xf] 0.0
    $region37: #{co_attention_forward.3} parent=1 // pred_fallthru
      _
    %v46 = vld [vmem:[#allocation3] sm:$0xf]
    %v47 = vld [vmem:[#allocation3 + $0x4] sm:$0xf]
    %v48 = vld [vmem:[#allocation3 + $0x8] sm:$0xf]
    %v49 = vld [vmem:[#allocation3 + $0xc] sm:$0xf]
    %v50 = vld [vmem:[#allocation3 + $0x10] sm:$0xf]
    %v51 = vld [vmem:[#allocation3 + $0x14] sm:$0xf]
    %v52 = vld [vmem:[#allocation3 + $0x18] sm:$0xf]
    %v53 = vld [vmem:[#allocation3 + $0x1c] sm:$0xf]
    %v54 = vld [vmem:[#allocation3 + $0x20] sm:$0xf]
    %v55 = vld [vmem:[#allocation3 + $0x24] sm:$0xf]
    %v56 = vld [vmem:[#allocation3 + $0x28] sm:$0xf]
    %v57 = vld [vmem:[#allocation3 + $0x2c] sm:$0xf]
    %v58 = vld [vmem:[#allocation3 + $0x30] sm:$0xf]
    %v59 = vld [vmem:[#allocation3 + $0x34] sm:$0xf]
    %v60 = vld [vmem:[#allocation3 + $0x38] sm:$0xf]
    %v61 = vld [vmem:[#allocation3 + $0x3c] sm:$0xf]
    %v62 = vld [vmem:[#allocation3 + $0x40] sm:$0xf]
    %v63 = vld [vmem:[#allocation3 + $0x44] sm:$0xf]
    %v64 = vld [vmem:[#allocation3 + $0x48] sm:$0xf]
    %v65 = vld [vmem:[#allocation3 + $0x4c] sm:$0xf]
    %v66 = vld [vmem:[#allocation3 + $0x50] sm:$0xf]
    %v67 = vld [vmem:[#allocation3 + $0x54] sm:$0xf]
    %v68 = vld [vmem:[#allocation3 + $0x58] sm:$0xf]
    %v69 = vld [vmem:[#allocation3 + $0x5c] sm:$0xf]
    %v70 = vld [vmem:[#allocation3 + $0x60] sm:$0xf]
    %v71 = vld [vmem:[#allocation3 + $0x64] sm:$0xf]
    %v72 = vld [vmem:[#allocation3 + $0x68] sm:$0xf]
    %v73 = vld [vmem:[#allocation3 + $0x6c] sm:$0xf]
    %v74 = vld [vmem:[#allocation3 + $0x70] sm:$0xf]
    %v75 = vld [vmem:[#allocation3 + $0x74] sm:$0xf]
    %v76 = vld [vmem:[#allocation3 + $0x78] sm:$0xf]
    %v77 = vld [vmem:[#allocation3 + $0x7c] sm:$0xf]
    %v78 = vld [vmem:[#allocation3 + $0x80] sm:$0xf]
    %v79 = vld [vmem:[#allocation3 + $0x84] sm:$0xf]
    %v80 = vld [vmem:[#allocation3 + $0x88] sm:$0xf]
    %v81 = vld [vmem:[#allocation3 + $0x8c] sm:$0xf]
    %v82 = vld [vmem:[#allocation3 + $0x90] sm:$0xf]
    %v83 = vld [vmem:[#allocation3 + $0x94] sm:$0xf]
    %v84 = vld [vmem:[#allocation3 + $0x98] sm:$0xf]
    %v85 = vld [vmem:[#allocation3 + $0x9c] sm:$0xf]
    %v86 = vld [vmem:[#allocation3 + $0xa0] sm:$0xf]
    %v87 = vld [vmem:[#allocation3 + $0xa4] sm:$0xf]
    %v88 = vld [vmem:[#allocation3 + $0xa8] sm:$0xf]
    %v89 = vld [vmem:[#allocation3 + $0xac] sm:$0xf]
    %v90 = vld [vmem:[#allocation3 + $0xb0] sm:$0xf]
    %v91 = vld [vmem:[#allocation3 + $0xb4] sm:$0xf]
    %v92 = vld [vmem:[#allocation3 + $0xb8] sm:$0xf]
    %v93 = vld [vmem:[#allocation3 + $0xbc] sm:$0xf]
    %v94 = vld [vmem:[#allocation3 + $0xc0] sm:$0xf]
    %v95 = vld [vmem:[#allocation3 + $0xc4] sm:$0xf]
    %v96 = vld [vmem:[#allocation3 + $0xc8] sm:$0xf]
    %v97 = vld [vmem:[#allocation3 + $0xcc] sm:$0xf]
    %v98 = vld [vmem:[#allocation3 + $0xd0] sm:$0xf]
    %v99 = vld [vmem:[#allocation3 + $0xd4] sm:$0xf]
    %v100 = vld [vmem:[#allocation3 + $0xd8] sm:$0xf]
    %v101 = vld [vmem:[#allocation3 + $0xdc] sm:$0xf]
    %v102 = vld [vmem:[#allocation3 + $0xe0] sm:$0xf]
    %v103 = vld [vmem:[#allocation3 + $0xe4] sm:$0xf]
    %v104 = vld [vmem:[#allocation3 + $0xe8] sm:$0xf]
    %v105 = vld [vmem:[#allocation3 + $0xec] sm:$0xf]
    %v106 = vld [vmem:[#allocation3 + $0xf0] sm:$0xf]
    %v107 = vld [vmem:[#allocation3 + $0xf4] sm:$0xf]
    %v108 = vld [vmem:[#allocation3 + $0xf8] sm:$0xf]
    %v109 = vld [vmem:[#allocation3 + $0xfc] sm:$0xf]
    %v110 = vld [vmem:[#allocation3 + $0x100] sm:$0xf]
    %v111 = vld [vmem:[#allocation3 + $0x104] sm:$0xf]
    %v112 = vld [vmem:[#allocation3 + $0x108] sm:$0xf]
    %v113 = vld [vmem:[#allocation3 + $0x10c] sm:$0xf]
    %v114 = vld [vmem:[#allocation3 + $0x110] sm:$0xf]
    %v115 = vld [vmem:[#allocation3 + $0x114] sm:$0xf]
    %v116 = vld [vmem:[#allocation3 + $0x118] sm:$0xf]
    %v117 = vld [vmem:[#allocation3 + $0x11c] sm:$0xf]
    %v118 = vld [vmem:[#allocation3 + $0x120] sm:$0xf]
    %v119 = vld [vmem:[#allocation3 + $0x124] sm:$0xf]
    %v120 = vld [vmem:[#allocation3 + $0x128] sm:$0xf]
    %v121 = vld [vmem:[#allocation3 + $0x12c] sm:$0xf]
    %v122 = vld [vmem:[#allocation3 + $0x130] sm:$0xf]
    %v123 = vld [vmem:[#allocation3 + $0x134] sm:$0xf]
    %v124 = vld [vmem:[#allocation3 + $0x138] sm:$0xf]
    %v125 = vld [vmem:[#allocation3 + $0x13c] sm:$0xf]
    %v126 = vld [vmem:[#allocation3 + $0x140] sm:$0xf]
    %v127 = vld [vmem:[#allocation3 + $0x144] sm:$0xf]
    %v128 = vld [vmem:[#allocation3 + $0x148] sm:$0xf]
    %v129 = vld [vmem:[#allocation3 + $0x14c] sm:$0xf]
    %v130 = vld [vmem:[#allocation3 + $0x150] sm:$0xf]
    %v131 = vld [vmem:[#allocation3 + $0x154] sm:$0xf]
    %v132 = vld [vmem:[#allocation3 + $0x158] sm:$0xf]
    %v133 = vld [vmem:[#allocation3 + $0x15c] sm:$0xf]
    %v134 = vld [vmem:[#allocation3 + $0x160] sm:$0xf]
    %v135 = vld [vmem:[#allocation3 + $0x164] sm:$0xf]
    %v136 = vld [vmem:[#allocation3 + $0x168] sm:$0xf]
    %v137 = vld [vmem:[#allocation3 + $0x16c] sm:$0xf]
    %v138 = vld [vmem:[#allocation3 + $0x170] sm:$0xf]
    %v139 = vld [vmem:[#allocation3 + $0x174] sm:$0xf]
    %v140 = vld [vmem:[#allocation3 + $0x178] sm:$0xf]
    %v141 = vld [vmem:[#allocation3 + $0x17c] sm:$0xf]
    %v142 = vld [vmem:[#allocation3 + $0x180] sm:$0xf]
    %v143 = vld [vmem:[#allocation3 + $0x184] sm:$0xf]
    %v144 = vld [vmem:[#allocation3 + $0x188] sm:$0xf]
    %v145 = vld [vmem:[#allocation3 + $0x18c] sm:$0xf]
    %v146 = vld [vmem:[#allocation3 + $0x190] sm:$0xf]
    %v147 = vld [vmem:[#allocation3 + $0x194] sm:$0xf]
    %v148 = vld [vmem:[#allocation3 + $0x198] sm:$0xf]
    %v149 = vld [vmem:[#allocation3 + $0x19c] sm:$0xf]
    %v150 = vld [vmem:[#allocation3 + $0x1a0] sm:$0xf]
    %v151 = vld [vmem:[#allocation3 + $0x1a4] sm:$0xf]
    %v152 = vld [vmem:[#allocation3 + $0x1a8] sm:$0xf]
    %v153 = vld [vmem:[#allocation3 + $0x1ac] sm:$0xf]
    %v154 = vld [vmem:[#allocation3 + $0x1b0] sm:$0xf]
    %v155 = vld [vmem:[#allocation3 + $0x1b4] sm:$0xf]
    %v156 = vld [vmem:[#allocation3 + $0x1b8] sm:$0xf]
    %v157 = vld [vmem:[#allocation3 + $0x1bc] sm:$0xf]
    %v158 = vld [vmem:[#allocation3 + $0x1c0] sm:$0xf]
    %v159 = vld [vmem:[#allocation3 + $0x1c4] sm:$0xf]
    %v160 = vld [vmem:[#allocation3 + $0x1c8] sm:$0xf]
    %v161 = vld [vmem:[#allocation3 + $0x1cc] sm:$0xf]
    %v162 = vld [vmem:[#allocation3 + $0x1d0] sm:$0xf]
    %v163 = vld [vmem:[#allocation3 + $0x1d4] sm:$0xf]
    %v164 = vld [vmem:[#allocation3 + $0x1d8] sm:$0xf]
    %v165 = vld [vmem:[#allocation3 + $0x1dc] sm:$0xf]
    %v166 = vld [vmem:[#allocation3 + $0x1e0] sm:$0xf]
    %v167 = vld [vmem:[#allocation3 + $0x1e4] sm:$0xf]
    %v168 = vld [vmem:[#allocation3 + $0x1e8] sm:$0xf]
    %v169 = vld [vmem:[#allocation3 + $0x1ec] sm:$0xf]
    %v170 = vld [vmem:[#allocation3 + $0x1f0] sm:$0xf]
    %v171 = vld [vmem:[#allocation3 + $0x1f4] sm:$0xf]
    %v172 = vld [vmem:[#allocation3 + $0x1f8] sm:$0xf]
    %v173 = vld [vmem:[#allocation3 + $0x1fc] sm:$0xf]
    %v174 = vld [vmem:[#allocation3 + $0x200] sm:$0xf]
    %v175 = vld [vmem:[#allocation3 + $0x204] sm:$0xf]
    %v176 = vld [vmem:[#allocation3 + $0x208] sm:$0xf]
    %v177 = vld [vmem:[#allocation3 + $0x20c] sm:$0xf]
    %v178 = vld [vmem:[#allocation3 + $0x210] sm:$0xf]
    %v179 = vld [vmem:[#allocation3 + $0x214] sm:$0xf]
    %v180 = vld [vmem:[#allocation3 + $0x218] sm:$0xf]
    %v181 = vld [vmem:[#allocation3 + $0x21c] sm:$0xf]
    %v182 = vld [vmem:[#allocation3 + $0x220] sm:$0xf]
    %v183 = vld [vmem:[#allocation3 + $0x224] sm:$0xf]
    %v184 = vld [vmem:[#allocation3 + $0x228] sm:$0xf]
    %v185 = vld [vmem:[#allocation3 + $0x22c] sm:$0xf]
    %v186 = vld [vmem:[#allocation3 + $0x230] sm:$0xf]
    %v187 = vld [vmem:[#allocation3 + $0x234] sm:$0xf]
    %v188 = vld [vmem:[#allocation3 + $0x238] sm:$0xf]
    %v189 = vld [vmem:[#allocation3 + $0x23c] sm:$0xf]
    %v190 = vld [vmem:[#allocation3 + $0x240] sm:$0xf]
    %v191 = vld [vmem:[#allocation3 + $0x244] sm:$0xf]
    %v192 = vld [vmem:[#allocation3 + $0x248] sm:$0xf]
    %v193 = vld [vmem:[#allocation3 + $0x24c] sm:$0xf]
    %v194 = vld [vmem:[#allocation3 + $0x250] sm:$0xf]
    %v195 = vld [vmem:[#allocation3 + $0x254] sm:$0xf]
    %v196 = vld [vmem:[#allocation3 + $0x258] sm:$0xf]
    %v197 = vld [vmem:[#allocation3 + $0x25c] sm:$0xf]
    %v198 = vld [vmem:[#allocation3 + $0x260] sm:$0xf]
    %v199 = vld [vmem:[#allocation3 + $0x264] sm:$0xf]
    %v200 = vld [vmem:[#allocation3 + $0x268] sm:$0xf]
    %v201 = vld [vmem:[#allocation3 + $0x26c] sm:$0xf]
    %v202 = vld [vmem:[#allocation3 + $0x270] sm:$0xf]
    %v203 = vld [vmem:[#allocation3 + $0x274] sm:$0xf]
    %v204 = vld [vmem:[#allocation3 + $0x278] sm:$0xf]
    %v205 = vld [vmem:[#allocation3 + $0x27c] sm:$0xf]
    %v206 = vld [vmem:[#allocation3 + $0x280] sm:$0xf]
    %v207 = vld [vmem:[#allocation3 + $0x284] sm:$0xf]
    %v208 = vld [vmem:[#allocation3 + $0x288] sm:$0xf]
    %v209 = vld [vmem:[#allocation3 + $0x28c] sm:$0xf]
    %v210 = vld [vmem:[#allocation3 + $0x290] sm:$0xf]
    %v211 = vld [vmem:[#allocation3 + $0x294] sm:$0xf]
    %v212 = vld [vmem:[#allocation3 + $0x298] sm:$0xf]
    %v213 = vld [vmem:[#allocation3 + $0x29c] sm:$0xf]
    %v214 = vld [vmem:[#allocation3 + $0x2a0] sm:$0xf]
    %v215 = vld [vmem:[#allocation3 + $0x2a4] sm:$0xf]
    %v216 = vld [vmem:[#allocation3 + $0x2a8] sm:$0xf]
    %v217 = vld [vmem:[#allocation3 + $0x2ac] sm:$0xf]
    %v218 = vld [vmem:[#allocation3 + $0x2b0] sm:$0xf]
    %v219 = vld [vmem:[#allocation3 + $0x2b4] sm:$0xf]
    %v220 = vld [vmem:[#allocation3 + $0x2b8] sm:$0xf]
    %v221 = vld [vmem:[#allocation3 + $0x2bc] sm:$0xf]
    %v222 = vld [vmem:[#allocation3 + $0x2c0] sm:$0xf]
    %v223 = vld [vmem:[#allocation3 + $0x2c4] sm:$0xf]
    %v224 = vld [vmem:[#allocation3 + $0x2c8] sm:$0xf]
    %v225 = vld [vmem:[#allocation3 + $0x2cc] sm:$0xf]
    %v226 = vld [vmem:[#allocation3 + $0x2d0] sm:$0xf]
    %v227 = vld [vmem:[#allocation3 + $0x2d4] sm:$0xf]
    %v228 = vld [vmem:[#allocation3 + $0x2d8] sm:$0xf]
    %v229 = vld [vmem:[#allocation3 + $0x2dc] sm:$0xf]
    %v230 = vld [vmem:[#allocation3 + $0x2e0] sm:$0xf]
    %v231 = vld [vmem:[#allocation3 + $0x2e4] sm:$0xf]
    %v232 = vld [vmem:[#allocation3 + $0x2e8] sm:$0xf]
    %v233 = vld [vmem:[#allocation3 + $0x2ec] sm:$0xf]
    %v234 = vld [vmem:[#allocation3 + $0x2f0] sm:$0xf]
    %v235 = vld [vmem:[#allocation3 + $0x2f4] sm:$0xf]
    %v236 = vld [vmem:[#allocation3 + $0x2f8] sm:$0xf]
    %v237 = vld [vmem:[#allocation3 + $0x2fc] sm:$0xf]
    %v238 = vld [vmem:[#allocation3 + $0x300] sm:$0xf]
    %v239 = vld [vmem:[#allocation3 + $0x304] sm:$0xf]
    %v240 = vld [vmem:[#allocation3 + $0x308] sm:$0xf]
    %v241 = vld [vmem:[#allocation3 + $0x30c] sm:$0xf]
    %v242 = vld [vmem:[#allocation3 + $0x310] sm:$0xf]
    %v243 = vld [vmem:[#allocation3 + $0x314] sm:$0xf]
    %v244 = vld [vmem:[#allocation3 + $0x318] sm:$0xf]
    %v245 = vld [vmem:[#allocation3 + $0x31c] sm:$0xf]
    %v246 = vld [vmem:[#allocation3 + $0x320] sm:$0xf]
    %v247 = vld [vmem:[#allocation3 + $0x324] sm:$0xf]
    %v248 = vld [vmem:[#allocation3 + $0x328] sm:$0xf]
    %v249 = vld [vmem:[#allocation3 + $0x32c] sm:$0xf]
    %v250 = vld [vmem:[#allocation3 + $0x330] sm:$0xf]
    %v251 = vld [vmem:[#allocation3 + $0x334] sm:$0xf]
    %v252 = vld [vmem:[#allocation3 + $0x338] sm:$0xf]
    %v253 = vld [vmem:[#allocation3 + $0x33c] sm:$0xf]
    %v254 = vld [vmem:[#allocation3 + $0x340] sm:$0xf]
    %v255 = vld [vmem:[#allocation3 + $0x344] sm:$0xf]
    %v256 = vld [vmem:[#allocation3 + $0x348] sm:$0xf]
    %v257 = vld [vmem:[#allocation3 + $0x34c] sm:$0xf]
    %v258 = vld [vmem:[#allocation3 + $0x350] sm:$0xf]
    %v259 = vld [vmem:[#allocation3 + $0x354] sm:$0xf]
    %v260 = vld [vmem:[#allocation3 + $0x358] sm:$0xf]
    %v261 = vld [vmem:[#allocation3 + $0x35c] sm:$0xf]
    %v262 = vld [vmem:[#allocation3 + $0x360] sm:$0xf]
    %v263 = vld [vmem:[#allocation3 + $0x364] sm:$0xf]
    %v264 = vld [vmem:[#allocation3 + $0x368] sm:$0xf]
    %v265 = vld [vmem:[#allocation3 + $0x36c] sm:$0xf]
    %v266 = vld [vmem:[#allocation3 + $0x370] sm:$0xf]
    %v267 = vld [vmem:[#allocation3 + $0x374] sm:$0xf]
    %v268 = vld [vmem:[#allocation3 + $0x378] sm:$0xf]
    %v269 = vld [vmem:[#allocation3 + $0x37c] sm:$0xf]
    %v270 = vld [vmem:[#allocation3 + $0x380] sm:$0xf]
    %v271 = vld [vmem:[#allocation3 + $0x384] sm:$0xf]
    %v272 = vld [vmem:[#allocation3 + $0x388] sm:$0xf]
    %v273 = vld [vmem:[#allocation3 + $0x38c] sm:$0xf]
    %v274 = vld [vmem:[#allocation3 + $0x390] sm:$0xf]
    %v275 = vld [vmem:[#allocation3 + $0x394] sm:$0xf]
    %v276 = vld [vmem:[#allocation3 + $0x398] sm:$0xf]
    %v277 = vld [vmem:[#allocation3 + $0x39c] sm:$0xf]
    %v278 = vld [vmem:[#allocation3 + $0x3a0] sm:$0xf]
    %v279 = vld [vmem:[#allocation3 + $0x3a4] sm:$0xf]
    %v280 = vld [vmem:[#allocation3 + $0x3a8] sm:$0xf]
    %v281 = vld [vmem:[#allocation3 + $0x3ac] sm:$0xf]
    %v282 = vld [vmem:[#allocation3 + $0x3b0] sm:$0xf]
    %v283 = vld [vmem:[#allocation3 + $0x3b4] sm:$0xf]
    %v284 = vld [vmem:[#allocation3 + $0x3b8] sm:$0xf]
    %v285 = vld [vmem:[#allocation3 + $0x3bc] sm:$0xf]
    %v286 = vld [vmem:[#allocation3 + $0x3c0] sm:$0xf]
    %v287 = vld [vmem:[#allocation3 + $0x3c4] sm:$0xf]
    %v288 = vld [vmem:[#allocation3 + $0x3c8] sm:$0xf]
    %v289 = vld [vmem:[#allocation3 + $0x3cc] sm:$0xf]
    %v290 = vld [vmem:[#allocation3 + $0x3d0] sm:$0xf]
    %v291 = vld [vmem:[#allocation3 + $0x3d4] sm:$0xf]
    %v292 = vld [vmem:[#allocation3 + $0x3d8] sm:$0xf]
    %v293 = vld [vmem:[#allocation3 + $0x3dc] sm:$0xf]
    %v294 = vld [vmem:[#allocation3 + $0x3e0] sm:$0xf]
    %v295 = vld [vmem:[#allocation3 + $0x3e4] sm:$0xf]
    %v296 = vld [vmem:[#allocation3 + $0x3e8] sm:$0xf]
    %v297 = vld [vmem:[#allocation3 + $0x3ec] sm:$0xf]
    %v298 = vld [vmem:[#allocation3 + $0x3f0] sm:$0xf]
    %v299 = vld [vmem:[#allocation3 + $0x3f4] sm:$0xf]
    %v300 = vld [vmem:[#allocation3 + $0x3f8] sm:$0xf]
    %v301 = vld [vmem:[#allocation3 + $0x3fc] sm:$0xf]
    %v302 = vld [vmem:[#allocation3 + $0x400] sm:$0xf]
    %v303 = vld [vmem:[#allocation3 + $0x404] sm:$0xf]
    %v304 = vld [vmem:[#allocation3 + $0x408] sm:$0xf]
    %v305 = vld [vmem:[#allocation3 + $0x40c] sm:$0xf]
    %v306 = vld [vmem:[#allocation3 + $0x410] sm:$0xf]
    %v307 = vld [vmem:[#allocation3 + $0x414] sm:$0xf]
    %v308 = vld [vmem:[#allocation3 + $0x418] sm:$0xf]
    %v309 = vld [vmem:[#allocation3 + $0x41c] sm:$0xf]
    %v310 = vld [vmem:[#allocation3 + $0x420] sm:$0xf]
    %v311 = vld [vmem:[#allocation3 + $0x424] sm:$0xf]
    %v312 = vld [vmem:[#allocation3 + $0x428] sm:$0xf]
    %v313 = vld [vmem:[#allocation3 + $0x42c] sm:$0xf]
    %v314 = vld [vmem:[#allocation3 + $0x430] sm:$0xf]
    %v315 = vld [vmem:[#allocation3 + $0x434] sm:$0xf]
    %v316 = vld [vmem:[#allocation3 + $0x438] sm:$0xf]
    %v317 = vld [vmem:[#allocation3 + $0x43c] sm:$0xf]
    %v318 = vld [vmem:[#allocation3 + $0x440] sm:$0xf]
    %v319 = vld [vmem:[#allocation3 + $0x444] sm:$0xf]
    %v320 = vld [vmem:[#allocation3 + $0x448] sm:$0xf]
    %v321 = vld [vmem:[#allocation3 + $0x44c] sm:$0xf]
    %v322 = vld [vmem:[#allocation3 + $0x450] sm:$0xf]
    %v323 = vld [vmem:[#allocation3 + $0x454] sm:$0xf]
    %v324 = vld [vmem:[#allocation3 + $0x458] sm:$0xf]
    %v325 = vld [vmem:[#allocation3 + $0x45c] sm:$0xf]
    %v326 = vld [vmem:[#allocation3 + $0x460] sm:$0xf]
    %v327 = vld [vmem:[#allocation3 + $0x464] sm:$0xf]
    %v328 = vld [vmem:[#allocation3 + $0x468] sm:$0xf]
    %v329 = vld [vmem:[#allocation3 + $0x46c] sm:$0xf]
    %v330 = vld [vmem:[#allocation3 + $0x470] sm:$0xf]
    %v331 = vld [vmem:[#allocation3 + $0x474] sm:$0xf]
    %v332 = vld [vmem:[#allocation3 + $0x478] sm:$0xf]
    %v333 = vld [vmem:[#allocation3 + $0x47c] sm:$0xf]
    %v334 = vld [vmem:[#allocation3 + $0x480] sm:$0xf]
    %v335 = vld [vmem:[#allocation3 + $0x484] sm:$0xf]
    %v336 = vld [vmem:[#allocation3 + $0x488] sm:$0xf]
    %v337 = vld [vmem:[#allocation3 + $0x48c] sm:$0xf]
    %v338 = vld [vmem:[#allocation3 + $0x490] sm:$0xf]
    %v339 = vld [vmem:[#allocation3 + $0x494] sm:$0xf]
    %v340 = vld [vmem:[#allocation3 + $0x498] sm:$0xf]
    %v341 = vld [vmem:[#allocation3 + $0x49c] sm:$0xf]
    %v342 = vld [vmem:[#allocation3 + $0x4a0] sm:$0xf]
    %v343 = vld [vmem:[#allocation3 + $0x4a4] sm:$0xf]
    %v344 = vld [vmem:[#allocation3 + $0x4a8] sm:$0xf]
    %v345 = vld [vmem:[#allocation3 + $0x4ac] sm:$0xf]
    %v346 = vld [vmem:[#allocation3 + $0x4b0] sm:$0xf]
    %v347 = vld [vmem:[#allocation3 + $0x4b4] sm:$0xf]
    %v348 = vld [vmem:[#allocation3 + $0x4b8] sm:$0xf]
    %v349 = vld [vmem:[#allocation3 + $0x4bc] sm:$0xf]
    %v350 = vld [vmem:[#allocation3 + $0x4c0] sm:$0xf]
    %v351 = vld [vmem:[#allocation3 + $0x4c4] sm:$0xf]
    %v352 = vld [vmem:[#allocation3 + $0x4c8] sm:$0xf]
    %v353 = vld [vmem:[#allocation3 + $0x4cc] sm:$0xf]
    %v354 = vld [vmem:[#allocation3 + $0x4d0] sm:$0xf]
    %v355 = vld [vmem:[#allocation3 + $0x4d4] sm:$0xf]
    %v356 = vld [vmem:[#allocation3 + $0x4d8] sm:$0xf]
    %v357 = vld [vmem:[#allocation3 + $0x4dc] sm:$0xf]
    %v358 = vld [vmem:[#allocation3 + $0x4e0] sm:$0xf]
    %v359 = vld [vmem:[#allocation3 + $0x4e4] sm:$0xf]
    %v360 = vld [vmem:[#allocation3 + $0x4e8] sm:$0xf]
    %v361 = vld [vmem:[#allocation3 + $0x4ec] sm:$0xf]
    %v362 = vld [vmem:[#allocation3 + $0x4f0] sm:$0xf]
    %v363 = vld [vmem:[#allocation3 + $0x4f4] sm:$0xf]
    %v364 = vld [vmem:[#allocation3 + $0x4f8] sm:$0xf]
    %v365 = vld [vmem:[#allocation3 + $0x4fc] sm:$0xf]
    %v366 = vld [vmem:[#allocation3 + $0x500] sm:$0xf]
    %v367 = vld [vmem:[#allocation3 + $0x504] sm:$0xf]
    %v368 = vld [vmem:[#allocation3 + $0x508] sm:$0xf]
    %v369 = vld [vmem:[#allocation3 + $0x50c] sm:$0xf]
    %v370 = vld [vmem:[#allocation3 + $0x510] sm:$0xf]
    %v371 = vld [vmem:[#allocation3 + $0x514] sm:$0xf]
    %v372 = vld [vmem:[#allocation3 + $0x518] sm:$0xf]
    %v373 = vld [vmem:[#allocation3 + $0x51c] sm:$0xf]
    %v374 = vld [vmem:[#allocation3 + $0x520] sm:$0xf]
    %v375 = vld [vmem:[#allocation3 + $0x524] sm:$0xf]
    %v376 = vld [vmem:[#allocation3 + $0x528] sm:$0xf]
    %v377 = vld [vmem:[#allocation3 + $0x52c] sm:$0xf]
    %v378 = vld [vmem:[#allocation3 + $0x530] sm:$0xf]
    %v379 = vld [vmem:[#allocation3 + $0x534] sm:$0xf]
    %v380 = vld [vmem:[#allocation3 + $0x538] sm:$0xf]
    %v381 = vld [vmem:[#allocation3 + $0x53c] sm:$0xf]
    %v382 = vld [vmem:[#allocation3 + $0x540] sm:$0xf]
    %v383 = vld [vmem:[#allocation3 + $0x544] sm:$0xf]
    %v384 = vld [vmem:[#allocation3 + $0x548] sm:$0xf]
    %v385 = vld [vmem:[#allocation3 + $0x54c] sm:$0xf]
    %v386 = vld [vmem:[#allocation3 + $0x550] sm:$0xf]
    %v387 = vld [vmem:[#allocation3 + $0x554] sm:$0xf]
    %v388 = vld [vmem:[#allocation3 + $0x558] sm:$0xf]
    %v389 = vld [vmem:[#allocation3 + $0x55c] sm:$0xf]
    %v390 = vld [vmem:[#allocation3 + $0x560] sm:$0xf]
    %v391 = vld [vmem:[#allocation3 + $0x564] sm:$0xf]
    %v392 = vld [vmem:[#allocation3 + $0x568] sm:$0xf]
    %v393 = vld [vmem:[#allocation3 + $0x56c] sm:$0xf]
    %v394 = vld [vmem:[#allocation3 + $0x570] sm:$0xf]
    %v395 = vld [vmem:[#allocation3 + $0x574] sm:$0xf]
    %v396 = vld [vmem:[#allocation3 + $0x578] sm:$0xf]
    %v397 = vld [vmem:[#allocation3 + $0x57c] sm:$0xf]
    %v398 = vld [vmem:[#allocation3 + $0x580] sm:$0xf]
    %v399 = vld [vmem:[#allocation3 + $0x584] sm:$0xf]
    %v400 = vld [vmem:[#allocation3 + $0x588] sm:$0xf]
    %v401 = vld [vmem:[#allocation3 + $0x58c] sm:$0xf]
    %v402 = vld [vmem:[#allocation3 + $0x590] sm:$0xf]
    %v403 = vld [vmem:[#allocation3 + $0x594] sm:$0xf]
    %v404 = vld [vmem:[#allocation3 + $0x598] sm:$0xf]
    %v405 = vld [vmem:[#allocation3 + $0x59c] sm:$0xf]
    %v406 = vld [vmem:[#allocation3 + $0x5a0] sm:$0xf]
    %v407 = vld [vmem:[#allocation3 + $0x5a4] sm:$0xf]
    %v408 = vld [vmem:[#allocation3 + $0x5a8] sm:$0xf]
    %v409 = vld [vmem:[#allocation3 + $0x5ac] sm:$0xf]
    %v410 = vld [vmem:[#allocation3 + $0x5b0] sm:$0xf]
    %v411 = vld [vmem:[#allocation3 + $0x5b4] sm:$0xf]
    %v412 = vld [vmem:[#allocation3 + $0x5b8] sm:$0xf]
    %v413 = vld [vmem:[#allocation3 + $0x5bc] sm:$0xf]
    %v414 = vld [vmem:[#allocation3 + $0x5c0] sm:$0xf]
    %v415 = vld [vmem:[#allocation3 + $0x5c4] sm:$0xf]
    %v416 = vld [vmem:[#allocation3 + $0x5c8] sm:$0xf]
    %v417 = vld [vmem:[#allocation3 + $0x5cc] sm:$0xf]
    %v418 = vld [vmem:[#allocation3 + $0x5d0] sm:$0xf]
    %v419 = vld [vmem:[#allocation3 + $0x5d4] sm:$0xf]
    %v420 = vld [vmem:[#allocation3 + $0x5d8] sm:$0xf]
    %v421 = vld [vmem:[#allocation3 + $0x5dc] sm:$0xf]
    %v422 = vld [vmem:[#allocation3 + $0x5e0] sm:$0xf]
    %v423 = vld [vmem:[#allocation3 + $0x5e4] sm:$0xf]
    %v424 = vld [vmem:[#allocation3 + $0x5e8] sm:$0xf]
    %v425 = vld [vmem:[#allocation3 + $0x5ec] sm:$0xf]
    %v426 = vld [vmem:[#allocation3 + $0x5f0] sm:$0xf]
    %v427 = vld [vmem:[#allocation3 + $0x5f4] sm:$0xf]
    %v428 = vld [vmem:[#allocation3 + $0x5f8] sm:$0xf]
    %v429 = vld [vmem:[#allocation3 + $0x5fc] sm:$0xf]
    %v430 = vld [vmem:[#allocation3 + $0x600] sm:$0xf]
    %v431 = vld [vmem:[#allocation3 + $0x604] sm:$0xf]
    %v432 = vld [vmem:[#allocation3 + $0x608] sm:$0xf]
    %v433 = vld [vmem:[#allocation3 + $0x60c] sm:$0xf]
    %v434 = vld [vmem:[#allocation3 + $0x610] sm:$0xf]
    %v435 = vld [vmem:[#allocation3 + $0x614] sm:$0xf]
    %v436 = vld [vmem:[#allocation3 + $0x618] sm:$0xf]
    %v437 = vld [vmem:[#allocation3 + $0x61c] sm:$0xf]
    %v438 = vld [vmem:[#allocation3 + $0x620] sm:$0xf]
    %v439 = vld [vmem:[#allocation3 + $0x624] sm:$0xf]
    %v440 = vld [vmem:[#allocation3 + $0x628] sm:$0xf]
    %v441 = vld [vmem:[#allocation3 + $0x62c] sm:$0xf]
    %v442 = vld [vmem:[#allocation3 + $0x630] sm:$0xf]
    %v443 = vld [vmem:[#allocation3 + $0x634] sm:$0xf]
    %v444 = vld [vmem:[#allocation3 + $0x638] sm:$0xf]
    %v445 = vld [vmem:[#allocation3 + $0x63c] sm:$0xf]
    %v446 = vld [vmem:[#allocation3 + $0x640] sm:$0xf]
    %v447 = vld [vmem:[#allocation3 + $0x644] sm:$0xf]
    %v448 = vld [vmem:[#allocation3 + $0x648] sm:$0xf]
    %v449 = vld [vmem:[#allocation3 + $0x64c] sm:$0xf]
    %v450 = vld [vmem:[#allocation3 + $0x650] sm:$0xf]
    %v451 = vld [vmem:[#allocation3 + $0x654] sm:$0xf]
    %v452 = vld [vmem:[#allocation3 + $0x658] sm:$0xf]
    %v453 = vld [vmem:[#allocation3 + $0x65c] sm:$0xf]
    %v454 = vld [vmem:[#allocation3 + $0x660] sm:$0xf]
    %v455 = vld [vmem:[#allocation3 + $0x664] sm:$0xf]
    %v456 = vld [vmem:[#allocation3 + $0x668] sm:$0xf]
    %v457 = vld [vmem:[#allocation3 + $0x66c] sm:$0xf]
    %v458 = vld [vmem:[#allocation3 + $0x670] sm:$0xf]
    %v459 = vld [vmem:[#allocation3 + $0x674] sm:$0xf]
    %v460 = vld [vmem:[#allocation3 + $0x678] sm:$0xf]
    %v461 = vld [vmem:[#allocation3 + $0x67c] sm:$0xf]
    %v462 = vld [vmem:[#allocation3 + $0x680] sm:$0xf]
    %v463 = vld [vmem:[#allocation3 + $0x684] sm:$0xf]
    %v464 = vld [vmem:[#allocation3 + $0x688] sm:$0xf]
    %v465 = vld [vmem:[#allocation3 + $0x68c] sm:$0xf]
    %v466 = vld [vmem:[#allocation3 + $0x690] sm:$0xf]
    %v467 = vld [vmem:[#allocation3 + $0x694] sm:$0xf]
    %v468 = vld [vmem:[#allocation3 + $0x698] sm:$0xf]
    %v469 = vld [vmem:[#allocation3 + $0x69c] sm:$0xf]
    %v470 = vld [vmem:[#allocation3 + $0x6a0] sm:$0xf]
    %v471 = vld [vmem:[#allocation3 + $0x6a4] sm:$0xf]
    %v472 = vld [vmem:[#allocation3 + $0x6a8] sm:$0xf]
    %v473 = vld [vmem:[#allocation3 + $0x6ac] sm:$0xf]
    %v474 = vld [vmem:[#allocation3 + $0x6b0] sm:$0xf]
    %v475 = vld [vmem:[#allocation3 + $0x6b4] sm:$0xf]
    %v476 = vld [vmem:[#allocation3 + $0x6b8] sm:$0xf]
    %v477 = vld [vmem:[#allocation3 + $0x6bc] sm:$0xf]
    %v478 = vld [vmem:[#allocation3 + $0x6c0] sm:$0xf]
    %v479 = vld [vmem:[#allocation3 + $0x6c4] sm:$0xf]
    %v480 = vld [vmem:[#allocation3 + $0x6c8] sm:$0xf]
    %v481 = vld [vmem:[#allocation3 + $0x6cc] sm:$0xf]
    %v482 = vld [vmem:[#allocation3 + $0x6d0] sm:$0xf]
    %v483 = vld [vmem:[#allocation3 + $0x6d4] sm:$0xf]
    %v484 = vld [vmem:[#allocation3 + $0x6d8] sm:$0xf]
    %v485 = vld [vmem:[#allocation3 + $0x6dc] sm:$0xf]
    %v486 = vld [vmem:[#allocation3 + $0x6e0] sm:$0xf]
    %v487 = vld [vmem:[#allocation3 + $0x6e4] sm:$0xf]
    %v488 = vld [vmem:[#allocation3 + $0x6e8] sm:$0xf]
    %v489 = vld [vmem:[#allocation3 + $0x6ec] sm:$0xf]
    %v490 = vld [vmem:[#allocation3 + $0x6f0] sm:$0xf]
    %v491 = vld [vmem:[#allocation3 + $0x6f4] sm:$0xf]
    %v492 = vld [vmem:[#allocation3 + $0x6f8] sm:$0xf]
    %v493 = vld [vmem:[#allocation3 + $0x6fc] sm:$0xf]
    %v494 = vld [vmem:[#allocation3 + $0x700] sm:$0xf]
    %v495 = vld [vmem:[#allocation3 + $0x704] sm:$0xf]
    %v496 = vld [vmem:[#allocation3 + $0x708] sm:$0xf]
    %v497 = vld [vmem:[#allocation3 + $0x70c] sm:$0xf]
    %v498 = vld [vmem:[#allocation3 + $0x710] sm:$0xf]
    %v499 = vld [vmem:[#allocation3 + $0x714] sm:$0xf]
    %v500 = vld [vmem:[#allocation3 + $0x718] sm:$0xf]
    %v501 = vld [vmem:[#allocation3 + $0x71c] sm:$0xf]
    %v502 = vld [vmem:[#allocation3 + $0x720] sm:$0xf]
    %v503 = vld [vmem:[#allocation3 + $0x724] sm:$0xf]
    %v504 = vld [vmem:[#allocation3 + $0x728] sm:$0xf]
    %v505 = vld [vmem:[#allocation3 + $0x72c] sm:$0xf]
    %v506 = vld [vmem:[#allocation3 + $0x730] sm:$0xf]
    %v507 = vld [vmem:[#allocation3 + $0x734] sm:$0xf]
    %v508 = vld [vmem:[#allocation3 + $0x738] sm:$0xf]
    %v509 = vld [vmem:[#allocation3 + $0x73c] sm:$0xf]
    %v510 = vld [vmem:[#allocation3 + $0x740] sm:$0xf]
    %v511 = vld [vmem:[#allocation3 + $0x744] sm:$0xf]
    %v512 = vld [vmem:[#allocation3 + $0x748] sm:$0xf]
    %v513 = vld [vmem:[#allocation3 + $0x74c] sm:$0xf]
    %v514 = vld [vmem:[#allocation3 + $0x750] sm:$0xf]
    %v515 = vld [vmem:[#allocation3 + $0x754] sm:$0xf]
    %v516 = vld [vmem:[#allocation3 + $0x758] sm:$0xf]
    %v517 = vld [vmem:[#allocation3 + $0x75c] sm:$0xf]
    %v518 = vld [vmem:[#allocation3 + $0x760] sm:$0xf]
    %v519 = vld [vmem:[#allocation3 + $0x764] sm:$0xf]
    %v520 = vld [vmem:[#allocation3 + $0x768] sm:$0xf]
    %v521 = vld [vmem:[#allocation3 + $0x76c] sm:$0xf]
    %v522 = vld [vmem:[#allocation3 + $0x770] sm:$0xf]
    %v523 = vld [vmem:[#allocation3 + $0x774] sm:$0xf]
    %v524 = vld [vmem:[#allocation3 + $0x778] sm:$0xf]
    %v525 = vld [vmem:[#allocation3 + $0x77c] sm:$0xf]
    %v526 = vld [vmem:[#allocation3 + $0x780] sm:$0xf]
    %v527 = vld [vmem:[#allocation3 + $0x784] sm:$0xf]
    %v528 = vld [vmem:[#allocation3 + $0x788] sm:$0xf]
    %v529 = vld [vmem:[#allocation3 + $0x78c] sm:$0xf]
    %v530 = vld [vmem:[#allocation3 + $0x790] sm:$0xf]
    %v531 = vld [vmem:[#allocation3 + $0x794] sm:$0xf]
    %v532 = vld [vmem:[#allocation3 + $0x798] sm:$0xf]
    %v533 = vld [vmem:[#allocation3 + $0x79c] sm:$0xf]
    %v534 = vld [vmem:[#allocation3 + $0x7a0] sm:$0xf]
    %v535 = vld [vmem:[#allocation3 + $0x7a4] sm:$0xf]
    %v536 = vld [vmem:[#allocation3 + $0x7a8] sm:$0xf]
    %v537 = vld [vmem:[#allocation3 + $0x7ac] sm:$0xf]
    %v538 = vld [vmem:[#allocation3 + $0x7b0] sm:$0xf]
    %v539 = vld [vmem:[#allocation3 + $0x7b4] sm:$0xf]
    %v540 = vld [vmem:[#allocation3 + $0x7b8] sm:$0xf]
    %v541 = vld [vmem:[#allocation3 + $0x7bc] sm:$0xf]
    %v542 = vld [vmem:[#allocation3 + $0x7c0] sm:$0xf]
    %v543 = vld [vmem:[#allocation3 + $0x7c4] sm:$0xf]
    %v544 = vld [vmem:[#allocation3 + $0x7c8] sm:$0xf]
    %v545 = vld [vmem:[#allocation3 + $0x7cc] sm:$0xf]
    %v546 = vld [vmem:[#allocation3 + $0x7d0] sm:$0xf]
    %v547 = vld [vmem:[#allocation3 + $0x7d4] sm:$0xf]
    %v548 = vld [vmem:[#allocation3 + $0x7d8] sm:$0xf]
    %v549 = vld [vmem:[#allocation3 + $0x7dc] sm:$0xf]
    %v550 = vld [vmem:[#allocation3 + $0x7e0] sm:$0xf]
    %v551 = vld [vmem:[#allocation3 + $0x7e4] sm:$0xf]
    %v552 = vld [vmem:[#allocation3 + $0x7e8] sm:$0xf]
    %v553 = vld [vmem:[#allocation3 + $0x7ec] sm:$0xf]
    %v554 = vld [vmem:[#allocation3 + $0x7f0] sm:$0xf]
    %v555 = vld [vmem:[#allocation3 + $0x7f4] sm:$0xf]
    %v556 = vld [vmem:[#allocation3 + $0x7f8] sm:$0xf]
    %v557 = vld [vmem:[#allocation3 + $0x7fc] sm:$0xf]
    %v558 = vld [vmem:[#allocation2] sm:$0xf]
    %v559 = vld [vmem:[%s0] sm:$0xff]
    %v560 = vld [vmem:[%s0 + $0x8] sm:$0xff]
    %v561 = vld [vmem:[%s0 + $0x10] sm:$0xff]
    %v562 = vld [vmem:[%s0 + $0x18] sm:$0xff]
    %v563 = vld [vmem:[%s0 + $0x20] sm:$0xff]
    %v564 = vld [vmem:[%s0 + $0x28] sm:$0xff]
    %v565 = vld [vmem:[%s0 + $0x30] sm:$0xff]
    %v566 = vld [vmem:[%s0 + $0x38] sm:$0xff]
    %v575 = vcombine.high %v559, %v559
    %v577 = vunpack.c.l.s4 1983009808
    %v578 = vunpack.c.0.s8 %v577
    %v579 = vlaneseq
    %v580 = vshrl.u32 %v579, 7
    %v581 = vsub.s32 %v578, %v580
    %v582 = vrot.slane %v559, %v581
    %v584 = vunpack.c.l.s4 1983009808
    %v585 = vunpack.c.0.s8 %v584
    %v586 = vlaneseq
    %v587 = vshrl.u32 %v586, 7
    %v588 = vsub.s32 %v585, %v587
    %v589 = vrot.slane %v575, %v588
    %v590 = vcombine.high %v582, %v582
    %v591 = vcombine.high %v589, %v589
    %v592 = vcombine.high %v560, %v560
    %v594 = vunpack.c.l.s4 1983009808
    %v595 = vunpack.c.0.s8 %v594
    %v596 = vlaneseq
    %v597 = vshrl.u32 %v596, 7
    %v598 = vsub.s32 %v595, %v597
    %v599 = vrot.slane %v560, %v598
    %v601 = vunpack.c.l.s4 1983009808
    %v602 = vunpack.c.0.s8 %v601
    %v603 = vlaneseq
    %v604 = vshrl.u32 %v603, 7
    %v605 = vsub.s32 %v602, %v604
    %v606 = vrot.slane %v592, %v605
    %v607 = vcombine.high %v599, %v599
    %v608 = vcombine.high %v606, %v606
    %v609 = vcombine.high %v561, %v561
    %v611 = vunpack.c.l.s4 1983009808
    %v612 = vunpack.c.0.s8 %v611
    %v613 = vlaneseq
    %v614 = vshrl.u32 %v613, 7
    %v615 = vsub.s32 %v612, %v614
    %v616 = vrot.slane %v561, %v615
    %v618 = vunpack.c.l.s4 1983009808
    %v619 = vunpack.c.0.s8 %v618
    %v620 = vlaneseq
    %v621 = vshrl.u32 %v620, 7
    %v622 = vsub.s32 %v619, %v621
    %v623 = vrot.slane %v609, %v622
    %v624 = vcombine.high %v616, %v616
    %v625 = vcombine.high %v623, %v623
    %v626 = vcombine.high %v562, %v562
    %v628 = vunpack.c.l.s4 1983009808
    %v629 = vunpack.c.0.s8 %v628
    %v630 = vlaneseq
    %v631 = vshrl.u32 %v630, 7
    %v632 = vsub.s32 %v629, %v631
    %v633 = vrot.slane %v562, %v632
    %v635 = vunpack.c.l.s4 1983009808
    %v636 = vunpack.c.0.s8 %v635
    %v637 = vlaneseq
    %v638 = vshrl.u32 %v637, 7
    %v639 = vsub.s32 %v636, %v638
    %v640 = vrot.slane %v626, %v639
    %v641 = vcombine.high %v633, %v633
    %v642 = vcombine.high %v640, %v640
    %v643 = vcombine.high %v563, %v563
    %v645 = vunpack.c.l.s4 1983009808
    %v646 = vunpack.c.0.s8 %v645
    %v647 = vlaneseq
    %v648 = vshrl.u32 %v647, 7
    %v649 = vsub.s32 %v646, %v648
    %v650 = vrot.slane %v563, %v649
    %v652 = vunpack.c.l.s4 1983009808
    %v653 = vunpack.c.0.s8 %v652
    %v654 = vlaneseq
    %v655 = vshrl.u32 %v654, 7
    %v656 = vsub.s32 %v653, %v655
    %v657 = vrot.slane %v643, %v656
    %v658 = vcombine.high %v650, %v650
    %v659 = vcombine.high %v657, %v657
    %v660 = vcombine.high %v564, %v564
    %v662 = vunpack.c.l.s4 1983009808
    %v663 = vunpack.c.0.s8 %v662
    %v664 = vlaneseq
    %v665 = vshrl.u32 %v664, 7
    %v666 = vsub.s32 %v663, %v665
    %v667 = vrot.slane %v564, %v666
    %v669 = vunpack.c.l.s4 1983009808
    %v670 = vunpack.c.0.s8 %v669
    %v671 = vlaneseq
    %v672 = vshrl.u32 %v671, 7
    %v673 = vsub.s32 %v670, %v672
    %v674 = vrot.slane %v660, %v673
    %v675 = vcombine.high %v667, %v667
    %v676 = vcombine.high %v674, %v674
    %v677 = vcombine.high %v565, %v565
    %v679 = vunpack.c.l.s4 1983009808
    %v680 = vunpack.c.0.s8 %v679
    %v681 = vlaneseq
    %v682 = vshrl.u32 %v681, 7
    %v683 = vsub.s32 %v680, %v682
    %v684 = vrot.slane %v565, %v683
    %v686 = vunpack.c.l.s4 1983009808
    %v687 = vunpack.c.0.s8 %v686
    %v688 = vlaneseq
    %v689 = vshrl.u32 %v688, 7
    %v690 = vsub.s32 %v687, %v689
    %v691 = vrot.slane %v677, %v690
    %v692 = vcombine.high %v684, %v684
    %v693 = vcombine.high %v691, %v691
    %v694 = vcombine.high %v566, %v566
    %v696 = vunpack.c.l.s4 1983009808
    %v697 = vunpack.c.0.s8 %v696
    %v698 = vlaneseq
    %v699 = vshrl.u32 %v698, 7
    %v700 = vsub.s32 %v697, %v699
    %v701 = vrot.slane %v566, %v700
    %v703 = vunpack.c.l.s4 1983009808
    %v704 = vunpack.c.0.s8 %v703
    %v705 = vlaneseq
    %v706 = vshrl.u32 %v705, 7
    %v707 = vsub.s32 %v704, %v706
    %v708 = vrot.slane %v694, %v707
    %v709 = vcombine.high %v701, %v701
    %v710 = vcombine.high %v708, %v708
    %v1255 = vunpack.c.l.b16 %v46
    %v1256 = vunpack.c.l.b16 %v47
    %v1257 = vunpack.c.l.b16 %v48
    %v1258 = vunpack.c.l.b16 %v49
    %v1259 = vunpack.c.l.b16 %v50
    %v1260 = vunpack.c.l.b16 %v51
    %v1261 = vunpack.c.l.b16 %v52
    %v1262 = vunpack.c.l.b16 %v53
    %v1263 = vunpack.c.l.b16 %v54
    %v1264 = vunpack.c.l.b16 %v55
    %v1265 = vunpack.c.l.b16 %v56
    %v1266 = vunpack.c.l.b16 %v57
    %v1267 = vunpack.c.l.b16 %v58
    %v1268 = vunpack.c.l.b16 %v59
    %v1269 = vunpack.c.l.b16 %v60
    %v1270 = vunpack.c.l.b16 %v61
    %v1271 = vunpack.c.l.b16 %v62
    %v1272 = vunpack.c.l.b16 %v63
    %v1273 = vunpack.c.l.b16 %v64
    %v1274 = vunpack.c.l.b16 %v65
    %v1275 = vunpack.c.l.b16 %v66
    %v1276 = vunpack.c.l.b16 %v67
    %v1277 = vunpack.c.l.b16 %v68
    %v1278 = vunpack.c.l.b16 %v69
    %v1279 = vunpack.c.l.b16 %v70
    %v1280 = vunpack.c.l.b16 %v71
    %v1281 = vunpack.c.l.b16 %v72
    %v1282 = vunpack.c.l.b16 %v73
    %v1283 = vunpack.c.l.b16 %v74
    %v1284 = vunpack.c.l.b16 %v75
    %v1285 = vunpack.c.l.b16 %v76
    %v1286 = vunpack.c.l.b16 %v77
    %v1287 = vunpack.c.l.b16 %v78
    %v1288 = vunpack.c.l.b16 %v79
    %v1289 = vunpack.c.l.b16 %v80
    %v1290 = vunpack.c.l.b16 %v81
    %v1291 = vunpack.c.l.b16 %v82
    %v1292 = vunpack.c.l.b16 %v83
    %v1293 = vunpack.c.l.b16 %v84
    %v1294 = vunpack.c.l.b16 %v85
    %v1295 = vunpack.c.l.b16 %v86
    %v1296 = vunpack.c.l.b16 %v87
    %v1297 = vunpack.c.l.b16 %v88
    %v1298 = vunpack.c.l.b16 %v89
    %v1299 = vunpack.c.l.b16 %v90
    %v1300 = vunpack.c.l.b16 %v91
    %v1301 = vunpack.c.l.b16 %v92
    %v1302 = vunpack.c.l.b16 %v93
    %v1303 = vunpack.c.l.b16 %v94
    %v1304 = vunpack.c.l.b16 %v95
    %v1305 = vunpack.c.l.b16 %v96
    %v1306 = vunpack.c.l.b16 %v97
    %v1307 = vunpack.c.l.b16 %v98
    %v1308 = vunpack.c.l.b16 %v99
    %v1309 = vunpack.c.l.b16 %v100
    %v1310 = vunpack.c.l.b16 %v101
    %v1311 = vunpack.c.l.b16 %v102
    %v1312 = vunpack.c.l.b16 %v103
    %v1313 = vunpack.c.l.b16 %v104
    %v1314 = vunpack.c.l.b16 %v105
    %v1315 = vunpack.c.l.b16 %v106
    %v1316 = vunpack.c.l.b16 %v107
    %v1317 = vunpack.c.l.b16 %v108
    %v1318 = vunpack.c.l.b16 %v109
    %v1319 = vunpack.c.l.b16 %v110
    %v1320 = vunpack.c.l.b16 %v111
    %v1321 = vunpack.c.l.b16 %v112
    %v1322 = vunpack.c.l.b16 %v113
    %v1323 = vunpack.c.l.b16 %v114
    %v1324 = vunpack.c.l.b16 %v115
    %v1325 = vunpack.c.l.b16 %v116
    %v1326 = vunpack.c.l.b16 %v117
    %v1327 = vunpack.c.l.b16 %v118
    %v1328 = vunpack.c.l.b16 %v119
    %v1329 = vunpack.c.l.b16 %v120
    %v1330 = vunpack.c.l.b16 %v121
    %v1331 = vunpack.c.l.b16 %v122
    %v1332 = vunpack.c.l.b16 %v123
    %v1333 = vunpack.c.l.b16 %v124
    %v1334 = vunpack.c.l.b16 %v125
    %v1335 = vunpack.c.l.b16 %v126
    %v1336 = vunpack.c.l.b16 %v127
    %v1337 = vunpack.c.l.b16 %v128
    %v1338 = vunpack.c.l.b16 %v129
    %v1339 = vunpack.c.l.b16 %v130
    %v1340 = vunpack.c.l.b16 %v131
    %v1341 = vunpack.c.l.b16 %v132
    %v1342 = vunpack.c.l.b16 %v133
    %v1343 = vunpack.c.l.b16 %v134
    %v1344 = vunpack.c.l.b16 %v135
    %v1345 = vunpack.c.l.b16 %v136
    %v1346 = vunpack.c.l.b16 %v137
    %v1347 = vunpack.c.l.b16 %v138
    %v1348 = vunpack.c.l.b16 %v139
    %v1349 = vunpack.c.l.b16 %v140
    %v1350 = vunpack.c.l.b16 %v141
    %v1351 = vunpack.c.l.b16 %v142
    %v1352 = vunpack.c.l.b16 %v143
    %v1353 = vunpack.c.l.b16 %v144
    %v1354 = vunpack.c.l.b16 %v145
    %v1355 = vunpack.c.l.b16 %v146
    %v1356 = vunpack.c.l.b16 %v147
    %v1357 = vunpack.c.l.b16 %v148
    %v1358 = vunpack.c.l.b16 %v149
    %v1359 = vunpack.c.l.b16 %v150
    %v1360 = vunpack.c.l.b16 %v151
    %v1361 = vunpack.c.l.b16 %v152
    %v1362 = vunpack.c.l.b16 %v153
    %v1363 = vunpack.c.l.b16 %v154
    %v1364 = vunpack.c.l.b16 %v155
    %v1365 = vunpack.c.l.b16 %v156
    %v1366 = vunpack.c.l.b16 %v157
    %v1367 = vunpack.c.l.b16 %v158
    %v1368 = vunpack.c.l.b16 %v159
    %v1369 = vunpack.c.l.b16 %v160
    %v1370 = vunpack.c.l.b16 %v161
    %v1371 = vunpack.c.l.b16 %v162
    %v1372 = vunpack.c.l.b16 %v163
    %v1373 = vunpack.c.l.b16 %v164
    %v1374 = vunpack.c.l.b16 %v165
    %v1375 = vunpack.c.l.b16 %v166
    %v1376 = vunpack.c.l.b16 %v167
    %v1377 = vunpack.c.l.b16 %v168
    %v1378 = vunpack.c.l.b16 %v169
    %v1379 = vunpack.c.l.b16 %v170
    %v1380 = vunpack.c.l.b16 %v171
    %v1381 = vunpack.c.l.b16 %v172
    %v1382 = vunpack.c.l.b16 %v173
    %v1383 = vunpack.c.l.b16 %v174
    %v1384 = vunpack.c.l.b16 %v175
    %v1385 = vunpack.c.l.b16 %v176
    %v1386 = vunpack.c.l.b16 %v177
    %v1387 = vunpack.c.l.b16 %v178
    %v1388 = vunpack.c.l.b16 %v179
    %v1389 = vunpack.c.l.b16 %v180
    %v1390 = vunpack.c.l.b16 %v181
    %v1391 = vunpack.c.l.b16 %v182
    %v1392 = vunpack.c.l.b16 %v183
    %v1393 = vunpack.c.l.b16 %v184
    %v1394 = vunpack.c.l.b16 %v185
    %v1395 = vunpack.c.l.b16 %v186
    %v1396 = vunpack.c.l.b16 %v187
    %v1397 = vunpack.c.l.b16 %v188
    %v1398 = vunpack.c.l.b16 %v189
    %v1399 = vunpack.c.l.b16 %v190
    %v1400 = vunpack.c.l.b16 %v191
    %v1401 = vunpack.c.l.b16 %v192
    %v1402 = vunpack.c.l.b16 %v193
    %v1403 = vunpack.c.l.b16 %v194
    %v1404 = vunpack.c.l.b16 %v195
    %v1405 = vunpack.c.l.b16 %v196
    %v1406 = vunpack.c.l.b16 %v197
    %v1407 = vunpack.c.l.b16 %v198
    %v1408 = vunpack.c.l.b16 %v199
    %v1409 = vunpack.c.l.b16 %v200
    %v1410 = vunpack.c.l.b16 %v201
    %v1411 = vunpack.c.l.b16 %v202
    %v1412 = vunpack.c.l.b16 %v203
    %v1413 = vunpack.c.l.b16 %v204
    %v1414 = vunpack.c.l.b16 %v205
    %v1415 = vunpack.c.l.b16 %v206
    %v1416 = vunpack.c.l.b16 %v207
    %v1417 = vunpack.c.l.b16 %v208
    %v1418 = vunpack.c.l.b16 %v209
    %v1419 = vunpack.c.l.b16 %v210
    %v1420 = vunpack.c.l.b16 %v211
    %v1421 = vunpack.c.l.b16 %v212
    %v1422 = vunpack.c.l.b16 %v213
    %v1423 = vunpack.c.l.b16 %v214
    %v1424 = vunpack.c.l.b16 %v215
    %v1425 = vunpack.c.l.b16 %v216
    %v1426 = vunpack.c.l.b16 %v217
    %v1427 = vunpack.c.l.b16 %v218
    %v1428 = vunpack.c.l.b16 %v219
    %v1429 = vunpack.c.l.b16 %v220
    %v1430 = vunpack.c.l.b16 %v221
    %v1431 = vunpack.c.l.b16 %v222
    %v1432 = vunpack.c.l.b16 %v223
    %v1433 = vunpack.c.l.b16 %v224
    %v1434 = vunpack.c.l.b16 %v225
    %v1435 = vunpack.c.l.b16 %v226
    %v1436 = vunpack.c.l.b16 %v227
    %v1437 = vunpack.c.l.b16 %v228
    %v1438 = vunpack.c.l.b16 %v229
    %v1439 = vunpack.c.l.b16 %v230
    %v1440 = vunpack.c.l.b16 %v231
    %v1441 = vunpack.c.l.b16 %v232
    %v1442 = vunpack.c.l.b16 %v233
    %v1443 = vunpack.c.l.b16 %v234
    %v1444 = vunpack.c.l.b16 %v235
    %v1445 = vunpack.c.l.b16 %v236
    %v1446 = vunpack.c.l.b16 %v237
    %v1447 = vunpack.c.l.b16 %v238
    %v1448 = vunpack.c.l.b16 %v239
    %v1449 = vunpack.c.l.b16 %v240
    %v1450 = vunpack.c.l.b16 %v241
    %v1451 = vunpack.c.l.b16 %v242
    %v1452 = vunpack.c.l.b16 %v243
    %v1453 = vunpack.c.l.b16 %v244
    %v1454 = vunpack.c.l.b16 %v245
    %v1455 = vunpack.c.l.b16 %v246
    %v1456 = vunpack.c.l.b16 %v247
    %v1457 = vunpack.c.l.b16 %v248
    %v1458 = vunpack.c.l.b16 %v249
    %v1459 = vunpack.c.l.b16 %v250
    %v1460 = vunpack.c.l.b16 %v251
    %v1461 = vunpack.c.l.b16 %v252
    %v1462 = vunpack.c.l.b16 %v253
    %v1463 = vunpack.c.l.b16 %v254
    %v1464 = vunpack.c.l.b16 %v255
    %v1465 = vunpack.c.l.b16 %v256
    %v1466 = vunpack.c.l.b16 %v257
    %v1467 = vunpack.c.l.b16 %v258
    %v1468 = vunpack.c.l.b16 %v259
    %v1469 = vunpack.c.l.b16 %v260
    %v1470 = vunpack.c.l.b16 %v261
    %v1471 = vunpack.c.l.b16 %v262
    %v1472 = vunpack.c.l.b16 %v263
    %v1473 = vunpack.c.l.b16 %v264
    %v1474 = vunpack.c.l.b16 %v265
    %v1475 = vunpack.c.l.b16 %v266
    %v1476 = vunpack.c.l.b16 %v267
    %v1477 = vunpack.c.l.b16 %v268
    %v1478 = vunpack.c.l.b16 %v269
    %v1479 = vunpack.c.l.b16 %v270
    %v1480 = vunpack.c.l.b16 %v271
    %v1481 = vunpack.c.l.b16 %v272
    %v1482 = vunpack.c.l.b16 %v273
    %v1483 = vunpack.c.l.b16 %v274
    %v1484 = vunpack.c.l.b16 %v275
    %v1485 = vunpack.c.l.b16 %v276
    %v1486 = vunpack.c.l.b16 %v277
    %v1487 = vunpack.c.l.b16 %v278
    %v1488 = vunpack.c.l.b16 %v279
    %v1489 = vunpack.c.l.b16 %v280
    %v1490 = vunpack.c.l.b16 %v281
    %v1491 = vunpack.c.l.b16 %v282
    %v1492 = vunpack.c.l.b16 %v283
    %v1493 = vunpack.c.l.b16 %v284
    %v1494 = vunpack.c.l.b16 %v285
    %v1495 = vunpack.c.l.b16 %v286
    %v1496 = vunpack.c.l.b16 %v287
    %v1497 = vunpack.c.l.b16 %v288
    %v1498 = vunpack.c.l.b16 %v289
    %v1499 = vunpack.c.l.b16 %v290
    %v1500 = vunpack.c.l.b16 %v291
    %v1501 = vunpack.c.l.b16 %v292
    %v1502 = vunpack.c.l.b16 %v293
    %v1503 = vunpack.c.l.b16 %v294
    %v1504 = vunpack.c.l.b16 %v295
    %v1505 = vunpack.c.l.b16 %v296
    %v1506 = vunpack.c.l.b16 %v297
    %v1507 = vunpack.c.l.b16 %v298
    %v1508 = vunpack.c.l.b16 %v299
    %v1509 = vunpack.c.l.b16 %v300
    %v1510 = vunpack.c.l.b16 %v301
    %v1511 = vunpack.c.l.b16 %v302
    %v1512 = vunpack.c.l.b16 %v303
    %v1513 = vunpack.c.l.b16 %v304
    %v1514 = vunpack.c.l.b16 %v305
    %v1515 = vunpack.c.l.b16 %v306
    %v1516 = vunpack.c.l.b16 %v307
    %v1517 = vunpack.c.l.b16 %v308
    %v1518 = vunpack.c.l.b16 %v309
    %v1519 = vunpack.c.l.b16 %v310
    %v1520 = vunpack.c.l.b16 %v311
    %v1521 = vunpack.c.l.b16 %v312
    %v1522 = vunpack.c.l.b16 %v313
    %v1523 = vunpack.c.l.b16 %v314
    %v1524 = vunpack.c.l.b16 %v315
    %v1525 = vunpack.c.l.b16 %v316
    %v1526 = vunpack.c.l.b16 %v317
    %v1527 = vunpack.c.l.b16 %v318
    %v1528 = vunpack.c.l.b16 %v319
    %v1529 = vunpack.c.l.b16 %v320
    %v1530 = vunpack.c.l.b16 %v321
    %v1531 = vunpack.c.l.b16 %v322
    %v1532 = vunpack.c.l.b16 %v323
    %v1533 = vunpack.c.l.b16 %v324
    %v1534 = vunpack.c.l.b16 %v325
    %v1535 = vunpack.c.l.b16 %v326
    %v1536 = vunpack.c.l.b16 %v327
    %v1537 = vunpack.c.l.b16 %v328
    %v1538 = vunpack.c.l.b16 %v329
    %v1539 = vunpack.c.l.b16 %v330
    %v1540 = vunpack.c.l.b16 %v331
    %v1541 = vunpack.c.l.b16 %v332
    %v1542 = vunpack.c.l.b16 %v333
    %v1543 = vunpack.c.l.b16 %v334
    %v1544 = vunpack.c.l.b16 %v335
    %v1545 = vunpack.c.l.b16 %v336
    %v1546 = vunpack.c.l.b16 %v337
    %v1547 = vunpack.c.l.b16 %v338
    %v1548 = vunpack.c.l.b16 %v339
    %v1549 = vunpack.c.l.b16 %v340
    %v1550 = vunpack.c.l.b16 %v341
    %v1551 = vunpack.c.l.b16 %v342
    %v1552 = vunpack.c.l.b16 %v343
    %v1553 = vunpack.c.l.b16 %v344
    %v1554 = vunpack.c.l.b16 %v345
    %v1555 = vunpack.c.l.b16 %v346
    %v1556 = vunpack.c.l.b16 %v347
    %v1557 = vunpack.c.l.b16 %v348
    %v1558 = vunpack.c.l.b16 %v349
    %v1559 = vunpack.c.l.b16 %v350
    %v1560 = vunpack.c.l.b16 %v351
    %v1561 = vunpack.c.l.b16 %v352
    %v1562 = vunpack.c.l.b16 %v353
    %v1563 = vunpack.c.l.b16 %v354
    %v1564 = vunpack.c.l.b16 %v355
    %v1565 = vunpack.c.l.b16 %v356
    %v1566 = vunpack.c.l.b16 %v357
    %v1567 = vunpack.c.l.b16 %v358
    %v1568 = vunpack.c.l.b16 %v359
    %v1569 = vunpack.c.l.b16 %v360
    %v1570 = vunpack.c.l.b16 %v361
    %v1571 = vunpack.c.l.b16 %v362
    %v1572 = vunpack.c.l.b16 %v363
    %v1573 = vunpack.c.l.b16 %v364
    %v1574 = vunpack.c.l.b16 %v365
    %v1575 = vunpack.c.l.b16 %v366
    %v1576 = vunpack.c.l.b16 %v367
    %v1577 = vunpack.c.l.b16 %v368
    %v1578 = vunpack.c.l.b16 %v369
    %v1579 = vunpack.c.l.b16 %v370
    %v1580 = vunpack.c.l.b16 %v371
    %v1581 = vunpack.c.l.b16 %v372
    %v1582 = vunpack.c.l.b16 %v373
    %v1583 = vunpack.c.l.b16 %v374
    %v1584 = vunpack.c.l.b16 %v375
    %v1585 = vunpack.c.l.b16 %v376
    %v1586 = vunpack.c.l.b16 %v377
    %v1587 = vunpack.c.l.b16 %v378
    %v1588 = vunpack.c.l.b16 %v379
    %v1589 = vunpack.c.l.b16 %v380
    %v1590 = vunpack.c.l.b16 %v381
    %v1591 = vunpack.c.l.b16 %v382
    %v1592 = vunpack.c.l.b16 %v383
    %v1593 = vunpack.c.l.b16 %v384
    %v1594 = vunpack.c.l.b16 %v385
    %v1595 = vunpack.c.l.b16 %v386
    %v1596 = vunpack.c.l.b16 %v387
    %v1597 = vunpack.c.l.b16 %v388
    %v1598 = vunpack.c.l.b16 %v389
    %v1599 = vunpack.c.l.b16 %v390
    %v1600 = vunpack.c.l.b16 %v391
    %v1601 = vunpack.c.l.b16 %v392
    %v1602 = vunpack.c.l.b16 %v393
    %v1603 = vunpack.c.l.b16 %v394
    %v1604 = vunpack.c.l.b16 %v395
    %v1605 = vunpack.c.l.b16 %v396
    %v1606 = vunpack.c.l.b16 %v397
    %v1607 = vunpack.c.l.b16 %v398
    %v1608 = vunpack.c.l.b16 %v399
    %v1609 = vunpack.c.l.b16 %v400
    %v1610 = vunpack.c.l.b16 %v401
    %v1611 = vunpack.c.l.b16 %v402
    %v1612 = vunpack.c.l.b16 %v403
    %v1613 = vunpack.c.l.b16 %v404
    %v1614 = vunpack.c.l.b16 %v405
    %v1615 = vunpack.c.l.b16 %v406
    %v1616 = vunpack.c.l.b16 %v407
    %v1617 = vunpack.c.l.b16 %v408
    %v1618 = vunpack.c.l.b16 %v409
    %v1619 = vunpack.c.l.b16 %v410
    %v1620 = vunpack.c.l.b16 %v411
    %v1621 = vunpack.c.l.b16 %v412
    %v1622 = vunpack.c.l.b16 %v413
    %v1623 = vunpack.c.l.b16 %v414
    %v1624 = vunpack.c.l.b16 %v415
    %v1625 = vunpack.c.l.b16 %v416
    %v1626 = vunpack.c.l.b16 %v417
    %v1627 = vunpack.c.l.b16 %v418
    %v1628 = vunpack.c.l.b16 %v419
    %v1629 = vunpack.c.l.b16 %v420
    %v1630 = vunpack.c.l.b16 %v421
    %v1631 = vunpack.c.l.b16 %v422
    %v1632 = vunpack.c.l.b16 %v423
    %v1633 = vunpack.c.l.b16 %v424
    %v1634 = vunpack.c.l.b16 %v425
    %v1635 = vunpack.c.l.b16 %v426
    %v1636 = vunpack.c.l.b16 %v427
    %v1637 = vunpack.c.l.b16 %v428
    %v1638 = vunpack.c.l.b16 %v429
    %v1639 = vunpack.c.l.b16 %v430
    %v1640 = vunpack.c.l.b16 %v431
    %v1641 = vunpack.c.l.b16 %v432
    %v1642 = vunpack.c.l.b16 %v433
    %v1643 = vunpack.c.l.b16 %v434
    %v1644 = vunpack.c.l.b16 %v435
    %v1645 = vunpack.c.l.b16 %v436
    %v1646 = vunpack.c.l.b16 %v437
    %v1647 = vunpack.c.l.b16 %v438
    %v1648 = vunpack.c.l.b16 %v439
    %v1649 = vunpack.c.l.b16 %v440
    %v1650 = vunpack.c.l.b16 %v441
    %v1651 = vunpack.c.l.b16 %v442
    %v1652 = vunpack.c.l.b16 %v443
    %v1653 = vunpack.c.l.b16 %v444
    %v1654 = vunpack.c.l.b16 %v445
    %v1655 = vunpack.c.l.b16 %v446
    %v1656 = vunpack.c.l.b16 %v447
    %v1657 = vunpack.c.l.b16 %v448
    %v1658 = vunpack.c.l.b16 %v449
    %v1659 = vunpack.c.l.b16 %v450
    %v1660 = vunpack.c.l.b16 %v451
    %v1661 = vunpack.c.l.b16 %v452
    %v1662 = vunpack.c.l.b16 %v453
    %v1663 = vunpack.c.l.b16 %v454
    %v1664 = vunpack.c.l.b16 %v455
    %v1665 = vunpack.c.l.b16 %v456
    %v1666 = vunpack.c.l.b16 %v457
    %v1667 = vunpack.c.l.b16 %v458
    %v1668 = vunpack.c.l.b16 %v459
    %v1669 = vunpack.c.l.b16 %v460
    %v1670 = vunpack.c.l.b16 %v461
    %v1671 = vunpack.c.l.b16 %v462
    %v1672 = vunpack.c.l.b16 %v463
    %v1673 = vunpack.c.l.b16 %v464
    %v1674 = vunpack.c.l.b16 %v465
    %v1675 = vunpack.c.l.b16 %v466
    %v1676 = vunpack.c.l.b16 %v467
    %v1677 = vunpack.c.l.b16 %v468
    %v1678 = vunpack.c.l.b16 %v469
    %v1679 = vunpack.c.l.b16 %v470
    %v1680 = vunpack.c.l.b16 %v471
    %v1681 = vunpack.c.l.b16 %v472
    %v1682 = vunpack.c.l.b16 %v473
    %v1683 = vunpack.c.l.b16 %v474
    %v1684 = vunpack.c.l.b16 %v475
    %v1685 = vunpack.c.l.b16 %v476
    %v1686 = vunpack.c.l.b16 %v477
    %v1687 = vunpack.c.l.b16 %v478
    %v1688 = vunpack.c.l.b16 %v479
    %v1689 = vunpack.c.l.b16 %v480
    %v1690 = vunpack.c.l.b16 %v481
    %v1691 = vunpack.c.l.b16 %v482
    %v1692 = vunpack.c.l.b16 %v483
    %v1693 = vunpack.c.l.b16 %v484
    %v1694 = vunpack.c.l.b16 %v485
    %v1695 = vunpack.c.l.b16 %v486
    %v1696 = vunpack.c.l.b16 %v487
    %v1697 = vunpack.c.l.b16 %v488
    %v1698 = vunpack.c.l.b16 %v489
    %v1699 = vunpack.c.l.b16 %v490
    %v1700 = vunpack.c.l.b16 %v491
    %v1701 = vunpack.c.l.b16 %v492
    %v1702 = vunpack.c.l.b16 %v493
    %v1703 = vunpack.c.l.b16 %v494
    %v1704 = vunpack.c.l.b16 %v495
    %v1705 = vunpack.c.l.b16 %v496
    %v1706 = vunpack.c.l.b16 %v497
    %v1707 = vunpack.c.l.b16 %v498
    %v1708 = vunpack.c.l.b16 %v499
    %v1709 = vunpack.c.l.b16 %v500
    %v1710 = vunpack.c.l.b16 %v501
    %v1711 = vunpack.c.l.b16 %v502
    %v1712 = vunpack.c.l.b16 %v503
    %v1713 = vunpack.c.l.b16 %v504
    %v1714 = vunpack.c.l.b16 %v505
    %v1715 = vunpack.c.l.b16 %v506
    %v1716 = vunpack.c.l.b16 %v507
    %v1717 = vunpack.c.l.b16 %v508
    %v1718 = vunpack.c.l.b16 %v509
    %v1719 = vunpack.c.l.b16 %v510
    %v1720 = vunpack.c.l.b16 %v511
    %v1721 = vunpack.c.l.b16 %v512
    %v1722 = vunpack.c.l.b16 %v513
    %v1723 = vunpack.c.l.b16 %v514
    %v1724 = vunpack.c.l.b16 %v515
    %v1725 = vunpack.c.l.b16 %v516
    %v1726 = vunpack.c.l.b16 %v517
    %v1727 = vunpack.c.l.b16 %v518
    %v1728 = vunpack.c.l.b16 %v519
    %v1729 = vunpack.c.l.b16 %v520
    %v1730 = vunpack.c.l.b16 %v521
    %v1731 = vunpack.c.l.b16 %v522
    %v1732 = vunpack.c.l.b16 %v523
    %v1733 = vunpack.c.l.b16 %v524
    %v1734 = vunpack.c.l.b16 %v525
    %v1735 = vunpack.c.l.b16 %v526
    %v1736 = vunpack.c.l.b16 %v527
    %v1737 = vunpack.c.l.b16 %v528
    %v1738 = vunpack.c.l.b16 %v529
    %v1739 = vunpack.c.l.b16 %v530
    %v1740 = vunpack.c.l.b16 %v531
    %v1741 = vunpack.c.l.b16 %v532
    %v1742 = vunpack.c.l.b16 %v533
    %v1743 = vunpack.c.l.b16 %v534
    %v1744 = vunpack.c.l.b16 %v535
    %v1745 = vunpack.c.l.b16 %v536
    %v1746 = vunpack.c.l.b16 %v537
    %v1747 = vunpack.c.l.b16 %v538
    %v1748 = vunpack.c.l.b16 %v539
    %v1749 = vunpack.c.l.b16 %v540
    %v1750 = vunpack.c.l.b16 %v541
    %v1751 = vunpack.c.l.b16 %v542
    %v1752 = vunpack.c.l.b16 %v543
    %v1753 = vunpack.c.l.b16 %v544
    %v1754 = vunpack.c.l.b16 %v545
    %v1755 = vunpack.c.l.b16 %v546
    %v1756 = vunpack.c.l.b16 %v547
    %v1757 = vunpack.c.l.b16 %v548
    %v1758 = vunpack.c.l.b16 %v549
    %v1759 = vunpack.c.l.b16 %v550
    %v1760 = vunpack.c.l.b16 %v551
    %v1761 = vunpack.c.l.b16 %v552
    %v1762 = vunpack.c.l.b16 %v553
    %v1763 = vunpack.c.l.b16 %v554
    %v1764 = vunpack.c.l.b16 %v555
    %v1765 = vunpack.c.l.b16 %v556
    %v1766 = vunpack.c.l.b16 %v557
    %v1767 = vpack.c.b16 %v1256, %v1255
    %v1768 = vpack.c.b16 %v1258, %v1257
    %v1769 = vpack.c.b16 %v1260, %v1259
    %v1770 = vpack.c.b16 %v1262, %v1261
    %v1771 = vpack.c.b16 %v1264, %v1263
    %v1772 = vpack.c.b16 %v1266, %v1265
    %v1773 = vpack.c.b16 %v1268, %v1267
    %v1774 = vpack.c.b16 %v1270, %v1269
    %v1775 = vpack.c.b16 %v1272, %v1271
    %v1776 = vpack.c.b16 %v1274, %v1273
    %v1777 = vpack.c.b16 %v1276, %v1275
    %v1778 = vpack.c.b16 %v1278, %v1277
    %v1779 = vpack.c.b16 %v1280, %v1279
    %v1780 = vpack.c.b16 %v1282, %v1281
    %v1781 = vpack.c.b16 %v1284, %v1283
    %v1782 = vpack.c.b16 %v1286, %v1285
    %v1783 = vpack.c.b16 %v1288, %v1287
    %v1784 = vpack.c.b16 %v1290, %v1289
    %v1785 = vpack.c.b16 %v1292, %v1291
    %v1786 = vpack.c.b16 %v1294, %v1293
    %v1787 = vpack.c.b16 %v1296, %v1295
    %v1788 = vpack.c.b16 %v1298, %v1297
    %v1789 = vpack.c.b16 %v1300, %v1299
    %v1790 = vpack.c.b16 %v1302, %v1301
    %v1791 = vpack.c.b16 %v1304, %v1303
    %v1792 = vpack.c.b16 %v1306, %v1305
    %v1793 = vpack.c.b16 %v1308, %v1307
    %v1794 = vpack.c.b16 %v1310, %v1309
    %v1795 = vpack.c.b16 %v1312, %v1311
    %v1796 = vpack.c.b16 %v1314, %v1313
    %v1797 = vpack.c.b16 %v1316, %v1315
    %v1798 = vpack.c.b16 %v1318, %v1317
    %v1799 = vpack.c.b16 %v1320, %v1319
    %v1800 = vpack.c.b16 %v1322, %v1321
    %v1801 = vpack.c.b16 %v1324, %v1323
    %v1802 = vpack.c.b16 %v1326, %v1325
    %v1803 = vpack.c.b16 %v1328, %v1327
    %v1804 = vpack.c.b16 %v1330, %v1329
    %v1805 = vpack.c.b16 %v1332, %v1331
    %v1806 = vpack.c.b16 %v1334, %v1333
    %v1807 = vpack.c.b16 %v1336, %v1335
    %v1808 = vpack.c.b16 %v1338, %v1337
    %v1809 = vpack.c.b16 %v1340, %v1339
    %v1810 = vpack.c.b16 %v1342, %v1341
    %v1811 = vpack.c.b16 %v1344, %v1343
    %v1812 = vpack.c.b16 %v1346, %v1345
    %v1813 = vpack.c.b16 %v1348, %v1347
    %v1814 = vpack.c.b16 %v1350, %v1349
    %v1815 = vpack.c.b16 %v1352, %v1351
    %v1816 = vpack.c.b16 %v1354, %v1353
    %v1817 = vpack.c.b16 %v1356, %v1355
    %v1818 = vpack.c.b16 %v1358, %v1357
    %v1819 = vpack.c.b16 %v1360, %v1359
    %v1820 = vpack.c.b16 %v1362, %v1361
    %v1821 = vpack.c.b16 %v1364, %v1363
    %v1822 = vpack.c.b16 %v1366, %v1365
    %v1823 = vpack.c.b16 %v1368, %v1367
    %v1824 = vpack.c.b16 %v1370, %v1369
    %v1825 = vpack.c.b16 %v1372, %v1371
    %v1826 = vpack.c.b16 %v1374, %v1373
    %v1827 = vpack.c.b16 %v1376, %v1375
    %v1828 = vpack.c.b16 %v1378, %v1377
    %v1829 = vpack.c.b16 %v1380, %v1379
    %v1830 = vpack.c.b16 %v1382, %v1381
    %v1831 = vpack.c.b16 %v1384, %v1383
    %v1832 = vpack.c.b16 %v1386, %v1385
    %v1833 = vpack.c.b16 %v1388, %v1387
    %v1834 = vpack.c.b16 %v1390, %v1389
    %v1835 = vpack.c.b16 %v1392, %v1391
    %v1836 = vpack.c.b16 %v1394, %v1393
    %v1837 = vpack.c.b16 %v1396, %v1395
    %v1838 = vpack.c.b16 %v1398, %v1397
    %v1839 = vpack.c.b16 %v1400, %v1399
    %v1840 = vpack.c.b16 %v1402, %v1401
    %v1841 = vpack.c.b16 %v1404, %v1403
    %v1842 = vpack.c.b16 %v1406, %v1405
    %v1843 = vpack.c.b16 %v1408, %v1407
    %v1844 = vpack.c.b16 %v1410, %v1409
    %v1845 = vpack.c.b16 %v1412, %v1411
    %v1846 = vpack.c.b16 %v1414, %v1413
    %v1847 = vpack.c.b16 %v1416, %v1415
    %v1848 = vpack.c.b16 %v1418, %v1417
    %v1849 = vpack.c.b16 %v1420, %v1419
    %v1850 = vpack.c.b16 %v1422, %v1421
    %v1851 = vpack.c.b16 %v1424, %v1423
    %v1852 = vpack.c.b16 %v1426, %v1425
    %v1853 = vpack.c.b16 %v1428, %v1427
    %v1854 = vpack.c.b16 %v1430, %v1429
    %v1855 = vpack.c.b16 %v1432, %v1431
    %v1856 = vpack.c.b16 %v1434, %v1433
    %v1857 = vpack.c.b16 %v1436, %v1435
    %v1858 = vpack.c.b16 %v1438, %v1437
    %v1859 = vpack.c.b16 %v1440, %v1439
    %v1860 = vpack.c.b16 %v1442, %v1441
    %v1861 = vpack.c.b16 %v1444, %v1443
    %v1862 = vpack.c.b16 %v1446, %v1445
    %v1863 = vpack.c.b16 %v1448, %v1447
    %v1864 = vpack.c.b16 %v1450, %v1449
    %v1865 = vpack.c.b16 %v1452, %v1451
    %v1866 = vpack.c.b16 %v1454, %v1453
    %v1867 = vpack.c.b16 %v1456, %v1455
    %v1868 = vpack.c.b16 %v1458, %v1457
    %v1869 = vpack.c.b16 %v1460, %v1459
    %v1870 = vpack.c.b16 %v1462, %v1461
    %v1871 = vpack.c.b16 %v1464, %v1463
    %v1872 = vpack.c.b16 %v1466, %v1465
    %v1873 = vpack.c.b16 %v1468, %v1467
    %v1874 = vpack.c.b16 %v1470, %v1469
    %v1875 = vpack.c.b16 %v1472, %v1471
    %v1876 = vpack.c.b16 %v1474, %v1473
    %v1877 = vpack.c.b16 %v1476, %v1475
    %v1878 = vpack.c.b16 %v1478, %v1477
    %v1879 = vpack.c.b16 %v1480, %v1479
    %v1880 = vpack.c.b16 %v1482, %v1481
    %v1881 = vpack.c.b16 %v1484, %v1483
    %v1882 = vpack.c.b16 %v1486, %v1485
    %v1883 = vpack.c.b16 %v1488, %v1487
    %v1884 = vpack.c.b16 %v1490, %v1489
    %v1885 = vpack.c.b16 %v1492, %v1491
    %v1886 = vpack.c.b16 %v1494, %v1493
    %v1887 = vpack.c.b16 %v1496, %v1495
    %v1888 = vpack.c.b16 %v1498, %v1497
    %v1889 = vpack.c.b16 %v1500, %v1499
    %v1890 = vpack.c.b16 %v1502, %v1501
    %v1891 = vpack.c.b16 %v1504, %v1503
    %v1892 = vpack.c.b16 %v1506, %v1505
    %v1893 = vpack.c.b16 %v1508, %v1507
    %v1894 = vpack.c.b16 %v1510, %v1509
    %v1895 = vpack.c.b16 %v1512, %v1511
    %v1896 = vpack.c.b16 %v1514, %v1513
    %v1897 = vpack.c.b16 %v1516, %v1515
    %v1898 = vpack.c.b16 %v1518, %v1517
    %v1899 = vpack.c.b16 %v1520, %v1519
    %v1900 = vpack.c.b16 %v1522, %v1521
    %v1901 = vpack.c.b16 %v1524, %v1523
    %v1902 = vpack.c.b16 %v1526, %v1525
    %v1903 = vpack.c.b16 %v1528, %v1527
    %v1904 = vpack.c.b16 %v1530, %v1529
    %v1905 = vpack.c.b16 %v1532, %v1531
    %v1906 = vpack.c.b16 %v1534, %v1533
    %v1907 = vpack.c.b16 %v1536, %v1535
    %v1908 = vpack.c.b16 %v1538, %v1537
    %v1909 = vpack.c.b16 %v1540, %v1539
    %v1910 = vpack.c.b16 %v1542, %v1541
    %v1911 = vpack.c.b16 %v1544, %v1543
    %v1912 = vpack.c.b16 %v1546, %v1545
    %v1913 = vpack.c.b16 %v1548, %v1547
    %v1914 = vpack.c.b16 %v1550, %v1549
    %v1915 = vpack.c.b16 %v1552, %v1551
    %v1916 = vpack.c.b16 %v1554, %v1553
    %v1917 = vpack.c.b16 %v1556, %v1555
    %v1918 = vpack.c.b16 %v1558, %v1557
    %v1919 = vpack.c.b16 %v1560, %v1559
    %v1920 = vpack.c.b16 %v1562, %v1561
    %v1921 = vpack.c.b16 %v1564, %v1563
    %v1922 = vpack.c.b16 %v1566, %v1565
    %v1923 = vpack.c.b16 %v1568, %v1567
    %v1924 = vpack.c.b16 %v1570, %v1569
    %v1925 = vpack.c.b16 %v1572, %v1571
    %v1926 = vpack.c.b16 %v1574, %v1573
    %v1927 = vpack.c.b16 %v1576, %v1575
    %v1928 = vpack.c.b16 %v1578, %v1577
    %v1929 = vpack.c.b16 %v1580, %v1579
    %v1930 = vpack.c.b16 %v1582, %v1581
    %v1931 = vpack.c.b16 %v1584, %v1583
    %v1932 = vpack.c.b16 %v1586, %v1585
    %v1933 = vpack.c.b16 %v1588, %v1587
    %v1934 = vpack.c.b16 %v1590, %v1589
    %v1935 = vpack.c.b16 %v1592, %v1591
    %v1936 = vpack.c.b16 %v1594, %v1593
    %v1937 = vpack.c.b16 %v1596, %v1595
    %v1938 = vpack.c.b16 %v1598, %v1597
    %v1939 = vpack.c.b16 %v1600, %v1599
    %v1940 = vpack.c.b16 %v1602, %v1601
    %v1941 = vpack.c.b16 %v1604, %v1603
    %v1942 = vpack.c.b16 %v1606, %v1605
    %v1943 = vpack.c.b16 %v1608, %v1607
    %v1944 = vpack.c.b16 %v1610, %v1609
    %v1945 = vpack.c.b16 %v1612, %v1611
    %v1946 = vpack.c.b16 %v1614, %v1613
    %v1947 = vpack.c.b16 %v1616, %v1615
    %v1948 = vpack.c.b16 %v1618, %v1617
    %v1949 = vpack.c.b16 %v1620, %v1619
    %v1950 = vpack.c.b16 %v1622, %v1621
    %v1951 = vpack.c.b16 %v1624, %v1623
    %v1952 = vpack.c.b16 %v1626, %v1625
    %v1953 = vpack.c.b16 %v1628, %v1627
    %v1954 = vpack.c.b16 %v1630, %v1629
    %v1955 = vpack.c.b16 %v1632, %v1631
    %v1956 = vpack.c.b16 %v1634, %v1633
    %v1957 = vpack.c.b16 %v1636, %v1635
    %v1958 = vpack.c.b16 %v1638, %v1637
    %v1959 = vpack.c.b16 %v1640, %v1639
    %v1960 = vpack.c.b16 %v1642, %v1641
    %v1961 = vpack.c.b16 %v1644, %v1643
    %v1962 = vpack.c.b16 %v1646, %v1645
    %v1963 = vpack.c.b16 %v1648, %v1647
    %v1964 = vpack.c.b16 %v1650, %v1649
    %v1965 = vpack.c.b16 %v1652, %v1651
    %v1966 = vpack.c.b16 %v1654, %v1653
    %v1967 = vpack.c.b16 %v1656, %v1655
    %v1968 = vpack.c.b16 %v1658, %v1657
    %v1969 = vpack.c.b16 %v1660, %v1659
    %v1970 = vpack.c.b16 %v1662, %v1661
    %v1971 = vpack.c.b16 %v1664, %v1663
    %v1972 = vpack.c.b16 %v1666, %v1665
    %v1973 = vpack.c.b16 %v1668, %v1667
    %v1974 = vpack.c.b16 %v1670, %v1669
    %v1975 = vpack.c.b16 %v1672, %v1671
    %v1976 = vpack.c.b16 %v1674, %v1673
    %v1977 = vpack.c.b16 %v1676, %v1675
    %v1978 = vpack.c.b16 %v1678, %v1677
    %v1979 = vpack.c.b16 %v1680, %v1679
    %v1980 = vpack.c.b16 %v1682, %v1681
    %v1981 = vpack.c.b16 %v1684, %v1683
    %v1982 = vpack.c.b16 %v1686, %v1685
    %v1983 = vpack.c.b16 %v1688, %v1687
    %v1984 = vpack.c.b16 %v1690, %v1689
    %v1985 = vpack.c.b16 %v1692, %v1691
    %v1986 = vpack.c.b16 %v1694, %v1693
    %v1987 = vpack.c.b16 %v1696, %v1695
    %v1988 = vpack.c.b16 %v1698, %v1697
    %v1989 = vpack.c.b16 %v1700, %v1699
    %v1990 = vpack.c.b16 %v1702, %v1701
    %v1991 = vpack.c.b16 %v1704, %v1703
    %v1992 = vpack.c.b16 %v1706, %v1705
    %v1993 = vpack.c.b16 %v1708, %v1707
    %v1994 = vpack.c.b16 %v1710, %v1709
    %v1995 = vpack.c.b16 %v1712, %v1711
    %v1996 = vpack.c.b16 %v1714, %v1713
    %v1997 = vpack.c.b16 %v1716, %v1715
    %v1998 = vpack.c.b16 %v1718, %v1717
    %v1999 = vpack.c.b16 %v1720, %v1719
    %v2000 = vpack.c.b16 %v1722, %v1721
    %v2001 = vpack.c.b16 %v1724, %v1723
    %v2002 = vpack.c.b16 %v1726, %v1725
    %v2003 = vpack.c.b16 %v1728, %v1727
    %v2004 = vpack.c.b16 %v1730, %v1729
    %v2005 = vpack.c.b16 %v1732, %v1731
    %v2006 = vpack.c.b16 %v1734, %v1733
    %v2007 = vpack.c.b16 %v1736, %v1735
    %v2008 = vpack.c.b16 %v1738, %v1737
    %v2009 = vpack.c.b16 %v1740, %v1739
    %v2010 = vpack.c.b16 %v1742, %v1741
    %v2011 = vpack.c.b16 %v1744, %v1743
    %v2012 = vpack.c.b16 %v1746, %v1745
    %v2013 = vpack.c.b16 %v1748, %v1747
    %v2014 = vpack.c.b16 %v1750, %v1749
    %v2015 = vpack.c.b16 %v1752, %v1751
    %v2016 = vpack.c.b16 %v1754, %v1753
    %v2017 = vpack.c.b16 %v1756, %v1755
    %v2018 = vpack.c.b16 %v1758, %v1757
    %v2019 = vpack.c.b16 %v1760, %v1759
    %v2020 = vpack.c.b16 %v1762, %v1761
    %v2021 = vpack.c.b16 %v1764, %v1763
    %v2022 = vpack.c.b16 %v1766, %v1765
    %2279 = vmatprep.subr.bf16.mxu0 0
    %2280 = vmatpush1.bf16.msra.mxu0 %v1767
    %2281 = vmatprep.subr.bf16.mxu0 0
    %2282 = vmatpush1.bf16.msra.mxu0 %v1768
    %2283 = vmatprep.subr.bf16.mxu0 0
    %2284 = vmatpush1.bf16.msra.mxu0 %v1769
    %2285 = vmatprep.subr.bf16.mxu0 0
    %2286 = vmatpush1.bf16.msra.mxu0 %v1770
    %2287 = vmatprep.subr.bf16.mxu0 0
    %2288 = vmatpush1.bf16.msra.mxu0 %v1771
    %2289 = vmatprep.subr.bf16.mxu0 0
    %2290 = vmatpush1.bf16.msra.mxu0 %v1772
    %2291 = vmatprep.subr.bf16.mxu0 0
    %2292 = vmatpush1.bf16.msra.mxu0 %v1773
    %2293 = vmatprep.subr.bf16.mxu0 0
    %2294 = vmatpush1.bf16.msra.mxu0 %v1774
    %2295 = vmatprep.subr.bf16.mxu0 0
    %2296 = vmatpush1.bf16.msra.mxu0 %v1775
    %2297 = vmatprep.subr.bf16.mxu0 0
    %2298 = vmatpush1.bf16.msra.mxu0 %v1776
    %2299 = vmatprep.subr.bf16.mxu0 0
    %2300 = vmatpush1.bf16.msra.mxu0 %v1777
    %2301 = vmatprep.subr.bf16.mxu0 0
    %2302 = vmatpush1.bf16.msra.mxu0 %v1778
    %2303 = vmatprep.subr.bf16.mxu0 0
    %2304 = vmatpush1.bf16.msra.mxu0 %v1779
    %2305 = vmatprep.subr.bf16.mxu0 0
    %2306 = vmatpush1.bf16.msra.mxu0 %v1780
    %2307 = vmatprep.subr.bf16.mxu0 0
    %2308 = vmatpush1.bf16.msra.mxu0 %v1781
    %2309 = vmatprep.subr.bf16.mxu0 0
    %2310 = vmatpush1.bf16.msra.mxu0 %v1782
    %2311 = vmatprep.mubr.bf16.mxu0 %v590
    %2312 = vmatmul.mubr.bf16.gmra.mrb[0].mxu0 %v582
    %v2313 = vpop.f32.mrb[0].mxu0
    %v2314 = vadd.f32 0.0, %v2313
    %v2315 = vpop.f32.mrb[0].mxu0
    %v2316 = vpop.f32.mrb[0].mxu0
    %v2317 = vpop.f32.mrb[0].mxu0
    %2318 = vdwg.mxu0
    %2319 = vmatprep.subr.bf16.mxu0 0
    %2320 = vmatpush1.bf16.msra.mxu0 %v1783
    %2321 = vmatprep.subr.bf16.mxu0 0
    %2322 = vmatpush1.bf16.msra.mxu0 %v1784
    %2323 = vmatprep.subr.bf16.mxu0 0
    %2324 = vmatpush1.bf16.msra.mxu0 %v1785
    %2325 = vmatprep.subr.bf16.mxu0 0
    %2326 = vmatpush1.bf16.msra.mxu0 %v1786
    %2327 = vmatprep.subr.bf16.mxu0 0
    %2328 = vmatpush1.bf16.msra.mxu0 %v1787
    %2329 = vmatprep.subr.bf16.mxu0 0
    %2330 = vmatpush1.bf16.msra.mxu0 %v1788
    %2331 = vmatprep.subr.bf16.mxu0 0
    %2332 = vmatpush1.bf16.msra.mxu0 %v1789
    %2333 = vmatprep.subr.bf16.mxu0 0
    %2334 = vmatpush1.bf16.msra.mxu0 %v1790
    %2335 = vmatprep.subr.bf16.mxu0 0
    %2336 = vmatpush1.bf16.msra.mxu0 %v1791
    %2337 = vmatprep.subr.bf16.mxu0 0
    %2338 = vmatpush1.bf16.msra.mxu0 %v1792
    %2339 = vmatprep.subr.bf16.mxu0 0
    %2340 = vmatpush1.bf16.msra.mxu0 %v1793
    %2341 = vmatprep.subr.bf16.mxu0 0
    %2342 = vmatpush1.bf16.msra.mxu0 %v1794
    %2343 = vmatprep.subr.bf16.mxu0 0
    %2344 = vmatpush1.bf16.msra.mxu0 %v1795
    %2345 = vmatprep.subr.bf16.mxu0 0
    %2346 = vmatpush1.bf16.msra.mxu0 %v1796
    %2347 = vmatprep.subr.bf16.mxu0 0
    %2348 = vmatpush1.bf16.msra.mxu0 %v1797
    %2349 = vmatprep.subr.bf16.mxu0 0
    %2350 = vmatpush1.bf16.msra.mxu0 %v1798
    %2351 = vmatprep.mubr.bf16.mxu0 %v591
    %2352 = vmatmul.mubr.bf16.gmra.mrb[0].mxu0 %v589
    %v2353 = vpop.f32.mrb[0].mxu0
    %v2354 = vadd.f32 %v2314, %v2353
    %v2355 = vpop.f32.mrb[0].mxu0
    %v2356 = vpop.f32.mrb[0].mxu0
    %v2357 = vpop.f32.mrb[0].mxu0
    %2358 = vdwg.mxu0
    %2359 = vmatprep.subr.bf16.mxu0 0
    %2360 = vmatpush1.bf16.msra.mxu0 %v1799
    %2361 = vmatprep.subr.bf16.mxu0 0
    %2362 = vmatpush1.bf16.msra.mxu0 %v1800
    %2363 = vmatprep.subr.bf16.mxu0 0
    %2364 = vmatpush1.bf16.msra.mxu0 %v1801
    %2365 = vmatprep.subr.bf16.mxu0 0
    %2366 = vmatpush1.bf16.msra.mxu0 %v1802
    %2367 = vmatprep.subr.bf16.mxu0 0
    %2368 = vmatpush1.bf16.msra.mxu0 %v1803
    %2369 = vmatprep.subr.bf16.mxu0 0
    %2370 = vmatpush1.bf16.msra.mxu0 %v1804
    %2371 = vmatprep.subr.bf16.mxu0 0
    %2372 = vmatpush1.bf16.msra.mxu0 %v1805
    %2373 = vmatprep.subr.bf16.mxu0 0
    %2374 = vmatpush1.bf16.msra.mxu0 %v1806
    %2375 = vmatprep.subr.bf16.mxu0 0
    %2376 = vmatpush1.bf16.msra.mxu0 %v1807
    %2377 = vmatprep.subr.bf16.mxu0 0
    %2378 = vmatpush1.bf16.msra.mxu0 %v1808
    %2379 = vmatprep.subr.bf16.mxu0 0
    %2380 = vmatpush1.bf16.msra.mxu0 %v1809
    %2381 = vmatprep.subr.bf16.mxu0 0
    %2382 = vmatpush1.bf16.msra.mxu0 %v1810
    %2383 = vmatprep.subr.bf16.mxu0 0
    %2384 = vmatpush1.bf16.msra.mxu0 %v1811
    %2385 = vmatprep.subr.bf16.mxu0 0
    %2386 = vmatpush1.bf16.msra.mxu0 %v1812
    %2387 = vmatprep.subr.bf16.mxu0 0
    %2388 = vmatpush1.bf16.msra.mxu0 %v1813
    %2389 = vmatprep.subr.bf16.mxu0 0
    %2390 = vmatpush1.bf16.msra.mxu0 %v1814
    %2391 = vmatprep.mubr.bf16.mxu0 %v607
    %2392 = vmatmul.mubr.bf16.gmra.mrb[0].mxu0 %v599
    %v2393 = vpop.f32.mrb[0].mxu0
    %v2394 = vadd.f32 %v2354, %v2393
    %v2395 = vpop.f32.mrb[0].mxu0
    %v2396 = vpop.f32.mrb[0].mxu0
    %v2397 = vpop.f32.mrb[0].mxu0
    %2398 = vdwg.mxu0
    %2399 = vmatprep.subr.bf16.mxu0 0
    %2400 = vmatpush1.bf16.msra.mxu0 %v1815
    %2401 = vmatprep.subr.bf16.mxu0 0
    %2402 = vmatpush1.bf16.msra.mxu0 %v1816
    %2403 = vmatprep.subr.bf16.mxu0 0
    %2404 = vmatpush1.bf16.msra.mxu0 %v1817
    %2405 = vmatprep.subr.bf16.mxu0 0
    %2406 = vmatpush1.bf16.msra.mxu0 %v1818
    %2407 = vmatprep.subr.bf16.mxu0 0
    %2408 = vmatpush1.bf16.msra.mxu0 %v1819
    %2409 = vmatprep.subr.bf16.mxu0 0
    %2410 = vmatpush1.bf16.msra.mxu0 %v1820
    %2411 = vmatprep.subr.bf16.mxu0 0
    %2412 = vmatpush1.bf16.msra.mxu0 %v1821
    %2413 = vmatprep.subr.bf16.mxu0 0
    %2414 = vmatpush1.bf16.msra.mxu0 %v1822
    %2415 = vmatprep.subr.bf16.mxu0 0
    %2416 = vmatpush1.bf16.msra.mxu0 %v1823
    %2417 = vmatprep.subr.bf16.mxu0 0
    %2418 = vmatpush1.bf16.msra.mxu0 %v1824
    %2419 = vmatprep.subr.bf16.mxu0 0
    %2420 = vmatpush1.bf16.msra.mxu0 %v1825
    %2421 = vmatprep.subr.bf16.mxu0 0
    %2422 = vmatpush1.bf16.msra.mxu0 %v1826
    %2423 = vmatprep.subr.bf16.mxu0 0
    %2424 = vmatpush1.bf16.msra.mxu0 %v1827
    %2425 = vmatprep.subr.bf16.mxu0 0
    %2426 = vmatpush1.bf16.msra.mxu0 %v1828
    %2427 = vmatprep.subr.bf16.mxu0 0
    %2428 = vmatpush1.bf16.msra.mxu0 %v1829
    %2429 = vmatprep.subr.bf16.mxu0 0
    %2430 = vmatpush1.bf16.msra.mxu0 %v1830
    %2431 = vmatprep.mubr.bf16.mxu0 %v608
    %2432 = vmatmul.mubr.bf16.gmra.mrb[0].mxu0 %v606
    %v2433 = vpop.f32.mrb[0].mxu0
    %v2434 = vadd.f32 %v2394, %v2433
    %v2435 = vpop.f32.mrb[0].mxu0
    %v2436 = vpop.f32.mrb[0].mxu0
    %v2437 = vpop.f32.mrb[0].mxu0
    %2438 = vdwg.mxu0
    %2439 = vmatprep.subr.bf16.mxu0 0
    %2440 = vmatpush1.bf16.msra.mxu0 %v1831
    %2441 = vmatprep.subr.bf16.mxu0 0
    %2442 = vmatpush1.bf16.msra.mxu0 %v1832
    %2443 = vmatprep.subr.bf16.mxu0 0
    %2444 = vmatpush1.bf16.msra.mxu0 %v1833
    %2445 = vmatprep.subr.bf16.mxu0 0
    %2446 = vmatpush1.bf16.msra.mxu0 %v1834
    %2447 = vmatprep.subr.bf16.mxu0 0
    %2448 = vmatpush1.bf16.msra.mxu0 %v1835
    %2449 = vmatprep.subr.bf16.mxu0 0
    %2450 = vmatpush1.bf16.msra.mxu0 %v1836
    %2451 = vmatprep.subr.bf16.mxu0 0
    %2452 = vmatpush1.bf16.msra.mxu0 %v1837
    %2453 = vmatprep.subr.bf16.mxu0 0
    %2454 = vmatpush1.bf16.msra.mxu0 %v1838
    %2455 = vmatprep.subr.bf16.mxu0 0
    %2456 = vmatpush1.bf16.msra.mxu0 %v1839
    %2457 = vmatprep.subr.bf16.mxu0 0
    %2458 = vmatpush1.bf16.msra.mxu0 %v1840
    %2459 = vmatprep.subr.bf16.mxu0 0
    %2460 = vmatpush1.bf16.msra.mxu0 %v1841
    %2461 = vmatprep.subr.bf16.mxu0 0
    %2462 = vmatpush1.bf16.msra.mxu0 %v1842
    %2463 = vmatprep.subr.bf16.mxu0 0
    %2464 = vmatpush1.bf16.msra.mxu0 %v1843
    %2465 = vmatprep.subr.bf16.mxu0 0
    %2466 = vmatpush1.bf16.msra.mxu0 %v1844
    %2467 = vmatprep.subr.bf16.mxu0 0
    %2468 = vmatpush1.bf16.msra.mxu0 %v1845
    %2469 = vmatprep.subr.bf16.mxu0 0
    %2470 = vmatpush1.bf16.msra.mxu0 %v1846
    %2471 = vmatprep.mubr.bf16.mxu0 %v624
    %2472 = vmatmul.mubr.bf16.gmra.mrb[0].mxu0 %v616
    %v2473 = vpop.f32.mrb[0].mxu0
    %v2474 = vadd.f32 %v2434, %v2473
    %v2475 = vpop.f32.mrb[0].mxu0
    %v2476 = vpop.f32.mrb[0].mxu0
    %v2477 = vpop.f32.mrb[0].mxu0
    %2478 = vdwg.mxu0
    %2479 = vmatprep.subr.bf16.mxu0 0
    %2480 = vmatpush1.bf16.msra.mxu0 %v1847
    %2481 = vmatprep.subr.bf16.mxu0 0
    %2482 = vmatpush1.bf16.msra.mxu0 %v1848
    %2483 = vmatprep.subr.bf16.mxu0 0
    %2484 = vmatpush1.bf16.msra.mxu0 %v1849
    %2485 = vmatprep.subr.bf16.mxu0 0
    %2486 = vmatpush1.bf16.msra.mxu0 %v1850
    %2487 = vmatprep.subr.bf16.mxu0 0
    %2488 = vmatpush1.bf16.msra.mxu0 %v1851
    %2489 = vmatprep.subr.bf16.mxu0 0
    %2490 = vmatpush1.bf16.msra.mxu0 %v1852
    %2491 = vmatprep.subr.bf16.mxu0 0
    %2492 = vmatpush1.bf16.msra.mxu0 %v1853
    %2493 = vmatprep.subr.bf16.mxu0 0
    %2494 = vmatpush1.bf16.msra.mxu0 %v1854
    %2495 = vmatprep.subr.bf16.mxu0 0
    %2496 = vmatpush1.bf16.msra.mxu0 %v1855
    %2497 = vmatprep.subr.bf16.mxu0 0
    %2498 = vmatpush1.bf16.msra.mxu0 %v1856
    %2499 = vmatprep.subr.bf16.mxu0 0
    %2500 = vmatpush1.bf16.msra.mxu0 %v1857
    %2501 = vmatprep.subr.bf16.mxu0 0
    %2502 = vmatpush1.bf16.msra.mxu0 %v1858
    %2503 = vmatprep.subr.bf16.mxu0 0
    %2504 = vmatpush1.bf16.msra.mxu0 %v1859
    %2505 = vmatprep.subr.bf16.mxu0 0
    %2506 = vmatpush1.bf16.msra.mxu0 %v1860
    %2507 = vmatprep.subr.bf16.mxu0 0
    %2508 = vmatpush1.bf16.msra.mxu0 %v1861
    %2509 = vmatprep.subr.bf16.mxu0 0
    %2510 = vmatpush1.bf16.msra.mxu0 %v1862
    %2511 = vmatprep.mubr.bf16.mxu0 %v625
    %2512 = vmatmul.mubr.bf16.gmra.mrb[0].mxu0 %v623
    %v2513 = vpop.f32.mrb[0].mxu0
    %v2514 = vadd.f32 %v2474, %v2513
    %v2515 = vpop.f32.mrb[0].mxu0
    %v2516 = vpop.f32.mrb[0].mxu0
    %v2517 = vpop.f32.mrb[0].mxu0
    %2518 = vdwg.mxu0
    %2519 = vmatprep.subr.bf16.mxu0 0
    %2520 = vmatpush1.bf16.msra.mxu0 %v1863
    %2521 = vmatprep.subr.bf16.mxu0 0
    %2522 = vmatpush1.bf16.msra.mxu0 %v1864
    %2523 = vmatprep.subr.bf16.mxu0 0
    %2524 = vmatpush1.bf16.msra.mxu0 %v1865
    %2525 = vmatprep.subr.bf16.mxu0 0
    %2526 = vmatpush1.bf16.msra.mxu0 %v1866
    %2527 = vmatprep.subr.bf16.mxu0 0
    %2528 = vmatpush1.bf16.msra.mxu0 %v1867
    %2529 = vmatprep.subr.bf16.mxu0 0
    %2530 = vmatpush1.bf16.msra.mxu0 %v1868
    %2531 = vmatprep.subr.bf16.mxu0 0
    %2532 = vmatpush1.bf16.msra.mxu0 %v1869
    %2533 = vmatprep.subr.bf16.mxu0 0
    %2534 = vmatpush1.bf16.msra.mxu0 %v1870
    %2535 = vmatprep.subr.bf16.mxu0 0
    %2536 = vmatpush1.bf16.msra.mxu0 %v1871
    %2537 = vmatprep.subr.bf16.mxu0 0
    %2538 = vmatpush1.bf16.msra.mxu0 %v1872
    %2539 = vmatprep.subr.bf16.mxu0 0
    %2540 = vmatpush1.bf16.msra.mxu0 %v1873
    %2541 = vmatprep.subr.bf16.mxu0 0
    %2542 = vmatpush1.bf16.msra.mxu0 %v1874
    %2543 = vmatprep.subr.bf16.mxu0 0
    %2544 = vmatpush1.bf16.msra.mxu0 %v1875
    %2545 = vmatprep.subr.bf16.mxu0 0
    %2546 = vmatpush1.bf16.msra.mxu0 %v1876
    %2547 = vmatprep.subr.bf16.mxu0 0
    %2548 = vmatpush1.bf16.msra.mxu0 %v1877
    %2549 = vmatprep.subr.bf16.mxu0 0
    %2550 = vmatpush1.bf16.msra.mxu0 %v1878
    %2551 = vmatprep.mubr.bf16.mxu0 %v641
    %2552 = vmatmul.mubr.bf16.gmra.mrb[0].mxu0 %v633
    %v2553 = vpop.f32.mrb[0].mxu0
    %v2554 = vadd.f32 %v2514, %v2553
    %v2555 = vpop.f32.mrb[0].mxu0
    %v2556 = vpop.f32.mrb[0].mxu0
    %v2557 = vpop.f32.mrb[0].mxu0
    %2558 = vdwg.mxu0
    %2559 = vmatprep.subr.bf16.mxu0 0
    %2560 = vmatpush1.bf16.msra.mxu0 %v1879
    %2561 = vmatprep.subr.bf16.mxu0 0
    %2562 = vmatpush1.bf16.msra.mxu0 %v1880
    %2563 = vmatprep.subr.bf16.mxu0 0
    %2564 = vmatpush1.bf16.msra.mxu0 %v1881
    %2565 = vmatprep.subr.bf16.mxu0 0
    %2566 = vmatpush1.bf16.msra.mxu0 %v1882
    %2567 = vmatprep.subr.bf16.mxu0 0
    %2568 = vmatpush1.bf16.msra.mxu0 %v1883
    %2569 = vmatprep.subr.bf16.mxu0 0
    %2570 = vmatpush1.bf16.msra.mxu0 %v1884
    %2571 = vmatprep.subr.bf16.mxu0 0
    %2572 = vmatpush1.bf16.msra.mxu0 %v1885
    %2573 = vmatprep.subr.bf16.mxu0 0
    %2574 = vmatpush1.bf16.msra.mxu0 %v1886
    %2575 = vmatprep.subr.bf16.mxu0 0
    %2576 = vmatpush1.bf16.msra.mxu0 %v1887
    %2577 = vmatprep.subr.bf16.mxu0 0
    %2578 = vmatpush1.bf16.msra.mxu0 %v1888
    %2579 = vmatprep.subr.bf16.mxu0 0
    %2580 = vmatpush1.bf16.msra.mxu0 %v1889
    %2581 = vmatprep.subr.bf16.mxu0 0
    %2582 = vmatpush1.bf16.msra.mxu0 %v1890
    %2583 = vmatprep.subr.bf16.mxu0 0
    %2584 = vmatpush1.bf16.msra.mxu0 %v1891
    %2585 = vmatprep.subr.bf16.mxu0 0
    %2586 = vmatpush1.bf16.msra.mxu0 %v1892
    %2587 = vmatprep.subr.bf16.mxu0 0
    %2588 = vmatpush1.bf16.msra.mxu0 %v1893
    %2589 = vmatprep.subr.bf16.mxu0 0
    %2590 = vmatpush1.bf16.msra.mxu0 %v1894
    %2591 = vmatprep.mubr.bf16.mxu0 %v642
    %2592 = vmatmul.mubr.bf16.gmra.mrb[0].mxu0 %v640
    %v2593 = vpop.f32.mrb[0].mxu0
    %v2594 = vadd.f32 %v2554, %v2593
    %v2595 = vpop.f32.mrb[0].mxu0
    %v2596 = vpop.f32.mrb[0].mxu0
    %v2597 = vpop.f32.mrb[0].mxu0
    %2598 = vdwg.mxu0
    %2599 = vmatprep.subr.bf16.mxu0 0
    %2600 = vmatpush1.bf16.msra.mxu0 %v1895
    %2601 = vmatprep.subr.bf16.mxu0 0
    %2602 = vmatpush1.bf16.msra.mxu0 %v1896
    %2603 = vmatprep.subr.bf16.mxu0 0
    %2604 = vmatpush1.bf16.msra.mxu0 %v1897
    %2605 = vmatprep.subr.bf16.mxu0 0
    %2606 = vmatpush1.bf16.msra.mxu0 %v1898
    %2607 = vmatprep.subr.bf16.mxu0 0
    %2608 = vmatpush1.bf16.msra.mxu0 %v1899
    %2609 = vmatprep.subr.bf16.mxu0 0
    %2610 = vmatpush1.bf16.msra.mxu0 %v1900
    %2611 = vmatprep.subr.bf16.mxu0 0
    %2612 = vmatpush1.bf16.msra.mxu0 %v1901
    %2613 = vmatprep.subr.bf16.mxu0 0
    %2614 = vmatpush1.bf16.msra.mxu0 %v1902
    %2615 = vmatprep.subr.bf16.mxu0 0
    %2616 = vmatpush1.bf16.msra.mxu0 %v1903
    %2617 = vmatprep.subr.bf16.mxu0 0
    %2618 = vmatpush1.bf16.msra.mxu0 %v1904
    %2619 = vmatprep.subr.bf16.mxu0 0
    %2620 = vmatpush1.bf16.msra.mxu0 %v1905
    %2621 = vmatprep.subr.bf16.mxu0 0
    %2622 = vmatpush1.bf16.msra.mxu0 %v1906
    %2623 = vmatprep.subr.bf16.mxu0 0
    %2624 = vmatpush1.bf16.msra.mxu0 %v1907
    %2625 = vmatprep.subr.bf16.mxu0 0
    %2626 = vmatpush1.bf16.msra.mxu0 %v1908
    %2627 = vmatprep.subr.bf16.mxu0 0
    %2628 = vmatpush1.bf16.msra.mxu0 %v1909
    %2629 = vmatprep.subr.bf16.mxu0 0
    %2630 = vmatpush1.bf16.msra.mxu0 %v1910
    %2631 = vmatprep.mubr.bf16.mxu0 %v658
    %2632 = vmatmul.mubr.bf16.gmra.mrb[0].mxu0 %v650
    %v2633 = vpop.f32.mrb[0].mxu0
    %v2634 = vadd.f32 %v2594, %v2633
    %v2635 = vpop.f32.mrb[0].mxu0
    %v2636 = vpop.f32.mrb[0].mxu0
    %v2637 = vpop.f32.mrb[0].mxu0
    %2638 = vdwg.mxu0
    %2639 = vmatprep.subr.bf16.mxu0 0
    %2640 = vmatpush1.bf16.msra.mxu0 %v1911
    %2641 = vmatprep.subr.bf16.mxu0 0
    %2642 = vmatpush1.bf16.msra.mxu0 %v1912
    %2643 = vmatprep.subr.bf16.mxu0 0
    %2644 = vmatpush1.bf16.msra.mxu0 %v1913
    %2645 = vmatprep.subr.bf16.mxu0 0
    %2646 = vmatpush1.bf16.msra.mxu0 %v1914
    %2647 = vmatprep.subr.bf16.mxu0 0
    %2648 = vmatpush1.bf16.msra.mxu0 %v1915
    %2649 = vmatprep.subr.bf16.mxu0 0
    %2650 = vmatpush1.bf16.msra.mxu0 %v1916
    %2651 = vmatprep.subr.bf16.mxu0 0
    %2652 = vmatpush1.bf16.msra.mxu0 %v1917
    %2653 = vmatprep.subr.bf16.mxu0 0
    %2654 = vmatpush1.bf16.msra.mxu0 %v1918
    %2655 = vmatprep.subr.bf16.mxu0 0
    %2656 = vmatpush1.bf16.msra.mxu0 %v1919
    %2657 = vmatprep.subr.bf16.mxu0 0
    %2658 = vmatpush1.bf16.msra.mxu0 %v1920
    %2659 = vmatprep.subr.bf16.mxu0 0
    %2660 = vmatpush1.bf16.msra.mxu0 %v1921
    %2661 = vmatprep.subr.bf16.mxu0 0
    %2662 = vmatpush1.bf16.msra.mxu0 %v1922
    %2663 = vmatprep.subr.bf16.mxu0 0
    %2664 = vmatpush1.bf16.msra.mxu0 %v1923
    %2665 = vmatprep.subr.bf16.mxu0 0
    %2666 = vmatpush1.bf16.msra.mxu0 %v1924
    %2667 = vmatprep.subr.bf16.mxu0 0
    %2668 = vmatpush1.bf16.msra.mxu0 %v1925
    %2669 = vmatprep.subr.bf16.mxu0 0
    %2670 = vmatpush1.bf16.msra.mxu0 %v1926
    %2671 = vmatprep.mubr.bf16.mxu0 %v659
    %2672 = vmatmul.mubr.bf16.gmra.mrb[0].mxu0 %v657
    %v2673 = vpop.f32.mrb[0].mxu0
    %v2674 = vadd.f32 %v2634, %v2673
    %v2675 = vpop.f32.mrb[0].mxu0
    %v2676 = vpop.f32.mrb[0].mxu0
    %v2677 = vpop.f32.mrb[0].mxu0
    %2678 = vdwg.mxu0
    %2679 = vmatprep.subr.bf16.mxu0 0
    %2680 = vmatpush1.bf16.msra.mxu0 %v1927
    %2681 = vmatprep.subr.bf16.mxu0 0
    %2682 = vmatpush1.bf16.msra.mxu0 %v1928
    %2683 = vmatprep.subr.bf16.mxu0 0
    %2684 = vmatpush1.bf16.msra.mxu0 %v1929
    %2685 = vmatprep.subr.bf16.mxu0 0
    %2686 = vmatpush1.bf16.msra.mxu0 %v1930
    %2687 = vmatprep.subr.bf16.mxu0 0
    %2688 = vmatpush1.bf16.msra.mxu0 %v1931
    %2689 = vmatprep.subr.bf16.mxu0 0
    %2690 = vmatpush1.bf16.msra.mxu0 %v1932
    %2691 = vmatprep.subr.bf16.mxu0 0
    %2692 = vmatpush1.bf16.msra.mxu0 %v1933
    %2693 = vmatprep.subr.bf16.mxu0 0
    %2694 = vmatpush1.bf16.msra.mxu0 %v1934
    %2695 = vmatprep.subr.bf16.mxu0 0
    %2696 = vmatpush1.bf16.msra.mxu0 %v1935
    %2697 = vmatprep.subr.bf16.mxu0 0
    %2698 = vmatpush1.bf16.msra.mxu0 %v1936
    %2699 = vmatprep.subr.bf16.mxu0 0
    %2700 = vmatpush1.bf16.msra.mxu0 %v1937
    %2701 = vmatprep.subr.bf16.mxu0 0
    %2702 = vmatpush1.bf16.msra.mxu0 %v1938
    %2703 = vmatprep.subr.bf16.mxu0 0
    %2704 = vmatpush1.bf16.msra.mxu0 %v1939
    %2705 = vmatprep.subr.bf16.mxu0 0
    %2706 = vmatpush1.bf16.msra.mxu0 %v1940
    %2707 = vmatprep.subr.bf16.mxu0 0
    %2708 = vmatpush1.bf16.msra.mxu0 %v1941
    %2709 = vmatprep.subr.bf16.mxu0 0
    %2710 = vmatpush1.bf16.msra.mxu0 %v1942
    %2711 = vmatprep.mubr.bf16.mxu0 %v675
    %2712 = vmatmul.mubr.bf16.gmra.mrb[0].mxu0 %v667
    %v2713 = vpop.f32.mrb[0].mxu0
    %v2714 = vadd.f32 %v2674, %v2713
    %v2715 = vpop.f32.mrb[0].mxu0
    %v2716 = vpop.f32.mrb[0].mxu0
    %v2717 = vpop.f32.mrb[0].mxu0
    %2718 = vdwg.mxu0
    %2719 = vmatprep.subr.bf16.mxu0 0
    %2720 = vmatpush1.bf16.msra.mxu0 %v1943
    %2721 = vmatprep.subr.bf16.mxu0 0
    %2722 = vmatpush1.bf16.msra.mxu0 %v1944
    %2723 = vmatprep.subr.bf16.mxu0 0
    %2724 = vmatpush1.bf16.msra.mxu0 %v1945
    %2725 = vmatprep.subr.bf16.mxu0 0
    %2726 = vmatpush1.bf16.msra.mxu0 %v1946
    %2727 = vmatprep.subr.bf16.mxu0 0
    %2728 = vmatpush1.bf16.msra.mxu0 %v1947
    %2729 = vmatprep.subr.bf16.mxu0 0
    %2730 = vmatpush1.bf16.msra.mxu0 %v1948
    %2731 = vmatprep.subr.bf16.mxu0 0
    %2732 = vmatpush1.bf16.msra.mxu0 %v1949
    %2733 = vmatprep.subr.bf16.mxu0 0
    %2734 = vmatpush1.bf16.msra.mxu0 %v1950
    %2735 = vmatprep.subr.bf16.mxu0 0
    %2736 = vmatpush1.bf16.msra.mxu0 %v1951
    %2737 = vmatprep.subr.bf16.mxu0 0
    %2738 = vmatpush1.bf16.msra.mxu0 %v1952
    %2739 = vmatprep.subr.bf16.mxu0 0
    %2740 = vmatpush1.bf16.msra.mxu0 %v1953
    %2741 = vmatprep.subr.bf16.mxu0 0
    %2742 = vmatpush1.bf16.msra.mxu0 %v1954
    %2743 = vmatprep.subr.bf16.mxu0 0
    %2744 = vmatpush1.bf16.msra.mxu0 %v1955
    %2745 = vmatprep.subr.bf16.mxu0 0
    %2746 = vmatpush1.bf16.msra.mxu0 %v1956
    %2747 = vmatprep.subr.bf16.mxu0 0
    %2748 = vmatpush1.bf16.msra.mxu0 %v1957
    %2749 = vmatprep.subr.bf16.mxu0 0
    %2750 = vmatpush1.bf16.msra.mxu0 %v1958
    %2751 = vmatprep.mubr.bf16.mxu0 %v676
    %2752 = vmatmul.mubr.bf16.gmra.mrb[0].mxu0 %v674
    %v2753 = vpop.f32.mrb[0].mxu0
    %v2754 = vadd.f32 %v2714, %v2753
    %v2755 = vpop.f32.mrb[0].mxu0
    %v2756 = vpop.f32.mrb[0].mxu0
    %v2757 = vpop.f32.mrb[0].mxu0
    %2758 = vdwg.mxu0
    %2759 = vmatprep.subr.bf16.mxu0 0
    %2760 = vmatpush1.bf16.msra.mxu0 %v1959
    %2761 = vmatprep.subr.bf16.mxu0 0
    %2762 = vmatpush1.bf16.msra.mxu0 %v1960
    %2763 = vmatprep.subr.bf16.mxu0 0
    %2764 = vmatpush1.bf16.msra.mxu0 %v1961
    %2765 = vmatprep.subr.bf16.mxu0 0
    %2766 = vmatpush1.bf16.msra.mxu0 %v1962
    %2767 = vmatprep.subr.bf16.mxu0 0
    %2768 = vmatpush1.bf16.msra.mxu0 %v1963
    %2769 = vmatprep.subr.bf16.mxu0 0
    %2770 = vmatpush1.bf16.msra.mxu0 %v1964
    %2771 = vmatprep.subr.bf16.mxu0 0
    %2772 = vmatpush1.bf16.msra.mxu0 %v1965
    %2773 = vmatprep.subr.bf16.mxu0 0
    %2774 = vmatpush1.bf16.msra.mxu0 %v1966
    %2775 = vmatprep.subr.bf16.mxu0 0
    %2776 = vmatpush1.bf16.msra.mxu0 %v1967
    %2777 = vmatprep.subr.bf16.mxu0 0
    %2778 = vmatpush1.bf16.msra.mxu0 %v1968
    %2779 = vmatprep.subr.bf16.mxu0 0
    %2780 = vmatpush1.bf16.msra.mxu0 %v1969
    %2781 = vmatprep.subr.bf16.mxu0 0
    %2782 = vmatpush1.bf16.msra.mxu0 %v1970
    %2783 = vmatprep.subr.bf16.mxu0 0
    %2784 = vmatpush1.bf16.msra.mxu0 %v1971
    %2785 = vmatprep.subr.bf16.mxu0 0
    %2786 = vmatpush1.bf16.msra.mxu0 %v1972
    %2787 = vmatprep.subr.bf16.mxu0 0
    %2788 = vmatpush1.bf16.msra.mxu0 %v1973
    %2789 = vmatprep.subr.bf16.mxu0 0
    %2790 = vmatpush1.bf16.msra.mxu0 %v1974
    %2791 = vmatprep.mubr.bf16.mxu0 %v692
    %2792 = vmatmul.mubr.bf16.gmra.mrb[0].mxu0 %v684
    %v2793 = vpop.f32.mrb[0].mxu0
    %v2794 = vadd.f32 %v2754, %v2793
    %v2795 = vpop.f32.mrb[0].mxu0
    %v2796 = vpop.f32.mrb[0].mxu0
    %v2797 = vpop.f32.mrb[0].mxu0
    %2798 = vdwg.mxu0
    %2799 = vmatprep.subr.bf16.mxu0 0
    %2800 = vmatpush1.bf16.msra.mxu0 %v1975
    %2801 = vmatprep.subr.bf16.mxu0 0
    %2802 = vmatpush1.bf16.msra.mxu0 %v1976
    %2803 = vmatprep.subr.bf16.mxu0 0
    %2804 = vmatpush1.bf16.msra.mxu0 %v1977
    %2805 = vmatprep.subr.bf16.mxu0 0
    %2806 = vmatpush1.bf16.msra.mxu0 %v1978
    %2807 = vmatprep.subr.bf16.mxu0 0
    %2808 = vmatpush1.bf16.msra.mxu0 %v1979
    %2809 = vmatprep.subr.bf16.mxu0 0
    %2810 = vmatpush1.bf16.msra.mxu0 %v1980
    %2811 = vmatprep.subr.bf16.mxu0 0
    %2812 = vmatpush1.bf16.msra.mxu0 %v1981
    %2813 = vmatprep.subr.bf16.mxu0 0
    %2814 = vmatpush1.bf16.msra.mxu0 %v1982
    %2815 = vmatprep.subr.bf16.mxu0 0
    %2816 = vmatpush1.bf16.msra.mxu0 %v1983
    %2817 = vmatprep.subr.bf16.mxu0 0
    %2818 = vmatpush1.bf16.msra.mxu0 %v1984
    %2819 = vmatprep.subr.bf16.mxu0 0
    %2820 = vmatpush1.bf16.msra.mxu0 %v1985
    %2821 = vmatprep.subr.bf16.mxu0 0
    %2822 = vmatpush1.bf16.msra.mxu0 %v1986
    %2823 = vmatprep.subr.bf16.mxu0 0
    %2824 = vmatpush1.bf16.msra.mxu0 %v1987
    %2825 = vmatprep.subr.bf16.mxu0 0
    %2826 = vmatpush1.bf16.msra.mxu0 %v1988
    %2827 = vmatprep.subr.bf16.mxu0 0
    %2828 = vmatpush1.bf16.msra.mxu0 %v1989
    %2829 = vmatprep.subr.bf16.mxu0 0
    %2830 = vmatpush1.bf16.msra.mxu0 %v1990
    %2831 = vmatprep.mubr.bf16.mxu0 %v693
    %2832 = vmatmul.mubr.bf16.gmra.mrb[0].mxu0 %v691
    %v2833 = vpop.f32.mrb[0].mxu0
    %v2834 = vadd.f32 %v2794, %v2833
    %v2835 = vpop.f32.mrb[0].mxu0
    %v2836 = vpop.f32.mrb[0].mxu0
    %v2837 = vpop.f32.mrb[0].mxu0
    %2838 = vdwg.mxu0
    %2839 = vmatprep.subr.bf16.mxu0 0
    %2840 = vmatpush1.bf16.msra.mxu0 %v1991
    %2841 = vmatprep.subr.bf16.mxu0 0
    %2842 = vmatpush1.bf16.msra.mxu0 %v1992
    %2843 = vmatprep.subr.bf16.mxu0 0
    %2844 = vmatpush1.bf16.msra.mxu0 %v1993
    %2845 = vmatprep.subr.bf16.mxu0 0
    %2846 = vmatpush1.bf16.msra.mxu0 %v1994
    %2847 = vmatprep.subr.bf16.mxu0 0
    %2848 = vmatpush1.bf16.msra.mxu0 %v1995
    %2849 = vmatprep.subr.bf16.mxu0 0
    %2850 = vmatpush1.bf16.msra.mxu0 %v1996
    %2851 = vmatprep.subr.bf16.mxu0 0
    %2852 = vmatpush1.bf16.msra.mxu0 %v1997
    %2853 = vmatprep.subr.bf16.mxu0 0
    %2854 = vmatpush1.bf16.msra.mxu0 %v1998
    %2855 = vmatprep.subr.bf16.mxu0 0
    %2856 = vmatpush1.bf16.msra.mxu0 %v1999
    %2857 = vmatprep.subr.bf16.mxu0 0
    %2858 = vmatpush1.bf16.msra.mxu0 %v2000
    %2859 = vmatprep.subr.bf16.mxu0 0
    %2860 = vmatpush1.bf16.msra.mxu0 %v2001
    %2861 = vmatprep.subr.bf16.mxu0 0
    %2862 = vmatpush1.bf16.msra.mxu0 %v2002
    %2863 = vmatprep.subr.bf16.mxu0 0
    %2864 = vmatpush1.bf16.msra.mxu0 %v2003
    %2865 = vmatprep.subr.bf16.mxu0 0
    %2866 = vmatpush1.bf16.msra.mxu0 %v2004
    %2867 = vmatprep.subr.bf16.mxu0 0
    %2868 = vmatpush1.bf16.msra.mxu0 %v2005
    %2869 = vmatprep.subr.bf16.mxu0 0
    %2870 = vmatpush1.bf16.msra.mxu0 %v2006
    %2871 = vmatprep.mubr.bf16.mxu0 %v709
    %2872 = vmatmul.mubr.bf16.gmra.mrb[0].mxu0 %v701
    %v2873 = vpop.f32.mrb[0].mxu0
    %v2874 = vadd.f32 %v2834, %v2873
    %v2875 = vpop.f32.mrb[0].mxu0
    %v2876 = vpop.f32.mrb[0].mxu0
    %v2877 = vpop.f32.mrb[0].mxu0
    %2878 = vdwg.mxu0
    %2879 = vmatprep.subr.bf16.mxu0 0
    %2880 = vmatpush1.bf16.msra.mxu0 %v2007
    %2881 = vmatprep.subr.bf16.mxu0 0
    %2882 = vmatpush1.bf16.msra.mxu0 %v2008
    %2883 = vmatprep.subr.bf16.mxu0 0
    %2884 = vmatpush1.bf16.msra.mxu0 %v2009
    %2885 = vmatprep.subr.bf16.mxu0 0
    %2886 = vmatpush1.bf16.msra.mxu0 %v2010
    %2887 = vmatprep.subr.bf16.mxu0 0
    %2888 = vmatpush1.bf16.msra.mxu0 %v2011
    %2889 = vmatprep.subr.bf16.mxu0 0
    %2890 = vmatpush1.bf16.msra.mxu0 %v2012
    %2891 = vmatprep.subr.bf16.mxu0 0
    %2892 = vmatpush1.bf16.msra.mxu0 %v2013
    %2893 = vmatprep.subr.bf16.mxu0 0
    %2894 = vmatpush1.bf16.msra.mxu0 %v2014
    %2895 = vmatprep.subr.bf16.mxu0 0
    %2896 = vmatpush1.bf16.msra.mxu0 %v2015
    %2897 = vmatprep.subr.bf16.mxu0 0
    %2898 = vmatpush1.bf16.msra.mxu0 %v2016
    %2899 = vmatprep.subr.bf16.mxu0 0
    %2900 = vmatpush1.bf16.msra.mxu0 %v2017
    %2901 = vmatprep.subr.bf16.mxu0 0
    %2902 = vmatpush1.bf16.msra.mxu0 %v2018
    %2903 = vmatprep.subr.bf16.mxu0 0
    %2904 = vmatpush1.bf16.msra.mxu0 %v2019
    %2905 = vmatprep.subr.bf16.mxu0 0
    %2906 = vmatpush1.bf16.msra.mxu0 %v2020
    %2907 = vmatprep.subr.bf16.mxu0 0
    %2908 = vmatpush1.bf16.msra.mxu0 %v2021
    %2909 = vmatprep.subr.bf16.mxu0 0
    %2910 = vmatpush1.bf16.msra.mxu0 %v2022
    %2911 = vmatprep.mubr.bf16.mxu0 %v710
    %2912 = vmatmul.mubr.bf16.gmra.mrb[0].mxu0 %v708
    %v2913 = vpop.f32.mrb[0].mxu0
    %v2914 = vadd.f32 %v2874, %v2913
    %v2915 = vpop.f32.mrb[0].mxu0
    %v2916 = vpop.f32.mrb[0].mxu0
    %v2917 = vpop.f32.mrb[0].mxu0
    %2918 = vdwg.mxu0
    %v2919 = vadd.f32 %v558, %v2914
    %2920 = vst [vmem:[#allocation2] sm:$0xf] %v2919
    // Predicated region
    $region38: #{co_attention_forward.3} parent=1 // pred_check
      %p2921 = pneg %p41
    $region39: #{co_attention_forward.3} parent=1 // pred_check_branch
      %2923 = sbr.rel (%p2921) target = $region41
    $region40: #{co_attention_forward.3} parent=1 // pred_region
      %v2924 = vld [vmem:[#allocation2] sm:$0xf]
      %v2925 = vld [vmem:[%s2] sm:$0x1]
      %v2927 = vlaneseq
      %v2928 = vshrl.u32 %v2927, 7
      %v2929 = vsub.s32 0, %v2928
      %v2930 = vrot.slane %v2925, %v2929
      %v2932 = vadd.f32 %v2924, %v2930
      %v2933 = vmax.f32 %v2932, 0.0
      %v2934 = vld [vmem:[%s3] sm:$0xf]
      %v2935 = vld [vmem:[%s3 + $0x4] sm:$0xf]
      %v2936 = vld [vmem:[%s3 + $0x8] sm:$0xf]
      %v2937 = vld [vmem:[%s3 + $0xc] sm:$0xf]
      %v2938 = vld [vmem:[%s3 + $0x10] sm:$0xf]
      %v2939 = vld [vmem:[%s3 + $0x14] sm:$0xf]
      %v2940 = vld [vmem:[%s3 + $0x18] sm:$0xf]
      %v2941 = vld [vmem:[%s3 + $0x1c] sm:$0xf]
      %v2942 = vld [vmem:[%s3 + $0x20] sm:$0xf]
      %v2943 = vld [vmem:[%s3 + $0x24] sm:$0xf]
      %v2944 = vld [vmem:[%s3 + $0x28] sm:$0xf]
      %v2945 = vld [vmem:[%s3 + $0x2c] sm:$0xf]
      %v2946 = vld [vmem:[%s3 + $0x30] sm:$0xf]
      %v2947 = vld [vmem:[%s3 + $0x34] sm:$0xf]
      %v2948 = vld [vmem:[%s3 + $0x38] sm:$0xf]
      %v2949 = vld [vmem:[%s3 + $0x3c] sm:$0xf]
      %v2950 = vpack.c.bf16 %v2933, %v2933
      %v2951 = vld [vmem:[%s4] sm:$0x1]
      %v2953 = vlaneseq
      %v2954 = vshrl.u32 %v2953, 7
      %v2955 = vsub.s32 0, %v2954
      %v2956 = vrot.slane %v2951, %v2955
      %v2974 = vunpack.c.l.b16 %v2934
      %v2975 = vunpack.c.l.b16 %v2935
      %v2976 = vunpack.c.l.b16 %v2936
      %v2977 = vunpack.c.l.b16 %v2937
      %v2978 = vunpack.c.l.b16 %v2938
      %v2979 = vunpack.c.l.b16 %v2939
      %v2980 = vunpack.c.l.b16 %v2940
      %v2981 = vunpack.c.l.b16 %v2941
      %v2982 = vunpack.c.l.b16 %v2942
      %v2983 = vunpack.c.l.b16 %v2943
      %v2984 = vunpack.c.l.b16 %v2944
      %v2985 = vunpack.c.l.b16 %v2945
      %v2986 = vunpack.c.l.b16 %v2946
      %v2987 = vunpack.c.l.b16 %v2947
      %v2988 = vunpack.c.l.b16 %v2948
      %v2989 = vunpack.c.l.b16 %v2949
      %v2990 = vpack.c.b16 %v2975, %v2974
      %v2991 = vpack.c.b16 %v2977, %v2976
      %v2992 = vpack.c.b16 %v2979, %v2978
      %v2993 = vpack.c.b16 %v2981, %v2980
      %v2994 = vpack.c.b16 %v2983, %v2982
      %v2995 = vpack.c.b16 %v2985, %v2984
      %v2996 = vpack.c.b16 %v2987, %v2986
      %v2997 = vpack.c.b16 %v2989, %v2988
      %3006 = vmatprep.subr.bf16.mxu0 0
      %3007 = vmatpush1.bf16.msra.mxu0 %v2990
      %3008 = vmatprep.subr.bf16.mxu0 0
      %3009 = vmatpush1.bf16.msra.mxu0 %v2991
      %3010 = vmatprep.subr.bf16.mxu0 0
      %3011 = vmatpush1.bf16.msra.mxu0 %v2992
      %3012 = vmatprep.subr.bf16.mxu0 0
      %3013 = vmatpush1.bf16.msra.mxu0 %v2993
      %3014 = vmatprep.subr.bf16.mxu0 0
      %3015 = vmatpush1.bf16.msra.mxu0 %v2994
      %3016 = vmatprep.subr.bf16.mxu0 0
      %3017 = vmatpush1.bf16.msra.mxu0 %v2995
      %3018 = vmatprep.subr.bf16.mxu0 0
      %3019 = vmatpush1.bf16.msra.mxu0 %v2996
      %3020 = vmatprep.subr.bf16.mxu0 0
      %3021 = vmatpush1.bf16.msra.mxu0 %v2997
      %3022 = vmatprep.subr.bf16.mxu0 0
      %3023 = vmatpush1.bf16.msra.mxu0 0
      %3024 = vmatprep.subr.bf16.mxu0 0
      %3025 = vmatpush1.bf16.msra.mxu0 0
      %3026 = vmatprep.subr.bf16.mxu0 0
      %3027 = vmatpush1.bf16.msra.mxu0 0
      %3028 = vmatprep.subr.bf16.mxu0 0
      %3029 = vmatpush1.bf16.msra.mxu0 0
      %3030 = vmatprep.subr.bf16.mxu0 0
      %3031 = vmatpush1.bf16.msra.mxu0 0
      %3032 = vmatprep.subr.bf16.mxu0 0
      %3033 = vmatpush1.bf16.msra.mxu0 0
      %3034 = vmatprep.subr.bf16.mxu0 0
      %3035 = vmatpush1.bf16.msra.mxu0 0
      %3036 = vmatprep.subr.bf16.mxu0 0
      %3037 = vmatpush1.bf16.msra.mxu0 0
      %3038 = vmatprep.mubr.bf16.mxu0 0
      %3039 = vmatmul.mubr.bf16.gmra.mrb[0].mxu0 %v2950
      %v3040 = vpop.f32.mrb[0].mxu0
      %v3041 = vadd.f32 %v2956, %v3040
      %v3042 = vpop.f32.mrb[0].mxu0
      %v3043 = vpop.f32.mrb[0].mxu0
      %v3044 = vpop.f32.mrb[0].mxu0
      %3045 = vdwg.mxu0
      %v3046 = vmax.f32 %v3041, 0.0
      %v3047 = vld [vmem:[%s5] sm:$0xf]
      %v3048 = vld [vmem:[%s5 + $0x4] sm:$0xf]
      %v3049 = vld [vmem:[%s5 + $0x8] sm:$0xf]
      %v3050 = vld [vmem:[%s5 + $0xc] sm:$0xf]
      %v3051 = vld [vmem:[%s5 + $0x10] sm:$0xf]
      %v3052 = vld [vmem:[%s5 + $0x14] sm:$0xf]
      %v3053 = vld [vmem:[%s5 + $0x18] sm:$0xf]
      %v3054 = vld [vmem:[%s5 + $0x1c] sm:$0xf]
      %v3055 = vld [vmem:[%s5 + $0x20] sm:$0xf]
      %v3056 = vld [vmem:[%s5 + $0x24] sm:$0xf]
      %v3057 = vld [vmem:[%s5 + $0x28] sm:$0xf]
      %v3058 = vld [vmem:[%s5 + $0x2c] sm:$0xf]
      %v3059 = vld [vmem:[%s5 + $0x30] sm:$0xf]
      %v3060 = vld [vmem:[%s5 + $0x34] sm:$0xf]
      %v3061 = vld [vmem:[%s5 + $0x38] sm:$0xf]
      %v3062 = vld [vmem:[%s5 + $0x3c] sm:$0xf]
      %v3063 = vpack.c.bf16 %v3046, %v3046
      %v3064 = vld [vmem:[%s6] sm:$0x1]
      %v3066 = vlaneseq
      %v3067 = vshrl.u32 %v3066, 7
      %v3068 = vsub.s32 0, %v3067
      %v3069 = vrot.slane %v3064, %v3068
      %v3087 = vunpack.c.l.b16 %v3047
      %v3088 = vunpack.c.l.b16 %v3048
      %v3089 = vunpack.c.l.b16 %v3049
      %v3090 = vunpack.c.l.b16 %v3050
      %v3091 = vunpack.c.l.b16 %v3051
      %v3092 = vunpack.c.l.b16 %v3052
      %v3093 = vunpack.c.l.b16 %v3053
      %v3094 = vunpack.c.l.b16 %v3054
      %v3095 = vunpack.c.l.b16 %v3055
      %v3096 = vunpack.c.l.b16 %v3056
      %v3097 = vunpack.c.l.b16 %v3057
      %v3098 = vunpack.c.l.b16 %v3058
      %v3099 = vunpack.c.l.b16 %v3059
      %v3100 = vunpack.c.l.b16 %v3060
      %v3101 = vunpack.c.l.b16 %v3061
      %v3102 = vunpack.c.l.b16 %v3062
      %v3103 = vpack.c.b16 %v3088, %v3087
      %v3104 = vpack.c.b16 %v3090, %v3089
      %v3105 = vpack.c.b16 %v3092, %v3091
      %v3106 = vpack.c.b16 %v3094, %v3093
      %v3107 = vpack.c.b16 %v3096, %v3095
      %v3108 = vpack.c.b16 %v3098, %v3097
      %v3109 = vpack.c.b16 %v3100, %v3099
      %v3110 = vpack.c.b16 %v3102, %v3101
      %3119 = vmatprep.subr.bf16.mxu0 0
      %3120 = vmatpush1.bf16.msra.mxu0 %v3103
      %3121 = vmatprep.subr.bf16.mxu0 0
      %3122 = vmatpush1.bf16.msra.mxu0 %v3104
      %3123 = vmatprep.subr.bf16.mxu0 0
      %3124 = vmatpush1.bf16.msra.mxu0 %v3105
      %3125 = vmatprep.subr.bf16.mxu0 0
      %3126 = vmatpush1.bf16.msra.mxu0 %v3106
      %3127 = vmatprep.subr.bf16.mxu0 0
      %3128 = vmatpush1.bf16.msra.mxu0 %v3107
      %3129 = vmatprep.subr.bf16.mxu0 0
      %3130 = vmatpush1.bf16.msra.mxu0 %v3108
      %3131 = vmatprep.subr.bf16.mxu0 0
      %3132 = vmatpush1.bf16.msra.mxu0 %v3109
      %3133 = vmatprep.subr.bf16.mxu0 0
      %3134 = vmatpush1.bf16.msra.mxu0 %v3110
      %3135 = vmatprep.subr.bf16.mxu0 0
      %3136 = vmatpush1.bf16.msra.mxu0 0
      %3137 = vmatprep.subr.bf16.mxu0 0
      %3138 = vmatpush1.bf16.msra.mxu0 0
      %3139 = vmatprep.subr.bf16.mxu0 0
      %3140 = vmatpush1.bf16.msra.mxu0 0
      %3141 = vmatprep.subr.bf16.mxu0 0
      %3142 = vmatpush1.bf16.msra.mxu0 0
      %3143 = vmatprep.subr.bf16.mxu0 0
      %3144 = vmatpush1.bf16.msra.mxu0 0
      %3145 = vmatprep.subr.bf16.mxu0 0
      %3146 = vmatpush1.bf16.msra.mxu0 0
      %3147 = vmatprep.subr.bf16.mxu0 0
      %3148 = vmatpush1.bf16.msra.mxu0 0
      %3149 = vmatprep.subr.bf16.mxu0 0
      %3150 = vmatpush1.bf16.msra.mxu0 0
      %3151 = vmatprep.mubr.bf16.mxu0 0
      %3152 = vmatmul.mubr.bf16.gmra.mrb[0].mxu0 %v3063
      %v3153 = vpop.f32.mrb[0].mxu0
      %v3154 = vadd.f32 %v3069, %v3153
      %v3155 = vpop.f32.mrb[0].mxu0
      %v3156 = vpop.f32.mrb[0].mxu0
      %v3157 = vpop.f32.mrb[0].mxu0
      %3158 = vdwg.mxu0
      %3159 = vst [vmem:[%s7] sm:$0xf] %v3154
    $region41: #{co_attention_forward.3} parent=1 // pred_fallthru
      _
    // Predicated region
    $region42: #{co_attention_forward.3} parent=1 // pred_check
      _
    $region43: #{co_attention_forward.3} parent=1 // pred_check_branch
      %3161 = sbr.rel (0) target = $region45
    $region44: #{co_attention_forward.3} parent=1 // pred_region
      _
    $region45: #{co_attention_forward.3} parent=1 // pred_fallthru
      _
    // Predicated region
    $region46: #{co_attention_forward.3} parent=1 // pred_check
      _
    $region47: #{co_attention_forward.3} parent=1 // pred_check_branch
      %3163 = sbr.rel (0) target = $region49
    $region48: #{co_attention_forward.3} parent=1 // pred_region
      _
    $region49: #{co_attention_forward.3} parent=1 // pred_fallthru
      _
    %3164 = vsyncpa [#allocation4], 1

</llo_original>
